<compile_context>
chip_gen: v7x
topology: tpu7x:2x2x1
jax: 0.10.0
libtpu: 0.0.40
codegen_flags: <defaults>
</compile_context>

<pallas_src>
import jax
import jax.numpy as jnp
import numpy as np
from jax.experimental import pallas as pl
from jax.experimental.pallas import tpu as pltpu

EPS = 1e-5          # torch.nn.BatchNorm2d default eps
NEG_SLOPE = 0.01    # torch.nn.functional.leaky_relu default negative_slope
HIDDEN = 100        # hidden_layer_dim in the reference module


# ------------------------------ Pallas kernel -------------------------------

def _conv_bn_lrelu(x_b16, L_ref, M_ref, Kc_ref, Kb_ref, g_ref, beta_ref):
    """One stride-2 4x4 conv + training-mode BatchNorm + LeakyReLU.

    x_b16 : (H*B, W*Cin) bf16 value, layout [h*B + b, w*Cin + c].
    Returns (OH*B, OW*Cout) bf16 value in the same layout convention.
    """
    ohb = L_ref.shape[1]                    # OH * B
    owc = M_ref.shape[2]                    # OW * Cout
    cout = g_ref.shape[1]
    ow = owc // cout

    acc = jnp.zeros((ohb, owc), jnp.float32)
    for i in range(4):                      # kernel rows (kh)
        rows = jnp.dot(L_ref[i], x_b16, preferred_element_type=jnp.float32)
        acc = acc + jnp.dot(rows.astype(jnp.bfloat16), M_ref[i],
                            preferred_element_type=jnp.float32)

    # BatchNorm2d (train mode): per-channel stats over (B, OH, OW) == over all
    # rows and all `ow` lane-blocks.  One-pass mean / E[x^2].
    n = float(ohb * ow)                     # B * OH * OW samples per channel
    s1 = jnp.sum(acc, axis=0, keepdims=True)            # (1, OW*Cout)
    s2 = jnp.sum(acc * acc, axis=0, keepdims=True)
    c1 = jnp.dot(s1, Kc_ref[...], preferred_element_type=jnp.float32)  # (1, Cout)
    c2 = jnp.dot(s2, Kc_ref[...], preferred_element_type=jnp.float32)
    mean = c1 / n
    var = jnp.maximum(c2 / n - mean * mean, 0.0)         # biased variance
    scale = g_ref[...] * jax.lax.rsqrt(var + EPS)        # (1, Cout)
    shift = beta_ref[...] - mean * scale
    # Broadcast per-channel scale/shift back to the (w, c) lane layout via the
    # 0/1 matrix Kb = Kc.T (exact; avoids lane-splitting reshapes in-kernel).
    scale_f = jnp.dot(scale, Kb_ref[...], preferred_element_type=jnp.float32)
    shift_f = jnp.dot(shift, Kb_ref[...], preferred_element_type=jnp.float32)

    y = acc * scale_f + shift_f
    y = jnp.where(y >= 0, y, NEG_SLOPE * y)              # LeakyReLU(0.01)
    return y.astype(jnp.bfloat16)


def _fused_kernel(
    x_ref,
    l1_ref, m1_ref, kc1_ref, kb1_ref, g1_ref, be1_ref,
    l2_ref, m2_ref, kc2_ref, kb2_ref, g2_ref, be2_ref,
    l3_ref, m3_ref, kc3_ref, kb3_ref, g3_ref, be3_ref,
    w1_ref, b1_ref,
    wpi_ref, bpi_ref, wsg_ref, bsg_ref, wmu_ref, bmu_ref,
    pi_ref, sigma_ref, mu_ref,
):
    x = x_ref[...]                                       # (H*B, W*3) bf16
    y1 = _conv_bn_lrelu(x, l1_ref, m1_ref, kc1_ref, kb1_ref, g1_ref, be1_ref)
    y2 = _conv_bn_lrelu(y1, l2_ref, m2_ref, kc2_ref, kb2_ref, g2_ref, be2_ref)
    y3 = _conv_bn_lrelu(y2, l3_ref, m3_ref, kc3_ref, kb3_ref, g3_ref, be3_ref)

    # ff = ReLU(Linear(Dropout(flatten(conv3_out)))).  The torch.flatten
    # (C,H,W) permutation is folded into w1_ref at init, so we only contract
    # the per-output-row slabs of y3 (unit-stride static slices).
    # TODO(synk): stochastic nn.Dropout() has no deterministic Pallas
    # equivalent; it is treated as identity (eval-mode behaviour).
    oh3 = w1_ref.shape[0]
    batch = y3.shape[0] // oh3
    hdim = w1_ref.shape[2]
    ff = jnp.zeros((batch, hdim), jnp.float32)
    for oh in range(oh3):
        ff = ff + jnp.dot(y3[oh * batch:(oh + 1) * batch, :], w1_ref[oh],
                          preferred_element_type=jnp.float32)
    ff = jnp.maximum(ff + b1_ref[...], 0.0)              # ReLU
    h = ff.astype(jnp.bfloat16)

    # MDN heads: pi = softmax(h @ Wpi), sigma = exp(h @ Wsg), mu = h @ Wmu.
    logits = jnp.dot(h, wpi_ref[...], preferred_element_type=jnp.float32) + bpi_ref[...]
    logits = logits - jnp.max(logits, axis=-1, keepdims=True)
    e = jnp.exp(logits)
    pi_ref[...] = e / jnp.sum(e, axis=-1, keepdims=True)

    sigma_ref[...] = jnp.exp(
        jnp.dot(h, wsg_ref[...], preferred_element_type=jnp.float32) + bsg_ref[...])
    mu_ref[...] = (jnp.dot(h, wmu_ref[...], preferred_element_type=jnp.float32)
                   + bmu_ref[...])


_VMEM = pl.BlockSpec(memory_space=pltpu.MemorySpace.VMEM)


# ------------------------------ wrapper (JAX) --------------------------------

def output_size(in_height, in_width, kernel_size, stride=1, padding=0):
    out_height = int((in_height - kernel_size + padding * 2) / stride) + 1
    out_width = int((in_width - kernel_size + padding * 2) / stride) + 1
    return (out_height, out_width)


def _param_list(params):
    order = []
    for name in ("conv1", "conv2", "conv3"):
        p = params[name]
        order += [p["L"], p["M"], p["Kc"], p["Kb"], p["gamma"], p["beta"]]
    order += [params["ff"]["W"], params["ff"]["b"]]
    for name in ("pi", "sigma", "mu"):
        p = params["mdn"][name]
        order += [p["W"], p["b"]]
    return order


def forward(params, img_ins):
    """img_ins: (B, 3, H, W) float32, NCHW (PyTorch convention)."""
    B, Cin, H, W = img_ins.shape
    mix = params["mdn"]["pi"]["W"].shape[1]
    joint = params["mdn"]["mu"]["W"].shape[1] // mix

    # Single cheap XLA relayout of the input only: NCHW -> [h*B+b, w*C+c].
    x2d = jnp.transpose(img_ins, (2, 0, 3, 1)).reshape(H * B, W * Cin)
    x2d = x2d.astype(jnp.bfloat16)

    args = [x2d] + _param_list(params)
    out_shapes = (
        jax.ShapeDtypeStruct((B, mix), jnp.float32),
        jax.ShapeDtypeStruct((B, mix * joint), jnp.float32),
        jax.ShapeDtypeStruct((B, mix * joint), jnp.float32),
    )
    pi, sigma2d, mu2d = pl.pallas_call(
        _fused_kernel,
        out_shape=out_shapes,
        in_specs=[_VMEM] * len(args),
        out_specs=(_VMEM, _VMEM, _VMEM),
    )(*args)
    return pi, sigma2d.reshape(B, mix, joint), mu2d.reshape(B, mix, joint)


# ------------------------------ parameter init -------------------------------

def _conv_layer_params(key, batch, h, w, cin, cout, k=4, stride=2):
    oh, ow = output_size(h, w, k, stride)
    wgt = np.asarray(0.05 * jax.random.normal(key, (cout, cin, k, k), jnp.float32))

    # M[i]: (W*Cin, OW*Cout) combined stride-2 column-tap selection + weights.
    M = np.zeros((k, w * cin, ow * cout), np.float32)
    for i in range(k):
        for o in range(ow):
            for j in range(k):
                col = stride * o + j
                if col < w:
                    M[i, col * cin:(col + 1) * cin, o * cout:(o + 1) * cout] = \
                        wgt[:, :, i, j].T
    # L[i]: (OH*B, H*B) 0/1 row selection (input row h = stride*oh + i, same batch).
    L = np.zeros((k, oh * batch, h * batch), np.float32)
    for i in range(k):
        for o in range(oh):
            row = stride * o + i
            if row < h:
                for b in range(batch):
                    L[i, o * batch + b, row * batch + b] = 1.0
    # Kc: (OW*Cout, Cout) per-channel lane-block reduction; Kb = Kc.T broadcast.
    Kc = np.tile(np.eye(cout, dtype=np.float32), (ow, 1))
    layer = dict(
        L=jnp.asarray(L, jnp.bfloat16),
        M=jnp.asarray(M, jnp.bfloat16),
        Kc=jnp.asarray(Kc, jnp.float32),
        Kb=jnp.asarray(Kc.T, jnp.float32),
        gamma=jnp.ones((1, cout), jnp.float32),   # BatchNorm affine defaults
        beta=jnp.zeros((1, cout), jnp.float32),
    )
    return layer, (oh, ow)


def init_params(key, batch, image_h, image_w, joint_dim, mix_num):
    keys = jax.random.split(key, 8)

    conv1, (h1, w1) = _conv_layer_params(keys[0], batch, image_h, image_w, 3, 32)
    conv2, (h2, w2) = _conv_layer_params(keys[1], batch, h1, w1, 32, 32)
    conv3, (h3, w3) = _conv_layer_params(keys[2], batch, h2, w2, 32, 32)

    lin_in = h3 * w3 * 32
    # Linear(lin_in, HIDDEN): fold the torch.flatten (C,H,W) ordering into the
    # weight at init:  W1s[oh, ow*C + c, u] = W1[u, c*(H3*W3) + oh*W3 + ow].
    w1 = np.asarray(0.05 * jax.random.normal(keys[3], (HIDDEN, lin_in), jnp.float32))
    b1 = np.asarray(0.05 * jax.random.normal(keys[4], (HIDDEN,), jnp.float32))
    w1s = w1.reshape(HIDDEN, 32, h3, w3).transpose(2, 3, 1, 0).reshape(h3, w3 * 32, HIDDEN)

    def linear(k, fin, fout):
        kk = jax.random.split(k, 2)
        wt = np.asarray(0.05 * jax.random.normal(kk[0], (fout, fin), jnp.float32))
        bs = np.asarray(0.05 * jax.random.normal(kk[1], (fout,), jnp.float32))
        return dict(W=jnp.asarray(wt.T, jnp.bfloat16),
                    b=jnp.asarray(bs.reshape(1, fout), jnp.float32))

    return {
        "conv1": conv1, "conv2": conv2, "conv3": conv3,
        "ff": dict(W=jnp.asarray(w1s, jnp.bfloat16),
                   b=jnp.asarray(b1.reshape(1, HIDDEN), jnp.float32)),
        # TODO(synk): the MDN submodule is not defined in the reference source;
        # this implements the standard Bishop-style MDN head
        # (pi = softmax(Linear), sigma = exp(Linear), mu = Linear).
        "mdn": {
            "pi": linear(keys[5], HIDDEN, mix_num),
            "sigma": linear(keys[6], HIDDEN, mix_num * joint_dim),
            "mu": linear(keys[7], HIDDEN, mix_num * joint_dim),
        },
    }


# ------------------------------------ main -----------------------------------

if __name__ == "__main__":
    key = jax.random.PRNGKey(0)
    k_img, k_param = jax.random.split(key, 2)

    B, H, W = 2, 32, 32            # 32x32 -> 15x15 -> 6x6 -> 2x2 spatial
    JOINT_DIM, MIX_NUM = 7, 5

    img_ins = jax.random.normal(k_img, (B, 3, H, W), jnp.float32)
    params = init_params(k_param, B, H, W, JOINT_DIM, MIX_NUM)

    fwd = jax.jit(forward)
    pi, std, mu = fwd(params, img_ins)
    jax.block_until_ready((pi, std, mu))

    assert pi.shape == (B, MIX_NUM), pi.shape
    assert std.shape == (B, MIX_NUM, JOINT_DIM), std.shape
    assert mu.shape == (B, MIX_NUM, JOINT_DIM), mu.shape
    assert bool(jnp.all(jnp.isfinite(pi)))
    assert bool(jnp.all(jnp.isfinite(std)))
    assert bool(jnp.all(jnp.isfinite(mu)))
    assert bool(jnp.allclose(jnp.sum(pi, axis=-1), 1.0, atol=1e-3))
    print("KERNEL_OK")
</pallas_src>

<mosaic_0001>
module attributes {stable_mosaic.version = 11 : i64} {
  func.func @_fused_kernel(%arg0: memref<64x96xbf16, #tpu.memory_space<vmem>>, %arg1: memref<4x30x64xbf16, #tpu.memory_space<vmem>>, %arg2: memref<4x96x480xbf16, #tpu.memory_space<vmem>>, %arg3: memref<480x32xf32, #tpu.memory_space<vmem>>, %arg4: memref<32x480xf32, #tpu.memory_space<vmem>>, %arg5: memref<1x32xf32, #tpu.memory_space<vmem>>, %arg6: memref<1x32xf32, #tpu.memory_space<vmem>>, %arg7: memref<4x12x30xbf16, #tpu.memory_space<vmem>>, %arg8: memref<4x480x192xbf16, #tpu.memory_space<vmem>>, %arg9: memref<192x32xf32, #tpu.memory_space<vmem>>, %arg10: memref<32x192xf32, #tpu.memory_space<vmem>>, %arg11: memref<1x32xf32, #tpu.memory_space<vmem>>, %arg12: memref<1x32xf32, #tpu.memory_space<vmem>>, %arg13: memref<4x4x12xbf16, #tpu.memory_space<vmem>>, %arg14: memref<4x192x64xbf16, #tpu.memory_space<vmem>>, %arg15: memref<64x32xf32, #tpu.memory_space<vmem>>, %arg16: memref<32x64xf32, #tpu.memory_space<vmem>>, %arg17: memref<1x32xf32, #tpu.memory_space<vmem>>, %arg18: memref<1x32xf32, #tpu.memory_space<vmem>>, %arg19: memref<2x64x100xbf16, #tpu.memory_space<vmem>>, %arg20: memref<1x100xf32, #tpu.memory_space<vmem>>, %arg21: memref<100x5xbf16, #tpu.memory_space<vmem>>, %arg22: memref<1x5xf32, #tpu.memory_space<vmem>>, %arg23: memref<100x35xbf16, #tpu.memory_space<vmem>>, %arg24: memref<1x35xf32, #tpu.memory_space<vmem>>, %arg25: memref<100x35xbf16, #tpu.memory_space<vmem>>, %arg26: memref<1x35xf32, #tpu.memory_space<vmem>>, %arg27: memref<2x5xf32, #tpu.memory_space<vmem>>, %arg28: memref<2x35xf32, #tpu.memory_space<vmem>>, %arg29: memref<2x35xf32, #tpu.memory_space<vmem>>) attributes {dimension_semantics = [], scalar_prefetch = 0 : i64, scratch_operands = 0 : i64, tpu.core_type = #tpu.core_type<tc>} {
    %c0 = arith.constant 0 : index
    %c0_0 = arith.constant 0 : index
    %0 = vector.load %arg0[%c0, %c0_0] : memref<64x96xbf16, #tpu.memory_space<vmem>>, vector<64x96xbf16>
    %cst = arith.constant 0.000000e+00 : f32
    %1 = vector.broadcast %cst : f32 to vector<30x480xf32>
    %c0_1 = arith.constant 0 : index
    %c0_2 = arith.constant 0 : index
    %c0_3 = arith.constant 0 : index
    %2 = vector.load %arg1[%c0_1, %c0_2, %c0_3] : memref<4x30x64xbf16, #tpu.memory_space<vmem>>, vector<1x30x64xbf16>
    %3 = vector.shape_cast %2 : vector<1x30x64xbf16> to vector<30x64xbf16>
    %cst_4 = arith.constant dense<0.000000e+00> : vector<30x96xf32>
    %4 = tpu.matmul %3, %0, %cst_4 {dimension_numbers = #tpu.dot_dimension_numbers<[1], [0], [0], [1], [0, 0, 1, 1], [], []>} : vector<30x64xbf16>, vector<64x96xbf16>, vector<30x96xf32> -> vector<30x96xf32>
    %5 = arith.truncf %4 : vector<30x96xf32> to vector<30x96xbf16>
    %c0_5 = arith.constant 0 : index
    %c0_6 = arith.constant 0 : index
    %c0_7 = arith.constant 0 : index
    %6 = vector.load %arg2[%c0_5, %c0_6, %c0_7] : memref<4x96x480xbf16, #tpu.memory_space<vmem>>, vector<1x96x480xbf16>
    %7 = vector.shape_cast %6 : vector<1x96x480xbf16> to vector<96x480xbf16>
    %cst_8 = arith.constant dense<0.000000e+00> : vector<30x480xf32>
    %8 = tpu.matmul %5, %7, %cst_8 {dimension_numbers = #tpu.dot_dimension_numbers<[1], [0], [0], [1], [0, 0, 1, 1], [], []>} : vector<30x96xbf16>, vector<96x480xbf16>, vector<30x480xf32> -> vector<30x480xf32>
    %9 = arith.addf %1, %8 : vector<30x480xf32>
    %c1 = arith.constant 1 : index
    %c0_9 = arith.constant 0 : index
    %c0_10 = arith.constant 0 : index
    %10 = vector.load %arg1[%c1, %c0_9, %c0_10] : memref<4x30x64xbf16, #tpu.memory_space<vmem>>, vector<1x30x64xbf16>
    %11 = vector.shape_cast %10 : vector<1x30x64xbf16> to vector<30x64xbf16>
    %cst_11 = arith.constant dense<0.000000e+00> : vector<30x96xf32>
    %12 = tpu.matmul %11, %0, %cst_11 {dimension_numbers = #tpu.dot_dimension_numbers<[1], [0], [0], [1], [0, 0, 1, 1], [], []>} : vector<30x64xbf16>, vector<64x96xbf16>, vector<30x96xf32> -> vector<30x96xf32>
    %13 = arith.truncf %12 : vector<30x96xf32> to vector<30x96xbf16>
    %c1_12 = arith.constant 1 : index
    %c0_13 = arith.constant 0 : index
    %c0_14 = arith.constant 0 : index
    %14 = vector.load %arg2[%c1_12, %c0_13, %c0_14] : memref<4x96x480xbf16, #tpu.memory_space<vmem>>, vector<1x96x480xbf16>
    %15 = vector.shape_cast %14 : vector<1x96x480xbf16> to vector<96x480xbf16>
    %cst_15 = arith.constant dense<0.000000e+00> : vector<30x480xf32>
    %16 = tpu.matmul %13, %15, %cst_15 {dimension_numbers = #tpu.dot_dimension_numbers<[1], [0], [0], [1], [0, 0, 1, 1], [], []>} : vector<30x96xbf16>, vector<96x480xbf16>, vector<30x480xf32> -> vector<30x480xf32>
    %17 = arith.addf %9, %16 : vector<30x480xf32>
    %c2 = arith.constant 2 : index
    %c0_16 = arith.constant 0 : index
    %c0_17 = arith.constant 0 : index
    %18 = vector.load %arg1[%c2, %c0_16, %c0_17] : memref<4x30x64xbf16, #tpu.memory_space<vmem>>, vector<1x30x64xbf16>
    %19 = vector.shape_cast %18 : vector<1x30x64xbf16> to vector<30x64xbf16>
    %cst_18 = arith.constant dense<0.000000e+00> : vector<30x96xf32>
    %20 = tpu.matmul %19, %0, %cst_18 {dimension_numbers = #tpu.dot_dimension_numbers<[1], [0], [0], [1], [0, 0, 1, 1], [], []>} : vector<30x64xbf16>, vector<64x96xbf16>, vector<30x96xf32> -> vector<30x96xf32>
    %21 = arith.truncf %20 : vector<30x96xf32> to vector<30x96xbf16>
    %c2_19 = arith.constant 2 : index
    %c0_20 = arith.constant 0 : index
    %c0_21 = arith.constant 0 : index
    %22 = vector.load %arg2[%c2_19, %c0_20, %c0_21] : memref<4x96x480xbf16, #tpu.memory_space<vmem>>, vector<1x96x480xbf16>
    %23 = vector.shape_cast %22 : vector<1x96x480xbf16> to vector<96x480xbf16>
    %cst_22 = arith.constant dense<0.000000e+00> : vector<30x480xf32>
    %24 = tpu.matmul %21, %23, %cst_22 {dimension_numbers = #tpu.dot_dimension_numbers<[1], [0], [0], [1], [0, 0, 1, 1], [], []>} : vector<30x96xbf16>, vector<96x480xbf16>, vector<30x480xf32> -> vector<30x480xf32>
    %25 = arith.addf %17, %24 : vector<30x480xf32>
    %c3 = arith.constant 3 : index
    %c0_23 = arith.constant 0 : index
    %c0_24 = arith.constant 0 : index
    %26 = vector.load %arg1[%c3, %c0_23, %c0_24] : memref<4x30x64xbf16, #tpu.memory_space<vmem>>, vector<1x30x64xbf16>
    %27 = vector.shape_cast %26 : vector<1x30x64xbf16> to vector<30x64xbf16>
    %cst_25 = arith.constant dense<0.000000e+00> : vector<30x96xf32>
    %28 = tpu.matmul %27, %0, %cst_25 {dimension_numbers = #tpu.dot_dimension_numbers<[1], [0], [0], [1], [0, 0, 1, 1], [], []>} : vector<30x64xbf16>, vector<64x96xbf16>, vector<30x96xf32> -> vector<30x96xf32>
    %29 = arith.truncf %28 : vector<30x96xf32> to vector<30x96xbf16>
    %c3_26 = arith.constant 3 : index
    %c0_27 = arith.constant 0 : index
    %c0_28 = arith.constant 0 : index
    %30 = vector.load %arg2[%c3_26, %c0_27, %c0_28] : memref<4x96x480xbf16, #tpu.memory_space<vmem>>, vector<1x96x480xbf16>
    %31 = vector.shape_cast %30 : vector<1x96x480xbf16> to vector<96x480xbf16>
    %cst_29 = arith.constant dense<0.000000e+00> : vector<30x480xf32>
    %32 = tpu.matmul %29, %31, %cst_29 {dimension_numbers = #tpu.dot_dimension_numbers<[1], [0], [0], [1], [0, 0, 1, 1], [], []>} : vector<30x96xbf16>, vector<96x480xbf16>, vector<30x480xf32> -> vector<30x480xf32>
    %33 = arith.addf %25, %32 : vector<30x480xf32>
    %cst_30 = arith.constant dense<0.000000e+00> : vector<480xf32>
    %34 = vector.multi_reduction <add>, %33, %cst_30 [0] : vector<30x480xf32> to vector<480xf32>
    %35 = vector.shape_cast %34 : vector<480xf32> to vector<1x480xf32>
    %36 = arith.mulf %33, %33 : vector<30x480xf32>
    %cst_31 = arith.constant dense<0.000000e+00> : vector<480xf32>
    %37 = vector.multi_reduction <add>, %36, %cst_31 [0] : vector<30x480xf32> to vector<480xf32>
    %38 = vector.shape_cast %37 : vector<480xf32> to vector<1x480xf32>
    %c0_32 = arith.constant 0 : index
    %c0_33 = arith.constant 0 : index
    %39 = vector.load %arg3[%c0_32, %c0_33] : memref<480x32xf32, #tpu.memory_space<vmem>>, vector<480x32xf32>
    %cst_34 = arith.constant dense<0.000000e+00> : vector<1x32xf32>
    %40 = tpu.matmul %35, %39, %cst_34 {dimension_numbers = #tpu.dot_dimension_numbers<[1], [0], [0], [1], [0, 0, 1, 1], [], []>} : vector<1x480xf32>, vector<480x32xf32>, vector<1x32xf32> -> vector<1x32xf32>
    %c0_35 = arith.constant 0 : index
    %c0_36 = arith.constant 0 : index
    %41 = vector.load %arg3[%c0_35, %c0_36] : memref<480x32xf32, #tpu.memory_space<vmem>>, vector<480x32xf32>
    %cst_37 = arith.constant dense<0.000000e+00> : vector<1x32xf32>
    %42 = tpu.matmul %38, %41, %cst_37 {dimension_numbers = #tpu.dot_dimension_numbers<[1], [0], [0], [1], [0, 0, 1, 1], [], []>} : vector<1x480xf32>, vector<480x32xf32>, vector<1x32xf32> -> vector<1x32xf32>
    %cst_38 = arith.constant 4.500000e+02 : f32
    %43 = vector.broadcast %cst_38 : f32 to vector<1x32xf32>
    %44 = arith.divf %40, %43 : vector<1x32xf32>
    %cst_39 = arith.constant 4.500000e+02 : f32
    %45 = vector.broadcast %cst_39 : f32 to vector<1x32xf32>
    %46 = arith.divf %42, %45 : vector<1x32xf32>
    %47 = arith.mulf %44, %44 : vector<1x32xf32>
    %48 = arith.subf %46, %47 : vector<1x32xf32>
    %cst_40 = arith.constant 0.000000e+00 : f32
    %49 = vector.broadcast %cst_40 : f32 to vector<1x32xf32>
    %50 = arith.maximumf %48, %49 : vector<1x32xf32>
    %c0_41 = arith.constant 0 : index
    %c0_42 = arith.constant 0 : index
    %51 = vector.load %arg5[%c0_41, %c0_42] : memref<1x32xf32, #tpu.memory_space<vmem>>, vector<1x32xf32>
    %cst_43 = arith.constant 9.99999974E-6 : f32
    %52 = vector.broadcast %cst_43 : f32 to vector<1x32xf32>
    %53 = arith.addf %50, %52 : vector<1x32xf32>
    %54 = math.rsqrt %53 : vector<1x32xf32>
    %55 = arith.mulf %51, %54 : vector<1x32xf32>
    %c0_44 = arith.constant 0 : index
    %c0_45 = arith.constant 0 : index
    %56 = vector.load %arg6[%c0_44, %c0_45] : memref<1x32xf32, #tpu.memory_space<vmem>>, vector<1x32xf32>
    %57 = arith.mulf %44, %55 : vector<1x32xf32>
    %58 = arith.subf %56, %57 : vector<1x32xf32>
    %c0_46 = arith.constant 0 : index
    %c0_47 = arith.constant 0 : index
    %59 = vector.load %arg4[%c0_46, %c0_47] : memref<32x480xf32, #tpu.memory_space<vmem>>, vector<32x480xf32>
    %cst_48 = arith.constant dense<0.000000e+00> : vector<1x480xf32>
    %60 = tpu.matmul %55, %59, %cst_48 {dimension_numbers = #tpu.dot_dimension_numbers<[1], [0], [0], [1], [0, 0, 1, 1], [], []>} : vector<1x32xf32>, vector<32x480xf32>, vector<1x480xf32> -> vector<1x480xf32>
    %c0_49 = arith.constant 0 : index
    %c0_50 = arith.constant 0 : index
    %61 = vector.load %arg4[%c0_49, %c0_50] : memref<32x480xf32, #tpu.memory_space<vmem>>, vector<32x480xf32>
    %cst_51 = arith.constant dense<0.000000e+00> : vector<1x480xf32>
    %62 = tpu.matmul %58, %61, %cst_51 {dimension_numbers = #tpu.dot_dimension_numbers<[1], [0], [0], [1], [0, 0, 1, 1], [], []>} : vector<1x32xf32>, vector<32x480xf32>, vector<1x480xf32> -> vector<1x480xf32>
    %63 = vector.broadcast %60 : vector<1x480xf32> to vector<30x480xf32>
    %64 = arith.mulf %33, %63 : vector<30x480xf32>
    %65 = vector.broadcast %62 : vector<1x480xf32> to vector<30x480xf32>
    %66 = arith.addf %64, %65 : vector<30x480xf32>
    %cst_52 = arith.constant 0.000000e+00 : f32
    %67 = vector.broadcast %cst_52 : f32 to vector<30x480xf32>
    %68 = arith.cmpf oge, %66, %67 : vector<30x480xf32>
    %cst_53 = arith.constant 0.00999999977 : f32
    %69 = vector.broadcast %cst_53 : f32 to vector<30x480xf32>
    %70 = arith.mulf %69, %66 : vector<30x480xf32>
    %71 = arith.select %68, %66, %70 : vector<30x480xi1>, vector<30x480xf32>
    %72 = arith.truncf %71 : vector<30x480xf32> to vector<30x480xbf16>
    %cst_54 = arith.constant 0.000000e+00 : f32
    %73 = vector.broadcast %cst_54 : f32 to vector<12x192xf32>
    %c0_55 = arith.constant 0 : index
    %c0_56 = arith.constant 0 : index
    %c0_57 = arith.constant 0 : index
    %74 = vector.load %arg7[%c0_55, %c0_56, %c0_57] : memref<4x12x30xbf16, #tpu.memory_space<vmem>>, vector<1x12x30xbf16>
    %75 = vector.shape_cast %74 : vector<1x12x30xbf16> to vector<12x30xbf16>
    %cst_58 = arith.constant dense<0.000000e+00> : vector<12x480xf32>
    %76 = tpu.matmul %75, %72, %cst_58 {dimension_numbers = #tpu.dot_dimension_numbers<[1], [0], [0], [1], [0, 0, 1, 1], [], []>} : vector<12x30xbf16>, vector<30x480xbf16>, vector<12x480xf32> -> vector<12x480xf32>
    %77 = arith.truncf %76 : vector<12x480xf32> to vector<12x480xbf16>
    %c0_59 = arith.constant 0 : index
    %c0_60 = arith.constant 0 : index
    %c0_61 = arith.constant 0 : index
    %78 = vector.load %arg8[%c0_59, %c0_60, %c0_61] : memref<4x480x192xbf16, #tpu.memory_space<vmem>>, vector<1x480x192xbf16>
    %79 = vector.shape_cast %78 : vector<1x480x192xbf16> to vector<480x192xbf16>
    %cst_62 = arith.constant dense<0.000000e+00> : vector<12x192xf32>
    %80 = tpu.matmul %77, %79, %cst_62 {dimension_numbers = #tpu.dot_dimension_numbers<[1], [0], [0], [1], [0, 0, 1, 1], [], []>} : vector<12x480xbf16>, vector<480x192xbf16>, vector<12x192xf32> -> vector<12x192xf32>
    %81 = arith.addf %73, %80 : vector<12x192xf32>
    %c1_63 = arith.constant 1 : index
    %c0_64 = arith.constant 0 : index
    %c0_65 = arith.constant 0 : index
    %82 = vector.load %arg7[%c1_63, %c0_64, %c0_65] : memref<4x12x30xbf16, #tpu.memory_space<vmem>>, vector<1x12x30xbf16>
    %83 = vector.shape_cast %82 : vector<1x12x30xbf16> to vector<12x30xbf16>
    %cst_66 = arith.constant dense<0.000000e+00> : vector<12x480xf32>
    %84 = tpu.matmul %83, %72, %cst_66 {dimension_numbers = #tpu.dot_dimension_numbers<[1], [0], [0], [1], [0, 0, 1, 1], [], []>} : vector<12x30xbf16>, vector<30x480xbf16>, vector<12x480xf32> -> vector<12x480xf32>
    %85 = arith.truncf %84 : vector<12x480xf32> to vector<12x480xbf16>
    %c1_67 = arith.constant 1 : index
    %c0_68 = arith.constant 0 : index
    %c0_69 = arith.constant 0 : index
    %86 = vector.load %arg8[%c1_67, %c0_68, %c0_69] : memref<4x480x192xbf16, #tpu.memory_space<vmem>>, vector<1x480x192xbf16>
    %87 = vector.shape_cast %86 : vector<1x480x192xbf16> to vector<480x192xbf16>
    %cst_70 = arith.constant dense<0.000000e+00> : vector<12x192xf32>
    %88 = tpu.matmul %85, %87, %cst_70 {dimension_numbers = #tpu.dot_dimension_numbers<[1], [0], [0], [1], [0, 0, 1, 1], [], []>} : vector<12x480xbf16>, vector<480x192xbf16>, vector<12x192xf32> -> vector<12x192xf32>
    %89 = arith.addf %81, %88 : vector<12x192xf32>
    %c2_71 = arith.constant 2 : index
    %c0_72 = arith.constant 0 : index
    %c0_73 = arith.constant 0 : index
    %90 = vector.load %arg7[%c2_71, %c0_72, %c0_73] : memref<4x12x30xbf16, #tpu.memory_space<vmem>>, vector<1x12x30xbf16>
    %91 = vector.shape_cast %90 : vector<1x12x30xbf16> to vector<12x30xbf16>
    %cst_74 = arith.constant dense<0.000000e+00> : vector<12x480xf32>
    %92 = tpu.matmul %91, %72, %cst_74 {dimension_numbers = #tpu.dot_dimension_numbers<[1], [0], [0], [1], [0, 0, 1, 1], [], []>} : vector<12x30xbf16>, vector<30x480xbf16>, vector<12x480xf32> -> vector<12x480xf32>
    %93 = arith.truncf %92 : vector<12x480xf32> to vector<12x480xbf16>
    %c2_75 = arith.constant 2 : index
    %c0_76 = arith.constant 0 : index
    %c0_77 = arith.constant 0 : index
    %94 = vector.load %arg8[%c2_75, %c0_76, %c0_77] : memref<4x480x192xbf16, #tpu.memory_space<vmem>>, vector<1x480x192xbf16>
    %95 = vector.shape_cast %94 : vector<1x480x192xbf16> to vector<480x192xbf16>
    %cst_78 = arith.constant dense<0.000000e+00> : vector<12x192xf32>
    %96 = tpu.matmul %93, %95, %cst_78 {dimension_numbers = #tpu.dot_dimension_numbers<[1], [0], [0], [1], [0, 0, 1, 1], [], []>} : vector<12x480xbf16>, vector<480x192xbf16>, vector<12x192xf32> -> vector<12x192xf32>
    %97 = arith.addf %89, %96 : vector<12x192xf32>
    %c3_79 = arith.constant 3 : index
    %c0_80 = arith.constant 0 : index
    %c0_81 = arith.constant 0 : index
    %98 = vector.load %arg7[%c3_79, %c0_80, %c0_81] : memref<4x12x30xbf16, #tpu.memory_space<vmem>>, vector<1x12x30xbf16>
    %99 = vector.shape_cast %98 : vector<1x12x30xbf16> to vector<12x30xbf16>
    %cst_82 = arith.constant dense<0.000000e+00> : vector<12x480xf32>
    %100 = tpu.matmul %99, %72, %cst_82 {dimension_numbers = #tpu.dot_dimension_numbers<[1], [0], [0], [1], [0, 0, 1, 1], [], []>} : vector<12x30xbf16>, vector<30x480xbf16>, vector<12x480xf32> -> vector<12x480xf32>
    %101 = arith.truncf %100 : vector<12x480xf32> to vector<12x480xbf16>
    %c3_83 = arith.constant 3 : index
    %c0_84 = arith.constant 0 : index
    %c0_85 = arith.constant 0 : index
    %102 = vector.load %arg8[%c3_83, %c0_84, %c0_85] : memref<4x480x192xbf16, #tpu.memory_space<vmem>>, vector<1x480x192xbf16>
    %103 = vector.shape_cast %102 : vector<1x480x192xbf16> to vector<480x192xbf16>
    %cst_86 = arith.constant dense<0.000000e+00> : vector<12x192xf32>
    %104 = tpu.matmul %101, %103, %cst_86 {dimension_numbers = #tpu.dot_dimension_numbers<[1], [0], [0], [1], [0, 0, 1, 1], [], []>} : vector<12x480xbf16>, vector<480x192xbf16>, vector<12x192xf32> -> vector<12x192xf32>
    %105 = arith.addf %97, %104 : vector<12x192xf32>
    %cst_87 = arith.constant dense<0.000000e+00> : vector<192xf32>
    %106 = vector.multi_reduction <add>, %105, %cst_87 [0] : vector<12x192xf32> to vector<192xf32>
    %107 = vector.shape_cast %106 : vector<192xf32> to vector<1x192xf32>
    %108 = arith.mulf %105, %105 : vector<12x192xf32>
    %cst_88 = arith.constant dense<0.000000e+00> : vector<192xf32>
    %109 = vector.multi_reduction <add>, %108, %cst_88 [0] : vector<12x192xf32> to vector<192xf32>
    %110 = vector.shape_cast %109 : vector<192xf32> to vector<1x192xf32>
    %c0_89 = arith.constant 0 : index
    %c0_90 = arith.constant 0 : index
    %111 = vector.load %arg9[%c0_89, %c0_90] : memref<192x32xf32, #tpu.memory_space<vmem>>, vector<192x32xf32>
    %cst_91 = arith.constant dense<0.000000e+00> : vector<1x32xf32>
    %112 = tpu.matmul %107, %111, %cst_91 {dimension_numbers = #tpu.dot_dimension_numbers<[1], [0], [0], [1], [0, 0, 1, 1], [], []>} : vector<1x192xf32>, vector<192x32xf32>, vector<1x32xf32> -> vector<1x32xf32>
    %c0_92 = arith.constant 0 : index
    %c0_93 = arith.constant 0 : index
    %113 = vector.load %arg9[%c0_92, %c0_93] : memref<192x32xf32, #tpu.memory_space<vmem>>, vector<192x32xf32>
    %cst_94 = arith.constant dense<0.000000e+00> : vector<1x32xf32>
    %114 = tpu.matmul %110, %113, %cst_94 {dimension_numbers = #tpu.dot_dimension_numbers<[1], [0], [0], [1], [0, 0, 1, 1], [], []>} : vector<1x192xf32>, vector<192x32xf32>, vector<1x32xf32> -> vector<1x32xf32>
    %cst_95 = arith.constant 7.200000e+01 : f32
    %115 = vector.broadcast %cst_95 : f32 to vector<1x32xf32>
    %116 = arith.divf %112, %115 : vector<1x32xf32>
    %cst_96 = arith.constant 7.200000e+01 : f32
    %117 = vector.broadcast %cst_96 : f32 to vector<1x32xf32>
    %118 = arith.divf %114, %117 : vector<1x32xf32>
    %119 = arith.mulf %116, %116 : vector<1x32xf32>
    %120 = arith.subf %118, %119 : vector<1x32xf32>
    %cst_97 = arith.constant 0.000000e+00 : f32
    %121 = vector.broadcast %cst_97 : f32 to vector<1x32xf32>
    %122 = arith.maximumf %120, %121 : vector<1x32xf32>
    %c0_98 = arith.constant 0 : index
    %c0_99 = arith.constant 0 : index
    %123 = vector.load %arg11[%c0_98, %c0_99] : memref<1x32xf32, #tpu.memory_space<vmem>>, vector<1x32xf32>
    %cst_100 = arith.constant 9.99999974E-6 : f32
    %124 = vector.broadcast %cst_100 : f32 to vector<1x32xf32>
    %125 = arith.addf %122, %124 : vector<1x32xf32>
    %126 = math.rsqrt %125 : vector<1x32xf32>
    %127 = arith.mulf %123, %126 : vector<1x32xf32>
    %c0_101 = arith.constant 0 : index
    %c0_102 = arith.constant 0 : index
    %128 = vector.load %arg12[%c0_101, %c0_102] : memref<1x32xf32, #tpu.memory_space<vmem>>, vector<1x32xf32>
    %129 = arith.mulf %116, %127 : vector<1x32xf32>
    %130 = arith.subf %128, %129 : vector<1x32xf32>
    %c0_103 = arith.constant 0 : index
    %c0_104 = arith.constant 0 : index
    %131 = vector.load %arg10[%c0_103, %c0_104] : memref<32x192xf32, #tpu.memory_space<vmem>>, vector<32x192xf32>
    %cst_105 = arith.constant dense<0.000000e+00> : vector<1x192xf32>
    %132 = tpu.matmul %127, %131, %cst_105 {dimension_numbers = #tpu.dot_dimension_numbers<[1], [0], [0], [1], [0, 0, 1, 1], [], []>} : vector<1x32xf32>, vector<32x192xf32>, vector<1x192xf32> -> vector<1x192xf32>
    %c0_106 = arith.constant 0 : index
    %c0_107 = arith.constant 0 : index
    %133 = vector.load %arg10[%c0_106, %c0_107] : memref<32x192xf32, #tpu.memory_space<vmem>>, vector<32x192xf32>
    %cst_108 = arith.constant dense<0.000000e+00> : vector<1x192xf32>
    %134 = tpu.matmul %130, %133, %cst_108 {dimension_numbers = #tpu.dot_dimension_numbers<[1], [0], [0], [1], [0, 0, 1, 1], [], []>} : vector<1x32xf32>, vector<32x192xf32>, vector<1x192xf32> -> vector<1x192xf32>
    %135 = vector.broadcast %132 : vector<1x192xf32> to vector<12x192xf32>
    %136 = arith.mulf %105, %135 : vector<12x192xf32>
    %137 = vector.broadcast %134 : vector<1x192xf32> to vector<12x192xf32>
    %138 = arith.addf %136, %137 : vector<12x192xf32>
    %cst_109 = arith.constant 0.000000e+00 : f32
    %139 = vector.broadcast %cst_109 : f32 to vector<12x192xf32>
    %140 = arith.cmpf oge, %138, %139 : vector<12x192xf32>
    %cst_110 = arith.constant 0.00999999977 : f32
    %141 = vector.broadcast %cst_110 : f32 to vector<12x192xf32>
    %142 = arith.mulf %141, %138 : vector<12x192xf32>
    %143 = arith.select %140, %138, %142 : vector<12x192xi1>, vector<12x192xf32>
    %144 = arith.truncf %143 : vector<12x192xf32> to vector<12x192xbf16>
    %cst_111 = arith.constant 0.000000e+00 : f32
    %145 = vector.broadcast %cst_111 : f32 to vector<4x64xf32>
    %c0_112 = arith.constant 0 : index
    %c0_113 = arith.constant 0 : index
    %c0_114 = arith.constant 0 : index
    %146 = vector.load %arg13[%c0_112, %c0_113, %c0_114] : memref<4x4x12xbf16, #tpu.memory_space<vmem>>, vector<1x4x12xbf16>
    %147 = vector.shape_cast %146 : vector<1x4x12xbf16> to vector<4x12xbf16>
    %cst_115 = arith.constant dense<0.000000e+00> : vector<4x192xf32>
    %148 = tpu.matmul %147, %144, %cst_115 {dimension_numbers = #tpu.dot_dimension_numbers<[1], [0], [0], [1], [0, 0, 1, 1], [], []>} : vector<4x12xbf16>, vector<12x192xbf16>, vector<4x192xf32> -> vector<4x192xf32>
    %149 = arith.truncf %148 : vector<4x192xf32> to vector<4x192xbf16>
    %c0_116 = arith.constant 0 : index
    %c0_117 = arith.constant 0 : index
    %c0_118 = arith.constant 0 : index
    %150 = vector.load %arg14[%c0_116, %c0_117, %c0_118] : memref<4x192x64xbf16, #tpu.memory_space<vmem>>, vector<1x192x64xbf16>
    %151 = vector.shape_cast %150 : vector<1x192x64xbf16> to vector<192x64xbf16>
    %cst_119 = arith.constant dense<0.000000e+00> : vector<4x64xf32>
    %152 = tpu.matmul %149, %151, %cst_119 {dimension_numbers = #tpu.dot_dimension_numbers<[1], [0], [0], [1], [0, 0, 1, 1], [], []>} : vector<4x192xbf16>, vector<192x64xbf16>, vector<4x64xf32> -> vector<4x64xf32>
    %153 = arith.addf %145, %152 : vector<4x64xf32>
    %c1_120 = arith.constant 1 : index
    %c0_121 = arith.constant 0 : index
    %c0_122 = arith.constant 0 : index
    %154 = vector.load %arg13[%c1_120, %c0_121, %c0_122] : memref<4x4x12xbf16, #tpu.memory_space<vmem>>, vector<1x4x12xbf16>
    %155 = vector.shape_cast %154 : vector<1x4x12xbf16> to vector<4x12xbf16>
    %cst_123 = arith.constant dense<0.000000e+00> : vector<4x192xf32>
    %156 = tpu.matmul %155, %144, %cst_123 {dimension_numbers = #tpu.dot_dimension_numbers<[1], [0], [0], [1], [0, 0, 1, 1], [], []>} : vector<4x12xbf16>, vector<12x192xbf16>, vector<4x192xf32> -> vector<4x192xf32>
    %157 = arith.truncf %156 : vector<4x192xf32> to vector<4x192xbf16>
    %c1_124 = arith.constant 1 : index
    %c0_125 = arith.constant 0 : index
    %c0_126 = arith.constant 0 : index
    %158 = vector.load %arg14[%c1_124, %c0_125, %c0_126] : memref<4x192x64xbf16, #tpu.memory_space<vmem>>, vector<1x192x64xbf16>
    %159 = vector.shape_cast %158 : vector<1x192x64xbf16> to vector<192x64xbf16>
    %cst_127 = arith.constant dense<0.000000e+00> : vector<4x64xf32>
    %160 = tpu.matmul %157, %159, %cst_127 {dimension_numbers = #tpu.dot_dimension_numbers<[1], [0], [0], [1], [0, 0, 1, 1], [], []>} : vector<4x192xbf16>, vector<192x64xbf16>, vector<4x64xf32> -> vector<4x64xf32>
    %161 = arith.addf %153, %160 : vector<4x64xf32>
    %c2_128 = arith.constant 2 : index
    %c0_129 = arith.constant 0 : index
    %c0_130 = arith.constant 0 : index
    %162 = vector.load %arg13[%c2_128, %c0_129, %c0_130] : memref<4x4x12xbf16, #tpu.memory_space<vmem>>, vector<1x4x12xbf16>
    %163 = vector.shape_cast %162 : vector<1x4x12xbf16> to vector<4x12xbf16>
    %cst_131 = arith.constant dense<0.000000e+00> : vector<4x192xf32>
    %164 = tpu.matmul %163, %144, %cst_131 {dimension_numbers = #tpu.dot_dimension_numbers<[1], [0], [0], [1], [0, 0, 1, 1], [], []>} : vector<4x12xbf16>, vector<12x192xbf16>, vector<4x192xf32> -> vector<4x192xf32>
    %165 = arith.truncf %164 : vector<4x192xf32> to vector<4x192xbf16>
    %c2_132 = arith.constant 2 : index
    %c0_133 = arith.constant 0 : index
    %c0_134 = arith.constant 0 : index
    %166 = vector.load %arg14[%c2_132, %c0_133, %c0_134] : memref<4x192x64xbf16, #tpu.memory_space<vmem>>, vector<1x192x64xbf16>
    %167 = vector.shape_cast %166 : vector<1x192x64xbf16> to vector<192x64xbf16>
    %cst_135 = arith.constant dense<0.000000e+00> : vector<4x64xf32>
    %168 = tpu.matmul %165, %167, %cst_135 {dimension_numbers = #tpu.dot_dimension_numbers<[1], [0], [0], [1], [0, 0, 1, 1], [], []>} : vector<4x192xbf16>, vector<192x64xbf16>, vector<4x64xf32> -> vector<4x64xf32>
    %169 = arith.addf %161, %168 : vector<4x64xf32>
    %c3_136 = arith.constant 3 : index
    %c0_137 = arith.constant 0 : index
    %c0_138 = arith.constant 0 : index
    %170 = vector.load %arg13[%c3_136, %c0_137, %c0_138] : memref<4x4x12xbf16, #tpu.memory_space<vmem>>, vector<1x4x12xbf16>
    %171 = vector.shape_cast %170 : vector<1x4x12xbf16> to vector<4x12xbf16>
    %cst_139 = arith.constant dense<0.000000e+00> : vector<4x192xf32>
    %172 = tpu.matmul %171, %144, %cst_139 {dimension_numbers = #tpu.dot_dimension_numbers<[1], [0], [0], [1], [0, 0, 1, 1], [], []>} : vector<4x12xbf16>, vector<12x192xbf16>, vector<4x192xf32> -> vector<4x192xf32>
    %173 = arith.truncf %172 : vector<4x192xf32> to vector<4x192xbf16>
    %c3_140 = arith.constant 3 : index
    %c0_141 = arith.constant 0 : index
    %c0_142 = arith.constant 0 : index
    %174 = vector.load %arg14[%c3_140, %c0_141, %c0_142] : memref<4x192x64xbf16, #tpu.memory_space<vmem>>, vector<1x192x64xbf16>
    %175 = vector.shape_cast %174 : vector<1x192x64xbf16> to vector<192x64xbf16>
    %cst_143 = arith.constant dense<0.000000e+00> : vector<4x64xf32>
    %176 = tpu.matmul %173, %175, %cst_143 {dimension_numbers = #tpu.dot_dimension_numbers<[1], [0], [0], [1], [0, 0, 1, 1], [], []>} : vector<4x192xbf16>, vector<192x64xbf16>, vector<4x64xf32> -> vector<4x64xf32>
    %177 = arith.addf %169, %176 : vector<4x64xf32>
    %cst_144 = arith.constant dense<0.000000e+00> : vector<64xf32>
    %178 = vector.multi_reduction <add>, %177, %cst_144 [0] : vector<4x64xf32> to vector<64xf32>
    %179 = vector.shape_cast %178 : vector<64xf32> to vector<1x64xf32>
    %180 = arith.mulf %177, %177 : vector<4x64xf32>
    %cst_145 = arith.constant dense<0.000000e+00> : vector<64xf32>
    %181 = vector.multi_reduction <add>, %180, %cst_145 [0] : vector<4x64xf32> to vector<64xf32>
    %182 = vector.shape_cast %181 : vector<64xf32> to vector<1x64xf32>
    %c0_146 = arith.constant 0 : index
    %c0_147 = arith.constant 0 : index
    %183 = vector.load %arg15[%c0_146, %c0_147] : memref<64x32xf32, #tpu.memory_space<vmem>>, vector<64x32xf32>
    %cst_148 = arith.constant dense<0.000000e+00> : vector<1x32xf32>
    %184 = tpu.matmul %179, %183, %cst_148 {dimension_numbers = #tpu.dot_dimension_numbers<[1], [0], [0], [1], [0, 0, 1, 1], [], []>} : vector<1x64xf32>, vector<64x32xf32>, vector<1x32xf32> -> vector<1x32xf32>
    %c0_149 = arith.constant 0 : index
    %c0_150 = arith.constant 0 : index
    %185 = vector.load %arg15[%c0_149, %c0_150] : memref<64x32xf32, #tpu.memory_space<vmem>>, vector<64x32xf32>
    %cst_151 = arith.constant dense<0.000000e+00> : vector<1x32xf32>
    %186 = tpu.matmul %182, %185, %cst_151 {dimension_numbers = #tpu.dot_dimension_numbers<[1], [0], [0], [1], [0, 0, 1, 1], [], []>} : vector<1x64xf32>, vector<64x32xf32>, vector<1x32xf32> -> vector<1x32xf32>
    %cst_152 = arith.constant 8.000000e+00 : f32
    %187 = vector.broadcast %cst_152 : f32 to vector<1x32xf32>
    %188 = arith.divf %184, %187 : vector<1x32xf32>
    %cst_153 = arith.constant 8.000000e+00 : f32
    %189 = vector.broadcast %cst_153 : f32 to vector<1x32xf32>
    %190 = arith.divf %186, %189 : vector<1x32xf32>
    %191 = arith.mulf %188, %188 : vector<1x32xf32>
    %192 = arith.subf %190, %191 : vector<1x32xf32>
    %cst_154 = arith.constant 0.000000e+00 : f32
    %193 = vector.broadcast %cst_154 : f32 to vector<1x32xf32>
    %194 = arith.maximumf %192, %193 : vector<1x32xf32>
    %c0_155 = arith.constant 0 : index
    %c0_156 = arith.constant 0 : index
    %195 = vector.load %arg17[%c0_155, %c0_156] : memref<1x32xf32, #tpu.memory_space<vmem>>, vector<1x32xf32>
    %cst_157 = arith.constant 9.99999974E-6 : f32
    %196 = vector.broadcast %cst_157 : f32 to vector<1x32xf32>
    %197 = arith.addf %194, %196 : vector<1x32xf32>
    %198 = math.rsqrt %197 : vector<1x32xf32>
    %199 = arith.mulf %195, %198 : vector<1x32xf32>
    %c0_158 = arith.constant 0 : index
    %c0_159 = arith.constant 0 : index
    %200 = vector.load %arg18[%c0_158, %c0_159] : memref<1x32xf32, #tpu.memory_space<vmem>>, vector<1x32xf32>
    %201 = arith.mulf %188, %199 : vector<1x32xf32>
    %202 = arith.subf %200, %201 : vector<1x32xf32>
    %c0_160 = arith.constant 0 : index
    %c0_161 = arith.constant 0 : index
    %203 = vector.load %arg16[%c0_160, %c0_161] : memref<32x64xf32, #tpu.memory_space<vmem>>, vector<32x64xf32>
    %cst_162 = arith.constant dense<0.000000e+00> : vector<1x64xf32>
    %204 = tpu.matmul %199, %203, %cst_162 {dimension_numbers = #tpu.dot_dimension_numbers<[1], [0], [0], [1], [0, 0, 1, 1], [], []>} : vector<1x32xf32>, vector<32x64xf32>, vector<1x64xf32> -> vector<1x64xf32>
    %c0_163 = arith.constant 0 : index
    %c0_164 = arith.constant 0 : index
    %205 = vector.load %arg16[%c0_163, %c0_164] : memref<32x64xf32, #tpu.memory_space<vmem>>, vector<32x64xf32>
    %cst_165 = arith.constant dense<0.000000e+00> : vector<1x64xf32>
    %206 = tpu.matmul %202, %205, %cst_165 {dimension_numbers = #tpu.dot_dimension_numbers<[1], [0], [0], [1], [0, 0, 1, 1], [], []>} : vector<1x32xf32>, vector<32x64xf32>, vector<1x64xf32> -> vector<1x64xf32>
    %207 = vector.broadcast %204 : vector<1x64xf32> to vector<4x64xf32>
    %208 = arith.mulf %177, %207 : vector<4x64xf32>
    %209 = vector.broadcast %206 : vector<1x64xf32> to vector<4x64xf32>
    %210 = arith.addf %208, %209 : vector<4x64xf32>
    %cst_166 = arith.constant 0.000000e+00 : f32
    %211 = vector.broadcast %cst_166 : f32 to vector<4x64xf32>
    %212 = arith.cmpf oge, %210, %211 : vector<4x64xf32>
    %cst_167 = arith.constant 0.00999999977 : f32
    %213 = vector.broadcast %cst_167 : f32 to vector<4x64xf32>
    %214 = arith.mulf %213, %210 : vector<4x64xf32>
    %215 = arith.select %212, %210, %214 : vector<4x64xi1>, vector<4x64xf32>
    %216 = arith.truncf %215 : vector<4x64xf32> to vector<4x64xbf16>
    %cst_168 = arith.constant 0.000000e+00 : f32
    %217 = vector.broadcast %cst_168 : f32 to vector<2x100xf32>
    %218 = vector.extract_strided_slice %216 {offsets = [0, 0], sizes = [2, 64], strides = [1, 1]} : vector<4x64xbf16> to vector<2x64xbf16>
    %c0_169 = arith.constant 0 : index
    %c0_170 = arith.constant 0 : index
    %c0_171 = arith.constant 0 : index
    %219 = vector.load %arg19[%c0_169, %c0_170, %c0_171] : memref<2x64x100xbf16, #tpu.memory_space<vmem>>, vector<1x64x100xbf16>
    %220 = vector.shape_cast %219 : vector<1x64x100xbf16> to vector<64x100xbf16>
    %cst_172 = arith.constant dense<0.000000e+00> : vector<2x100xf32>
    %221 = tpu.matmul %218, %220, %cst_172 {dimension_numbers = #tpu.dot_dimension_numbers<[1], [0], [0], [1], [0, 0, 1, 1], [], []>} : vector<2x64xbf16>, vector<64x100xbf16>, vector<2x100xf32> -> vector<2x100xf32>
    %222 = arith.addf %217, %221 : vector<2x100xf32>
    %223 = vector.extract_strided_slice %216 {offsets = [2, 0], sizes = [2, 64], strides = [1, 1]} : vector<4x64xbf16> to vector<2x64xbf16>
    %c1_173 = arith.constant 1 : index
    %c0_174 = arith.constant 0 : index
    %c0_175 = arith.constant 0 : index
    %224 = vector.load %arg19[%c1_173, %c0_174, %c0_175] : memref<2x64x100xbf16, #tpu.memory_space<vmem>>, vector<1x64x100xbf16>
    %225 = vector.shape_cast %224 : vector<1x64x100xbf16> to vector<64x100xbf16>
    %cst_176 = arith.constant dense<0.000000e+00> : vector<2x100xf32>
    %226 = tpu.matmul %223, %225, %cst_176 {dimension_numbers = #tpu.dot_dimension_numbers<[1], [0], [0], [1], [0, 0, 1, 1], [], []>} : vector<2x64xbf16>, vector<64x100xbf16>, vector<2x100xf32> -> vector<2x100xf32>
    %227 = arith.addf %222, %226 : vector<2x100xf32>
    %c0_177 = arith.constant 0 : index
    %c0_178 = arith.constant 0 : index
    %228 = vector.load %arg20[%c0_177, %c0_178] : memref<1x100xf32, #tpu.memory_space<vmem>>, vector<1x100xf32>
    %229 = vector.broadcast %228 : vector<1x100xf32> to vector<2x100xf32>
    %230 = arith.addf %227, %229 : vector<2x100xf32>
    %cst_179 = arith.constant 0.000000e+00 : f32
    %231 = vector.broadcast %cst_179 : f32 to vector<2x100xf32>
    %232 = arith.maximumf %230, %231 : vector<2x100xf32>
    %233 = arith.truncf %232 : vector<2x100xf32> to vector<2x100xbf16>
    %c0_180 = arith.constant 0 : index
    %c0_181 = arith.constant 0 : index
    %234 = vector.load %arg21[%c0_180, %c0_181] : memref<100x5xbf16, #tpu.memory_space<vmem>>, vector<100x5xbf16>
    %cst_182 = arith.constant dense<0.000000e+00> : vector<2x5xf32>
    %235 = tpu.matmul %233, %234, %cst_182 {dimension_numbers = #tpu.dot_dimension_numbers<[1], [0], [0], [1], [0, 0, 1, 1], [], []>} : vector<2x100xbf16>, vector<100x5xbf16>, vector<2x5xf32> -> vector<2x5xf32>
    %c0_183 = arith.constant 0 : index
    %c0_184 = arith.constant 0 : index
    %236 = vector.load %arg22[%c0_183, %c0_184] : memref<1x5xf32, #tpu.memory_space<vmem>>, vector<1x5xf32>
    %237 = vector.broadcast %236 : vector<1x5xf32> to vector<2x5xf32>
    %238 = arith.addf %235, %237 : vector<2x5xf32>
    %cst_185 = arith.constant dense<0xFF800000> : vector<2xf32>
    %239 = vector.multi_reduction <maximumf>, %238, %cst_185 [1] : vector<2x5xf32> to vector<2xf32>
    %240 = vector.shape_cast %239 : vector<2xf32> to vector<2x1xf32>
    %241 = vector.broadcast %240 : vector<2x1xf32> to vector<2x5xf32>
    %242 = arith.subf %238, %241 : vector<2x5xf32>
    %243 = math.exp %242 : vector<2x5xf32>
    %cst_186 = arith.constant dense<0.000000e+00> : vector<2xf32>
    %244 = vector.multi_reduction <add>, %243, %cst_186 [1] : vector<2x5xf32> to vector<2xf32>
    %245 = vector.shape_cast %244 : vector<2xf32> to vector<2x1xf32>
    %246 = vector.broadcast %245 : vector<2x1xf32> to vector<2x5xf32>
    %247 = arith.divf %243, %246 : vector<2x5xf32>
    %c0_187 = arith.constant 0 : index
    %c0_188 = arith.constant 0 : index
    %248 = vector.load %arg27[%c0_187, %c0_188] : memref<2x5xf32, #tpu.memory_space<vmem>>, vector<2x5xf32>
    tpu.vector_store %arg27[%c0_187, %c0_188], %247 {strides = array<i32>} : memref<2x5xf32, #tpu.memory_space<vmem>>, vector<2x5xf32>,
    %c0_189 = arith.constant 0 : index
    %c0_190 = arith.constant 0 : index
    %249 = vector.load %arg23[%c0_189, %c0_190] : memref<100x35xbf16, #tpu.memory_space<vmem>>, vector<100x35xbf16>
    %cst_191 = arith.constant dense<0.000000e+00> : vector<2x35xf32>
    %250 = tpu.matmul %233, %249, %cst_191 {dimension_numbers = #tpu.dot_dimension_numbers<[1], [0], [0], [1], [0, 0, 1, 1], [], []>} : vector<2x100xbf16>, vector<100x35xbf16>, vector<2x35xf32> -> vector<2x35xf32>
    %c0_192 = arith.constant 0 : index
    %c0_193 = arith.constant 0 : index
    %251 = vector.load %arg24[%c0_192, %c0_193] : memref<1x35xf32, #tpu.memory_space<vmem>>, vector<1x35xf32>
    %252 = vector.broadcast %251 : vector<1x35xf32> to vector<2x35xf32>
    %253 = arith.addf %250, %252 : vector<2x35xf32>
    %254 = math.exp %253 : vector<2x35xf32>
    %c0_194 = arith.constant 0 : index
    %c0_195 = arith.constant 0 : index
    %255 = vector.load %arg28[%c0_194, %c0_195] : memref<2x35xf32, #tpu.memory_space<vmem>>, vector<2x35xf32>
    tpu.vector_store %arg28[%c0_194, %c0_195], %254 {strides = array<i32>} : memref<2x35xf32, #tpu.memory_space<vmem>>, vector<2x35xf32>,
    %c0_196 = arith.constant 0 : index
    %c0_197 = arith.constant 0 : index
    %256 = vector.load %arg25[%c0_196, %c0_197] : memref<100x35xbf16, #tpu.memory_space<vmem>>, vector<100x35xbf16>
    %cst_198 = arith.constant dense<0.000000e+00> : vector<2x35xf32>
    %257 = tpu.matmul %233, %256, %cst_198 {dimension_numbers = #tpu.dot_dimension_numbers<[1], [0], [0], [1], [0, 0, 1, 1], [], []>} : vector<2x100xbf16>, vector<100x35xbf16>, vector<2x35xf32> -> vector<2x35xf32>
    %c0_199 = arith.constant 0 : index
    %c0_200 = arith.constant 0 : index
    %258 = vector.load %arg26[%c0_199, %c0_200] : memref<1x35xf32, #tpu.memory_space<vmem>>, vector<1x35xf32>
    %259 = vector.broadcast %258 : vector<1x35xf32> to vector<2x35xf32>
    %260 = arith.addf %257, %259 : vector<2x35xf32>
    %c0_201 = arith.constant 0 : index
    %c0_202 = arith.constant 0 : index
    %261 = vector.load %arg29[%c0_201, %c0_202] : memref<2x35xf32, #tpu.memory_space<vmem>>, vector<2x35xf32>
    tpu.vector_store %arg29[%c0_201, %c0_202], %260 {strides = array<i32>} : memref<2x35xf32, #tpu.memory_space<vmem>>, vector<2x35xf32>,
    return
  }
}

</mosaic_0001>

<llo_original>
// kernel: forward.1
$region0: #{forward.1}
  #allocation0 [shape = 'u32[]', space=smem, size = 0x4, offset = 0x4, fixed_abs, tag = 'smem constant byte address 0x4 - core index']
  #allocation1 [shape = 'u32[144,128]{1,0:T(1,128)}', space=vmem, size = 0x12000, scoped, tag = 'internal scratch']
  %s0 = inlined_call_operand.smem [shape: u32[30], index: -1, kind: input, shape index: {}]
  %s1 = sld [smem:[%s0]]
  %s2 = scalar_lea.smem %s0, 1
  %s3 = sld [smem:[%s2]]
  %s4 = scalar_lea.smem %s0, 2
  %s5 = sld [smem:[%s4]]
  %s6 = scalar_lea.smem %s0, 3
  %s7 = sld [smem:[%s6]]
  %s8 = scalar_lea.smem %s0, 4
  %s9 = sld [smem:[%s8]]
  %s10 = scalar_lea.smem %s0, 5
  %s11 = sld [smem:[%s10]]
  %s12 = scalar_lea.smem %s0, 6
  %s13 = sld [smem:[%s12]]
  %s14 = scalar_lea.smem %s0, 7
  %s15 = sld [smem:[%s14]]
  %s16 = scalar_lea.smem %s0, 8
  %s17 = sld [smem:[%s16]]
  %s18 = scalar_lea.smem %s0, 9
  %s19 = sld [smem:[%s18]]
  %s20 = scalar_lea.smem %s0, 10
  %s21 = sld [smem:[%s20]]
  %s22 = scalar_lea.smem %s0, 11
  %s23 = sld [smem:[%s22]]
  %s24 = scalar_lea.smem %s0, 12
  %s25 = sld [smem:[%s24]]
  %s26 = scalar_lea.smem %s0, 13
  %s27 = sld [smem:[%s26]]
  %s28 = scalar_lea.smem %s0, 14
  %s29 = sld [smem:[%s28]]
  %s30 = scalar_lea.smem %s0, 15
  %s31 = sld [smem:[%s30]]
  %s32 = scalar_lea.smem %s0, 16
  %s33 = sld [smem:[%s32]]
  %s34 = scalar_lea.smem %s0, 17
  %s35 = sld [smem:[%s34]]
  %s36 = scalar_lea.smem %s0, 18
  %s37 = sld [smem:[%s36]]
  %s38 = scalar_lea.smem %s0, 19
  %s39 = sld [smem:[%s38]]
  %s40 = scalar_lea.smem %s0, 20
  %s41 = sld [smem:[%s40]]
  %s42 = scalar_lea.smem %s0, 21
  %s43 = sld [smem:[%s42]]
  %s44 = scalar_lea.smem %s0, 22
  %s45 = sld [smem:[%s44]]
  %s46 = scalar_lea.smem %s0, 23
  %s47 = sld [smem:[%s46]]
  %s48 = scalar_lea.smem %s0, 24
  %s49 = sld [smem:[%s48]]
  %s50 = scalar_lea.smem %s0, 25
  %s51 = sld [smem:[%s50]]
  %s52 = scalar_lea.smem %s0, 26
  %s53 = sld [smem:[%s52]]
  %s54 = scalar_lea.smem %s0, 27
  %s55 = sld [smem:[%s54]]
  %s56 = scalar_lea.smem %s0, 28
  %s57 = sld [smem:[%s56]]
  %s58 = scalar_lea.smem %s0, 29
  %s59 = sld [smem:[%s58]]
  %60 = xla_tuple %s55, %s57, %s59
  %s61 = sld [smem:[#allocation0]]
  $region134: #{forward.1} parent=0
    _
  %s63 = ssub.s32 1, %s61
  %s64 = scalar_select 0, %s63, %s61
  $region1: #{forward.1} parent=0
    #allocation2 [shape = 'u8[1024]{0}', space=vmem, size = 0x400, scoped, tag = 'output window, operand 0, single buffered']
    #allocation3 [shape = 's32[1]{0}', space=sflag, size = 0x4, scoped, tag = 'scoped memory for forward.1']
    %65 = vsyncpa [#allocation3], 0
    // Predicated region
    $region2: #{forward.1} parent=1 // pred_check
      _
    $region3: #{forward.1} parent=1 // pred_check_branch
      %67 = sbr.rel (0) target = $region5
    $region4: #{forward.1} parent=1 // pred_region
      _
    $region5: #{forward.1} parent=1 // pred_fallthru
      _
    // Predicated region
    $region6: #{forward.1} parent=1 // pred_check
      _
    $region7: #{forward.1} parent=1 // pred_check_branch
      %69 = sbr.rel (0) target = $region9
    $region8: #{forward.1} parent=1 // pred_region
      _
    $region9: #{forward.1} parent=1 // pred_fallthru
      _
    // Predicated region
    $region10: #{forward.1} parent=1 // pred_check
      _
    $region11: #{forward.1} parent=1 // pred_check_branch
      %71 = sbr.rel (0) target = $region13
    $region12: #{forward.1} parent=1 // pred_region
      _
    $region13: #{forward.1} parent=1 // pred_fallthru
      _
    // Predicated region
    $region14: #{forward.1} parent=1 // pred_check
      _
    $region15: #{forward.1} parent=1 // pred_check_branch
      %73 = sbr.rel (0) target = $region17
    $region16: #{forward.1} parent=1 // pred_region
      _
    $region17: #{forward.1} parent=1 // pred_fallthru
      _
    // Predicated region
    $region18: #{forward.1} parent=1 // pred_check
      _
    $region19: #{forward.1} parent=1 // pred_check_branch
      %75 = sbr.rel (0) target = $region21
    $region20: #{forward.1} parent=1 // pred_region
      _
    $region21: #{forward.1} parent=1 // pred_fallthru
      _
    // Predicated region
    $region22: #{forward.1} parent=1 // pred_check
      _
    $region23: #{forward.1} parent=1 // pred_check_branch
      %77 = sbr.rel (0) target = $region25
    $region24: #{forward.1} parent=1 // pred_region
      _
    $region25: #{forward.1} parent=1 // pred_fallthru
      _
    // Predicated region
    $region26: #{forward.1} parent=1 // pred_check
      _
    $region27: #{forward.1} parent=1 // pred_check_branch
      %79 = sbr.rel (0) target = $region29
    $region28: #{forward.1} parent=1 // pred_region
      _
    $region29: #{forward.1} parent=1 // pred_fallthru
      _
    // Predicated region
    $region30: #{forward.1} parent=1 // pred_check
      _
    $region31: #{forward.1} parent=1 // pred_check_branch
      %81 = sbr.rel (0) target = $region33
    $region32: #{forward.1} parent=1 // pred_region
      _
    $region33: #{forward.1} parent=1 // pred_fallthru
      _
    // Predicated region
    $region34: #{forward.1} parent=1 // pred_check
      _
    $region35: #{forward.1} parent=1 // pred_check_branch
      %83 = sbr.rel (0) target = $region37
    $region36: #{forward.1} parent=1 // pred_region
      _
    $region37: #{forward.1} parent=1 // pred_fallthru
      _
    // Predicated region
    $region38: #{forward.1} parent=1 // pred_check
      _
    $region39: #{forward.1} parent=1 // pred_check_branch
      %85 = sbr.rel (0) target = $region41
    $region40: #{forward.1} parent=1 // pred_region
      _
    $region41: #{forward.1} parent=1 // pred_fallthru
      _
    // Predicated region
    $region42: #{forward.1} parent=1 // pred_check
      _
    $region43: #{forward.1} parent=1 // pred_check_branch
      %87 = sbr.rel (0) target = $region45
    $region44: #{forward.1} parent=1 // pred_region
      _
    $region45: #{forward.1} parent=1 // pred_fallthru
      _
    // Predicated region
    $region46: #{forward.1} parent=1 // pred_check
      _
    $region47: #{forward.1} parent=1 // pred_check_branch
      %89 = sbr.rel (0) target = $region49
    $region48: #{forward.1} parent=1 // pred_region
      _
    $region49: #{forward.1} parent=1 // pred_fallthru
      _
    // Predicated region
    $region50: #{forward.1} parent=1 // pred_check
      _
    $region51: #{forward.1} parent=1 // pred_check_branch
      %91 = sbr.rel (0) target = $region53
    $region52: #{forward.1} parent=1 // pred_region
      _
    $region53: #{forward.1} parent=1 // pred_fallthru
      _
    // Predicated region
    $region54: #{forward.1} parent=1 // pred_check
      _
    $region55: #{forward.1} parent=1 // pred_check_branch
      %93 = sbr.rel (0) target = $region57
    $region56: #{forward.1} parent=1 // pred_region
      _
    $region57: #{forward.1} parent=1 // pred_fallthru
      _
    // Predicated region
    $region58: #{forward.1} parent=1 // pred_check
      _
    $region59: #{forward.1} parent=1 // pred_check_branch
      %95 = sbr.rel (0) target = $region61
    $region60: #{forward.1} parent=1 // pred_region
      _
    $region61: #{forward.1} parent=1 // pred_fallthru
      _
    // Predicated region
    $region62: #{forward.1} parent=1 // pred_check
      _
    $region63: #{forward.1} parent=1 // pred_check_branch
      %97 = sbr.rel (0) target = $region65
    $region64: #{forward.1} parent=1 // pred_region
      _
    $region65: #{forward.1} parent=1 // pred_fallthru
      _
    // Predicated region
    $region66: #{forward.1} parent=1 // pred_check
      _
    $region67: #{forward.1} parent=1 // pred_check_branch
      %99 = sbr.rel (0) target = $region69
    $region68: #{forward.1} parent=1 // pred_region
      _
    $region69: #{forward.1} parent=1 // pred_fallthru
      _
    // Predicated region
    $region70: #{forward.1} parent=1 // pred_check
      _
    $region71: #{forward.1} parent=1 // pred_check_branch
      %101 = sbr.rel (0) target = $region73
    $region72: #{forward.1} parent=1 // pred_region
      _
    $region73: #{forward.1} parent=1 // pred_fallthru
      _
    // Predicated region
    $region74: #{forward.1} parent=1 // pred_check
      _
    $region75: #{forward.1} parent=1 // pred_check_branch
      %103 = sbr.rel (0) target = $region77
    $region76: #{forward.1} parent=1 // pred_region
      _
    $region77: #{forward.1} parent=1 // pred_fallthru
      _
    // Predicated region
    $region78: #{forward.1} parent=1 // pred_check
      _
    $region79: #{forward.1} parent=1 // pred_check_branch
      %105 = sbr.rel (0) target = $region81
    $region80: #{forward.1} parent=1 // pred_region
      _
    $region81: #{forward.1} parent=1 // pred_fallthru
      _
    // Predicated region
    $region82: #{forward.1} parent=1 // pred_check
      _
    $region83: #{forward.1} parent=1 // pred_check_branch
      %107 = sbr.rel (0) target = $region85
    $region84: #{forward.1} parent=1 // pred_region
      _
    $region85: #{forward.1} parent=1 // pred_fallthru
      _
    // Predicated region
    $region86: #{forward.1} parent=1 // pred_check
      _
    $region87: #{forward.1} parent=1 // pred_check_branch
      %109 = sbr.rel (0) target = $region89
    $region88: #{forward.1} parent=1 // pred_region
      _
    $region89: #{forward.1} parent=1 // pred_fallthru
      _
    // Predicated region
    $region90: #{forward.1} parent=1 // pred_check
      _
    $region91: #{forward.1} parent=1 // pred_check_branch
      %111 = sbr.rel (0) target = $region93
    $region92: #{forward.1} parent=1 // pred_region
      _
    $region93: #{forward.1} parent=1 // pred_fallthru
      _
    // Predicated region
    $region94: #{forward.1} parent=1 // pred_check
      _
    $region95: #{forward.1} parent=1 // pred_check_branch
      %113 = sbr.rel (0) target = $region97
    $region96: #{forward.1} parent=1 // pred_region
      _
    $region97: #{forward.1} parent=1 // pred_fallthru
      _
    // Predicated region
    $region98: #{forward.1} parent=1 // pred_check
      _
    $region99: #{forward.1} parent=1 // pred_check_branch
      %115 = sbr.rel (0) target = $region101
    $region100: #{forward.1} parent=1 // pred_region
      _
    $region101: #{forward.1} parent=1 // pred_fallthru
      _
    // Predicated region
    $region102: #{forward.1} parent=1 // pred_check
      _
    $region103: #{forward.1} parent=1 // pred_check_branch
      %117 = sbr.rel (0) target = $region105
    $region104: #{forward.1} parent=1 // pred_region
      _
    $region105: #{forward.1} parent=1 // pred_fallthru
      _
    // Predicated region
    $region106: #{forward.1} parent=1 // pred_check
      _
    $region107: #{forward.1} parent=1 // pred_check_branch
      %119 = sbr.rel (0) target = $region109
    $region108: #{forward.1} parent=1 // pred_region
      _
    $region109: #{forward.1} parent=1 // pred_fallthru
      _
    %v121 = vld [vmem:[%s1] sm:$0xf]
    %v122 = vld [vmem:[%s1 + $0x4] sm:$0xf]
    %v123 = vld [vmem:[%s1 + $0x8] sm:$0xf]
    %v124 = vld [vmem:[%s1 + $0xc] sm:$0xf]
    %v125 = vld [vmem:[%s1 + $0x10] sm:$0xf]
    %v126 = vld [vmem:[%s1 + $0x14] sm:$0xf]
    %v127 = vld [vmem:[%s1 + $0x18] sm:$0xf]
    %v128 = vld [vmem:[%s1 + $0x1c] sm:$0xf]
    %v129 = vld [vmem:[%s3] sm:$0xf]
    %v130 = vld [vmem:[%s3 + $0x4] sm:$0xf]
    %v131 = vld [vmem:[%s3 + $0x8] sm:$0xf]
    %v132 = vld [vmem:[%s3 + $0xc] sm:$0x7]
    %v137 = vunpack.c.l.b16 %v129
    %v138 = vunpack.c.l.b16 %v130
    %v139 = vunpack.c.l.b16 %v131
    %v140 = vunpack.c.l.b16 %v132
    %v141 = vpack.c.b16 %v138, %v137
    %v142 = vpack.c.b16 %v140, %v139
    %v151 = vunpack.c.l.b16 %v121
    %v152 = vunpack.c.l.b16 %v122
    %v153 = vunpack.c.l.b16 %v123
    %v154 = vunpack.c.l.b16 %v124
    %v155 = vunpack.c.l.b16 %v125
    %v156 = vunpack.c.l.b16 %v126
    %v157 = vunpack.c.l.b16 %v127
    %v158 = vunpack.c.l.b16 %v128
    %v159 = vpack.c.b16 %v152, %v151
    %v160 = vpack.c.b16 %v154, %v153
    %v161 = vpack.c.b16 %v156, %v155
    %v162 = vpack.c.b16 %v158, %v157
    %vm167 = vcmask 523264
    %v169 = vsel %vm167, %v141, 0
    %v172 = vsel %vm167, %v142, 0
    %174 = vmatprep.subr.bf16.mxu0 0
    %175 = vmatpush1.bf16.msra.mxu0 %v159
    %176 = vmatprep.subr.bf16.mxu0 0
    %177 = vmatpush1.bf16.msra.mxu0 %v160
    %178 = vmatprep.subr.bf16.mxu0 0
    %179 = vmatpush1.bf16.msra.mxu0 %v161
    %180 = vmatprep.subr.bf16.mxu0 0
    %181 = vmatpush1.bf16.msra.mxu0 %v162
    %182 = vmatprep.subr.bf16.mxu0 0
    %183 = vmatpush1.bf16.msra.mxu0 0
    %184 = vmatprep.subr.bf16.mxu0 0
    %185 = vmatpush1.bf16.msra.mxu0 0
    %186 = vmatprep.subr.bf16.mxu0 0
    %187 = vmatpush1.bf16.msra.mxu0 0
    %188 = vmatprep.subr.bf16.mxu0 0
    %189 = vmatpush1.bf16.msra.mxu0 0
    %190 = vmatprep.subr.bf16.mxu0 0
    %191 = vmatpush1.bf16.msra.mxu0 0
    %192 = vmatprep.subr.bf16.mxu0 0
    %193 = vmatpush1.bf16.msra.mxu0 0
    %194 = vmatprep.subr.bf16.mxu0 0
    %195 = vmatpush1.bf16.msra.mxu0 0
    %196 = vmatprep.subr.bf16.mxu0 0
    %197 = vmatpush1.bf16.msra.mxu0 0
    %198 = vmatprep.subr.bf16.mxu0 0
    %199 = vmatpush1.bf16.msra.mxu0 0
    %200 = vmatprep.subr.bf16.mxu0 0
    %201 = vmatpush1.bf16.msra.mxu0 0
    %202 = vmatprep.subr.bf16.mxu0 0
    %203 = vmatpush1.bf16.msra.mxu0 0
    %204 = vmatprep.subr.bf16.mxu0 0
    %205 = vmatpush1.bf16.msra.mxu0 0
    %206 = vmatprep.mubr.bf16.mxu0 0
    %207 = vmatmul.mubr.bf16.gmra.mrb[0].mxu0 %v169
    %v208 = vpop.f32.mrb[0].mxu0
    %v209 = vadd.f32 0.0, %v208
    %v210 = vpop.f32.mrb[0].mxu0
    %v211 = vpop.f32.mrb[0].mxu0
    %v212 = vadd.f32 0.0, %v211
    %v213 = vpop.f32.mrb[0].mxu0
    %214 = vmatprep.mubr.bf16.mxu0 0
    %215 = vmatmul.mubr.bf16.gmra.mrb[0].mxu0 %v172
    %v216 = vpop.f32.mrb[0].mxu0
    %v217 = vadd.f32 0.0, %v216
    %v218 = vpop.f32.mrb[0].mxu0
    %v219 = vpop.f32.mrb[0].mxu0
    %v220 = vadd.f32 0.0, %v219
    %v221 = vpop.f32.mrb[0].mxu0
    %222 = vdwg.mxu0
    %v223 = vpack.c.bf16 %v212, %v209
    %v224 = vpack.c.bf16 %v220, %v217
    %v225 = vld [vmem:[%s5] sm:$0xff]
    %v226 = vld [vmem:[%s5 + $0x8] sm:$0xff]
    %v227 = vld [vmem:[%s5 + $0x10] sm:$0xff]
    %v228 = vld [vmem:[%s5 + $0x18] sm:$0xff]
    %v229 = vld [vmem:[%s5 + $0x20] sm:$0xff]
    %v230 = vld [vmem:[%s5 + $0x28] sm:$0xff]
    %v231 = vld [vmem:[%s5 + $0x30] sm:$0xff]
    %v232 = vld [vmem:[%s5 + $0x38] sm:$0xff]
    %v233 = vld [vmem:[%s5 + $0x40] sm:$0xff]
    %v234 = vld [vmem:[%s5 + $0x48] sm:$0xff]
    %v235 = vld [vmem:[%s5 + $0x50] sm:$0xff]
    %v236 = vld [vmem:[%s5 + $0x58] sm:$0xff]
    %v237 = vld [vmem:[%s5 + $0x60] sm:$0xff]
    %v238 = vld [vmem:[%s5 + $0x68] sm:$0xff]
    %v239 = vld [vmem:[%s5 + $0x70] sm:$0xff]
    %v240 = vld [vmem:[%s5 + $0x78] sm:$0xff]
    %v241 = vld [vmem:[%s5 + $0x80] sm:$0xff]
    %v242 = vld [vmem:[%s5 + $0x88] sm:$0xff]
    %v243 = vld [vmem:[%s5 + $0x90] sm:$0xff]
    %v244 = vld [vmem:[%s5 + $0x98] sm:$0xff]
    %v245 = vld [vmem:[%s5 + $0xa0] sm:$0xff]
    %v246 = vld [vmem:[%s5 + $0xa8] sm:$0xff]
    %v247 = vld [vmem:[%s5 + $0xb0] sm:$0xff]
    %v248 = vld [vmem:[%s5 + $0xb8] sm:$0xff]
    %s249 = scalar_lea.vmem %s3, 16
    %v250 = vld [vmem:[%s249] sm:$0xf]
    %v251 = vld [vmem:[%s249 + $0x4] sm:$0xf]
    %v252 = vld [vmem:[%s249 + $0x8] sm:$0xf]
    %v253 = vld [vmem:[%s249 + $0xc] sm:$0x7]
    %v258 = vunpack.c.l.b16 %v250
    %v259 = vunpack.c.l.b16 %v251
    %v260 = vunpack.c.l.b16 %v252
    %v261 = vunpack.c.l.b16 %v253
    %v262 = vpack.c.b16 %v259, %v258
    %v263 = vpack.c.b16 %v261, %v260
    %v265 = vsel %vm167, %v262, 0
    %v268 = vsel %vm167, %v263, 0
    %270 = vmatprep.subr.bf16.mxu0 0
    %271 = vmatpush1.bf16.msra.mxu0 %v159
    %272 = vmatprep.subr.bf16.mxu0 0
    %273 = vmatpush1.bf16.msra.mxu0 %v160
    %274 = vmatprep.subr.bf16.mxu0 0
    %275 = vmatpush1.bf16.msra.mxu0 %v161
    %276 = vmatprep.subr.bf16.mxu0 0
    %277 = vmatpush1.bf16.msra.mxu0 %v162
    %278 = vmatprep.subr.bf16.mxu0 0
    %279 = vmatpush1.bf16.msra.mxu0 0
    %280 = vmatprep.subr.bf16.mxu0 0
    %281 = vmatpush1.bf16.msra.mxu0 0
    %282 = vmatprep.subr.bf16.mxu0 0
    %283 = vmatpush1.bf16.msra.mxu0 0
    %284 = vmatprep.subr.bf16.mxu0 0
    %285 = vmatpush1.bf16.msra.mxu0 0
    %286 = vmatprep.subr.bf16.mxu0 0
    %287 = vmatpush1.bf16.msra.mxu0 0
    %288 = vmatprep.subr.bf16.mxu0 0
    %289 = vmatpush1.bf16.msra.mxu0 0
    %290 = vmatprep.subr.bf16.mxu0 0
    %291 = vmatpush1.bf16.msra.mxu0 0
    %292 = vmatprep.subr.bf16.mxu0 0
    %293 = vmatpush1.bf16.msra.mxu0 0
    %294 = vmatprep.subr.bf16.mxu0 0
    %295 = vmatpush1.bf16.msra.mxu0 0
    %296 = vmatprep.subr.bf16.mxu0 0
    %297 = vmatpush1.bf16.msra.mxu0 0
    %298 = vmatprep.subr.bf16.mxu0 0
    %299 = vmatpush1.bf16.msra.mxu0 0
    %300 = vmatprep.subr.bf16.mxu0 0
    %301 = vmatpush1.bf16.msra.mxu0 0
    %302 = vmatprep.mubr.bf16.mxu0 0
    %303 = vmatmul.mubr.bf16.gmra.mrb[0].mxu0 %v265
    %v304 = vpop.f32.mrb[0].mxu0
    %v305 = vadd.f32 0.0, %v304
    %v306 = vpop.f32.mrb[0].mxu0
    %v307 = vpop.f32.mrb[0].mxu0
    %v308 = vadd.f32 0.0, %v307
    %v309 = vpop.f32.mrb[0].mxu0
    %310 = vmatprep.mubr.bf16.mxu0 0
    %311 = vmatmul.mubr.bf16.gmra.mrb[0].mxu0 %v268
    %v312 = vpop.f32.mrb[0].mxu0
    %v313 = vadd.f32 0.0, %v312
    %v314 = vpop.f32.mrb[0].mxu0
    %v315 = vpop.f32.mrb[0].mxu0
    %v316 = vadd.f32 0.0, %v315
    %v317 = vpop.f32.mrb[0].mxu0
    %318 = vdwg.mxu0
    %v319 = vpack.c.bf16 %v308, %v305
    %v320 = vpack.c.bf16 %v316, %v313
    %s321 = scalar_lea.vmem %s5, 192
    %v322 = vld [vmem:[%s321] sm:$0xff]
    %v323 = vld [vmem:[%s321 + $0x8] sm:$0xff]
    %v324 = vld [vmem:[%s321 + $0x10] sm:$0xff]
    %v325 = vld [vmem:[%s321 + $0x18] sm:$0xff]
    %v326 = vld [vmem:[%s321 + $0x20] sm:$0xff]
    %v327 = vld [vmem:[%s321 + $0x28] sm:$0xff]
    %v328 = vld [vmem:[%s321 + $0x30] sm:$0xff]
    %v329 = vld [vmem:[%s321 + $0x38] sm:$0xff]
    %v330 = vld [vmem:[%s321 + $0x40] sm:$0xff]
    %v331 = vld [vmem:[%s321 + $0x48] sm:$0xff]
    %v332 = vld [vmem:[%s321 + $0x50] sm:$0xff]
    %v333 = vld [vmem:[%s321 + $0x58] sm:$0xff]
    %v334 = vld [vmem:[%s321 + $0x60] sm:$0xff]
    %v335 = vld [vmem:[%s321 + $0x68] sm:$0xff]
    %v336 = vld [vmem:[%s321 + $0x70] sm:$0xff]
    %v337 = vld [vmem:[%s321 + $0x78] sm:$0xff]
    %v338 = vld [vmem:[%s321 + $0x80] sm:$0xff]
    %v339 = vld [vmem:[%s321 + $0x88] sm:$0xff]
    %v340 = vld [vmem:[%s321 + $0x90] sm:$0xff]
    %v341 = vld [vmem:[%s321 + $0x98] sm:$0xff]
    %v342 = vld [vmem:[%s321 + $0xa0] sm:$0xff]
    %v343 = vld [vmem:[%s321 + $0xa8] sm:$0xff]
    %v344 = vld [vmem:[%s321 + $0xb0] sm:$0xff]
    %v345 = vld [vmem:[%s321 + $0xb8] sm:$0xff]
    %v370 = vunpack.c.l.b16 %v322
    %v371 = vunpack.c.h.b16 %v322
    %v372 = vunpack.c.l.b16 %v323
    %v373 = vunpack.c.h.b16 %v323
    %v374 = vunpack.c.l.b16 %v324
    %v375 = vunpack.c.h.b16 %v324
    %v376 = vunpack.c.l.b16 %v325
    %v377 = vunpack.c.h.b16 %v325
    %v378 = vunpack.c.l.b16 %v326
    %v379 = vunpack.c.h.b16 %v326
    %v380 = vunpack.c.l.b16 %v327
    %v381 = vunpack.c.h.b16 %v327
    %v382 = vunpack.c.l.b16 %v328
    %v383 = vunpack.c.h.b16 %v328
    %v384 = vunpack.c.l.b16 %v329
    %v385 = vunpack.c.h.b16 %v329
    %v386 = vunpack.c.l.b16 %v330
    %v387 = vunpack.c.h.b16 %v330
    %v388 = vunpack.c.l.b16 %v331
    %v389 = vunpack.c.h.b16 %v331
    %v390 = vunpack.c.l.b16 %v332
    %v391 = vunpack.c.h.b16 %v332
    %v392 = vunpack.c.l.b16 %v333
    %v393 = vunpack.c.h.b16 %v333
    %v394 = vunpack.c.l.b16 %v334
    %v395 = vunpack.c.h.b16 %v334
    %v396 = vunpack.c.l.b16 %v335
    %v397 = vunpack.c.h.b16 %v335
    %v398 = vunpack.c.l.b16 %v336
    %v399 = vunpack.c.h.b16 %v336
    %v400 = vunpack.c.l.b16 %v337
    %v401 = vunpack.c.h.b16 %v337
    %v402 = vunpack.c.l.b16 %v338
    %v403 = vunpack.c.h.b16 %v338
    %v404 = vunpack.c.l.b16 %v339
    %v405 = vunpack.c.h.b16 %v339
    %v406 = vunpack.c.l.b16 %v340
    %v407 = vunpack.c.h.b16 %v340
    %v408 = vunpack.c.l.b16 %v341
    %v409 = vunpack.c.h.b16 %v341
    %v410 = vunpack.c.l.b16 %v342
    %v411 = vunpack.c.h.b16 %v342
    %v412 = vunpack.c.l.b16 %v343
    %v413 = vunpack.c.h.b16 %v343
    %v414 = vunpack.c.l.b16 %v344
    %v415 = vunpack.c.h.b16 %v344
    %v416 = vunpack.c.l.b16 %v345
    %v417 = vunpack.c.h.b16 %v345
    %v418 = vpack.c.b16 %v374, %v370
    %v419 = vpack.c.b16 %v375, %v371
    %v420 = vpack.c.b16 %v376, %v372
    %v421 = vpack.c.b16 %v377, %v373
    %v422 = vpack.c.b16 %v382, %v378
    %v423 = vpack.c.b16 %v383, %v379
    %v424 = vpack.c.b16 %v384, %v380
    %v425 = vpack.c.b16 %v385, %v381
    %v426 = vpack.c.b16 %v390, %v386
    %v427 = vpack.c.b16 %v391, %v387
    %v428 = vpack.c.b16 %v392, %v388
    %v429 = vpack.c.b16 %v393, %v389
    %v430 = vpack.c.b16 %v398, %v394
    %v431 = vpack.c.b16 %v399, %v395
    %v432 = vpack.c.b16 %v400, %v396
    %v433 = vpack.c.b16 %v401, %v397
    %v434 = vpack.c.b16 %v406, %v402
    %v435 = vpack.c.b16 %v407, %v403
    %v436 = vpack.c.b16 %v408, %v404
    %v437 = vpack.c.b16 %v409, %v405
    %v438 = vpack.c.b16 %v414, %v410
    %v439 = vpack.c.b16 %v415, %v411
    %v440 = vpack.c.b16 %v416, %v412
    %v441 = vpack.c.b16 %v417, %v413
    %vm466 = vcmask 785408
    %v468 = vsel %vm466, %v319, 0
    %v471 = vsel %vm466, %v320, 0
    %473 = vmatprep.subr.bf16.mxu0 %v419
    %474 = vmatpush1.bf16.msra.mxu0 %v418
    %475 = vmatprep.subr.bf16.mxu0 %v423
    %476 = vmatpush1.bf16.msra.mxu0 %v422
    %477 = vmatprep.subr.bf16.mxu0 %v427
    %478 = vmatpush1.bf16.msra.mxu0 %v426
    %479 = vmatprep.subr.bf16.mxu0 %v431
    %480 = vmatpush1.bf16.msra.mxu0 %v430
    %481 = vmatprep.subr.bf16.mxu0 %v435
    %482 = vmatpush1.bf16.msra.mxu0 %v434
    %483 = vmatprep.subr.bf16.mxu0 %v439
    %484 = vmatpush1.bf16.msra.mxu0 %v438
    %485 = vmatprep.subr.bf16.mxu0 0
    %486 = vmatpush1.bf16.msra.mxu0 0
    %487 = vmatprep.subr.bf16.mxu0 0
    %488 = vmatpush1.bf16.msra.mxu0 0
    %489 = vmatprep.subr.bf16.mxu0 0
    %490 = vmatpush1.bf16.msra.mxu0 0
    %491 = vmatprep.subr.bf16.mxu0 0
    %492 = vmatpush1.bf16.msra.mxu0 0
    %493 = vmatprep.subr.bf16.mxu0 0
    %494 = vmatpush1.bf16.msra.mxu0 0
    %495 = vmatprep.subr.bf16.mxu0 0
    %496 = vmatpush1.bf16.msra.mxu0 0
    %497 = vmatprep.subr.bf16.mxu0 0
    %498 = vmatpush1.bf16.msra.mxu0 0
    %499 = vmatprep.subr.bf16.mxu0 0
    %500 = vmatpush1.bf16.msra.mxu0 0
    %501 = vmatprep.subr.bf16.mxu0 0
    %502 = vmatpush1.bf16.msra.mxu0 0
    %503 = vmatprep.subr.bf16.mxu0 0
    %504 = vmatpush1.bf16.msra.mxu0 0
    %505 = vmatprep.mubr.bf16.mxu0 0
    %506 = vmatmul.mubr.bf16.gmra.mrb[0].mxu0 %v468
    %v507 = vpop.f32.mrb[0].mxu0
    %v508 = vadd.f32 0.0, %v507
    %v509 = vpop.f32.mrb[0].mxu0
    %v510 = vadd.f32 0.0, %v509
    %v511 = vpop.f32.mrb[0].mxu0
    %v512 = vadd.f32 0.0, %v511
    %v513 = vpop.f32.mrb[0].mxu0
    %v514 = vadd.f32 0.0, %v513
    %515 = vmatprep.mubr.bf16.mxu0 0
    %516 = vmatmul.mubr.bf16.gmra.mrb[0].mxu0 %v471
    %v517 = vpop.f32.mrb[0].mxu0
    %v518 = vadd.f32 0.0, %v517
    %v519 = vpop.f32.mrb[0].mxu0
    %v520 = vadd.f32 0.0, %v519
    %v521 = vpop.f32.mrb[0].mxu0
    %v522 = vadd.f32 0.0, %v521
    %v523 = vpop.f32.mrb[0].mxu0
    %v524 = vadd.f32 0.0, %v523
    %525 = vdwg.mxu0
    %526 = vmatprep.subr.bf16.mxu0 %v421
    %527 = vmatpush1.bf16.msra.mxu0 %v420
    %528 = vmatprep.subr.bf16.mxu0 %v425
    %529 = vmatpush1.bf16.msra.mxu0 %v424
    %530 = vmatprep.subr.bf16.mxu0 %v429
    %531 = vmatpush1.bf16.msra.mxu0 %v428
    %532 = vmatprep.subr.bf16.mxu0 %v433
    %533 = vmatpush1.bf16.msra.mxu0 %v432
    %534 = vmatprep.subr.bf16.mxu0 %v437
    %535 = vmatpush1.bf16.msra.mxu0 %v436
    %536 = vmatprep.subr.bf16.mxu0 %v441
    %537 = vmatpush1.bf16.msra.mxu0 %v440
    %538 = vmatprep.subr.bf16.mxu0 0
    %539 = vmatpush1.bf16.msra.mxu0 0
    %540 = vmatprep.subr.bf16.mxu0 0
    %541 = vmatpush1.bf16.msra.mxu0 0
    %542 = vmatprep.subr.bf16.mxu0 0
    %543 = vmatpush1.bf16.msra.mxu0 0
    %544 = vmatprep.subr.bf16.mxu0 0
    %545 = vmatpush1.bf16.msra.mxu0 0
    %546 = vmatprep.subr.bf16.mxu0 0
    %547 = vmatpush1.bf16.msra.mxu0 0
    %548 = vmatprep.subr.bf16.mxu0 0
    %549 = vmatpush1.bf16.msra.mxu0 0
    %550 = vmatprep.subr.bf16.mxu0 0
    %551 = vmatpush1.bf16.msra.mxu0 0
    %552 = vmatprep.subr.bf16.mxu0 0
    %553 = vmatpush1.bf16.msra.mxu0 0
    %554 = vmatprep.subr.bf16.mxu0 0
    %555 = vmatpush1.bf16.msra.mxu0 0
    %556 = vmatprep.subr.bf16.mxu0 0
    %557 = vmatpush1.bf16.msra.mxu0 0
    %558 = vmatprep.mubr.bf16.mxu0 0
    %559 = vmatmul.mubr.bf16.gmra.mrb[0].mxu0 %v468
    %v560 = vpop.f32.mrb[0].mxu0
    %v561 = vadd.f32 0.0, %v560
    %v562 = vpop.f32.mrb[0].mxu0
    %v563 = vadd.f32 0.0, %v562
    %v564 = vpop.f32.mrb[0].mxu0
    %v565 = vadd.f32 0.0, %v564
    %v566 = vpop.f32.mrb[0].mxu0
    %v567 = vadd.f32 0.0, %v566
    %568 = vmatprep.mubr.bf16.mxu0 0
    %569 = vmatmul.mubr.bf16.gmra.mrb[0].mxu0 %v471
    %v570 = vpop.f32.mrb[0].mxu0
    %v571 = vadd.f32 0.0, %v570
    %v572 = vpop.f32.mrb[0].mxu0
    %v573 = vadd.f32 0.0, %v572
    %v574 = vpop.f32.mrb[0].mxu0
    %v575 = vadd.f32 0.0, %v574
    %v576 = vpop.f32.mrb[0].mxu0
    %v577 = vadd.f32 0.0, %v576
    %578 = vdwg.mxu0
    %v603 = vunpack.c.l.b16 %v225
    %v604 = vunpack.c.h.b16 %v225
    %v605 = vunpack.c.l.b16 %v226
    %v606 = vunpack.c.h.b16 %v226
    %v607 = vunpack.c.l.b16 %v227
    %v608 = vunpack.c.h.b16 %v227
    %v609 = vunpack.c.l.b16 %v228
    %v610 = vunpack.c.h.b16 %v228
    %v611 = vunpack.c.l.b16 %v229
    %v612 = vunpack.c.h.b16 %v229
    %v613 = vunpack.c.l.b16 %v230
    %v614 = vunpack.c.h.b16 %v230
    %v615 = vunpack.c.l.b16 %v231
    %v616 = vunpack.c.h.b16 %v231
    %v617 = vunpack.c.l.b16 %v232
    %v618 = vunpack.c.h.b16 %v232
    %v619 = vunpack.c.l.b16 %v233
    %v620 = vunpack.c.h.b16 %v233
    %v621 = vunpack.c.l.b16 %v234
    %v622 = vunpack.c.h.b16 %v234
    %v623 = vunpack.c.l.b16 %v235
    %v624 = vunpack.c.h.b16 %v235
    %v625 = vunpack.c.l.b16 %v236
    %v626 = vunpack.c.h.b16 %v236
    %v627 = vunpack.c.l.b16 %v237
    %v628 = vunpack.c.h.b16 %v237
    %v629 = vunpack.c.l.b16 %v238
    %v630 = vunpack.c.h.b16 %v238
    %v631 = vunpack.c.l.b16 %v239
    %v632 = vunpack.c.h.b16 %v239
    %v633 = vunpack.c.l.b16 %v240
    %v634 = vunpack.c.h.b16 %v240
    %v635 = vunpack.c.l.b16 %v241
    %v636 = vunpack.c.h.b16 %v241
    %v637 = vunpack.c.l.b16 %v242
    %v638 = vunpack.c.h.b16 %v242
    %v639 = vunpack.c.l.b16 %v243
    %v640 = vunpack.c.h.b16 %v243
    %v641 = vunpack.c.l.b16 %v244
    %v642 = vunpack.c.h.b16 %v244
    %v643 = vunpack.c.l.b16 %v245
    %v644 = vunpack.c.h.b16 %v245
    %v645 = vunpack.c.l.b16 %v246
    %v646 = vunpack.c.h.b16 %v246
    %v647 = vunpack.c.l.b16 %v247
    %v648 = vunpack.c.h.b16 %v247
    %v649 = vunpack.c.l.b16 %v248
    %v650 = vunpack.c.h.b16 %v248
    %v651 = vpack.c.b16 %v607, %v603
    %v652 = vpack.c.b16 %v608, %v604
    %v653 = vpack.c.b16 %v609, %v605
    %v654 = vpack.c.b16 %v610, %v606
    %v655 = vpack.c.b16 %v615, %v611
    %v656 = vpack.c.b16 %v616, %v612
    %v657 = vpack.c.b16 %v617, %v613
    %v658 = vpack.c.b16 %v618, %v614
    %v659 = vpack.c.b16 %v623, %v619
    %v660 = vpack.c.b16 %v624, %v620
    %v661 = vpack.c.b16 %v625, %v621
    %v662 = vpack.c.b16 %v626, %v622
    %v663 = vpack.c.b16 %v631, %v627
    %v664 = vpack.c.b16 %v632, %v628
    %v665 = vpack.c.b16 %v633, %v629
    %v666 = vpack.c.b16 %v634, %v630
    %v667 = vpack.c.b16 %v639, %v635
    %v668 = vpack.c.b16 %v640, %v636
    %v669 = vpack.c.b16 %v641, %v637
    %v670 = vpack.c.b16 %v642, %v638
    %v671 = vpack.c.b16 %v647, %v643
    %v672 = vpack.c.b16 %v648, %v644
    %v673 = vpack.c.b16 %v649, %v645
    %v674 = vpack.c.b16 %v650, %v646
    %v700 = vsel %vm466, %v223, 0
    %v703 = vsel %vm466, %v224, 0
    %705 = vmatprep.subr.bf16.mxu0 %v652
    %706 = vmatpush1.bf16.msra.mxu0 %v651
    %707 = vmatprep.subr.bf16.mxu0 %v656
    %708 = vmatpush1.bf16.msra.mxu0 %v655
    %709 = vmatprep.subr.bf16.mxu0 %v660
    %710 = vmatpush1.bf16.msra.mxu0 %v659
    %711 = vmatprep.subr.bf16.mxu0 %v664
    %712 = vmatpush1.bf16.msra.mxu0 %v663
    %713 = vmatprep.subr.bf16.mxu0 %v668
    %714 = vmatpush1.bf16.msra.mxu0 %v667
    %715 = vmatprep.subr.bf16.mxu0 %v672
    %716 = vmatpush1.bf16.msra.mxu0 %v671
    %717 = vmatprep.subr.bf16.mxu0 0
    %718 = vmatpush1.bf16.msra.mxu0 0
    %719 = vmatprep.subr.bf16.mxu0 0
    %720 = vmatpush1.bf16.msra.mxu0 0
    %721 = vmatprep.subr.bf16.mxu0 0
    %722 = vmatpush1.bf16.msra.mxu0 0
    %723 = vmatprep.subr.bf16.mxu0 0
    %724 = vmatpush1.bf16.msra.mxu0 0
    %725 = vmatprep.subr.bf16.mxu0 0
    %726 = vmatpush1.bf16.msra.mxu0 0
    %727 = vmatprep.subr.bf16.mxu0 0
    %728 = vmatpush1.bf16.msra.mxu0 0
    %729 = vmatprep.subr.bf16.mxu0 0
    %730 = vmatpush1.bf16.msra.mxu0 0
    %731 = vmatprep.subr.bf16.mxu0 0
    %732 = vmatpush1.bf16.msra.mxu0 0
    %733 = vmatprep.subr.bf16.mxu0 0
    %734 = vmatpush1.bf16.msra.mxu0 0
    %735 = vmatprep.subr.bf16.mxu0 0
    %736 = vmatpush1.bf16.msra.mxu0 0
    %737 = vmatprep.mubr.bf16.mxu0 0
    %738 = vmatmul.mubr.bf16.gmra.mrb[0].mxu0 %v700
    %v739 = vpop.f32.mrb[0].mxu0
    %v740 = vadd.f32 %v508, %v739
    %v741 = vpop.f32.mrb[0].mxu0
    %v742 = vadd.f32 %v510, %v741
    %v743 = vpop.f32.mrb[0].mxu0
    %v744 = vadd.f32 %v512, %v743
    %v745 = vpop.f32.mrb[0].mxu0
    %v746 = vadd.f32 %v514, %v745
    %747 = vmatprep.mubr.bf16.mxu0 0
    %748 = vmatmul.mubr.bf16.gmra.mrb[0].mxu0 %v703
    %v749 = vpop.f32.mrb[0].mxu0
    %v750 = vadd.f32 %v518, %v749
    %v751 = vpop.f32.mrb[0].mxu0
    %v752 = vadd.f32 %v520, %v751
    %v753 = vpop.f32.mrb[0].mxu0
    %v754 = vadd.f32 %v522, %v753
    %v755 = vpop.f32.mrb[0].mxu0
    %v756 = vadd.f32 %v524, %v755
    %757 = vdwg.mxu0
    %758 = vmatprep.subr.bf16.mxu0 %v654
    %759 = vmatpush1.bf16.msra.mxu0 %v653
    %760 = vmatprep.subr.bf16.mxu0 %v658
    %761 = vmatpush1.bf16.msra.mxu0 %v657
    %762 = vmatprep.subr.bf16.mxu0 %v662
    %763 = vmatpush1.bf16.msra.mxu0 %v661
    %764 = vmatprep.subr.bf16.mxu0 %v666
    %765 = vmatpush1.bf16.msra.mxu0 %v665
    %766 = vmatprep.subr.bf16.mxu0 %v670
    %767 = vmatpush1.bf16.msra.mxu0 %v669
    %768 = vmatprep.subr.bf16.mxu0 %v674
    %769 = vmatpush1.bf16.msra.mxu0 %v673
    %770 = vmatprep.subr.bf16.mxu0 0
    %771 = vmatpush1.bf16.msra.mxu0 0
    %772 = vmatprep.subr.bf16.mxu0 0
    %773 = vmatpush1.bf16.msra.mxu0 0
    %774 = vmatprep.subr.bf16.mxu0 0
    %775 = vmatpush1.bf16.msra.mxu0 0
    %776 = vmatprep.subr.bf16.mxu0 0
    %777 = vmatpush1.bf16.msra.mxu0 0
    %778 = vmatprep.subr.bf16.mxu0 0
    %779 = vmatpush1.bf16.msra.mxu0 0
    %780 = vmatprep.subr.bf16.mxu0 0
    %781 = vmatpush1.bf16.msra.mxu0 0
    %782 = vmatprep.subr.bf16.mxu0 0
    %783 = vmatpush1.bf16.msra.mxu0 0
    %784 = vmatprep.subr.bf16.mxu0 0
    %785 = vmatpush1.bf16.msra.mxu0 0
    %786 = vmatprep.subr.bf16.mxu0 0
    %787 = vmatpush1.bf16.msra.mxu0 0
    %788 = vmatprep.subr.bf16.mxu0 0
    %789 = vmatpush1.bf16.msra.mxu0 0
    %790 = vmatprep.mubr.bf16.mxu0 0
    %791 = vmatmul.mubr.bf16.gmra.mrb[0].mxu0 %v700
    %v792 = vpop.f32.mrb[0].mxu0
    %v793 = vadd.f32 %v561, %v792
    %v794 = vpop.f32.mrb[0].mxu0
    %v795 = vadd.f32 %v563, %v794
    %v796 = vpop.f32.mrb[0].mxu0
    %v797 = vadd.f32 %v565, %v796
    %v798 = vpop.f32.mrb[0].mxu0
    %v799 = vadd.f32 %v567, %v798
    %800 = vmatprep.mubr.bf16.mxu0 0
    %801 = vmatmul.mubr.bf16.gmra.mrb[0].mxu0 %v703
    %v802 = vpop.f32.mrb[0].mxu0
    %v803 = vadd.f32 %v571, %v802
    %v804 = vpop.f32.mrb[0].mxu0
    %v805 = vadd.f32 %v573, %v804
    %v806 = vpop.f32.mrb[0].mxu0
    %v807 = vadd.f32 %v575, %v806
    %v808 = vpop.f32.mrb[0].mxu0
    %v809 = vadd.f32 %v577, %v808
    %810 = vdwg.mxu0
    %s811 = scalar_lea.vmem %s3, 32
    %v812 = vld [vmem:[%s811] sm:$0xf]
    %v813 = vld [vmem:[%s811 + $0x4] sm:$0xf]
    %v814 = vld [vmem:[%s811 + $0x8] sm:$0xf]
    %v815 = vld [vmem:[%s811 + $0xc] sm:$0x7]
    %v820 = vunpack.c.l.b16 %v812
    %v821 = vunpack.c.l.b16 %v813
    %v822 = vunpack.c.l.b16 %v814
    %v823 = vunpack.c.l.b16 %v815
    %v824 = vpack.c.b16 %v821, %v820
    %v825 = vpack.c.b16 %v823, %v822
    %v827 = vsel %vm167, %v824, 0
    %v830 = vsel %vm167, %v825, 0
    %832 = vmatprep.subr.bf16.mxu0 0
    %833 = vmatpush1.bf16.msra.mxu0 %v159
    %834 = vmatprep.subr.bf16.mxu0 0
    %835 = vmatpush1.bf16.msra.mxu0 %v160
    %836 = vmatprep.subr.bf16.mxu0 0
    %837 = vmatpush1.bf16.msra.mxu0 %v161
    %838 = vmatprep.subr.bf16.mxu0 0
    %839 = vmatpush1.bf16.msra.mxu0 %v162
    %840 = vmatprep.subr.bf16.mxu0 0
    %841 = vmatpush1.bf16.msra.mxu0 0
    %842 = vmatprep.subr.bf16.mxu0 0
    %843 = vmatpush1.bf16.msra.mxu0 0
    %844 = vmatprep.subr.bf16.mxu0 0
    %845 = vmatpush1.bf16.msra.mxu0 0
    %846 = vmatprep.subr.bf16.mxu0 0
    %847 = vmatpush1.bf16.msra.mxu0 0
    %848 = vmatprep.subr.bf16.mxu0 0
    %849 = vmatpush1.bf16.msra.mxu0 0
    %850 = vmatprep.subr.bf16.mxu0 0
    %851 = vmatpush1.bf16.msra.mxu0 0
    %852 = vmatprep.subr.bf16.mxu0 0
    %853 = vmatpush1.bf16.msra.mxu0 0
    %854 = vmatprep.subr.bf16.mxu0 0
    %855 = vmatpush1.bf16.msra.mxu0 0
    %856 = vmatprep.subr.bf16.mxu0 0
    %857 = vmatpush1.bf16.msra.mxu0 0
    %858 = vmatprep.subr.bf16.mxu0 0
    %859 = vmatpush1.bf16.msra.mxu0 0
    %860 = vmatprep.subr.bf16.mxu0 0
    %861 = vmatpush1.bf16.msra.mxu0 0
    %862 = vmatprep.subr.bf16.mxu0 0
    %863 = vmatpush1.bf16.msra.mxu0 0
    %864 = vmatprep.mubr.bf16.mxu0 0
    %865 = vmatmul.mubr.bf16.gmra.mrb[0].mxu0 %v827
    %v866 = vpop.f32.mrb[0].mxu0
    %v867 = vadd.f32 0.0, %v866
    %v868 = vpop.f32.mrb[0].mxu0
    %v869 = vpop.f32.mrb[0].mxu0
    %v870 = vadd.f32 0.0, %v869
    %v871 = vpop.f32.mrb[0].mxu0
    %872 = vmatprep.mubr.bf16.mxu0 0
    %873 = vmatmul.mubr.bf16.gmra.mrb[0].mxu0 %v830
    %v874 = vpop.f32.mrb[0].mxu0
    %v875 = vadd.f32 0.0, %v874
    %v876 = vpop.f32.mrb[0].mxu0
    %v877 = vpop.f32.mrb[0].mxu0
    %v878 = vadd.f32 0.0, %v877
    %v879 = vpop.f32.mrb[0].mxu0
    %880 = vdwg.mxu0
    %v881 = vpack.c.bf16 %v870, %v867
    %v882 = vpack.c.bf16 %v878, %v875
    %s883 = scalar_lea.vmem %s5, 384
    %v884 = vld [vmem:[%s883] sm:$0xff]
    %v885 = vld [vmem:[%s883 + $0x8] sm:$0xff]
    %v886 = vld [vmem:[%s883 + $0x10] sm:$0xff]
    %v887 = vld [vmem:[%s883 + $0x18] sm:$0xff]
    %v888 = vld [vmem:[%s883 + $0x20] sm:$0xff]
    %v889 = vld [vmem:[%s883 + $0x28] sm:$0xff]
    %v890 = vld [vmem:[%s883 + $0x30] sm:$0xff]
    %v891 = vld [vmem:[%s883 + $0x38] sm:$0xff]
    %v892 = vld [vmem:[%s883 + $0x40] sm:$0xff]
    %v893 = vld [vmem:[%s883 + $0x48] sm:$0xff]
    %v894 = vld [vmem:[%s883 + $0x50] sm:$0xff]
    %v895 = vld [vmem:[%s883 + $0x58] sm:$0xff]
    %v896 = vld [vmem:[%s883 + $0x60] sm:$0xff]
    %v897 = vld [vmem:[%s883 + $0x68] sm:$0xff]
    %v898 = vld [vmem:[%s883 + $0x70] sm:$0xff]
    %v899 = vld [vmem:[%s883 + $0x78] sm:$0xff]
    %v900 = vld [vmem:[%s883 + $0x80] sm:$0xff]
    %v901 = vld [vmem:[%s883 + $0x88] sm:$0xff]
    %v902 = vld [vmem:[%s883 + $0x90] sm:$0xff]
    %v903 = vld [vmem:[%s883 + $0x98] sm:$0xff]
    %v904 = vld [vmem:[%s883 + $0xa0] sm:$0xff]
    %v905 = vld [vmem:[%s883 + $0xa8] sm:$0xff]
    %v906 = vld [vmem:[%s883 + $0xb0] sm:$0xff]
    %v907 = vld [vmem:[%s883 + $0xb8] sm:$0xff]
    %v932 = vunpack.c.l.b16 %v884
    %v933 = vunpack.c.h.b16 %v884
    %v934 = vunpack.c.l.b16 %v885
    %v935 = vunpack.c.h.b16 %v885
    %v936 = vunpack.c.l.b16 %v886
    %v937 = vunpack.c.h.b16 %v886
    %v938 = vunpack.c.l.b16 %v887
    %v939 = vunpack.c.h.b16 %v887
    %v940 = vunpack.c.l.b16 %v888
    %v941 = vunpack.c.h.b16 %v888
    %v942 = vunpack.c.l.b16 %v889
    %v943 = vunpack.c.h.b16 %v889
    %v944 = vunpack.c.l.b16 %v890
    %v945 = vunpack.c.h.b16 %v890
    %v946 = vunpack.c.l.b16 %v891
    %v947 = vunpack.c.h.b16 %v891
    %v948 = vunpack.c.l.b16 %v892
    %v949 = vunpack.c.h.b16 %v892
    %v950 = vunpack.c.l.b16 %v893
    %v951 = vunpack.c.h.b16 %v893
    %v952 = vunpack.c.l.b16 %v894
    %v953 = vunpack.c.h.b16 %v894
    %v954 = vunpack.c.l.b16 %v895
    %v955 = vunpack.c.h.b16 %v895
    %v956 = vunpack.c.l.b16 %v896
    %v957 = vunpack.c.h.b16 %v896
    %v958 = vunpack.c.l.b16 %v897
    %v959 = vunpack.c.h.b16 %v897
    %v960 = vunpack.c.l.b16 %v898
    %v961 = vunpack.c.h.b16 %v898
    %v962 = vunpack.c.l.b16 %v899
    %v963 = vunpack.c.h.b16 %v899
    %v964 = vunpack.c.l.b16 %v900
    %v965 = vunpack.c.h.b16 %v900
    %v966 = vunpack.c.l.b16 %v901
    %v967 = vunpack.c.h.b16 %v901
    %v968 = vunpack.c.l.b16 %v902
    %v969 = vunpack.c.h.b16 %v902
    %v970 = vunpack.c.l.b16 %v903
    %v971 = vunpack.c.h.b16 %v903
    %v972 = vunpack.c.l.b16 %v904
    %v973 = vunpack.c.h.b16 %v904
    %v974 = vunpack.c.l.b16 %v905
    %v975 = vunpack.c.h.b16 %v905
    %v976 = vunpack.c.l.b16 %v906
    %v977 = vunpack.c.h.b16 %v906
    %v978 = vunpack.c.l.b16 %v907
    %v979 = vunpack.c.h.b16 %v907
    %v980 = vpack.c.b16 %v936, %v932
    %v981 = vpack.c.b16 %v937, %v933
    %v982 = vpack.c.b16 %v938, %v934
    %v983 = vpack.c.b16 %v939, %v935
    %v984 = vpack.c.b16 %v944, %v940
    %v985 = vpack.c.b16 %v945, %v941
    %v986 = vpack.c.b16 %v946, %v942
    %v987 = vpack.c.b16 %v947, %v943
    %v988 = vpack.c.b16 %v952, %v948
    %v989 = vpack.c.b16 %v953, %v949
    %v990 = vpack.c.b16 %v954, %v950
    %v991 = vpack.c.b16 %v955, %v951
    %v992 = vpack.c.b16 %v960, %v956
    %v993 = vpack.c.b16 %v961, %v957
    %v994 = vpack.c.b16 %v962, %v958
    %v995 = vpack.c.b16 %v963, %v959
    %v996 = vpack.c.b16 %v968, %v964
    %v997 = vpack.c.b16 %v969, %v965
    %v998 = vpack.c.b16 %v970, %v966
    %v999 = vpack.c.b16 %v971, %v967
    %v1000 = vpack.c.b16 %v976, %v972
    %v1001 = vpack.c.b16 %v977, %v973
    %v1002 = vpack.c.b16 %v978, %v974
    %v1003 = vpack.c.b16 %v979, %v975
    %v1029 = vsel %vm466, %v881, 0
    %v1032 = vsel %vm466, %v882, 0
    %1034 = vmatprep.subr.bf16.mxu0 %v981
    %1035 = vmatpush1.bf16.msra.mxu0 %v980
    %1036 = vmatprep.subr.bf16.mxu0 %v985
    %1037 = vmatpush1.bf16.msra.mxu0 %v984
    %1038 = vmatprep.subr.bf16.mxu0 %v989
    %1039 = vmatpush1.bf16.msra.mxu0 %v988
    %1040 = vmatprep.subr.bf16.mxu0 %v993
    %1041 = vmatpush1.bf16.msra.mxu0 %v992
    %1042 = vmatprep.subr.bf16.mxu0 %v997
    %1043 = vmatpush1.bf16.msra.mxu0 %v996
    %1044 = vmatprep.subr.bf16.mxu0 %v1001
    %1045 = vmatpush1.bf16.msra.mxu0 %v1000
    %1046 = vmatprep.subr.bf16.mxu0 0
    %1047 = vmatpush1.bf16.msra.mxu0 0
    %1048 = vmatprep.subr.bf16.mxu0 0
    %1049 = vmatpush1.bf16.msra.mxu0 0
    %1050 = vmatprep.subr.bf16.mxu0 0
    %1051 = vmatpush1.bf16.msra.mxu0 0
    %1052 = vmatprep.subr.bf16.mxu0 0
    %1053 = vmatpush1.bf16.msra.mxu0 0
    %1054 = vmatprep.subr.bf16.mxu0 0
    %1055 = vmatpush1.bf16.msra.mxu0 0
    %1056 = vmatprep.subr.bf16.mxu0 0
    %1057 = vmatpush1.bf16.msra.mxu0 0
    %1058 = vmatprep.subr.bf16.mxu0 0
    %1059 = vmatpush1.bf16.msra.mxu0 0
    %1060 = vmatprep.subr.bf16.mxu0 0
    %1061 = vmatpush1.bf16.msra.mxu0 0
    %1062 = vmatprep.subr.bf16.mxu0 0
    %1063 = vmatpush1.bf16.msra.mxu0 0
    %1064 = vmatprep.subr.bf16.mxu0 0
    %1065 = vmatpush1.bf16.msra.mxu0 0
    %1066 = vmatprep.mubr.bf16.mxu0 0
    %1067 = vmatmul.mubr.bf16.gmra.mrb[0].mxu0 %v1029
    %v1068 = vpop.f32.mrb[0].mxu0
    %v1069 = vadd.f32 0.0, %v1068
    %v1070 = vpop.f32.mrb[0].mxu0
    %v1071 = vadd.f32 0.0, %v1070
    %v1072 = vpop.f32.mrb[0].mxu0
    %v1073 = vadd.f32 0.0, %v1072
    %v1074 = vpop.f32.mrb[0].mxu0
    %v1075 = vadd.f32 0.0, %v1074
    %1076 = vmatprep.mubr.bf16.mxu0 0
    %1077 = vmatmul.mubr.bf16.gmra.mrb[0].mxu0 %v1032
    %v1078 = vpop.f32.mrb[0].mxu0
    %v1079 = vadd.f32 0.0, %v1078
    %v1080 = vpop.f32.mrb[0].mxu0
    %v1081 = vadd.f32 0.0, %v1080
    %v1082 = vpop.f32.mrb[0].mxu0
    %v1083 = vadd.f32 0.0, %v1082
    %v1084 = vpop.f32.mrb[0].mxu0
    %v1085 = vadd.f32 0.0, %v1084
    %1086 = vdwg.mxu0
    %1087 = vmatprep.subr.bf16.mxu0 %v983
    %1088 = vmatpush1.bf16.msra.mxu0 %v982
    %1089 = vmatprep.subr.bf16.mxu0 %v987
    %1090 = vmatpush1.bf16.msra.mxu0 %v986
    %1091 = vmatprep.subr.bf16.mxu0 %v991
    %1092 = vmatpush1.bf16.msra.mxu0 %v990
    %1093 = vmatprep.subr.bf16.mxu0 %v995
    %1094 = vmatpush1.bf16.msra.mxu0 %v994
    %1095 = vmatprep.subr.bf16.mxu0 %v999
    %1096 = vmatpush1.bf16.msra.mxu0 %v998
    %1097 = vmatprep.subr.bf16.mxu0 %v1003
    %1098 = vmatpush1.bf16.msra.mxu0 %v1002
    %1099 = vmatprep.subr.bf16.mxu0 0
    %1100 = vmatpush1.bf16.msra.mxu0 0
    %1101 = vmatprep.subr.bf16.mxu0 0
    %1102 = vmatpush1.bf16.msra.mxu0 0
    %1103 = vmatprep.subr.bf16.mxu0 0
    %1104 = vmatpush1.bf16.msra.mxu0 0
    %1105 = vmatprep.subr.bf16.mxu0 0
    %1106 = vmatpush1.bf16.msra.mxu0 0
    %1107 = vmatprep.subr.bf16.mxu0 0
    %1108 = vmatpush1.bf16.msra.mxu0 0
    %1109 = vmatprep.subr.bf16.mxu0 0
    %1110 = vmatpush1.bf16.msra.mxu0 0
    %1111 = vmatprep.subr.bf16.mxu0 0
    %1112 = vmatpush1.bf16.msra.mxu0 0
    %1113 = vmatprep.subr.bf16.mxu0 0
    %1114 = vmatpush1.bf16.msra.mxu0 0
    %1115 = vmatprep.subr.bf16.mxu0 0
    %1116 = vmatpush1.bf16.msra.mxu0 0
    %1117 = vmatprep.subr.bf16.mxu0 0
    %1118 = vmatpush1.bf16.msra.mxu0 0
    %1119 = vmatprep.mubr.bf16.mxu0 0
    %1120 = vmatmul.mubr.bf16.gmra.mrb[0].mxu0 %v1029
    %v1121 = vpop.f32.mrb[0].mxu0
    %v1122 = vadd.f32 0.0, %v1121
    %v1123 = vpop.f32.mrb[0].mxu0
    %v1124 = vadd.f32 0.0, %v1123
    %v1125 = vpop.f32.mrb[0].mxu0
    %v1126 = vadd.f32 0.0, %v1125
    %v1127 = vpop.f32.mrb[0].mxu0
    %v1128 = vadd.f32 0.0, %v1127
    %1129 = vmatprep.mubr.bf16.mxu0 0
    %1130 = vmatmul.mubr.bf16.gmra.mrb[0].mxu0 %v1032
    %v1131 = vpop.f32.mrb[0].mxu0
    %v1132 = vadd.f32 0.0, %v1131
    %v1133 = vpop.f32.mrb[0].mxu0
    %v1134 = vadd.f32 0.0, %v1133
    %v1135 = vpop.f32.mrb[0].mxu0
    %v1136 = vadd.f32 0.0, %v1135
    %v1137 = vpop.f32.mrb[0].mxu0
    %v1138 = vadd.f32 0.0, %v1137
    %1139 = vdwg.mxu0
    %v1140 = vadd.f32 %v740, %v1069
    %v1141 = vadd.f32 %v742, %v1071
    %v1142 = vadd.f32 %v793, %v1122
    %v1143 = vadd.f32 %v795, %v1124
    %v1144 = vadd.f32 %v744, %v1073
    %v1145 = vadd.f32 %v746, %v1075
    %v1146 = vadd.f32 %v797, %v1126
    %v1147 = vadd.f32 %v799, %v1128
    %v1148 = vadd.f32 %v750, %v1079
    %v1149 = vadd.f32 %v752, %v1081
    %v1150 = vadd.f32 %v803, %v1132
    %v1151 = vadd.f32 %v805, %v1134
    %v1152 = vadd.f32 %v754, %v1083
    %v1153 = vadd.f32 %v756, %v1085
    %v1154 = vadd.f32 %v807, %v1136
    %v1155 = vadd.f32 %v809, %v1138
    %s1156 = scalar_lea.vmem %s3, 48
    %v1157 = vld [vmem:[%s1156] sm:$0xf]
    %v1158 = vld [vmem:[%s1156 + $0x4] sm:$0xf]
    %v1159 = vld [vmem:[%s1156 + $0x8] sm:$0xf]
    %v1160 = vld [vmem:[%s1156 + $0xc] sm:$0x7]
    %v1165 = vunpack.c.l.b16 %v1157
    %v1166 = vunpack.c.l.b16 %v1158
    %v1167 = vunpack.c.l.b16 %v1159
    %v1168 = vunpack.c.l.b16 %v1160
    %v1169 = vpack.c.b16 %v1166, %v1165
    %v1170 = vpack.c.b16 %v1168, %v1167
    %v1172 = vsel %vm167, %v1169, 0
    %v1175 = vsel %vm167, %v1170, 0
    %1177 = vmatprep.subr.bf16.mxu0 0
    %1178 = vmatpush1.bf16.msra.mxu0 %v159
    %1179 = vmatprep.subr.bf16.mxu0 0
    %1180 = vmatpush1.bf16.msra.mxu0 %v160
    %1181 = vmatprep.subr.bf16.mxu0 0
    %1182 = vmatpush1.bf16.msra.mxu0 %v161
    %1183 = vmatprep.subr.bf16.mxu0 0
    %1184 = vmatpush1.bf16.msra.mxu0 %v162
    %1185 = vmatprep.subr.bf16.mxu0 0
    %1186 = vmatpush1.bf16.msra.mxu0 0
    %1187 = vmatprep.subr.bf16.mxu0 0
    %1188 = vmatpush1.bf16.msra.mxu0 0
    %1189 = vmatprep.subr.bf16.mxu0 0
    %1190 = vmatpush1.bf16.msra.mxu0 0
    %1191 = vmatprep.subr.bf16.mxu0 0
    %1192 = vmatpush1.bf16.msra.mxu0 0
    %1193 = vmatprep.subr.bf16.mxu0 0
    %1194 = vmatpush1.bf16.msra.mxu0 0
    %1195 = vmatprep.subr.bf16.mxu0 0
    %1196 = vmatpush1.bf16.msra.mxu0 0
    %1197 = vmatprep.subr.bf16.mxu0 0
    %1198 = vmatpush1.bf16.msra.mxu0 0
    %1199 = vmatprep.subr.bf16.mxu0 0
    %1200 = vmatpush1.bf16.msra.mxu0 0
    %1201 = vmatprep.subr.bf16.mxu0 0
    %1202 = vmatpush1.bf16.msra.mxu0 0
    %1203 = vmatprep.subr.bf16.mxu0 0
    %1204 = vmatpush1.bf16.msra.mxu0 0
    %1205 = vmatprep.subr.bf16.mxu0 0
    %1206 = vmatpush1.bf16.msra.mxu0 0
    %1207 = vmatprep.subr.bf16.mxu0 0
    %1208 = vmatpush1.bf16.msra.mxu0 0
    %1209 = vmatprep.mubr.bf16.mxu0 0
    %1210 = vmatmul.mubr.bf16.gmra.mrb[0].mxu0 %v1172
    %v1211 = vpop.f32.mrb[0].mxu0
    %v1212 = vadd.f32 0.0, %v1211
    %v1213 = vpop.f32.mrb[0].mxu0
    %v1214 = vpop.f32.mrb[0].mxu0
    %v1215 = vadd.f32 0.0, %v1214
    %v1216 = vpop.f32.mrb[0].mxu0
    %1217 = vmatprep.mubr.bf16.mxu0 0
    %1218 = vmatmul.mubr.bf16.gmra.mrb[0].mxu0 %v1175
    %v1219 = vpop.f32.mrb[0].mxu0
    %v1220 = vadd.f32 0.0, %v1219
    %v1221 = vpop.f32.mrb[0].mxu0
    %v1222 = vpop.f32.mrb[0].mxu0
    %v1223 = vadd.f32 0.0, %v1222
    %v1224 = vpop.f32.mrb[0].mxu0
    %1225 = vdwg.mxu0
    %v1226 = vpack.c.bf16 %v1215, %v1212
    %v1227 = vpack.c.bf16 %v1223, %v1220
    %s1228 = scalar_lea.vmem %s5, 576
    %v1229 = vld [vmem:[%s1228] sm:$0xff]
    %v1230 = vld [vmem:[%s1228 + $0x8] sm:$0xff]
    %v1231 = vld [vmem:[%s1228 + $0x10] sm:$0xff]
    %v1232 = vld [vmem:[%s1228 + $0x18] sm:$0xff]
    %v1233 = vld [vmem:[%s1228 + $0x20] sm:$0xff]
    %v1234 = vld [vmem:[%s1228 + $0x28] sm:$0xff]
    %v1235 = vld [vmem:[%s1228 + $0x30] sm:$0xff]
    %v1236 = vld [vmem:[%s1228 + $0x38] sm:$0xff]
    %v1237 = vld [vmem:[%s1228 + $0x40] sm:$0xff]
    %v1238 = vld [vmem:[%s1228 + $0x48] sm:$0xff]
    %v1239 = vld [vmem:[%s1228 + $0x50] sm:$0xff]
    %v1240 = vld [vmem:[%s1228 + $0x58] sm:$0xff]
    %v1241 = vld [vmem:[%s1228 + $0x60] sm:$0xff]
    %v1242 = vld [vmem:[%s1228 + $0x68] sm:$0xff]
    %v1243 = vld [vmem:[%s1228 + $0x70] sm:$0xff]
    %v1244 = vld [vmem:[%s1228 + $0x78] sm:$0xff]
    %v1245 = vld [vmem:[%s1228 + $0x80] sm:$0xff]
    %v1246 = vld [vmem:[%s1228 + $0x88] sm:$0xff]
    %v1247 = vld [vmem:[%s1228 + $0x90] sm:$0xff]
    %v1248 = vld [vmem:[%s1228 + $0x98] sm:$0xff]
    %v1249 = vld [vmem:[%s1228 + $0xa0] sm:$0xff]
    %v1250 = vld [vmem:[%s1228 + $0xa8] sm:$0xff]
    %v1251 = vld [vmem:[%s1228 + $0xb0] sm:$0xff]
    %v1252 = vld [vmem:[%s1228 + $0xb8] sm:$0xff]
    %v1277 = vunpack.c.l.b16 %v1229
    %v1278 = vunpack.c.h.b16 %v1229
    %v1279 = vunpack.c.l.b16 %v1230
    %v1280 = vunpack.c.h.b16 %v1230
    %v1281 = vunpack.c.l.b16 %v1231
    %v1282 = vunpack.c.h.b16 %v1231
    %v1283 = vunpack.c.l.b16 %v1232
    %v1284 = vunpack.c.h.b16 %v1232
    %v1285 = vunpack.c.l.b16 %v1233
    %v1286 = vunpack.c.h.b16 %v1233
    %v1287 = vunpack.c.l.b16 %v1234
    %v1288 = vunpack.c.h.b16 %v1234
    %v1289 = vunpack.c.l.b16 %v1235
    %v1290 = vunpack.c.h.b16 %v1235
    %v1291 = vunpack.c.l.b16 %v1236
    %v1292 = vunpack.c.h.b16 %v1236
    %v1293 = vunpack.c.l.b16 %v1237
    %v1294 = vunpack.c.h.b16 %v1237
    %v1295 = vunpack.c.l.b16 %v1238
    %v1296 = vunpack.c.h.b16 %v1238
    %v1297 = vunpack.c.l.b16 %v1239
    %v1298 = vunpack.c.h.b16 %v1239
    %v1299 = vunpack.c.l.b16 %v1240
    %v1300 = vunpack.c.h.b16 %v1240
    %v1301 = vunpack.c.l.b16 %v1241
    %v1302 = vunpack.c.h.b16 %v1241
    %v1303 = vunpack.c.l.b16 %v1242
    %v1304 = vunpack.c.h.b16 %v1242
    %v1305 = vunpack.c.l.b16 %v1243
    %v1306 = vunpack.c.h.b16 %v1243
    %v1307 = vunpack.c.l.b16 %v1244
    %v1308 = vunpack.c.h.b16 %v1244
    %v1309 = vunpack.c.l.b16 %v1245
    %v1310 = vunpack.c.h.b16 %v1245
    %v1311 = vunpack.c.l.b16 %v1246
    %v1312 = vunpack.c.h.b16 %v1246
    %v1313 = vunpack.c.l.b16 %v1247
    %v1314 = vunpack.c.h.b16 %v1247
    %v1315 = vunpack.c.l.b16 %v1248
    %v1316 = vunpack.c.h.b16 %v1248
    %v1317 = vunpack.c.l.b16 %v1249
    %v1318 = vunpack.c.h.b16 %v1249
    %v1319 = vunpack.c.l.b16 %v1250
    %v1320 = vunpack.c.h.b16 %v1250
    %v1321 = vunpack.c.l.b16 %v1251
    %v1322 = vunpack.c.h.b16 %v1251
    %v1323 = vunpack.c.l.b16 %v1252
    %v1324 = vunpack.c.h.b16 %v1252
    %v1325 = vpack.c.b16 %v1281, %v1277
    %v1326 = vpack.c.b16 %v1282, %v1278
    %v1327 = vpack.c.b16 %v1283, %v1279
    %v1328 = vpack.c.b16 %v1284, %v1280
    %v1329 = vpack.c.b16 %v1289, %v1285
    %v1330 = vpack.c.b16 %v1290, %v1286
    %v1331 = vpack.c.b16 %v1291, %v1287
    %v1332 = vpack.c.b16 %v1292, %v1288
    %v1333 = vpack.c.b16 %v1297, %v1293
    %v1334 = vpack.c.b16 %v1298, %v1294
    %v1335 = vpack.c.b16 %v1299, %v1295
    %v1336 = vpack.c.b16 %v1300, %v1296
    %v1337 = vpack.c.b16 %v1305, %v1301
    %v1338 = vpack.c.b16 %v1306, %v1302
    %v1339 = vpack.c.b16 %v1307, %v1303
    %v1340 = vpack.c.b16 %v1308, %v1304
    %v1341 = vpack.c.b16 %v1313, %v1309
    %v1342 = vpack.c.b16 %v1314, %v1310
    %v1343 = vpack.c.b16 %v1315, %v1311
    %v1344 = vpack.c.b16 %v1316, %v1312
    %v1345 = vpack.c.b16 %v1321, %v1317
    %v1346 = vpack.c.b16 %v1322, %v1318
    %v1347 = vpack.c.b16 %v1323, %v1319
    %v1348 = vpack.c.b16 %v1324, %v1320
    %v1374 = vsel %vm466, %v1226, 0
    %v1377 = vsel %vm466, %v1227, 0
    %1379 = vmatprep.subr.bf16.mxu0 %v1326
    %1380 = vmatpush1.bf16.msra.mxu0 %v1325
    %1381 = vmatprep.subr.bf16.mxu0 %v1330
    %1382 = vmatpush1.bf16.msra.mxu0 %v1329
    %1383 = vmatprep.subr.bf16.mxu0 %v1334
    %1384 = vmatpush1.bf16.msra.mxu0 %v1333
    %1385 = vmatprep.subr.bf16.mxu0 %v1338
    %1386 = vmatpush1.bf16.msra.mxu0 %v1337
    %1387 = vmatprep.subr.bf16.mxu0 %v1342
    %1388 = vmatpush1.bf16.msra.mxu0 %v1341
    %1389 = vmatprep.subr.bf16.mxu0 %v1346
    %1390 = vmatpush1.bf16.msra.mxu0 %v1345
    %1391 = vmatprep.subr.bf16.mxu0 0
    %1392 = vmatpush1.bf16.msra.mxu0 0
    %1393 = vmatprep.subr.bf16.mxu0 0
    %1394 = vmatpush1.bf16.msra.mxu0 0
    %1395 = vmatprep.subr.bf16.mxu0 0
    %1396 = vmatpush1.bf16.msra.mxu0 0
    %1397 = vmatprep.subr.bf16.mxu0 0
    %1398 = vmatpush1.bf16.msra.mxu0 0
    %1399 = vmatprep.subr.bf16.mxu0 0
    %1400 = vmatpush1.bf16.msra.mxu0 0
    %1401 = vmatprep.subr.bf16.mxu0 0
    %1402 = vmatpush1.bf16.msra.mxu0 0
    %1403 = vmatprep.subr.bf16.mxu0 0
    %1404 = vmatpush1.bf16.msra.mxu0 0
    %1405 = vmatprep.subr.bf16.mxu0 0
    %1406 = vmatpush1.bf16.msra.mxu0 0
    %1407 = vmatprep.subr.bf16.mxu0 0
    %1408 = vmatpush1.bf16.msra.mxu0 0
    %1409 = vmatprep.subr.bf16.mxu0 0
    %1410 = vmatpush1.bf16.msra.mxu0 0
    %1411 = vmatprep.mubr.bf16.mxu0 0
    %1412 = vmatmul.mubr.bf16.gmra.mrb[0].mxu0 %v1374
    %v1413 = vpop.f32.mrb[0].mxu0
    %v1414 = vadd.f32 0.0, %v1413
    %v1415 = vpop.f32.mrb[0].mxu0
    %v1416 = vadd.f32 0.0, %v1415
    %v1417 = vpop.f32.mrb[0].mxu0
    %v1418 = vadd.f32 0.0, %v1417
    %v1419 = vpop.f32.mrb[0].mxu0
    %v1420 = vadd.f32 0.0, %v1419
    %1421 = vmatprep.mubr.bf16.mxu0 0
    %1422 = vmatmul.mubr.bf16.gmra.mrb[0].mxu0 %v1377
    %v1423 = vpop.f32.mrb[0].mxu0
    %v1424 = vadd.f32 0.0, %v1423
    %v1425 = vpop.f32.mrb[0].mxu0
    %v1426 = vadd.f32 0.0, %v1425
    %v1427 = vpop.f32.mrb[0].mxu0
    %v1428 = vadd.f32 0.0, %v1427
    %v1429 = vpop.f32.mrb[0].mxu0
    %v1430 = vadd.f32 0.0, %v1429
    %1431 = vdwg.mxu0
    %1432 = vmatprep.subr.bf16.mxu0 %v1328
    %1433 = vmatpush1.bf16.msra.mxu0 %v1327
    %1434 = vmatprep.subr.bf16.mxu0 %v1332
    %1435 = vmatpush1.bf16.msra.mxu0 %v1331
    %1436 = vmatprep.subr.bf16.mxu0 %v1336
    %1437 = vmatpush1.bf16.msra.mxu0 %v1335
    %1438 = vmatprep.subr.bf16.mxu0 %v1340
    %1439 = vmatpush1.bf16.msra.mxu0 %v1339
    %1440 = vmatprep.subr.bf16.mxu0 %v1344
    %1441 = vmatpush1.bf16.msra.mxu0 %v1343
    %1442 = vmatprep.subr.bf16.mxu0 %v1348
    %1443 = vmatpush1.bf16.msra.mxu0 %v1347
    %1444 = vmatprep.subr.bf16.mxu0 0
    %1445 = vmatpush1.bf16.msra.mxu0 0
    %1446 = vmatprep.subr.bf16.mxu0 0
    %1447 = vmatpush1.bf16.msra.mxu0 0
    %1448 = vmatprep.subr.bf16.mxu0 0
    %1449 = vmatpush1.bf16.msra.mxu0 0
    %1450 = vmatprep.subr.bf16.mxu0 0
    %1451 = vmatpush1.bf16.msra.mxu0 0
    %1452 = vmatprep.subr.bf16.mxu0 0
    %1453 = vmatpush1.bf16.msra.mxu0 0
    %1454 = vmatprep.subr.bf16.mxu0 0
    %1455 = vmatpush1.bf16.msra.mxu0 0
    %1456 = vmatprep.subr.bf16.mxu0 0
    %1457 = vmatpush1.bf16.msra.mxu0 0
    %1458 = vmatprep.subr.bf16.mxu0 0
    %1459 = vmatpush1.bf16.msra.mxu0 0
    %1460 = vmatprep.subr.bf16.mxu0 0
    %1461 = vmatpush1.bf16.msra.mxu0 0
    %1462 = vmatprep.subr.bf16.mxu0 0
    %1463 = vmatpush1.bf16.msra.mxu0 0
    %1464 = vmatprep.mubr.bf16.mxu0 0
    %1465 = vmatmul.mubr.bf16.gmra.mrb[0].mxu0 %v1374
    %v1466 = vpop.f32.mrb[0].mxu0
    %v1467 = vadd.f32 0.0, %v1466
    %v1468 = vpop.f32.mrb[0].mxu0
    %v1469 = vadd.f32 0.0, %v1468
    %v1470 = vpop.f32.mrb[0].mxu0
    %v1471 = vadd.f32 0.0, %v1470
    %v1472 = vpop.f32.mrb[0].mxu0
    %v1473 = vadd.f32 0.0, %v1472
    %1474 = vmatprep.mubr.bf16.mxu0 0
    %1475 = vmatmul.mubr.bf16.gmra.mrb[0].mxu0 %v1377
    %v1476 = vpop.f32.mrb[0].mxu0
    %v1477 = vadd.f32 0.0, %v1476
    %v1478 = vpop.f32.mrb[0].mxu0
    %v1479 = vadd.f32 0.0, %v1478
    %v1480 = vpop.f32.mrb[0].mxu0
    %v1481 = vadd.f32 0.0, %v1480
    %v1482 = vpop.f32.mrb[0].mxu0
    %v1483 = vadd.f32 0.0, %v1482
    %1484 = vdwg.mxu0
    %v1485 = vadd.f32 %v1140, %v1414
    %v1486 = vadd.f32 %v1141, %v1416
    %v1487 = vadd.f32 %v1142, %v1467
    %v1488 = vadd.f32 %v1143, %v1469
    %v1489 = vadd.f32 %v1144, %v1418
    %v1490 = vadd.f32 %v1145, %v1420
    %v1491 = vadd.f32 %v1146, %v1471
    %v1492 = vadd.f32 %v1147, %v1473
    %v1493 = vadd.f32 %v1148, %v1424
    %v1494 = vadd.f32 %v1149, %v1426
    %v1495 = vadd.f32 %v1150, %v1477
    %v1496 = vadd.f32 %v1151, %v1479
    %v1497 = vadd.f32 %v1152, %v1428
    %v1498 = vadd.f32 %v1153, %v1430
    %v1499 = vadd.f32 %v1154, %v1481
    %v1500 = vadd.f32 %v1155, %v1483
    %v1501 = vadd.f32 %v1485, %v1489
    %v1502 = vadd.f32 %v1501, %v1493
    %vm1503 = vcmask 1045504
    %v1504 = vsel %vm1503, %v1497, 0.0
    %v1505 = vadd.f32 %v1502, %v1504
    %v1506 = vrot.slane %v1505, 4
    %v1507 = vadd.f32 %v1505, %v1506
    %v1508 = vrot.slane %v1507, 2
    %v1509 = vadd.f32 %v1507, %v1508
    %v1510 = vrot.slane %v1509, 1
    %v1511 = vadd.f32 %v1509, %v1510
    %v1512 = vadd.f32 %v1486, %v1490
    %v1513 = vadd.f32 %v1512, %v1494
    %v1514 = vsel %vm1503, %v1498, 0.0
    %v1515 = vadd.f32 %v1513, %v1514
    %v1516 = vrot.slane %v1515, 4
    %v1517 = vadd.f32 %v1515, %v1516
    %v1518 = vrot.slane %v1517, 2
    %v1519 = vadd.f32 %v1517, %v1518
    %v1520 = vrot.slane %v1519, 1
    %v1521 = vadd.f32 %v1519, %v1520
    %v1522 = vadd.f32 %v1487, %v1491
    %v1523 = vadd.f32 %v1522, %v1495
    %v1524 = vsel %vm1503, %v1499, 0.0
    %v1525 = vadd.f32 %v1523, %v1524
    %v1526 = vrot.slane %v1525, 4
    %v1527 = vadd.f32 %v1525, %v1526
    %v1528 = vrot.slane %v1527, 2
    %v1529 = vadd.f32 %v1527, %v1528
    %v1530 = vrot.slane %v1529, 1
    %v1531 = vadd.f32 %v1529, %v1530
    %v1532 = vsel %vm466, %v1488, 0.0
    %v1533 = vsel %vm466, %v1492, 0.0
    %v1534 = vadd.f32 %v1532, %v1533
    %v1535 = vsel %vm466, %v1496, 0.0
    %v1536 = vadd.f32 %v1534, %v1535
    %vm1537 = vcmask 783360
    %v1538 = vsel %vm1537, %v1500, 0.0
    %v1539 = vadd.f32 %v1536, %v1538
    %v1540 = vrot.slane %v1539, 4
    %v1541 = vadd.f32 %v1539, %v1540
    %v1542 = vrot.slane %v1541, 2
    %v1543 = vadd.f32 %v1541, %v1542
    %v1544 = vrot.slane %v1543, 1
    %v1545 = vadd.f32 %v1543, %v1544
    %v1546 = vmul.f32 %v1485, %v1485
    %v1547 = vmul.f32 %v1486, %v1486
    %v1548 = vmul.f32 %v1487, %v1487
    %v1549 = vmul.f32 %v1488, %v1488
    %v1550 = vmul.f32 %v1489, %v1489
    %v1551 = vmul.f32 %v1490, %v1490
    %v1552 = vmul.f32 %v1491, %v1491
    %v1553 = vmul.f32 %v1492, %v1492
    %v1554 = vmul.f32 %v1493, %v1493
    %v1555 = vmul.f32 %v1494, %v1494
    %v1556 = vmul.f32 %v1495, %v1495
    %v1557 = vmul.f32 %v1496, %v1496
    %v1558 = vmul.f32 %v1497, %v1497
    %v1559 = vmul.f32 %v1498, %v1498
    %v1560 = vmul.f32 %v1499, %v1499
    %v1561 = vmul.f32 %v1500, %v1500
    %v1562 = vadd.f32 %v1546, %v1550
    %v1563 = vadd.f32 %v1562, %v1554
    %v1564 = vsel %vm1503, %v1558, 0.0
    %v1565 = vadd.f32 %v1563, %v1564
    %v1566 = vrot.slane %v1565, 4
    %v1567 = vadd.f32 %v1565, %v1566
    %v1568 = vrot.slane %v1567, 2
    %v1569 = vadd.f32 %v1567, %v1568
    %v1570 = vrot.slane %v1569, 1
    %v1571 = vadd.f32 %v1569, %v1570
    %v1572 = vadd.f32 %v1547, %v1551
    %v1573 = vadd.f32 %v1572, %v1555
    %v1574 = vsel %vm1503, %v1559, 0.0
    %v1575 = vadd.f32 %v1573, %v1574
    %v1576 = vrot.slane %v1575, 4
    %v1577 = vadd.f32 %v1575, %v1576
    %v1578 = vrot.slane %v1577, 2
    %v1579 = vadd.f32 %v1577, %v1578
    %v1580 = vrot.slane %v1579, 1
    %v1581 = vadd.f32 %v1579, %v1580
    %v1582 = vadd.f32 %v1548, %v1552
    %v1583 = vadd.f32 %v1582, %v1556
    %v1584 = vsel %vm1503, %v1560, 0.0
    %v1585 = vadd.f32 %v1583, %v1584
    %v1586 = vrot.slane %v1585, 4
    %v1587 = vadd.f32 %v1585, %v1586
    %v1588 = vrot.slane %v1587, 2
    %v1589 = vadd.f32 %v1587, %v1588
    %v1590 = vrot.slane %v1589, 1
    %v1591 = vadd.f32 %v1589, %v1590
    %v1592 = vsel %vm466, %v1549, 0.0
    %v1593 = vsel %vm466, %v1553, 0.0
    %v1594 = vadd.f32 %v1592, %v1593
    %v1595 = vsel %vm466, %v1557, 0.0
    %v1596 = vadd.f32 %v1594, %v1595
    %v1597 = vsel %vm1537, %v1561, 0.0
    %v1598 = vadd.f32 %v1596, %v1597
    %v1599 = vrot.slane %v1598, 4
    %v1600 = vadd.f32 %v1598, %v1599
    %v1601 = vrot.slane %v1600, 2
    %v1602 = vadd.f32 %v1600, %v1601
    %v1603 = vrot.slane %v1602, 1
    %v1604 = vadd.f32 %v1602, %v1603
    %v1605 = vld [vmem:[%s7] sm:$0xff]
    %v1606 = vld [vmem:[%s7 + $0x8] sm:$0xff]
    %v1607 = vld [vmem:[%s7 + $0x10] sm:$0xff]
    %v1608 = vld [vmem:[%s7 + $0x18] sm:$0xff]
    %v1609 = vld [vmem:[%s7 + $0x20] sm:$0xff]
    %v1610 = vld [vmem:[%s7 + $0x28] sm:$0xff]
    %v1611 = vld [vmem:[%s7 + $0x30] sm:$0xff]
    %v1612 = vld [vmem:[%s7 + $0x38] sm:$0xff]
    %v1613 = vld [vmem:[%s7 + $0x40] sm:$0xff]
    %v1614 = vld [vmem:[%s7 + $0x48] sm:$0xff]
    %v1615 = vld [vmem:[%s7 + $0x50] sm:$0xff]
    %v1616 = vld [vmem:[%s7 + $0x58] sm:$0xff]
    %v1617 = vld [vmem:[%s7 + $0x60] sm:$0xff]
    %v1618 = vld [vmem:[%s7 + $0x68] sm:$0xff]
    %v1619 = vld [vmem:[%s7 + $0x70] sm:$0xff]
    %v1620 = vld [vmem:[%s7 + $0x78] sm:$0xff]
    %v1621 = vld [vmem:[%s7 + $0x80] sm:$0xff]
    %v1622 = vld [vmem:[%s7 + $0x88] sm:$0xff]
    %v1623 = vld [vmem:[%s7 + $0x90] sm:$0xff]
    %v1624 = vld [vmem:[%s7 + $0x98] sm:$0xff]
    %v1625 = vld [vmem:[%s7 + $0xa0] sm:$0xff]
    %v1626 = vld [vmem:[%s7 + $0xa8] sm:$0xff]
    %v1627 = vld [vmem:[%s7 + $0xb0] sm:$0xff]
    %v1628 = vld [vmem:[%s7 + $0xb8] sm:$0xff]
    %v1629 = vld [vmem:[%s7 + $0xc0] sm:$0xff]
    %v1630 = vld [vmem:[%s7 + $0xc8] sm:$0xff]
    %v1631 = vld [vmem:[%s7 + $0xd0] sm:$0xff]
    %v1632 = vld [vmem:[%s7 + $0xd8] sm:$0xff]
    %v1633 = vld [vmem:[%s7 + $0xe0] sm:$0xff]
    %v1634 = vld [vmem:[%s7 + $0xe8] sm:$0xff]
    %v1635 = vld [vmem:[%s7 + $0xf0] sm:$0xff]
    %v1636 = vld [vmem:[%s7 + $0xf8] sm:$0xff]
    %v1637 = vld [vmem:[%s7 + $0x100] sm:$0xff]
    %v1638 = vld [vmem:[%s7 + $0x108] sm:$0xff]
    %v1639 = vld [vmem:[%s7 + $0x110] sm:$0xff]
    %v1640 = vld [vmem:[%s7 + $0x118] sm:$0xff]
    %v1641 = vld [vmem:[%s7 + $0x120] sm:$0xff]
    %v1642 = vld [vmem:[%s7 + $0x128] sm:$0xff]
    %v1643 = vld [vmem:[%s7 + $0x130] sm:$0xff]
    %v1644 = vld [vmem:[%s7 + $0x138] sm:$0xff]
    %v1645 = vld [vmem:[%s7 + $0x140] sm:$0xff]
    %v1646 = vld [vmem:[%s7 + $0x148] sm:$0xff]
    %v1647 = vld [vmem:[%s7 + $0x150] sm:$0xff]
    %v1648 = vld [vmem:[%s7 + $0x158] sm:$0xff]
    %v1649 = vld [vmem:[%s7 + $0x160] sm:$0xff]
    %v1650 = vld [vmem:[%s7 + $0x168] sm:$0xff]
    %v1651 = vld [vmem:[%s7 + $0x170] sm:$0xff]
    %v1652 = vld [vmem:[%s7 + $0x178] sm:$0xff]
    %v1653 = vld [vmem:[%s7 + $0x180] sm:$0xff]
    %v1654 = vld [vmem:[%s7 + $0x188] sm:$0xff]
    %v1655 = vld [vmem:[%s7 + $0x190] sm:$0xff]
    %v1656 = vld [vmem:[%s7 + $0x198] sm:$0xff]
    %v1657 = vld [vmem:[%s7 + $0x1a0] sm:$0xff]
    %v1658 = vld [vmem:[%s7 + $0x1a8] sm:$0xff]
    %v1659 = vld [vmem:[%s7 + $0x1b0] sm:$0xff]
    %v1660 = vld [vmem:[%s7 + $0x1b8] sm:$0xff]
    %v1661 = vld [vmem:[%s7 + $0x1c0] sm:$0xff]
    %v1662 = vld [vmem:[%s7 + $0x1c8] sm:$0xff]
    %v1663 = vld [vmem:[%s7 + $0x1d0] sm:$0xff]
    %v1664 = vld [vmem:[%s7 + $0x1d8] sm:$0xff]
    %v1666 = vsel %vm466, %v1545, 0
    %1668 = vmatprep.subr.mxu0 0.0
    %1669 = vmatpush1.msra.mxu0 %v1605
    %1670 = vmatprep.subr.mxu0 0.0
    %1671 = vmatpush1.msra.mxu0 %v1606
    %1672 = vmatprep.subr.mxu0 0.0
    %1673 = vmatpush1.msra.mxu0 %v1607
    %1674 = vmatprep.subr.mxu0 0.0
    %1675 = vmatpush1.msra.mxu0 %v1608
    %1676 = vmatprep.subr.mxu0 0.0
    %1677 = vmatpush1.msra.mxu0 %v1609
    %1678 = vmatprep.subr.mxu0 0.0
    %1679 = vmatpush1.msra.mxu0 %v1610
    %1680 = vmatprep.subr.mxu0 0.0
    %1681 = vmatpush1.msra.mxu0 %v1611
    %1682 = vmatprep.subr.mxu0 0.0
    %1683 = vmatpush1.msra.mxu0 %v1612
    %1684 = vmatprep.subr.mxu0 0.0
    %1685 = vmatpush1.msra.mxu0 %v1613
    %1686 = vmatprep.subr.mxu0 0.0
    %1687 = vmatpush1.msra.mxu0 %v1614
    %1688 = vmatprep.subr.mxu0 0.0
    %1689 = vmatpush1.msra.mxu0 %v1615
    %1690 = vmatprep.subr.mxu0 0.0
    %1691 = vmatpush1.msra.mxu0 %v1616
    %1692 = vmatprep.subr.mxu0 0.0
    %1693 = vmatpush1.msra.mxu0 %v1617
    %1694 = vmatprep.subr.mxu0 0.0
    %1695 = vmatpush1.msra.mxu0 %v1618
    %1696 = vmatprep.subr.mxu0 0.0
    %1697 = vmatpush1.msra.mxu0 %v1619
    %1698 = vmatprep.subr.mxu0 0.0
    %1699 = vmatpush1.msra.mxu0 %v1620
    %1700 = vmatprep.subr.mxu0 0.0
    %1701 = vmatpush1.msra.mxu0 %v1621
    %1702 = vmatprep.subr.mxu0 0.0
    %1703 = vmatpush1.msra.mxu0 %v1622
    %1704 = vmatprep.subr.mxu0 0.0
    %1705 = vmatpush1.msra.mxu0 %v1623
    %1706 = vmatprep.subr.mxu0 0.0
    %1707 = vmatpush1.msra.mxu0 %v1624
    %1708 = vmatprep.subr.mxu0 0.0
    %1709 = vmatpush1.msra.mxu0 %v1625
    %1710 = vmatprep.subr.mxu0 0.0
    %1711 = vmatpush1.msra.mxu0 %v1626
    %1712 = vmatprep.subr.mxu0 0.0
    %1713 = vmatpush1.msra.mxu0 %v1627
    %1714 = vmatprep.subr.mxu0 0.0
    %1715 = vmatpush1.msra.mxu0 %v1628
    %1716 = vmatprep.subr.mxu0 0.0
    %1717 = vmatpush1.msra.mxu0 %v1629
    %1718 = vmatprep.subr.mxu0 0.0
    %1719 = vmatpush1.msra.mxu0 %v1630
    %1720 = vmatprep.subr.mxu0 0.0
    %1721 = vmatpush1.msra.mxu0 %v1631
    %1722 = vmatprep.subr.mxu0 0.0
    %1723 = vmatpush1.msra.mxu0 %v1632
    %1724 = vmatprep.subr.mxu0 0.0
    %1725 = vmatpush1.msra.mxu0 %v1633
    %1726 = vmatprep.subr.mxu0 0.0
    %1727 = vmatpush1.msra.mxu0 %v1634
    %1728 = vmatprep.subr.mxu0 0.0
    %1729 = vmatpush1.msra.mxu0 %v1635
    %1730 = vmatprep.subr.mxu0 0.0
    %1731 = vmatpush1.msra.mxu0 %v1636
    %1732 = vmatprep.mubr.f32.mxu0 %v1521
    %1733 = vmatmul.mubr.f32.gmra.mrb[0].mxu0 %v1511
    %v1734 = vpop.f32.mrb[0].mxu0
    %v1735 = vadd.f32 0.0, %v1734
    %v1736 = vpop.f32.mrb[0].mxu0
    %1737 = vdwg.mxu0
    %1738 = vmatprep.subr.mxu0 0.0
    %1739 = vmatpush1.msra.mxu0 %v1637
    %1740 = vmatprep.subr.mxu0 0.0
    %1741 = vmatpush1.msra.mxu0 %v1638
    %1742 = vmatprep.subr.mxu0 0.0
    %1743 = vmatpush1.msra.mxu0 %v1639
    %1744 = vmatprep.subr.mxu0 0.0
    %1745 = vmatpush1.msra.mxu0 %v1640
    %1746 = vmatprep.subr.mxu0 0.0
    %1747 = vmatpush1.msra.mxu0 %v1641
    %1748 = vmatprep.subr.mxu0 0.0
    %1749 = vmatpush1.msra.mxu0 %v1642
    %1750 = vmatprep.subr.mxu0 0.0
    %1751 = vmatpush1.msra.mxu0 %v1643
    %1752 = vmatprep.subr.mxu0 0.0
    %1753 = vmatpush1.msra.mxu0 %v1644
    %1754 = vmatprep.subr.mxu0 0.0
    %1755 = vmatpush1.msra.mxu0 %v1645
    %1756 = vmatprep.subr.mxu0 0.0
    %1757 = vmatpush1.msra.mxu0 %v1646
    %1758 = vmatprep.subr.mxu0 0.0
    %1759 = vmatpush1.msra.mxu0 %v1647
    %1760 = vmatprep.subr.mxu0 0.0
    %1761 = vmatpush1.msra.mxu0 %v1648
    %1762 = vmatprep.subr.mxu0 0.0
    %1763 = vmatpush1.msra.mxu0 %v1649
    %1764 = vmatprep.subr.mxu0 0.0
    %1765 = vmatpush1.msra.mxu0 %v1650
    %1766 = vmatprep.subr.mxu0 0.0
    %1767 = vmatpush1.msra.mxu0 %v1651
    %1768 = vmatprep.subr.mxu0 0.0
    %1769 = vmatpush1.msra.mxu0 %v1652
    %1770 = vmatprep.subr.mxu0 0.0
    %1771 = vmatpush1.msra.mxu0 %v1653
    %1772 = vmatprep.subr.mxu0 0.0
    %1773 = vmatpush1.msra.mxu0 %v1654
    %1774 = vmatprep.subr.mxu0 0.0
    %1775 = vmatpush1.msra.mxu0 %v1655
    %1776 = vmatprep.subr.mxu0 0.0
    %1777 = vmatpush1.msra.mxu0 %v1656
    %1778 = vmatprep.subr.mxu0 0.0
    %1779 = vmatpush1.msra.mxu0 %v1657
    %1780 = vmatprep.subr.mxu0 0.0
    %1781 = vmatpush1.msra.mxu0 %v1658
    %1782 = vmatprep.subr.mxu0 0.0
    %1783 = vmatpush1.msra.mxu0 %v1659
    %1784 = vmatprep.subr.mxu0 0.0
    %1785 = vmatpush1.msra.mxu0 %v1660
    %1786 = vmatprep.subr.mxu0 0.0
    %1787 = vmatpush1.msra.mxu0 %v1661
    %1788 = vmatprep.subr.mxu0 0.0
    %1789 = vmatpush1.msra.mxu0 %v1662
    %1790 = vmatprep.subr.mxu0 0.0
    %1791 = vmatpush1.msra.mxu0 %v1663
    %1792 = vmatprep.subr.mxu0 0.0
    %1793 = vmatpush1.msra.mxu0 %v1664
    %1794 = vmatprep.subr.mxu0 0.0
    %1795 = vmatpush1.msra.mxu0 0.0
    %1796 = vmatprep.subr.mxu0 0.0
    %1797 = vmatpush1.msra.mxu0 0.0
    %1798 = vmatprep.subr.mxu0 0.0
    %1799 = vmatpush1.msra.mxu0 0.0
    %1800 = vmatprep.subr.mxu0 0.0
    %1801 = vmatpush1.msra.mxu0 0.0
    %1802 = vmatprep.mubr.f32.mxu0 %v1666
    %1803 = vmatmul.mubr.f32.gmra.mrb[0].mxu0 %v1531
    %v1804 = vpop.f32.mrb[0].mxu0
    %v1805 = vadd.f32 %v1735, %v1804
    %v1806 = vpop.f32.mrb[0].mxu0
    %1807 = vdwg.mxu0
    %v1809 = vsel %vm466, %v1604, 0
    %1811 = vmatprep.subr.mxu0 0.0
    %1812 = vmatpush1.msra.mxu0 %v1605
    %1813 = vmatprep.subr.mxu0 0.0
    %1814 = vmatpush1.msra.mxu0 %v1606
    %1815 = vmatprep.subr.mxu0 0.0
    %1816 = vmatpush1.msra.mxu0 %v1607
    %1817 = vmatprep.subr.mxu0 0.0
    %1818 = vmatpush1.msra.mxu0 %v1608
    %1819 = vmatprep.subr.mxu0 0.0
    %1820 = vmatpush1.msra.mxu0 %v1609
    %1821 = vmatprep.subr.mxu0 0.0
    %1822 = vmatpush1.msra.mxu0 %v1610
    %1823 = vmatprep.subr.mxu0 0.0
    %1824 = vmatpush1.msra.mxu0 %v1611
    %1825 = vmatprep.subr.mxu0 0.0
    %1826 = vmatpush1.msra.mxu0 %v1612
    %1827 = vmatprep.subr.mxu0 0.0
    %1828 = vmatpush1.msra.mxu0 %v1613
    %1829 = vmatprep.subr.mxu0 0.0
    %1830 = vmatpush1.msra.mxu0 %v1614
    %1831 = vmatprep.subr.mxu0 0.0
    %1832 = vmatpush1.msra.mxu0 %v1615
    %1833 = vmatprep.subr.mxu0 0.0
    %1834 = vmatpush1.msra.mxu0 %v1616
    %1835 = vmatprep.subr.mxu0 0.0
    %1836 = vmatpush1.msra.mxu0 %v1617
    %1837 = vmatprep.subr.mxu0 0.0
    %1838 = vmatpush1.msra.mxu0 %v1618
    %1839 = vmatprep.subr.mxu0 0.0
    %1840 = vmatpush1.msra.mxu0 %v1619
    %1841 = vmatprep.subr.mxu0 0.0
    %1842 = vmatpush1.msra.mxu0 %v1620
    %1843 = vmatprep.subr.mxu0 0.0
    %1844 = vmatpush1.msra.mxu0 %v1621
    %1845 = vmatprep.subr.mxu0 0.0
    %1846 = vmatpush1.msra.mxu0 %v1622
    %1847 = vmatprep.subr.mxu0 0.0
    %1848 = vmatpush1.msra.mxu0 %v1623
    %1849 = vmatprep.subr.mxu0 0.0
    %1850 = vmatpush1.msra.mxu0 %v1624
    %1851 = vmatprep.subr.mxu0 0.0
    %1852 = vmatpush1.msra.mxu0 %v1625
    %1853 = vmatprep.subr.mxu0 0.0
    %1854 = vmatpush1.msra.mxu0 %v1626
    %1855 = vmatprep.subr.mxu0 0.0
    %1856 = vmatpush1.msra.mxu0 %v1627
    %1857 = vmatprep.subr.mxu0 0.0
    %1858 = vmatpush1.msra.mxu0 %v1628
    %1859 = vmatprep.subr.mxu0 0.0
    %1860 = vmatpush1.msra.mxu0 %v1629
    %1861 = vmatprep.subr.mxu0 0.0
    %1862 = vmatpush1.msra.mxu0 %v1630
    %1863 = vmatprep.subr.mxu0 0.0
    %1864 = vmatpush1.msra.mxu0 %v1631
    %1865 = vmatprep.subr.mxu0 0.0
    %1866 = vmatpush1.msra.mxu0 %v1632
    %1867 = vmatprep.subr.mxu0 0.0
    %1868 = vmatpush1.msra.mxu0 %v1633
    %1869 = vmatprep.subr.mxu0 0.0
    %1870 = vmatpush1.msra.mxu0 %v1634
    %1871 = vmatprep.subr.mxu0 0.0
    %1872 = vmatpush1.msra.mxu0 %v1635
    %1873 = vmatprep.subr.mxu0 0.0
    %1874 = vmatpush1.msra.mxu0 %v1636
    %1875 = vmatprep.mubr.f32.mxu0 %v1581
    %1876 = vmatmul.mubr.f32.gmra.mrb[0].mxu0 %v1571
    %v1877 = vpop.f32.mrb[0].mxu0
    %v1878 = vadd.f32 0.0, %v1877
    %v1879 = vpop.f32.mrb[0].mxu0
    %1880 = vdwg.mxu0
    %1881 = vmatprep.subr.mxu0 0.0
    %1882 = vmatpush1.msra.mxu0 %v1637
    %1883 = vmatprep.subr.mxu0 0.0
    %1884 = vmatpush1.msra.mxu0 %v1638
    %1885 = vmatprep.subr.mxu0 0.0
    %1886 = vmatpush1.msra.mxu0 %v1639
    %1887 = vmatprep.subr.mxu0 0.0
    %1888 = vmatpush1.msra.mxu0 %v1640
    %1889 = vmatprep.subr.mxu0 0.0
    %1890 = vmatpush1.msra.mxu0 %v1641
    %1891 = vmatprep.subr.mxu0 0.0
    %1892 = vmatpush1.msra.mxu0 %v1642
    %1893 = vmatprep.subr.mxu0 0.0
    %1894 = vmatpush1.msra.mxu0 %v1643
    %1895 = vmatprep.subr.mxu0 0.0
    %1896 = vmatpush1.msra.mxu0 %v1644
    %1897 = vmatprep.subr.mxu0 0.0
    %1898 = vmatpush1.msra.mxu0 %v1645
    %1899 = vmatprep.subr.mxu0 0.0
    %1900 = vmatpush1.msra.mxu0 %v1646
    %1901 = vmatprep.subr.mxu0 0.0
    %1902 = vmatpush1.msra.mxu0 %v1647
    %1903 = vmatprep.subr.mxu0 0.0
    %1904 = vmatpush1.msra.mxu0 %v1648
    %1905 = vmatprep.subr.mxu0 0.0
    %1906 = vmatpush1.msra.mxu0 %v1649
    %1907 = vmatprep.subr.mxu0 0.0
    %1908 = vmatpush1.msra.mxu0 %v1650
    %1909 = vmatprep.subr.mxu0 0.0
    %1910 = vmatpush1.msra.mxu0 %v1651
    %1911 = vmatprep.subr.mxu0 0.0
    %1912 = vmatpush1.msra.mxu0 %v1652
    %1913 = vmatprep.subr.mxu0 0.0
    %1914 = vmatpush1.msra.mxu0 %v1653
    %1915 = vmatprep.subr.mxu0 0.0
    %1916 = vmatpush1.msra.mxu0 %v1654
    %1917 = vmatprep.subr.mxu0 0.0
    %1918 = vmatpush1.msra.mxu0 %v1655
    %1919 = vmatprep.subr.mxu0 0.0
    %1920 = vmatpush1.msra.mxu0 %v1656
    %1921 = vmatprep.subr.mxu0 0.0
    %1922 = vmatpush1.msra.mxu0 %v1657
    %1923 = vmatprep.subr.mxu0 0.0
    %1924 = vmatpush1.msra.mxu0 %v1658
    %1925 = vmatprep.subr.mxu0 0.0
    %1926 = vmatpush1.msra.mxu0 %v1659
    %1927 = vmatprep.subr.mxu0 0.0
    %1928 = vmatpush1.msra.mxu0 %v1660
    %1929 = vmatprep.subr.mxu0 0.0
    %1930 = vmatpush1.msra.mxu0 %v1661
    %1931 = vmatprep.subr.mxu0 0.0
    %1932 = vmatpush1.msra.mxu0 %v1662
    %1933 = vmatprep.subr.mxu0 0.0
    %1934 = vmatpush1.msra.mxu0 %v1663
    %1935 = vmatprep.subr.mxu0 0.0
    %1936 = vmatpush1.msra.mxu0 %v1664
    %1937 = vmatprep.subr.mxu0 0.0
    %1938 = vmatpush1.msra.mxu0 0.0
    %1939 = vmatprep.subr.mxu0 0.0
    %1940 = vmatpush1.msra.mxu0 0.0
    %1941 = vmatprep.subr.mxu0 0.0
    %1942 = vmatpush1.msra.mxu0 0.0
    %1943 = vmatprep.subr.mxu0 0.0
    %1944 = vmatpush1.msra.mxu0 0.0
    %1945 = vmatprep.mubr.f32.mxu0 %v1809
    %1946 = vmatmul.mubr.f32.gmra.mrb[0].mxu0 %v1591
    %v1947 = vpop.f32.mrb[0].mxu0
    %v1948 = vadd.f32 %v1878, %v1947
    %v1949 = vpop.f32.mrb[0].mxu0
    %1950 = vdwg.mxu0
    %v1951 = vrcp.pop 450.0
    %v1952 = vmul.f32 %v1805, %v1951
    %v1953 = vmul.f32 %v1948, %v1951
    %v1954 = vmul.f32 %v1952, %v1952
    %v1955 = vsub.f32 %v1953, %v1954
    %v1956 = vmax.f32 %v1955, 0.0
    %v1957 = vld [vmem:[%s11] sm:$0x1]
    %v1958 = vadd.f32 %v1956, 1e-05
    %v1959 = vrsqrt.pop %v1958
    %v1960 = vmul.f32 %v1957, %v1959
    %v1961 = vld [vmem:[%s13] sm:$0x1]
    %v1962 = vmul.f32 %v1952, %v1960
    %v1963 = vsub.f32 %v1961, %v1962
    %v1964 = vld [vmem:[%s9] sm:$0xff]
    %v1965 = vld [vmem:[%s9 + $0x8] sm:$0xff]
    %v1966 = vld [vmem:[%s9 + $0x10] sm:$0xff]
    %v1967 = vld [vmem:[%s9 + $0x18] sm:$0xff]
    %v1968 = vld [vmem:[%s9 + $0x20] sm:$0xff]
    %v1969 = vld [vmem:[%s9 + $0x28] sm:$0xff]
    %v1970 = vld [vmem:[%s9 + $0x30] sm:$0xff]
    %v1971 = vld [vmem:[%s9 + $0x38] sm:$0xff]
    %v1972 = vld [vmem:[%s9 + $0x40] sm:$0xff]
    %v1973 = vld [vmem:[%s9 + $0x48] sm:$0xff]
    %v1974 = vld [vmem:[%s9 + $0x50] sm:$0xff]
    %v1975 = vld [vmem:[%s9 + $0x58] sm:$0xff]
    %v1976 = vld [vmem:[%s9 + $0x60] sm:$0xff]
    %v1977 = vld [vmem:[%s9 + $0x68] sm:$0xff]
    %v1978 = vld [vmem:[%s9 + $0x70] sm:$0xff]
    %v1979 = vld [vmem:[%s9 + $0x78] sm:$0xff]
    %vm1980 = vcmask 261120
    %v1982 = vsel %vm1980, %v1960, 0
    %1984 = vmatprep.subr.mxu0 %v1965
    %1985 = vmatpush1.msra.mxu0 %v1964
    %1986 = vmatprep.subr.mxu0 %v1969
    %1987 = vmatpush1.msra.mxu0 %v1968
    %1988 = vmatprep.subr.mxu0 %v1973
    %1989 = vmatpush1.msra.mxu0 %v1972
    %1990 = vmatprep.subr.mxu0 %v1977
    %1991 = vmatpush1.msra.mxu0 %v1976
    %1992 = vmatprep.subr.mxu0 0.0
    %1993 = vmatpush1.msra.mxu0 0.0
    %1994 = vmatprep.subr.mxu0 0.0
    %1995 = vmatpush1.msra.mxu0 0.0
    %1996 = vmatprep.subr.mxu0 0.0
    %1997 = vmatpush1.msra.mxu0 0.0
    %1998 = vmatprep.subr.mxu0 0.0
    %1999 = vmatpush1.msra.mxu0 0.0
    %2000 = vmatprep.subr.mxu0 0.0
    %2001 = vmatpush1.msra.mxu0 0.0
    %2002 = vmatprep.subr.mxu0 0.0
    %2003 = vmatpush1.msra.mxu0 0.0
    %2004 = vmatprep.subr.mxu0 0.0
    %2005 = vmatpush1.msra.mxu0 0.0
    %2006 = vmatprep.subr.mxu0 0.0
    %2007 = vmatpush1.msra.mxu0 0.0
    %2008 = vmatprep.subr.mxu0 0.0
    %2009 = vmatpush1.msra.mxu0 0.0
    %2010 = vmatprep.subr.mxu0 0.0
    %2011 = vmatpush1.msra.mxu0 0.0
    %2012 = vmatprep.subr.mxu0 0.0
    %2013 = vmatpush1.msra.mxu0 0.0
    %2014 = vmatprep.subr.mxu0 0.0
    %2015 = vmatpush1.msra.mxu0 0.0
    %2016 = vmatprep.subr.mxu0 0.0
    %2017 = vmatpush1.msra.mxu0 0.0
    %2018 = vmatprep.subr.mxu0 0.0
    %2019 = vmatpush1.msra.mxu0 0.0
    %2020 = vmatprep.subr.mxu0 0.0
    %2021 = vmatpush1.msra.mxu0 0.0
    %2022 = vmatprep.subr.mxu0 0.0
    %2023 = vmatpush1.msra.mxu0 0.0
    %2024 = vmatprep.subr.mxu0 0.0
    %2025 = vmatpush1.msra.mxu0 0.0
    %2026 = vmatprep.subr.mxu0 0.0
    %2027 = vmatpush1.msra.mxu0 0.0
    %2028 = vmatprep.subr.mxu0 0.0
    %2029 = vmatpush1.msra.mxu0 0.0
    %2030 = vmatprep.subr.mxu0 0.0
    %2031 = vmatpush1.msra.mxu0 0.0
    %2032 = vmatprep.subr.mxu0 0.0
    %2033 = vmatpush1.msra.mxu0 0.0
    %2034 = vmatprep.subr.mxu0 0.0
    %2035 = vmatpush1.msra.mxu0 0.0
    %2036 = vmatprep.subr.mxu0 0.0
    %2037 = vmatpush1.msra.mxu0 0.0
    %2038 = vmatprep.subr.mxu0 0.0
    %2039 = vmatpush1.msra.mxu0 0.0
    %2040 = vmatprep.subr.mxu0 0.0
    %2041 = vmatpush1.msra.mxu0 0.0
    %2042 = vmatprep.subr.mxu0 0.0
    %2043 = vmatpush1.msra.mxu0 0.0
    %2044 = vmatprep.subr.mxu0 0.0
    %2045 = vmatpush1.msra.mxu0 0.0
    %2046 = vmatprep.subr.mxu0 0.0
    %2047 = vmatpush1.msra.mxu0 0.0
    %2048 = vmatprep.mubr.f32.mxu0 0.0
    %2049 = vmatmul.mubr.f32.gmra.mrb[0].mxu0 %v1982
    %v2050 = vpop.f32.mrb[0].mxu0
    %v2051 = vadd.f32 0.0, %v2050
    %v2052 = vpop.f32.mrb[0].mxu0
    %v2053 = vadd.f32 0.0, %v2052
    %2054 = vdwg.mxu0
    %2055 = vmatprep.subr.mxu0 %v1967
    %2056 = vmatpush1.msra.mxu0 %v1966
    %2057 = vmatprep.subr.mxu0 %v1971
    %2058 = vmatpush1.msra.mxu0 %v1970
    %2059 = vmatprep.subr.mxu0 %v1975
    %2060 = vmatpush1.msra.mxu0 %v1974
    %2061 = vmatprep.subr.mxu0 %v1979
    %2062 = vmatpush1.msra.mxu0 %v1978
    %2063 = vmatprep.subr.mxu0 0.0
    %2064 = vmatpush1.msra.mxu0 0.0
    %2065 = vmatprep.subr.mxu0 0.0
    %2066 = vmatpush1.msra.mxu0 0.0
    %2067 = vmatprep.subr.mxu0 0.0
    %2068 = vmatpush1.msra.mxu0 0.0
    %2069 = vmatprep.subr.mxu0 0.0
    %2070 = vmatpush1.msra.mxu0 0.0
    %2071 = vmatprep.subr.mxu0 0.0
    %2072 = vmatpush1.msra.mxu0 0.0
    %2073 = vmatprep.subr.mxu0 0.0
    %2074 = vmatpush1.msra.mxu0 0.0
    %2075 = vmatprep.subr.mxu0 0.0
    %2076 = vmatpush1.msra.mxu0 0.0
    %2077 = vmatprep.subr.mxu0 0.0
    %2078 = vmatpush1.msra.mxu0 0.0
    %2079 = vmatprep.subr.mxu0 0.0
    %2080 = vmatpush1.msra.mxu0 0.0
    %2081 = vmatprep.subr.mxu0 0.0
    %2082 = vmatpush1.msra.mxu0 0.0
    %2083 = vmatprep.subr.mxu0 0.0
    %2084 = vmatpush1.msra.mxu0 0.0
    %2085 = vmatprep.subr.mxu0 0.0
    %2086 = vmatpush1.msra.mxu0 0.0
    %2087 = vmatprep.subr.mxu0 0.0
    %2088 = vmatpush1.msra.mxu0 0.0
    %2089 = vmatprep.subr.mxu0 0.0
    %2090 = vmatpush1.msra.mxu0 0.0
    %2091 = vmatprep.subr.mxu0 0.0
    %2092 = vmatpush1.msra.mxu0 0.0
    %2093 = vmatprep.subr.mxu0 0.0
    %2094 = vmatpush1.msra.mxu0 0.0
    %2095 = vmatprep.subr.mxu0 0.0
    %2096 = vmatpush1.msra.mxu0 0.0
    %2097 = vmatprep.subr.mxu0 0.0
    %2098 = vmatpush1.msra.mxu0 0.0
    %2099 = vmatprep.subr.mxu0 0.0
    %2100 = vmatpush1.msra.mxu0 0.0
    %2101 = vmatprep.subr.mxu0 0.0
    %2102 = vmatpush1.msra.mxu0 0.0
    %2103 = vmatprep.subr.mxu0 0.0
    %2104 = vmatpush1.msra.mxu0 0.0
    %2105 = vmatprep.subr.mxu0 0.0
    %2106 = vmatpush1.msra.mxu0 0.0
    %2107 = vmatprep.subr.mxu0 0.0
    %2108 = vmatpush1.msra.mxu0 0.0
    %2109 = vmatprep.subr.mxu0 0.0
    %2110 = vmatpush1.msra.mxu0 0.0
    %2111 = vmatprep.subr.mxu0 0.0
    %2112 = vmatpush1.msra.mxu0 0.0
    %2113 = vmatprep.subr.mxu0 0.0
    %2114 = vmatpush1.msra.mxu0 0.0
    %2115 = vmatprep.subr.mxu0 0.0
    %2116 = vmatpush1.msra.mxu0 0.0
    %2117 = vmatprep.subr.mxu0 0.0
    %2118 = vmatpush1.msra.mxu0 0.0
    %2119 = vmatprep.mubr.f32.mxu0 0.0
    %2120 = vmatmul.mubr.f32.gmra.mrb[0].mxu0 %v1982
    %v2121 = vpop.f32.mrb[0].mxu0
    %v2122 = vadd.f32 0.0, %v2121
    %v2123 = vpop.f32.mrb[0].mxu0
    %v2124 = vadd.f32 0.0, %v2123
    %2125 = vdwg.mxu0
    %v2127 = vsel %vm1980, %v1963, 0
    %2129 = vmatprep.subr.mxu0 %v1965
    %2130 = vmatpush1.msra.mxu0 %v1964
    %2131 = vmatprep.subr.mxu0 %v1969
    %2132 = vmatpush1.msra.mxu0 %v1968
    %2133 = vmatprep.subr.mxu0 %v1973
    %2134 = vmatpush1.msra.mxu0 %v1972
    %2135 = vmatprep.subr.mxu0 %v1977
    %2136 = vmatpush1.msra.mxu0 %v1976
    %2137 = vmatprep.subr.mxu0 0.0
    %2138 = vmatpush1.msra.mxu0 0.0
    %2139 = vmatprep.subr.mxu0 0.0
    %2140 = vmatpush1.msra.mxu0 0.0
    %2141 = vmatprep.subr.mxu0 0.0
    %2142 = vmatpush1.msra.mxu0 0.0
    %2143 = vmatprep.subr.mxu0 0.0
    %2144 = vmatpush1.msra.mxu0 0.0
    %2145 = vmatprep.subr.mxu0 0.0
    %2146 = vmatpush1.msra.mxu0 0.0
    %2147 = vmatprep.subr.mxu0 0.0
    %2148 = vmatpush1.msra.mxu0 0.0
    %2149 = vmatprep.subr.mxu0 0.0
    %2150 = vmatpush1.msra.mxu0 0.0
    %2151 = vmatprep.subr.mxu0 0.0
    %2152 = vmatpush1.msra.mxu0 0.0
    %2153 = vmatprep.subr.mxu0 0.0
    %2154 = vmatpush1.msra.mxu0 0.0
    %2155 = vmatprep.subr.mxu0 0.0
    %2156 = vmatpush1.msra.mxu0 0.0
    %2157 = vmatprep.subr.mxu0 0.0
    %2158 = vmatpush1.msra.mxu0 0.0
    %2159 = vmatprep.subr.mxu0 0.0
    %2160 = vmatpush1.msra.mxu0 0.0
    %2161 = vmatprep.subr.mxu0 0.0
    %2162 = vmatpush1.msra.mxu0 0.0
    %2163 = vmatprep.subr.mxu0 0.0
    %2164 = vmatpush1.msra.mxu0 0.0
    %2165 = vmatprep.subr.mxu0 0.0
    %2166 = vmatpush1.msra.mxu0 0.0
    %2167 = vmatprep.subr.mxu0 0.0
    %2168 = vmatpush1.msra.mxu0 0.0
    %2169 = vmatprep.subr.mxu0 0.0
    %2170 = vmatpush1.msra.mxu0 0.0
    %2171 = vmatprep.subr.mxu0 0.0
    %2172 = vmatpush1.msra.mxu0 0.0
    %2173 = vmatprep.subr.mxu0 0.0
    %2174 = vmatpush1.msra.mxu0 0.0
    %2175 = vmatprep.subr.mxu0 0.0
    %2176 = vmatpush1.msra.mxu0 0.0
    %2177 = vmatprep.subr.mxu0 0.0
    %2178 = vmatpush1.msra.mxu0 0.0
    %2179 = vmatprep.subr.mxu0 0.0
    %2180 = vmatpush1.msra.mxu0 0.0
    %2181 = vmatprep.subr.mxu0 0.0
    %2182 = vmatpush1.msra.mxu0 0.0
    %2183 = vmatprep.subr.mxu0 0.0
    %2184 = vmatpush1.msra.mxu0 0.0
    %2185 = vmatprep.subr.mxu0 0.0
    %2186 = vmatpush1.msra.mxu0 0.0
    %2187 = vmatprep.subr.mxu0 0.0
    %2188 = vmatpush1.msra.mxu0 0.0
    %2189 = vmatprep.subr.mxu0 0.0
    %2190 = vmatpush1.msra.mxu0 0.0
    %2191 = vmatprep.subr.mxu0 0.0
    %2192 = vmatpush1.msra.mxu0 0.0
    %2193 = vmatprep.mubr.f32.mxu0 0.0
    %2194 = vmatmul.mubr.f32.gmra.mrb[0].mxu0 %v2127
    %v2195 = vpop.f32.mrb[0].mxu0
    %v2196 = vadd.f32 0.0, %v2195
    %v2197 = vpop.f32.mrb[0].mxu0
    %v2198 = vadd.f32 0.0, %v2197
    %2199 = vdwg.mxu0
    %2200 = vmatprep.subr.mxu0 %v1967
    %2201 = vmatpush1.msra.mxu0 %v1966
    %2202 = vmatprep.subr.mxu0 %v1971
    %2203 = vmatpush1.msra.mxu0 %v1970
    %2204 = vmatprep.subr.mxu0 %v1975
    %2205 = vmatpush1.msra.mxu0 %v1974
    %2206 = vmatprep.subr.mxu0 %v1979
    %2207 = vmatpush1.msra.mxu0 %v1978
    %2208 = vmatprep.subr.mxu0 0.0
    %2209 = vmatpush1.msra.mxu0 0.0
    %2210 = vmatprep.subr.mxu0 0.0
    %2211 = vmatpush1.msra.mxu0 0.0
    %2212 = vmatprep.subr.mxu0 0.0
    %2213 = vmatpush1.msra.mxu0 0.0
    %2214 = vmatprep.subr.mxu0 0.0
    %2215 = vmatpush1.msra.mxu0 0.0
    %2216 = vmatprep.subr.mxu0 0.0
    %2217 = vmatpush1.msra.mxu0 0.0
    %2218 = vmatprep.subr.mxu0 0.0
    %2219 = vmatpush1.msra.mxu0 0.0
    %2220 = vmatprep.subr.mxu0 0.0
    %2221 = vmatpush1.msra.mxu0 0.0
    %2222 = vmatprep.subr.mxu0 0.0
    %2223 = vmatpush1.msra.mxu0 0.0
    %2224 = vmatprep.subr.mxu0 0.0
    %2225 = vmatpush1.msra.mxu0 0.0
    %2226 = vmatprep.subr.mxu0 0.0
    %2227 = vmatpush1.msra.mxu0 0.0
    %2228 = vmatprep.subr.mxu0 0.0
    %2229 = vmatpush1.msra.mxu0 0.0
    %2230 = vmatprep.subr.mxu0 0.0
    %2231 = vmatpush1.msra.mxu0 0.0
    %2232 = vmatprep.subr.mxu0 0.0
    %2233 = vmatpush1.msra.mxu0 0.0
    %2234 = vmatprep.subr.mxu0 0.0
    %2235 = vmatpush1.msra.mxu0 0.0
    %2236 = vmatprep.subr.mxu0 0.0
    %2237 = vmatpush1.msra.mxu0 0.0
    %2238 = vmatprep.subr.mxu0 0.0
    %2239 = vmatpush1.msra.mxu0 0.0
    %2240 = vmatprep.subr.mxu0 0.0
    %2241 = vmatpush1.msra.mxu0 0.0
    %2242 = vmatprep.subr.mxu0 0.0
    %2243 = vmatpush1.msra.mxu0 0.0
    %2244 = vmatprep.subr.mxu0 0.0
    %2245 = vmatpush1.msra.mxu0 0.0
    %2246 = vmatprep.subr.mxu0 0.0
    %2247 = vmatpush1.msra.mxu0 0.0
    %2248 = vmatprep.subr.mxu0 0.0
    %2249 = vmatpush1.msra.mxu0 0.0
    %2250 = vmatprep.subr.mxu0 0.0
    %2251 = vmatpush1.msra.mxu0 0.0
    %2252 = vmatprep.subr.mxu0 0.0
    %2253 = vmatpush1.msra.mxu0 0.0
    %2254 = vmatprep.subr.mxu0 0.0
    %2255 = vmatpush1.msra.mxu0 0.0
    %2256 = vmatprep.subr.mxu0 0.0
    %2257 = vmatpush1.msra.mxu0 0.0
    %2258 = vmatprep.subr.mxu0 0.0
    %2259 = vmatpush1.msra.mxu0 0.0
    %2260 = vmatprep.subr.mxu0 0.0
    %2261 = vmatpush1.msra.mxu0 0.0
    %2262 = vmatprep.subr.mxu0 0.0
    %2263 = vmatpush1.msra.mxu0 0.0
    %2264 = vmatprep.mubr.f32.mxu0 0.0
    %2265 = vmatmul.mubr.f32.gmra.mrb[0].mxu0 %v2127
    %v2266 = vpop.f32.mrb[0].mxu0
    %v2267 = vadd.f32 0.0, %v2266
    %v2268 = vpop.f32.mrb[0].mxu0
    %v2269 = vadd.f32 0.0, %v2268
    %2270 = vdwg.mxu0
    %v2271 = vlaneseq
    %v2272 = vshrl.u32 %v2271, 7
    %v2273 = vsub.s32 0, %v2272
    %v2274 = vrot.slane %v2051, %v2273
    %v2275 = vlaneseq
    %v2276 = vshrl.u32 %v2275, 7
    %v2277 = vsub.s32 0, %v2276
    %v2278 = vrot.slane %v2053, %v2277
    %v2279 = vlaneseq
    %v2280 = vshrl.u32 %v2279, 7
    %v2281 = vsub.s32 0, %v2280
    %v2282 = vrot.slane %v2122, %v2281
    %v2283 = vlaneseq
    %v2284 = vshrl.u32 %v2283, 7
    %v2285 = vsub.s32 0, %v2284
    %v2286 = vrot.slane %v2124, %v2285
    %v2287 = vmul.f32 %v1485, %v2274
    %v2288 = vmul.f32 %v1486, %v2278
    %v2289 = vmul.f32 %v1487, %v2282
    %v2290 = vmul.f32 %v1488, %v2286
    %v2291 = vmul.f32 %v1489, %v2274
    %v2292 = vmul.f32 %v1490, %v2278
    %v2293 = vmul.f32 %v1491, %v2282
    %v2294 = vmul.f32 %v1492, %v2286
    %v2295 = vmul.f32 %v1493, %v2274
    %v2296 = vmul.f32 %v1494, %v2278
    %v2297 = vmul.f32 %v1495, %v2282
    %v2298 = vmul.f32 %v1496, %v2286
    %v2299 = vmul.f32 %v1497, %v2274
    %v2300 = vmul.f32 %v1498, %v2278
    %v2301 = vmul.f32 %v1499, %v2282
    %v2302 = vmul.f32 %v1500, %v2286
    %v2303 = vlaneseq
    %v2304 = vshrl.u32 %v2303, 7
    %v2305 = vsub.s32 0, %v2304
    %v2306 = vrot.slane %v2196, %v2305
    %v2307 = vlaneseq
    %v2308 = vshrl.u32 %v2307, 7
    %v2309 = vsub.s32 0, %v2308
    %v2310 = vrot.slane %v2198, %v2309
    %v2311 = vlaneseq
    %v2312 = vshrl.u32 %v2311, 7
    %v2313 = vsub.s32 0, %v2312
    %v2314 = vrot.slane %v2267, %v2313
    %v2315 = vlaneseq
    %v2316 = vshrl.u32 %v2315, 7
    %v2317 = vsub.s32 0, %v2316
    %v2318 = vrot.slane %v2269, %v2317
    %v2319 = vadd.f32 %v2287, %v2306
    %v2320 = vadd.f32 %v2288, %v2310
    %v2321 = vadd.f32 %v2289, %v2314
    %v2322 = vadd.f32 %v2290, %v2318
    %v2323 = vadd.f32 %v2291, %v2306
    %v2324 = vadd.f32 %v2292, %v2310
    %v2325 = vadd.f32 %v2293, %v2314
    %v2326 = vadd.f32 %v2294, %v2318
    %v2327 = vadd.f32 %v2295, %v2306
    %v2328 = vadd.f32 %v2296, %v2310
    %v2329 = vadd.f32 %v2297, %v2314
    %v2330 = vadd.f32 %v2298, %v2318
    %v2331 = vadd.f32 %v2299, %v2306
    %v2332 = vadd.f32 %v2300, %v2310
    %v2333 = vadd.f32 %v2301, %v2314
    %v2334 = vadd.f32 %v2302, %v2318
    %vm2335 = vcmp.ge.f32.partialorder %v2319, 0.0
    %vm2336 = vcmp.ge.f32.partialorder %v2320, 0.0
    %vm2337 = vcmp.ge.f32.partialorder %v2321, 0.0
    %vm2338 = vcmp.ge.f32.partialorder %v2322, 0.0
    %vm2339 = vcmp.ge.f32.partialorder %v2323, 0.0
    %vm2340 = vcmp.ge.f32.partialorder %v2324, 0.0
    %vm2341 = vcmp.ge.f32.partialorder %v2325, 0.0
    %vm2342 = vcmp.ge.f32.partialorder %v2326, 0.0
    %vm2343 = vcmp.ge.f32.partialorder %v2327, 0.0
    %vm2344 = vcmp.ge.f32.partialorder %v2328, 0.0
    %vm2345 = vcmp.ge.f32.partialorder %v2329, 0.0
    %vm2346 = vcmp.ge.f32.partialorder %v2330, 0.0
    %vm2347 = vcmp.ge.f32.partialorder %v2331, 0.0
    %vm2348 = vcmp.ge.f32.partialorder %v2332, 0.0
    %vm2349 = vcmp.ge.f32.partialorder %v2333, 0.0
    %vm2350 = vcmp.ge.f32.partialorder %v2334, 0.0
    %v2351 = vmul.f32 %v2319, 0.01
    %v2352 = vmul.f32 %v2320, 0.01
    %v2353 = vmul.f32 %v2321, 0.01
    %v2354 = vmul.f32 %v2322, 0.01
    %v2355 = vmul.f32 %v2323, 0.01
    %v2356 = vmul.f32 %v2324, 0.01
    %v2357 = vmul.f32 %v2325, 0.01
    %v2358 = vmul.f32 %v2326, 0.01
    %v2359 = vmul.f32 %v2327, 0.01
    %v2360 = vmul.f32 %v2328, 0.01
    %v2361 = vmul.f32 %v2329, 0.01
    %v2362 = vmul.f32 %v2330, 0.01
    %v2363 = vmul.f32 %v2331, 0.01
    %v2364 = vmul.f32 %v2332, 0.01
    %v2365 = vmul.f32 %v2333, 0.01
    %v2366 = vmul.f32 %v2334, 0.01
    %v2367 = vsel %vm2335, %v2319, %v2351
    %v2368 = vsel %vm2336, %v2320, %v2352
    %v2369 = vsel %vm2337, %v2321, %v2353
    %v2370 = vsel %vm2338, %v2322, %v2354
    %v2371 = vsel %vm2339, %v2323, %v2355
    %v2372 = vsel %vm2340, %v2324, %v2356
    %v2373 = vsel %vm2341, %v2325, %v2357
    %v2374 = vsel %vm2342, %v2326, %v2358
    %v2375 = vsel %vm2343, %v2327, %v2359
    %v2376 = vsel %vm2344, %v2328, %v2360
    %v2377 = vsel %vm2345, %v2329, %v2361
    %v2378 = vsel %vm2346, %v2330, %v2362
    %v2379 = vsel %vm2347, %v2331, %v2363
    %v2380 = vsel %vm2348, %v2332, %v2364
    %v2381 = vsel %vm2349, %v2333, %v2365
    %v2382 = vsel %vm2350, %v2334, %v2366
    %v2383 = vpack.c.bf16 %v2371, %v2367
    %v2384 = vpack.c.bf16 %v2372, %v2368
    %v2385 = vpack.c.bf16 %v2373, %v2369
    %v2386 = vpack.c.bf16 %v2374, %v2370
    %v2387 = vpack.c.bf16 %v2379, %v2375
    %v2388 = vpack.c.bf16 %v2380, %v2376
    %v2389 = vpack.c.bf16 %v2381, %v2377
    %v2390 = vpack.c.bf16 %v2382, %v2378
    %v2391 = vld [vmem:[%s15] sm:$0xf]
    %v2392 = vld [vmem:[%s15 + $0x4] sm:$0x3]
    %v2395 = vunpack.c.l.b16 %v2391
    %v2396 = vunpack.c.l.b16 %v2392
    %v2397 = vpack.c.b16 %v2396, %v2395
    %vm2398 = vcmask 244736
    %v2400 = vsel %vm2398, %v2397, 0
    %vm2402 = vcmask 1046528
    %v2404 = vsel %vm2402, %v2387, 0
    %v2407 = vsel %vm2402, %v2388, 0
    %v2410 = vsel %vm2402, %v2389, 0
    %v2413 = vsel %vm2402, %v2390, 0
    %2415 = vmatprep.subr.bf16.mxu0 %v2384
    %2416 = vmatpush1.bf16.msra.mxu0 %v2383
    %2417 = vmatprep.subr.bf16.mxu0 %v2407
    %2418 = vmatpush1.bf16.msra.mxu0 %v2404
    %2419 = vmatprep.subr.bf16.mxu0 0
    %2420 = vmatpush1.bf16.msra.mxu0 0
    %2421 = vmatprep.subr.bf16.mxu0 0
    %2422 = vmatpush1.bf16.msra.mxu0 0
    %2423 = vmatprep.subr.bf16.mxu0 0
    %2424 = vmatpush1.bf16.msra.mxu0 0
    %2425 = vmatprep.subr.bf16.mxu0 0
    %2426 = vmatpush1.bf16.msra.mxu0 0
    %2427 = vmatprep.subr.bf16.mxu0 0
    %2428 = vmatpush1.bf16.msra.mxu0 0
    %2429 = vmatprep.subr.bf16.mxu0 0
    %2430 = vmatpush1.bf16.msra.mxu0 0
    %2431 = vmatprep.subr.bf16.mxu0 0
    %2432 = vmatpush1.bf16.msra.mxu0 0
    %2433 = vmatprep.subr.bf16.mxu0 0
    %2434 = vmatpush1.bf16.msra.mxu0 0
    %2435 = vmatprep.subr.bf16.mxu0 0
    %2436 = vmatpush1.bf16.msra.mxu0 0
    %2437 = vmatprep.subr.bf16.mxu0 0
    %2438 = vmatpush1.bf16.msra.mxu0 0
    %2439 = vmatprep.subr.bf16.mxu0 0
    %2440 = vmatpush1.bf16.msra.mxu0 0
    %2441 = vmatprep.subr.bf16.mxu0 0
    %2442 = vmatpush1.bf16.msra.mxu0 0
    %2443 = vmatprep.subr.bf16.mxu0 0
    %2444 = vmatpush1.bf16.msra.mxu0 0
    %2445 = vmatprep.subr.bf16.mxu0 0
    %2446 = vmatpush1.bf16.msra.mxu0 0
    %2447 = vmatprep.mubr.bf16.mxu0 0
    %2448 = vmatmul.mubr.bf16.gmra.mrb[0].mxu0 %v2400
    %v2449 = vpop.f32.mrb[0].mxu0
    %v2450 = vadd.f32 0.0, %v2449
    %v2451 = vpop.f32.mrb[0].mxu0
    %v2452 = vadd.f32 0.0, %v2451
    %v2453 = vpop.f32.mrb[0].mxu0
    %v2454 = vadd.f32 0.0, %v2453
    %v2455 = vpop.f32.mrb[0].mxu0
    %v2456 = vadd.f32 0.0, %v2455
    %2457 = vdwg.mxu0
    %2458 = vmatprep.subr.bf16.mxu0 %v2386
    %2459 = vmatpush1.bf16.msra.mxu0 %v2385
    %2460 = vmatprep.subr.bf16.mxu0 %v2413
    %2461 = vmatpush1.bf16.msra.mxu0 %v2410
    %2462 = vmatprep.subr.bf16.mxu0 0
    %2463 = vmatpush1.bf16.msra.mxu0 0
    %2464 = vmatprep.subr.bf16.mxu0 0
    %2465 = vmatpush1.bf16.msra.mxu0 0
    %2466 = vmatprep.subr.bf16.mxu0 0
    %2467 = vmatpush1.bf16.msra.mxu0 0
    %2468 = vmatprep.subr.bf16.mxu0 0
    %2469 = vmatpush1.bf16.msra.mxu0 0
    %2470 = vmatprep.subr.bf16.mxu0 0
    %2471 = vmatpush1.bf16.msra.mxu0 0
    %2472 = vmatprep.subr.bf16.mxu0 0
    %2473 = vmatpush1.bf16.msra.mxu0 0
    %2474 = vmatprep.subr.bf16.mxu0 0
    %2475 = vmatpush1.bf16.msra.mxu0 0
    %2476 = vmatprep.subr.bf16.mxu0 0
    %2477 = vmatpush1.bf16.msra.mxu0 0
    %2478 = vmatprep.subr.bf16.mxu0 0
    %2479 = vmatpush1.bf16.msra.mxu0 0
    %2480 = vmatprep.subr.bf16.mxu0 0
    %2481 = vmatpush1.bf16.msra.mxu0 0
    %2482 = vmatprep.subr.bf16.mxu0 0
    %2483 = vmatpush1.bf16.msra.mxu0 0
    %2484 = vmatprep.subr.bf16.mxu0 0
    %2485 = vmatpush1.bf16.msra.mxu0 0
    %2486 = vmatprep.subr.bf16.mxu0 0
    %2487 = vmatpush1.bf16.msra.mxu0 0
    %2488 = vmatprep.subr.bf16.mxu0 0
    %2489 = vmatpush1.bf16.msra.mxu0 0
    %2490 = vmatprep.mubr.bf16.mxu0 0
    %2491 = vmatmul.mubr.bf16.gmra.mrb[0].mxu0 %v2400
    %v2492 = vpop.f32.mrb[0].mxu0
    %v2493 = vadd.f32 0.0, %v2492
    %v2494 = vpop.f32.mrb[0].mxu0
    %v2495 = vadd.f32 0.0, %v2494
    %v2496 = vpop.f32.mrb[0].mxu0
    %v2497 = vadd.f32 0.0, %v2496
    %v2498 = vpop.f32.mrb[0].mxu0
    %v2499 = vadd.f32 0.0, %v2498
    %2500 = vdwg.mxu0
    %v2501 = vpack.c.bf16 %v2454, %v2450
    %v2502 = vpack.c.bf16 %v2456, %v2452
    %v2503 = vpack.c.bf16 %v2497, %v2493
    %v2504 = vpack.c.bf16 %v2499, %v2495
    %v2505 = vld [vmem:[%s17] sm:$0xff]
    %v2506 = vld [vmem:[%s17 + $0x8] sm:$0xff]
    %v2507 = vld [vmem:[%s17 + $0x10] sm:$0xff]
    %v2508 = vld [vmem:[%s17 + $0x18] sm:$0xff]
    %v2509 = vld [vmem:[%s17 + $0x20] sm:$0xff]
    %v2510 = vld [vmem:[%s17 + $0x28] sm:$0xff]
    %v2511 = vld [vmem:[%s17 + $0x30] sm:$0xff]
    %v2512 = vld [vmem:[%s17 + $0x38] sm:$0xff]
    %v2513 = vld [vmem:[%s17 + $0x40] sm:$0xff]
    %v2514 = vld [vmem:[%s17 + $0x48] sm:$0xff]
    %v2515 = vld [vmem:[%s17 + $0x50] sm:$0xff]
    %v2516 = vld [vmem:[%s17 + $0x58] sm:$0xff]
    %v2517 = vld [vmem:[%s17 + $0x60] sm:$0xff]
    %v2518 = vld [vmem:[%s17 + $0x68] sm:$0xff]
    %v2519 = vld [vmem:[%s17 + $0x70] sm:$0xff]
    %v2520 = vld [vmem:[%s17 + $0x78] sm:$0xff]
    %v2521 = vld [vmem:[%s17 + $0x80] sm:$0xff]
    %v2522 = vld [vmem:[%s17 + $0x88] sm:$0xff]
    %v2523 = vld [vmem:[%s17 + $0x90] sm:$0xff]
    %v2524 = vld [vmem:[%s17 + $0x98] sm:$0xff]
    %v2525 = vld [vmem:[%s17 + $0xa0] sm:$0xff]
    %v2526 = vld [vmem:[%s17 + $0xa8] sm:$0xff]
    %v2527 = vld [vmem:[%s17 + $0xb0] sm:$0xff]
    %v2528 = vld [vmem:[%s17 + $0xb8] sm:$0xff]
    %v2529 = vld [vmem:[%s17 + $0xc0] sm:$0xff]
    %v2530 = vld [vmem:[%s17 + $0xc8] sm:$0xff]
    %v2531 = vld [vmem:[%s17 + $0xd0] sm:$0xff]
    %v2532 = vld [vmem:[%s17 + $0xd8] sm:$0xff]
    %v2533 = vld [vmem:[%s17 + $0xe0] sm:$0xff]
    %v2534 = vld [vmem:[%s17 + $0xe8] sm:$0xff]
    %v2535 = vld [vmem:[%s17 + $0xf0] sm:$0xff]
    %v2536 = vld [vmem:[%s17 + $0xf8] sm:$0xff]
    %v2537 = vld [vmem:[%s17 + $0x100] sm:$0xff]
    %v2538 = vld [vmem:[%s17 + $0x108] sm:$0xff]
    %v2539 = vld [vmem:[%s17 + $0x110] sm:$0xff]
    %v2540 = vld [vmem:[%s17 + $0x118] sm:$0xff]
    %v2541 = vld [vmem:[%s17 + $0x120] sm:$0xff]
    %v2542 = vld [vmem:[%s17 + $0x128] sm:$0xff]
    %v2543 = vld [vmem:[%s17 + $0x130] sm:$0xff]
    %v2544 = vld [vmem:[%s17 + $0x138] sm:$0xff]
    %v2545 = vld [vmem:[%s17 + $0x140] sm:$0xff]
    %v2546 = vld [vmem:[%s17 + $0x148] sm:$0xff]
    %v2547 = vld [vmem:[%s17 + $0x150] sm:$0xff]
    %v2548 = vld [vmem:[%s17 + $0x158] sm:$0xff]
    %v2549 = vld [vmem:[%s17 + $0x160] sm:$0xff]
    %v2550 = vld [vmem:[%s17 + $0x168] sm:$0xff]
    %v2551 = vld [vmem:[%s17 + $0x170] sm:$0xff]
    %v2552 = vld [vmem:[%s17 + $0x178] sm:$0xff]
    %v2553 = vld [vmem:[%s17 + $0x180] sm:$0xff]
    %v2554 = vld [vmem:[%s17 + $0x188] sm:$0xff]
    %v2555 = vld [vmem:[%s17 + $0x190] sm:$0xff]
    %v2556 = vld [vmem:[%s17 + $0x198] sm:$0xff]
    %v2557 = vld [vmem:[%s17 + $0x1a0] sm:$0xff]
    %v2558 = vld [vmem:[%s17 + $0x1a8] sm:$0xff]
    %v2559 = vld [vmem:[%s17 + $0x1b0] sm:$0xff]
    %v2560 = vld [vmem:[%s17 + $0x1b8] sm:$0xff]
    %v2561 = vld [vmem:[%s17 + $0x1c0] sm:$0xff]
    %v2562 = vld [vmem:[%s17 + $0x1c8] sm:$0xff]
    %v2563 = vld [vmem:[%s17 + $0x1d0] sm:$0xff]
    %v2564 = vld [vmem:[%s17 + $0x1d8] sm:$0xff]
    %s2565 = scalar_lea.vmem %s15, 8
    %v2566 = vld [vmem:[%s2565] sm:$0xf]
    %v2567 = vld [vmem:[%s2565 + $0x4] sm:$0x3]
    %v2570 = vunpack.c.l.b16 %v2566
    %v2571 = vunpack.c.l.b16 %v2567
    %v2572 = vpack.c.b16 %v2571, %v2570
    %v2574 = vsel %vm2398, %v2572, 0
    %2576 = vmatprep.subr.bf16.mxu0 %v2384
    %2577 = vmatpush1.bf16.msra.mxu0 %v2383
    %2578 = vmatprep.subr.bf16.mxu0 %v2407
    %2579 = vmatpush1.bf16.msra.mxu0 %v2404
    %2580 = vmatprep.subr.bf16.mxu0 0
    %2581 = vmatpush1.bf16.msra.mxu0 0
    %2582 = vmatprep.subr.bf16.mxu0 0
    %2583 = vmatpush1.bf16.msra.mxu0 0
    %2584 = vmatprep.subr.bf16.mxu0 0
    %2585 = vmatpush1.bf16.msra.mxu0 0
    %2586 = vmatprep.subr.bf16.mxu0 0
    %2587 = vmatpush1.bf16.msra.mxu0 0
    %2588 = vmatprep.subr.bf16.mxu0 0
    %2589 = vmatpush1.bf16.msra.mxu0 0
    %2590 = vmatprep.subr.bf16.mxu0 0
    %2591 = vmatpush1.bf16.msra.mxu0 0
    %2592 = vmatprep.subr.bf16.mxu0 0
    %2593 = vmatpush1.bf16.msra.mxu0 0
    %2594 = vmatprep.subr.bf16.mxu0 0
    %2595 = vmatpush1.bf16.msra.mxu0 0
    %2596 = vmatprep.subr.bf16.mxu0 0
    %2597 = vmatpush1.bf16.msra.mxu0 0
    %2598 = vmatprep.subr.bf16.mxu0 0
    %2599 = vmatpush1.bf16.msra.mxu0 0
    %2600 = vmatprep.subr.bf16.mxu0 0
    %2601 = vmatpush1.bf16.msra.mxu0 0
    %2602 = vmatprep.subr.bf16.mxu0 0
    %2603 = vmatpush1.bf16.msra.mxu0 0
    %2604 = vmatprep.subr.bf16.mxu0 0
    %2605 = vmatpush1.bf16.msra.mxu0 0
    %2606 = vmatprep.subr.bf16.mxu0 0
    %2607 = vmatpush1.bf16.msra.mxu0 0
    %2608 = vmatprep.mubr.bf16.mxu0 0
    %2609 = vmatmul.mubr.bf16.gmra.mrb[0].mxu0 %v2574
    %v2610 = vpop.f32.mrb[0].mxu0
    %v2611 = vadd.f32 0.0, %v2610
    %v2612 = vpop.f32.mrb[0].mxu0
    %v2613 = vadd.f32 0.0, %v2612
    %v2614 = vpop.f32.mrb[0].mxu0
    %v2615 = vadd.f32 0.0, %v2614
    %v2616 = vpop.f32.mrb[0].mxu0
    %v2617 = vadd.f32 0.0, %v2616
    %2618 = vdwg.mxu0
    %2619 = vmatprep.subr.bf16.mxu0 %v2386
    %2620 = vmatpush1.bf16.msra.mxu0 %v2385
    %2621 = vmatprep.subr.bf16.mxu0 %v2413
    %2622 = vmatpush1.bf16.msra.mxu0 %v2410
    %2623 = vmatprep.subr.bf16.mxu0 0
    %2624 = vmatpush1.bf16.msra.mxu0 0
    %2625 = vmatprep.subr.bf16.mxu0 0
    %2626 = vmatpush1.bf16.msra.mxu0 0
    %2627 = vmatprep.subr.bf16.mxu0 0
    %2628 = vmatpush1.bf16.msra.mxu0 0
    %2629 = vmatprep.subr.bf16.mxu0 0
    %2630 = vmatpush1.bf16.msra.mxu0 0
    %2631 = vmatprep.subr.bf16.mxu0 0
    %2632 = vmatpush1.bf16.msra.mxu0 0
    %2633 = vmatprep.subr.bf16.mxu0 0
    %2634 = vmatpush1.bf16.msra.mxu0 0
    %2635 = vmatprep.subr.bf16.mxu0 0
    %2636 = vmatpush1.bf16.msra.mxu0 0
    %2637 = vmatprep.subr.bf16.mxu0 0
    %2638 = vmatpush1.bf16.msra.mxu0 0
    %2639 = vmatprep.subr.bf16.mxu0 0
    %2640 = vmatpush1.bf16.msra.mxu0 0
    %2641 = vmatprep.subr.bf16.mxu0 0
    %2642 = vmatpush1.bf16.msra.mxu0 0
    %2643 = vmatprep.subr.bf16.mxu0 0
    %2644 = vmatpush1.bf16.msra.mxu0 0
    %2645 = vmatprep.subr.bf16.mxu0 0
    %2646 = vmatpush1.bf16.msra.mxu0 0
    %2647 = vmatprep.subr.bf16.mxu0 0
    %2648 = vmatpush1.bf16.msra.mxu0 0
    %2649 = vmatprep.subr.bf16.mxu0 0
    %2650 = vmatpush1.bf16.msra.mxu0 0
    %2651 = vmatprep.mubr.bf16.mxu0 0
    %2652 = vmatmul.mubr.bf16.gmra.mrb[0].mxu0 %v2574
    %v2653 = vpop.f32.mrb[0].mxu0
    %v2654 = vadd.f32 0.0, %v2653
    %v2655 = vpop.f32.mrb[0].mxu0
    %v2656 = vadd.f32 0.0, %v2655
    %v2657 = vpop.f32.mrb[0].mxu0
    %v2658 = vadd.f32 0.0, %v2657
    %v2659 = vpop.f32.mrb[0].mxu0
    %v2660 = vadd.f32 0.0, %v2659
    %2661 = vdwg.mxu0
    %v2662 = vpack.c.bf16 %v2615, %v2611
    %v2663 = vpack.c.bf16 %v2617, %v2613
    %v2664 = vpack.c.bf16 %v2658, %v2654
    %v2665 = vpack.c.bf16 %v2660, %v2656
    %s2666 = scalar_lea.vmem %s17, 480
    %v2667 = vld [vmem:[%s2666] sm:$0xff]
    %v2668 = vld [vmem:[%s2666 + $0x8] sm:$0xff]
    %v2669 = vld [vmem:[%s2666 + $0x10] sm:$0xff]
    %v2670 = vld [vmem:[%s2666 + $0x18] sm:$0xff]
    %v2671 = vld [vmem:[%s2666 + $0x20] sm:$0xff]
    %v2672 = vld [vmem:[%s2666 + $0x28] sm:$0xff]
    %v2673 = vld [vmem:[%s2666 + $0x30] sm:$0xff]
    %v2674 = vld [vmem:[%s2666 + $0x38] sm:$0xff]
    %v2675 = vld [vmem:[%s2666 + $0x40] sm:$0xff]
    %v2676 = vld [vmem:[%s2666 + $0x48] sm:$0xff]
    %v2677 = vld [vmem:[%s2666 + $0x50] sm:$0xff]
    %v2678 = vld [vmem:[%s2666 + $0x58] sm:$0xff]
    %v2679 = vld [vmem:[%s2666 + $0x60] sm:$0xff]
    %v2680 = vld [vmem:[%s2666 + $0x68] sm:$0xff]
    %v2681 = vld [vmem:[%s2666 + $0x70] sm:$0xff]
    %v2682 = vld [vmem:[%s2666 + $0x78] sm:$0xff]
    %v2683 = vld [vmem:[%s2666 + $0x80] sm:$0xff]
    %v2684 = vld [vmem:[%s2666 + $0x88] sm:$0xff]
    %v2685 = vld [vmem:[%s2666 + $0x90] sm:$0xff]
    %v2686 = vld [vmem:[%s2666 + $0x98] sm:$0xff]
    %v2687 = vld [vmem:[%s2666 + $0xa0] sm:$0xff]
    %v2688 = vld [vmem:[%s2666 + $0xa8] sm:$0xff]
    %v2689 = vld [vmem:[%s2666 + $0xb0] sm:$0xff]
    %v2690 = vld [vmem:[%s2666 + $0xb8] sm:$0xff]
    %v2691 = vld [vmem:[%s2666 + $0xc0] sm:$0xff]
    %v2692 = vld [vmem:[%s2666 + $0xc8] sm:$0xff]
    %v2693 = vld [vmem:[%s2666 + $0xd0] sm:$0xff]
    %v2694 = vld [vmem:[%s2666 + $0xd8] sm:$0xff]
    %v2695 = vld [vmem:[%s2666 + $0xe0] sm:$0xff]
    %v2696 = vld [vmem:[%s2666 + $0xe8] sm:$0xff]
    %v2697 = vld [vmem:[%s2666 + $0xf0] sm:$0xff]
    %v2698 = vld [vmem:[%s2666 + $0xf8] sm:$0xff]
    %v2699 = vld [vmem:[%s2666 + $0x100] sm:$0xff]
    %v2700 = vld [vmem:[%s2666 + $0x108] sm:$0xff]
    %v2701 = vld [vmem:[%s2666 + $0x110] sm:$0xff]
    %v2702 = vld [vmem:[%s2666 + $0x118] sm:$0xff]
    %v2703 = vld [vmem:[%s2666 + $0x120] sm:$0xff]
    %v2704 = vld [vmem:[%s2666 + $0x128] sm:$0xff]
    %v2705 = vld [vmem:[%s2666 + $0x130] sm:$0xff]
    %v2706 = vld [vmem:[%s2666 + $0x138] sm:$0xff]
    %v2707 = vld [vmem:[%s2666 + $0x140] sm:$0xff]
    %v2708 = vld [vmem:[%s2666 + $0x148] sm:$0xff]
    %v2709 = vld [vmem:[%s2666 + $0x150] sm:$0xff]
    %v2710 = vld [vmem:[%s2666 + $0x158] sm:$0xff]
    %v2711 = vld [vmem:[%s2666 + $0x160] sm:$0xff]
    %v2712 = vld [vmem:[%s2666 + $0x168] sm:$0xff]
    %v2713 = vld [vmem:[%s2666 + $0x170] sm:$0xff]
    %v2714 = vld [vmem:[%s2666 + $0x178] sm:$0xff]
    %v2715 = vld [vmem:[%s2666 + $0x180] sm:$0xff]
    %v2716 = vld [vmem:[%s2666 + $0x188] sm:$0xff]
    %v2717 = vld [vmem:[%s2666 + $0x190] sm:$0xff]
    %v2718 = vld [vmem:[%s2666 + $0x198] sm:$0xff]
    %v2719 = vld [vmem:[%s2666 + $0x1a0] sm:$0xff]
    %v2720 = vld [vmem:[%s2666 + $0x1a8] sm:$0xff]
    %v2721 = vld [vmem:[%s2666 + $0x1b0] sm:$0xff]
    %v2722 = vld [vmem:[%s2666 + $0x1b8] sm:$0xff]
    %v2723 = vld [vmem:[%s2666 + $0x1c0] sm:$0xff]
    %v2724 = vld [vmem:[%s2666 + $0x1c8] sm:$0xff]
    %v2725 = vld [vmem:[%s2666 + $0x1d0] sm:$0xff]
    %v2726 = vld [vmem:[%s2666 + $0x1d8] sm:$0xff]
    %v2787 = vunpack.c.l.b16 %v2667
    %v2788 = vunpack.c.h.b16 %v2667
    %v2789 = vunpack.c.l.b16 %v2668
    %v2790 = vunpack.c.h.b16 %v2668
    %v2791 = vunpack.c.l.b16 %v2669
    %v2792 = vunpack.c.h.b16 %v2669
    %v2793 = vunpack.c.l.b16 %v2670
    %v2794 = vunpack.c.h.b16 %v2670
    %v2795 = vunpack.c.l.b16 %v2671
    %v2796 = vunpack.c.h.b16 %v2671
    %v2797 = vunpack.c.l.b16 %v2672
    %v2798 = vunpack.c.h.b16 %v2672
    %v2799 = vunpack.c.l.b16 %v2673
    %v2800 = vunpack.c.h.b16 %v2673
    %v2801 = vunpack.c.l.b16 %v2674
    %v2802 = vunpack.c.h.b16 %v2674
    %v2803 = vunpack.c.l.b16 %v2675
    %v2804 = vunpack.c.h.b16 %v2675
    %v2805 = vunpack.c.l.b16 %v2676
    %v2806 = vunpack.c.h.b16 %v2676
    %v2807 = vunpack.c.l.b16 %v2677
    %v2808 = vunpack.c.h.b16 %v2677
    %v2809 = vunpack.c.l.b16 %v2678
    %v2810 = vunpack.c.h.b16 %v2678
    %v2811 = vunpack.c.l.b16 %v2679
    %v2812 = vunpack.c.h.b16 %v2679
    %v2813 = vunpack.c.l.b16 %v2680
    %v2814 = vunpack.c.h.b16 %v2680
    %v2815 = vunpack.c.l.b16 %v2681
    %v2816 = vunpack.c.h.b16 %v2681
    %v2817 = vunpack.c.l.b16 %v2682
    %v2818 = vunpack.c.h.b16 %v2682
    %v2819 = vunpack.c.l.b16 %v2683
    %v2820 = vunpack.c.h.b16 %v2683
    %v2821 = vunpack.c.l.b16 %v2684
    %v2822 = vunpack.c.h.b16 %v2684
    %v2823 = vunpack.c.l.b16 %v2685
    %v2824 = vunpack.c.h.b16 %v2685
    %v2825 = vunpack.c.l.b16 %v2686
    %v2826 = vunpack.c.h.b16 %v2686
    %v2827 = vunpack.c.l.b16 %v2687
    %v2828 = vunpack.c.h.b16 %v2687
    %v2829 = vunpack.c.l.b16 %v2688
    %v2830 = vunpack.c.h.b16 %v2688
    %v2831 = vunpack.c.l.b16 %v2689
    %v2832 = vunpack.c.h.b16 %v2689
    %v2833 = vunpack.c.l.b16 %v2690
    %v2834 = vunpack.c.h.b16 %v2690
    %v2835 = vunpack.c.l.b16 %v2691
    %v2836 = vunpack.c.h.b16 %v2691
    %v2837 = vunpack.c.l.b16 %v2692
    %v2838 = vunpack.c.h.b16 %v2692
    %v2839 = vunpack.c.l.b16 %v2693
    %v2840 = vunpack.c.h.b16 %v2693
    %v2841 = vunpack.c.l.b16 %v2694
    %v2842 = vunpack.c.h.b16 %v2694
    %v2843 = vunpack.c.l.b16 %v2695
    %v2844 = vunpack.c.h.b16 %v2695
    %v2845 = vunpack.c.l.b16 %v2696
    %v2846 = vunpack.c.h.b16 %v2696
    %v2847 = vunpack.c.l.b16 %v2697
    %v2848 = vunpack.c.h.b16 %v2697
    %v2849 = vunpack.c.l.b16 %v2698
    %v2850 = vunpack.c.h.b16 %v2698
    %v2851 = vunpack.c.l.b16 %v2699
    %v2852 = vunpack.c.h.b16 %v2699
    %v2853 = vunpack.c.l.b16 %v2700
    %v2854 = vunpack.c.h.b16 %v2700
    %v2855 = vunpack.c.l.b16 %v2701
    %v2856 = vunpack.c.h.b16 %v2701
    %v2857 = vunpack.c.l.b16 %v2702
    %v2858 = vunpack.c.h.b16 %v2702
    %v2859 = vunpack.c.l.b16 %v2703
    %v2860 = vunpack.c.h.b16 %v2703
    %v2861 = vunpack.c.l.b16 %v2704
    %v2862 = vunpack.c.h.b16 %v2704
    %v2863 = vunpack.c.l.b16 %v2705
    %v2864 = vunpack.c.h.b16 %v2705
    %v2865 = vunpack.c.l.b16 %v2706
    %v2866 = vunpack.c.h.b16 %v2706
    %v2867 = vunpack.c.l.b16 %v2707
    %v2868 = vunpack.c.h.b16 %v2707
    %v2869 = vunpack.c.l.b16 %v2708
    %v2870 = vunpack.c.h.b16 %v2708
    %v2871 = vunpack.c.l.b16 %v2709
    %v2872 = vunpack.c.h.b16 %v2709
    %v2873 = vunpack.c.l.b16 %v2710
    %v2874 = vunpack.c.h.b16 %v2710
    %v2875 = vunpack.c.l.b16 %v2711
    %v2876 = vunpack.c.h.b16 %v2711
    %v2877 = vunpack.c.l.b16 %v2712
    %v2878 = vunpack.c.h.b16 %v2712
    %v2879 = vunpack.c.l.b16 %v2713
    %v2880 = vunpack.c.h.b16 %v2713
    %v2881 = vunpack.c.l.b16 %v2714
    %v2882 = vunpack.c.h.b16 %v2714
    %v2883 = vunpack.c.l.b16 %v2715
    %v2884 = vunpack.c.h.b16 %v2715
    %v2885 = vunpack.c.l.b16 %v2716
    %v2886 = vunpack.c.h.b16 %v2716
    %v2887 = vunpack.c.l.b16 %v2717
    %v2888 = vunpack.c.h.b16 %v2717
    %v2889 = vunpack.c.l.b16 %v2718
    %v2890 = vunpack.c.h.b16 %v2718
    %v2891 = vunpack.c.l.b16 %v2719
    %v2892 = vunpack.c.h.b16 %v2719
    %v2893 = vunpack.c.l.b16 %v2720
    %v2894 = vunpack.c.h.b16 %v2720
    %v2895 = vunpack.c.l.b16 %v2721
    %v2896 = vunpack.c.h.b16 %v2721
    %v2897 = vunpack.c.l.b16 %v2722
    %v2898 = vunpack.c.h.b16 %v2722
    %v2899 = vunpack.c.l.b16 %v2723
    %v2900 = vunpack.c.h.b16 %v2723
    %v2901 = vunpack.c.l.b16 %v2724
    %v2902 = vunpack.c.h.b16 %v2724
    %v2903 = vunpack.c.l.b16 %v2725
    %v2904 = vunpack.c.h.b16 %v2725
    %v2905 = vunpack.c.l.b16 %v2726
    %v2906 = vunpack.c.h.b16 %v2726
    %v2907 = vpack.c.b16 %v2789, %v2787
    %v2908 = vpack.c.b16 %v2790, %v2788
    %v2909 = vpack.c.b16 %v2793, %v2791
    %v2910 = vpack.c.b16 %v2794, %v2792
    %v2911 = vpack.c.b16 %v2797, %v2795
    %v2912 = vpack.c.b16 %v2798, %v2796
    %v2913 = vpack.c.b16 %v2801, %v2799
    %v2914 = vpack.c.b16 %v2802, %v2800
    %v2915 = vpack.c.b16 %v2805, %v2803
    %v2916 = vpack.c.b16 %v2806, %v2804
    %v2917 = vpack.c.b16 %v2809, %v2807
    %v2918 = vpack.c.b16 %v2810, %v2808
    %v2919 = vpack.c.b16 %v2813, %v2811
    %v2920 = vpack.c.b16 %v2814, %v2812
    %v2921 = vpack.c.b16 %v2817, %v2815
    %v2922 = vpack.c.b16 %v2818, %v2816
    %v2923 = vpack.c.b16 %v2821, %v2819
    %v2924 = vpack.c.b16 %v2822, %v2820
    %v2925 = vpack.c.b16 %v2825, %v2823
    %v2926 = vpack.c.b16 %v2826, %v2824
    %v2927 = vpack.c.b16 %v2829, %v2827
    %v2928 = vpack.c.b16 %v2830, %v2828
    %v2929 = vpack.c.b16 %v2833, %v2831
    %v2930 = vpack.c.b16 %v2834, %v2832
    %v2931 = vpack.c.b16 %v2837, %v2835
    %v2932 = vpack.c.b16 %v2838, %v2836
    %v2933 = vpack.c.b16 %v2841, %v2839
    %v2934 = vpack.c.b16 %v2842, %v2840
    %v2935 = vpack.c.b16 %v2845, %v2843
    %v2936 = vpack.c.b16 %v2846, %v2844
    %v2937 = vpack.c.b16 %v2849, %v2847
    %v2938 = vpack.c.b16 %v2850, %v2848
    %v2939 = vpack.c.b16 %v2853, %v2851
    %v2940 = vpack.c.b16 %v2854, %v2852
    %v2941 = vpack.c.b16 %v2857, %v2855
    %v2942 = vpack.c.b16 %v2858, %v2856
    %v2943 = vpack.c.b16 %v2861, %v2859
    %v2944 = vpack.c.b16 %v2862, %v2860
    %v2945 = vpack.c.b16 %v2865, %v2863
    %v2946 = vpack.c.b16 %v2866, %v2864
    %v2947 = vpack.c.b16 %v2869, %v2867
    %v2948 = vpack.c.b16 %v2870, %v2868
    %v2949 = vpack.c.b16 %v2873, %v2871
    %v2950 = vpack.c.b16 %v2874, %v2872
    %v2951 = vpack.c.b16 %v2877, %v2875
    %v2952 = vpack.c.b16 %v2878, %v2876
    %v2953 = vpack.c.b16 %v2881, %v2879
    %v2954 = vpack.c.b16 %v2882, %v2880
    %v2955 = vpack.c.b16 %v2885, %v2883
    %v2956 = vpack.c.b16 %v2886, %v2884
    %v2957 = vpack.c.b16 %v2889, %v2887
    %v2958 = vpack.c.b16 %v2890, %v2888
    %v2959 = vpack.c.b16 %v2893, %v2891
    %v2960 = vpack.c.b16 %v2894, %v2892
    %v2961 = vpack.c.b16 %v2897, %v2895
    %v2962 = vpack.c.b16 %v2898, %v2896
    %v2963 = vpack.c.b16 %v2901, %v2899
    %v2964 = vpack.c.b16 %v2902, %v2900
    %v2965 = vpack.c.b16 %v2905, %v2903
    %v2966 = vpack.c.b16 %v2906, %v2904
    %v3028 = vsel %vm466, %v2665, 0
    %3030 = vmatprep.subr.bf16.mxu0 %v2908
    %3031 = vmatpush1.bf16.msra.mxu0 %v2907
    %3032 = vmatprep.subr.bf16.mxu0 %v2910
    %3033 = vmatpush1.bf16.msra.mxu0 %v2909
    %3034 = vmatprep.subr.bf16.mxu0 %v2912
    %3035 = vmatpush1.bf16.msra.mxu0 %v2911
    %3036 = vmatprep.subr.bf16.mxu0 %v2914
    %3037 = vmatpush1.bf16.msra.mxu0 %v2913
    %3038 = vmatprep.subr.bf16.mxu0 %v2916
    %3039 = vmatpush1.bf16.msra.mxu0 %v2915
    %3040 = vmatprep.subr.bf16.mxu0 %v2918
    %3041 = vmatpush1.bf16.msra.mxu0 %v2917
    %3042 = vmatprep.subr.bf16.mxu0 %v2920
    %3043 = vmatpush1.bf16.msra.mxu0 %v2919
    %3044 = vmatprep.subr.bf16.mxu0 %v2922
    %3045 = vmatpush1.bf16.msra.mxu0 %v2921
    %3046 = vmatprep.subr.bf16.mxu0 %v2924
    %3047 = vmatpush1.bf16.msra.mxu0 %v2923
    %3048 = vmatprep.subr.bf16.mxu0 %v2926
    %3049 = vmatpush1.bf16.msra.mxu0 %v2925
    %3050 = vmatprep.subr.bf16.mxu0 %v2928
    %3051 = vmatpush1.bf16.msra.mxu0 %v2927
    %3052 = vmatprep.subr.bf16.mxu0 %v2930
    %3053 = vmatpush1.bf16.msra.mxu0 %v2929
    %3054 = vmatprep.subr.bf16.mxu0 %v2932
    %3055 = vmatpush1.bf16.msra.mxu0 %v2931
    %3056 = vmatprep.subr.bf16.mxu0 %v2934
    %3057 = vmatpush1.bf16.msra.mxu0 %v2933
    %3058 = vmatprep.subr.bf16.mxu0 %v2936
    %3059 = vmatpush1.bf16.msra.mxu0 %v2935
    %3060 = vmatprep.subr.bf16.mxu0 %v2938
    %3061 = vmatpush1.bf16.msra.mxu0 %v2937
    %3062 = vmatprep.mubr.bf16.mxu0 %v2663
    %3063 = vmatmul.mubr.bf16.gmra.mrb[0].mxu0 %v2662
    %v3064 = vpop.f32.mrb[0].mxu0
    %v3065 = vadd.f32 0.0, %v3064
    %v3066 = vpop.f32.mrb[0].mxu0
    %v3067 = vadd.f32 0.0, %v3066
    %v3068 = vpop.f32.mrb[0].mxu0
    %v3069 = vadd.f32 0.0, %v3068
    %v3070 = vpop.f32.mrb[0].mxu0
    %v3071 = vadd.f32 0.0, %v3070
    %3072 = vdwg.mxu0
    %3073 = vmatprep.subr.bf16.mxu0 %v2940
    %3074 = vmatpush1.bf16.msra.mxu0 %v2939
    %3075 = vmatprep.subr.bf16.mxu0 %v2942
    %3076 = vmatpush1.bf16.msra.mxu0 %v2941
    %3077 = vmatprep.subr.bf16.mxu0 %v2944
    %3078 = vmatpush1.bf16.msra.mxu0 %v2943
    %3079 = vmatprep.subr.bf16.mxu0 %v2946
    %3080 = vmatpush1.bf16.msra.mxu0 %v2945
    %3081 = vmatprep.subr.bf16.mxu0 %v2948
    %3082 = vmatpush1.bf16.msra.mxu0 %v2947
    %3083 = vmatprep.subr.bf16.mxu0 %v2950
    %3084 = vmatpush1.bf16.msra.mxu0 %v2949
    %3085 = vmatprep.subr.bf16.mxu0 %v2952
    %3086 = vmatpush1.bf16.msra.mxu0 %v2951
    %3087 = vmatprep.subr.bf16.mxu0 %v2954
    %3088 = vmatpush1.bf16.msra.mxu0 %v2953
    %3089 = vmatprep.subr.bf16.mxu0 %v2956
    %3090 = vmatpush1.bf16.msra.mxu0 %v2955
    %3091 = vmatprep.subr.bf16.mxu0 %v2958
    %3092 = vmatpush1.bf16.msra.mxu0 %v2957
    %3093 = vmatprep.subr.bf16.mxu0 %v2960
    %3094 = vmatpush1.bf16.msra.mxu0 %v2959
    %3095 = vmatprep.subr.bf16.mxu0 %v2962
    %3096 = vmatpush1.bf16.msra.mxu0 %v2961
    %3097 = vmatprep.subr.bf16.mxu0 %v2964
    %3098 = vmatpush1.bf16.msra.mxu0 %v2963
    %3099 = vmatprep.subr.bf16.mxu0 %v2966
    %3100 = vmatpush1.bf16.msra.mxu0 %v2965
    %3101 = vmatprep.subr.bf16.mxu0 0
    %3102 = vmatpush1.bf16.msra.mxu0 0
    %3103 = vmatprep.subr.bf16.mxu0 0
    %3104 = vmatpush1.bf16.msra.mxu0 0
    %3105 = vmatprep.mubr.bf16.mxu0 %v3028
    %3106 = vmatmul.mubr.bf16.gmra.mrb[0].mxu0 %v2664
    %v3107 = vpop.f32.mrb[0].mxu0
    %v3108 = vadd.f32 %v3065, %v3107
    %v3109 = vpop.f32.mrb[0].mxu0
    %v3110 = vadd.f32 %v3067, %v3109
    %v3111 = vpop.f32.mrb[0].mxu0
    %v3112 = vadd.f32 %v3069, %v3111
    %v3113 = vpop.f32.mrb[0].mxu0
    %v3114 = vadd.f32 %v3071, %v3113
    %3115 = vdwg.mxu0
    %v3176 = vunpack.c.l.b16 %v2505
    %v3177 = vunpack.c.h.b16 %v2505
    %v3178 = vunpack.c.l.b16 %v2506
    %v3179 = vunpack.c.h.b16 %v2506
    %v3180 = vunpack.c.l.b16 %v2507
    %v3181 = vunpack.c.h.b16 %v2507
    %v3182 = vunpack.c.l.b16 %v2508
    %v3183 = vunpack.c.h.b16 %v2508
    %v3184 = vunpack.c.l.b16 %v2509
    %v3185 = vunpack.c.h.b16 %v2509
    %v3186 = vunpack.c.l.b16 %v2510
    %v3187 = vunpack.c.h.b16 %v2510
    %v3188 = vunpack.c.l.b16 %v2511
    %v3189 = vunpack.c.h.b16 %v2511
    %v3190 = vunpack.c.l.b16 %v2512
    %v3191 = vunpack.c.h.b16 %v2512
    %v3192 = vunpack.c.l.b16 %v2513
    %v3193 = vunpack.c.h.b16 %v2513
    %v3194 = vunpack.c.l.b16 %v2514
    %v3195 = vunpack.c.h.b16 %v2514
    %v3196 = vunpack.c.l.b16 %v2515
    %v3197 = vunpack.c.h.b16 %v2515
    %v3198 = vunpack.c.l.b16 %v2516
    %v3199 = vunpack.c.h.b16 %v2516
    %v3200 = vunpack.c.l.b16 %v2517
    %v3201 = vunpack.c.h.b16 %v2517
    %v3202 = vunpack.c.l.b16 %v2518
    %v3203 = vunpack.c.h.b16 %v2518
    %v3204 = vunpack.c.l.b16 %v2519
    %v3205 = vunpack.c.h.b16 %v2519
    %v3206 = vunpack.c.l.b16 %v2520
    %v3207 = vunpack.c.h.b16 %v2520
    %v3208 = vunpack.c.l.b16 %v2521
    %v3209 = vunpack.c.h.b16 %v2521
    %v3210 = vunpack.c.l.b16 %v2522
    %v3211 = vunpack.c.h.b16 %v2522
    %v3212 = vunpack.c.l.b16 %v2523
    %v3213 = vunpack.c.h.b16 %v2523
    %v3214 = vunpack.c.l.b16 %v2524
    %v3215 = vunpack.c.h.b16 %v2524
    %v3216 = vunpack.c.l.b16 %v2525
    %v3217 = vunpack.c.h.b16 %v2525
    %v3218 = vunpack.c.l.b16 %v2526
    %v3219 = vunpack.c.h.b16 %v2526
    %v3220 = vunpack.c.l.b16 %v2527
    %v3221 = vunpack.c.h.b16 %v2527
    %v3222 = vunpack.c.l.b16 %v2528
    %v3223 = vunpack.c.h.b16 %v2528
    %v3224 = vunpack.c.l.b16 %v2529
    %v3225 = vunpack.c.h.b16 %v2529
    %v3226 = vunpack.c.l.b16 %v2530
    %v3227 = vunpack.c.h.b16 %v2530
    %v3228 = vunpack.c.l.b16 %v2531
    %v3229 = vunpack.c.h.b16 %v2531
    %v3230 = vunpack.c.l.b16 %v2532
    %v3231 = vunpack.c.h.b16 %v2532
    %v3232 = vunpack.c.l.b16 %v2533
    %v3233 = vunpack.c.h.b16 %v2533
    %v3234 = vunpack.c.l.b16 %v2534
    %v3235 = vunpack.c.h.b16 %v2534
    %v3236 = vunpack.c.l.b16 %v2535
    %v3237 = vunpack.c.h.b16 %v2535
    %v3238 = vunpack.c.l.b16 %v2536
    %v3239 = vunpack.c.h.b16 %v2536
    %v3240 = vunpack.c.l.b16 %v2537
    %v3241 = vunpack.c.h.b16 %v2537
    %v3242 = vunpack.c.l.b16 %v2538
    %v3243 = vunpack.c.h.b16 %v2538
    %v3244 = vunpack.c.l.b16 %v2539
    %v3245 = vunpack.c.h.b16 %v2539
    %v3246 = vunpack.c.l.b16 %v2540
    %v3247 = vunpack.c.h.b16 %v2540
    %v3248 = vunpack.c.l.b16 %v2541
    %v3249 = vunpack.c.h.b16 %v2541
    %v3250 = vunpack.c.l.b16 %v2542
    %v3251 = vunpack.c.h.b16 %v2542
    %v3252 = vunpack.c.l.b16 %v2543
    %v3253 = vunpack.c.h.b16 %v2543
    %v3254 = vunpack.c.l.b16 %v2544
    %v3255 = vunpack.c.h.b16 %v2544
    %v3256 = vunpack.c.l.b16 %v2545
    %v3257 = vunpack.c.h.b16 %v2545
    %v3258 = vunpack.c.l.b16 %v2546
    %v3259 = vunpack.c.h.b16 %v2546
    %v3260 = vunpack.c.l.b16 %v2547
    %v3261 = vunpack.c.h.b16 %v2547
    %v3262 = vunpack.c.l.b16 %v2548
    %v3263 = vunpack.c.h.b16 %v2548
    %v3264 = vunpack.c.l.b16 %v2549
    %v3265 = vunpack.c.h.b16 %v2549
    %v3266 = vunpack.c.l.b16 %v2550
    %v3267 = vunpack.c.h.b16 %v2550
    %v3268 = vunpack.c.l.b16 %v2551
    %v3269 = vunpack.c.h.b16 %v2551
    %v3270 = vunpack.c.l.b16 %v2552
    %v3271 = vunpack.c.h.b16 %v2552
    %v3272 = vunpack.c.l.b16 %v2553
    %v3273 = vunpack.c.h.b16 %v2553
    %v3274 = vunpack.c.l.b16 %v2554
    %v3275 = vunpack.c.h.b16 %v2554
    %v3276 = vunpack.c.l.b16 %v2555
    %v3277 = vunpack.c.h.b16 %v2555
    %v3278 = vunpack.c.l.b16 %v2556
    %v3279 = vunpack.c.h.b16 %v2556
    %v3280 = vunpack.c.l.b16 %v2557
    %v3281 = vunpack.c.h.b16 %v2557
    %v3282 = vunpack.c.l.b16 %v2558
    %v3283 = vunpack.c.h.b16 %v2558
    %v3284 = vunpack.c.l.b16 %v2559
    %v3285 = vunpack.c.h.b16 %v2559
    %v3286 = vunpack.c.l.b16 %v2560
    %v3287 = vunpack.c.h.b16 %v2560
    %v3288 = vunpack.c.l.b16 %v2561
    %v3289 = vunpack.c.h.b16 %v2561
    %v3290 = vunpack.c.l.b16 %v2562
    %v3291 = vunpack.c.h.b16 %v2562
    %v3292 = vunpack.c.l.b16 %v2563
    %v3293 = vunpack.c.h.b16 %v2563
    %v3294 = vunpack.c.l.b16 %v2564
    %v3295 = vunpack.c.h.b16 %v2564
    %v3296 = vpack.c.b16 %v3178, %v3176
    %v3297 = vpack.c.b16 %v3179, %v3177
    %v3298 = vpack.c.b16 %v3182, %v3180
    %v3299 = vpack.c.b16 %v3183, %v3181
    %v3300 = vpack.c.b16 %v3186, %v3184
    %v3301 = vpack.c.b16 %v3187, %v3185
    %v3302 = vpack.c.b16 %v3190, %v3188
    %v3303 = vpack.c.b16 %v3191, %v3189
    %v3304 = vpack.c.b16 %v3194, %v3192
    %v3305 = vpack.c.b16 %v3195, %v3193
    %v3306 = vpack.c.b16 %v3198, %v3196
    %v3307 = vpack.c.b16 %v3199, %v3197
    %v3308 = vpack.c.b16 %v3202, %v3200
    %v3309 = vpack.c.b16 %v3203, %v3201
    %v3310 = vpack.c.b16 %v3206, %v3204
    %v3311 = vpack.c.b16 %v3207, %v3205
    %v3312 = vpack.c.b16 %v3210, %v3208
    %v3313 = vpack.c.b16 %v3211, %v3209
    %v3314 = vpack.c.b16 %v3214, %v3212
    %v3315 = vpack.c.b16 %v3215, %v3213
    %v3316 = vpack.c.b16 %v3218, %v3216
    %v3317 = vpack.c.b16 %v3219, %v3217
    %v3318 = vpack.c.b16 %v3222, %v3220
    %v3319 = vpack.c.b16 %v3223, %v3221
    %v3320 = vpack.c.b16 %v3226, %v3224
    %v3321 = vpack.c.b16 %v3227, %v3225
    %v3322 = vpack.c.b16 %v3230, %v3228
    %v3323 = vpack.c.b16 %v3231, %v3229
    %v3324 = vpack.c.b16 %v3234, %v3232
    %v3325 = vpack.c.b16 %v3235, %v3233
    %v3326 = vpack.c.b16 %v3238, %v3236
    %v3327 = vpack.c.b16 %v3239, %v3237
    %v3328 = vpack.c.b16 %v3242, %v3240
    %v3329 = vpack.c.b16 %v3243, %v3241
    %v3330 = vpack.c.b16 %v3246, %v3244
    %v3331 = vpack.c.b16 %v3247, %v3245
    %v3332 = vpack.c.b16 %v3250, %v3248
    %v3333 = vpack.c.b16 %v3251, %v3249
    %v3334 = vpack.c.b16 %v3254, %v3252
    %v3335 = vpack.c.b16 %v3255, %v3253
    %v3336 = vpack.c.b16 %v3258, %v3256
    %v3337 = vpack.c.b16 %v3259, %v3257
    %v3338 = vpack.c.b16 %v3262, %v3260
    %v3339 = vpack.c.b16 %v3263, %v3261
    %v3340 = vpack.c.b16 %v3266, %v3264
    %v3341 = vpack.c.b16 %v3267, %v3265
    %v3342 = vpack.c.b16 %v3270, %v3268
    %v3343 = vpack.c.b16 %v3271, %v3269
    %v3344 = vpack.c.b16 %v3274, %v3272
    %v3345 = vpack.c.b16 %v3275, %v3273
    %v3346 = vpack.c.b16 %v3278, %v3276
    %v3347 = vpack.c.b16 %v3279, %v3277
    %v3348 = vpack.c.b16 %v3282, %v3280
    %v3349 = vpack.c.b16 %v3283, %v3281
    %v3350 = vpack.c.b16 %v3286, %v3284
    %v3351 = vpack.c.b16 %v3287, %v3285
    %v3352 = vpack.c.b16 %v3290, %v3288
    %v3353 = vpack.c.b16 %v3291, %v3289
    %v3354 = vpack.c.b16 %v3294, %v3292
    %v3355 = vpack.c.b16 %v3295, %v3293
    %v3417 = vsel %vm466, %v2504, 0
    %3419 = vmatprep.subr.bf16.mxu0 %v3297
    %3420 = vmatpush1.bf16.msra.mxu0 %v3296
    %3421 = vmatprep.subr.bf16.mxu0 %v3299
    %3422 = vmatpush1.bf16.msra.mxu0 %v3298
    %3423 = vmatprep.subr.bf16.mxu0 %v3301
    %3424 = vmatpush1.bf16.msra.mxu0 %v3300
    %3425 = vmatprep.subr.bf16.mxu0 %v3303
    %3426 = vmatpush1.bf16.msra.mxu0 %v3302
    %3427 = vmatprep.subr.bf16.mxu0 %v3305
    %3428 = vmatpush1.bf16.msra.mxu0 %v3304
    %3429 = vmatprep.subr.bf16.mxu0 %v3307
    %3430 = vmatpush1.bf16.msra.mxu0 %v3306
    %3431 = vmatprep.subr.bf16.mxu0 %v3309
    %3432 = vmatpush1.bf16.msra.mxu0 %v3308
    %3433 = vmatprep.subr.bf16.mxu0 %v3311
    %3434 = vmatpush1.bf16.msra.mxu0 %v3310
    %3435 = vmatprep.subr.bf16.mxu0 %v3313
    %3436 = vmatpush1.bf16.msra.mxu0 %v3312
    %3437 = vmatprep.subr.bf16.mxu0 %v3315
    %3438 = vmatpush1.bf16.msra.mxu0 %v3314
    %3439 = vmatprep.subr.bf16.mxu0 %v3317
    %3440 = vmatpush1.bf16.msra.mxu0 %v3316
    %3441 = vmatprep.subr.bf16.mxu0 %v3319
    %3442 = vmatpush1.bf16.msra.mxu0 %v3318
    %3443 = vmatprep.subr.bf16.mxu0 %v3321
    %3444 = vmatpush1.bf16.msra.mxu0 %v3320
    %3445 = vmatprep.subr.bf16.mxu0 %v3323
    %3446 = vmatpush1.bf16.msra.mxu0 %v3322
    %3447 = vmatprep.subr.bf16.mxu0 %v3325
    %3448 = vmatpush1.bf16.msra.mxu0 %v3324
    %3449 = vmatprep.subr.bf16.mxu0 %v3327
    %3450 = vmatpush1.bf16.msra.mxu0 %v3326
    %3451 = vmatprep.mubr.bf16.mxu0 %v2502
    %3452 = vmatmul.mubr.bf16.gmra.mrb[0].mxu0 %v2501
    %v3453 = vpop.f32.mrb[0].mxu0
    %v3454 = vadd.f32 %v3108, %v3453
    %v3455 = vpop.f32.mrb[0].mxu0
    %v3456 = vadd.f32 %v3110, %v3455
    %v3457 = vpop.f32.mrb[0].mxu0
    %v3458 = vadd.f32 %v3112, %v3457
    %v3459 = vpop.f32.mrb[0].mxu0
    %v3460 = vadd.f32 %v3114, %v3459
    %3461 = vdwg.mxu0
    %3462 = vmatprep.subr.bf16.mxu0 %v3329
    %3463 = vmatpush1.bf16.msra.mxu0 %v3328
    %3464 = vmatprep.subr.bf16.mxu0 %v3331
    %3465 = vmatpush1.bf16.msra.mxu0 %v3330
    %3466 = vmatprep.subr.bf16.mxu0 %v3333
    %3467 = vmatpush1.bf16.msra.mxu0 %v3332
    %3468 = vmatprep.subr.bf16.mxu0 %v3335
    %3469 = vmatpush1.bf16.msra.mxu0 %v3334
    %3470 = vmatprep.subr.bf16.mxu0 %v3337
    %3471 = vmatpush1.bf16.msra.mxu0 %v3336
    %3472 = vmatprep.subr.bf16.mxu0 %v3339
    %3473 = vmatpush1.bf16.msra.mxu0 %v3338
    %3474 = vmatprep.subr.bf16.mxu0 %v3341
    %3475 = vmatpush1.bf16.msra.mxu0 %v3340
    %3476 = vmatprep.subr.bf16.mxu0 %v3343
    %3477 = vmatpush1.bf16.msra.mxu0 %v3342
    %3478 = vmatprep.subr.bf16.mxu0 %v3345
    %3479 = vmatpush1.bf16.msra.mxu0 %v3344
    %3480 = vmatprep.subr.bf16.mxu0 %v3347
    %3481 = vmatpush1.bf16.msra.mxu0 %v3346
    %3482 = vmatprep.subr.bf16.mxu0 %v3349
    %3483 = vmatpush1.bf16.msra.mxu0 %v3348
    %3484 = vmatprep.subr.bf16.mxu0 %v3351
    %3485 = vmatpush1.bf16.msra.mxu0 %v3350
    %3486 = vmatprep.subr.bf16.mxu0 %v3353
    %3487 = vmatpush1.bf16.msra.mxu0 %v3352
    %3488 = vmatprep.subr.bf16.mxu0 %v3355
    %3489 = vmatpush1.bf16.msra.mxu0 %v3354
    %3490 = vmatprep.subr.bf16.mxu0 0
    %3491 = vmatpush1.bf16.msra.mxu0 0
    %3492 = vmatprep.subr.bf16.mxu0 0
    %3493 = vmatpush1.bf16.msra.mxu0 0
    %3494 = vmatprep.mubr.bf16.mxu0 %v3417
    %3495 = vmatmul.mubr.bf16.gmra.mrb[0].mxu0 %v2503
    %v3496 = vpop.f32.mrb[0].mxu0
    %v3497 = vadd.f32 %v3454, %v3496
    %v3498 = vpop.f32.mrb[0].mxu0
    %v3499 = vadd.f32 %v3456, %v3498
    %v3500 = vpop.f32.mrb[0].mxu0
    %v3501 = vadd.f32 %v3458, %v3500
    %v3502 = vpop.f32.mrb[0].mxu0
    %v3503 = vadd.f32 %v3460, %v3502
    %3504 = vdwg.mxu0
    %s3505 = scalar_lea.vmem %s15, 16
    %v3506 = vld [vmem:[%s3505] sm:$0xf]
    %v3507 = vld [vmem:[%s3505 + $0x4] sm:$0x3]
    %v3510 = vunpack.c.l.b16 %v3506
    %v3511 = vunpack.c.l.b16 %v3507
    %v3512 = vpack.c.b16 %v3511, %v3510
    %v3514 = vsel %vm2398, %v3512, 0
    %3516 = vmatprep.subr.bf16.mxu0 %v2384
    %3517 = vmatpush1.bf16.msra.mxu0 %v2383
    %3518 = vmatprep.subr.bf16.mxu0 %v2407
    %3519 = vmatpush1.bf16.msra.mxu0 %v2404
    %3520 = vmatprep.subr.bf16.mxu0 0
    %3521 = vmatpush1.bf16.msra.mxu0 0
    %3522 = vmatprep.subr.bf16.mxu0 0
    %3523 = vmatpush1.bf16.msra.mxu0 0
    %3524 = vmatprep.subr.bf16.mxu0 0
    %3525 = vmatpush1.bf16.msra.mxu0 0
    %3526 = vmatprep.subr.bf16.mxu0 0
    %3527 = vmatpush1.bf16.msra.mxu0 0
    %3528 = vmatprep.subr.bf16.mxu0 0
    %3529 = vmatpush1.bf16.msra.mxu0 0
    %3530 = vmatprep.subr.bf16.mxu0 0
    %3531 = vmatpush1.bf16.msra.mxu0 0
    %3532 = vmatprep.subr.bf16.mxu0 0
    %3533 = vmatpush1.bf16.msra.mxu0 0
    %3534 = vmatprep.subr.bf16.mxu0 0
    %3535 = vmatpush1.bf16.msra.mxu0 0
    %3536 = vmatprep.subr.bf16.mxu0 0
    %3537 = vmatpush1.bf16.msra.mxu0 0
    %3538 = vmatprep.subr.bf16.mxu0 0
    %3539 = vmatpush1.bf16.msra.mxu0 0
    %3540 = vmatprep.subr.bf16.mxu0 0
    %3541 = vmatpush1.bf16.msra.mxu0 0
    %3542 = vmatprep.subr.bf16.mxu0 0
    %3543 = vmatpush1.bf16.msra.mxu0 0
    %3544 = vmatprep.subr.bf16.mxu0 0
    %3545 = vmatpush1.bf16.msra.mxu0 0
    %3546 = vmatprep.subr.bf16.mxu0 0
    %3547 = vmatpush1.bf16.msra.mxu0 0
    %3548 = vmatprep.mubr.bf16.mxu0 0
    %3549 = vmatmul.mubr.bf16.gmra.mrb[0].mxu0 %v3514
    %v3550 = vpop.f32.mrb[0].mxu0
    %v3551 = vadd.f32 0.0, %v3550
    %v3552 = vpop.f32.mrb[0].mxu0
    %v3553 = vadd.f32 0.0, %v3552
    %v3554 = vpop.f32.mrb[0].mxu0
    %v3555 = vadd.f32 0.0, %v3554
    %v3556 = vpop.f32.mrb[0].mxu0
    %v3557 = vadd.f32 0.0, %v3556
    %3558 = vdwg.mxu0
    %3559 = vmatprep.subr.bf16.mxu0 %v2386
    %3560 = vmatpush1.bf16.msra.mxu0 %v2385
    %3561 = vmatprep.subr.bf16.mxu0 %v2413
    %3562 = vmatpush1.bf16.msra.mxu0 %v2410
    %3563 = vmatprep.subr.bf16.mxu0 0
    %3564 = vmatpush1.bf16.msra.mxu0 0
    %3565 = vmatprep.subr.bf16.mxu0 0
    %3566 = vmatpush1.bf16.msra.mxu0 0
    %3567 = vmatprep.subr.bf16.mxu0 0
    %3568 = vmatpush1.bf16.msra.mxu0 0
    %3569 = vmatprep.subr.bf16.mxu0 0
    %3570 = vmatpush1.bf16.msra.mxu0 0
    %3571 = vmatprep.subr.bf16.mxu0 0
    %3572 = vmatpush1.bf16.msra.mxu0 0
    %3573 = vmatprep.subr.bf16.mxu0 0
    %3574 = vmatpush1.bf16.msra.mxu0 0
    %3575 = vmatprep.subr.bf16.mxu0 0
    %3576 = vmatpush1.bf16.msra.mxu0 0
    %3577 = vmatprep.subr.bf16.mxu0 0
    %3578 = vmatpush1.bf16.msra.mxu0 0
    %3579 = vmatprep.subr.bf16.mxu0 0
    %3580 = vmatpush1.bf16.msra.mxu0 0
    %3581 = vmatprep.subr.bf16.mxu0 0
    %3582 = vmatpush1.bf16.msra.mxu0 0
    %3583 = vmatprep.subr.bf16.mxu0 0
    %3584 = vmatpush1.bf16.msra.mxu0 0
    %3585 = vmatprep.subr.bf16.mxu0 0
    %3586 = vmatpush1.bf16.msra.mxu0 0
    %3587 = vmatprep.subr.bf16.mxu0 0
    %3588 = vmatpush1.bf16.msra.mxu0 0
    %3589 = vmatprep.subr.bf16.mxu0 0
    %3590 = vmatpush1.bf16.msra.mxu0 0
    %3591 = vmatprep.mubr.bf16.mxu0 0
    %3592 = vmatmul.mubr.bf16.gmra.mrb[0].mxu0 %v3514
    %v3593 = vpop.f32.mrb[0].mxu0
    %v3594 = vadd.f32 0.0, %v3593
    %v3595 = vpop.f32.mrb[0].mxu0
    %v3596 = vadd.f32 0.0, %v3595
    %v3597 = vpop.f32.mrb[0].mxu0
    %v3598 = vadd.f32 0.0, %v3597
    %v3599 = vpop.f32.mrb[0].mxu0
    %v3600 = vadd.f32 0.0, %v3599
    %3601 = vdwg.mxu0
    %v3602 = vpack.c.bf16 %v3555, %v3551
    %v3603 = vpack.c.bf16 %v3557, %v3553
    %v3604 = vpack.c.bf16 %v3598, %v3594
    %v3605 = vpack.c.bf16 %v3600, %v3596
    %s3606 = scalar_lea.vmem %s17, 960
    %v3607 = vld [vmem:[%s3606] sm:$0xff]
    %v3608 = vld [vmem:[%s3606 + $0x8] sm:$0xff]
    %v3609 = vld [vmem:[%s3606 + $0x10] sm:$0xff]
    %v3610 = vld [vmem:[%s3606 + $0x18] sm:$0xff]
    %v3611 = vld [vmem:[%s3606 + $0x20] sm:$0xff]
    %v3612 = vld [vmem:[%s3606 + $0x28] sm:$0xff]
    %v3613 = vld [vmem:[%s3606 + $0x30] sm:$0xff]
    %v3614 = vld [vmem:[%s3606 + $0x38] sm:$0xff]
    %v3615 = vld [vmem:[%s3606 + $0x40] sm:$0xff]
    %v3616 = vld [vmem:[%s3606 + $0x48] sm:$0xff]
    %v3617 = vld [vmem:[%s3606 + $0x50] sm:$0xff]
    %v3618 = vld [vmem:[%s3606 + $0x58] sm:$0xff]
    %v3619 = vld [vmem:[%s3606 + $0x60] sm:$0xff]
    %v3620 = vld [vmem:[%s3606 + $0x68] sm:$0xff]
    %v3621 = vld [vmem:[%s3606 + $0x70] sm:$0xff]
    %v3622 = vld [vmem:[%s3606 + $0x78] sm:$0xff]
    %v3623 = vld [vmem:[%s3606 + $0x80] sm:$0xff]
    %v3624 = vld [vmem:[%s3606 + $0x88] sm:$0xff]
    %v3625 = vld [vmem:[%s3606 + $0x90] sm:$0xff]
    %v3626 = vld [vmem:[%s3606 + $0x98] sm:$0xff]
    %v3627 = vld [vmem:[%s3606 + $0xa0] sm:$0xff]
    %v3628 = vld [vmem:[%s3606 + $0xa8] sm:$0xff]
    %v3629 = vld [vmem:[%s3606 + $0xb0] sm:$0xff]
    %v3630 = vld [vmem:[%s3606 + $0xb8] sm:$0xff]
    %v3631 = vld [vmem:[%s3606 + $0xc0] sm:$0xff]
    %v3632 = vld [vmem:[%s3606 + $0xc8] sm:$0xff]
    %v3633 = vld [vmem:[%s3606 + $0xd0] sm:$0xff]
    %v3634 = vld [vmem:[%s3606 + $0xd8] sm:$0xff]
    %v3635 = vld [vmem:[%s3606 + $0xe0] sm:$0xff]
    %v3636 = vld [vmem:[%s3606 + $0xe8] sm:$0xff]
    %v3637 = vld [vmem:[%s3606 + $0xf0] sm:$0xff]
    %v3638 = vld [vmem:[%s3606 + $0xf8] sm:$0xff]
    %v3639 = vld [vmem:[%s3606 + $0x100] sm:$0xff]
    %v3640 = vld [vmem:[%s3606 + $0x108] sm:$0xff]
    %v3641 = vld [vmem:[%s3606 + $0x110] sm:$0xff]
    %v3642 = vld [vmem:[%s3606 + $0x118] sm:$0xff]
    %v3643 = vld [vmem:[%s3606 + $0x120] sm:$0xff]
    %v3644 = vld [vmem:[%s3606 + $0x128] sm:$0xff]
    %v3645 = vld [vmem:[%s3606 + $0x130] sm:$0xff]
    %v3646 = vld [vmem:[%s3606 + $0x138] sm:$0xff]
    %v3647 = vld [vmem:[%s3606 + $0x140] sm:$0xff]
    %v3648 = vld [vmem:[%s3606 + $0x148] sm:$0xff]
    %v3649 = vld [vmem:[%s3606 + $0x150] sm:$0xff]
    %v3650 = vld [vmem:[%s3606 + $0x158] sm:$0xff]
    %v3651 = vld [vmem:[%s3606 + $0x160] sm:$0xff]
    %v3652 = vld [vmem:[%s3606 + $0x168] sm:$0xff]
    %v3653 = vld [vmem:[%s3606 + $0x170] sm:$0xff]
    %v3654 = vld [vmem:[%s3606 + $0x178] sm:$0xff]
    %v3655 = vld [vmem:[%s3606 + $0x180] sm:$0xff]
    %v3656 = vld [vmem:[%s3606 + $0x188] sm:$0xff]
    %v3657 = vld [vmem:[%s3606 + $0x190] sm:$0xff]
    %v3658 = vld [vmem:[%s3606 + $0x198] sm:$0xff]
    %v3659 = vld [vmem:[%s3606 + $0x1a0] sm:$0xff]
    %v3660 = vld [vmem:[%s3606 + $0x1a8] sm:$0xff]
    %v3661 = vld [vmem:[%s3606 + $0x1b0] sm:$0xff]
    %v3662 = vld [vmem:[%s3606 + $0x1b8] sm:$0xff]
    %v3663 = vld [vmem:[%s3606 + $0x1c0] sm:$0xff]
    %v3664 = vld [vmem:[%s3606 + $0x1c8] sm:$0xff]
    %v3665 = vld [vmem:[%s3606 + $0x1d0] sm:$0xff]
    %v3666 = vld [vmem:[%s3606 + $0x1d8] sm:$0xff]
    %v3727 = vunpack.c.l.b16 %v3607
    %v3728 = vunpack.c.h.b16 %v3607
    %v3729 = vunpack.c.l.b16 %v3608
    %v3730 = vunpack.c.h.b16 %v3608
    %v3731 = vunpack.c.l.b16 %v3609
    %v3732 = vunpack.c.h.b16 %v3609
    %v3733 = vunpack.c.l.b16 %v3610
    %v3734 = vunpack.c.h.b16 %v3610
    %v3735 = vunpack.c.l.b16 %v3611
    %v3736 = vunpack.c.h.b16 %v3611
    %v3737 = vunpack.c.l.b16 %v3612
    %v3738 = vunpack.c.h.b16 %v3612
    %v3739 = vunpack.c.l.b16 %v3613
    %v3740 = vunpack.c.h.b16 %v3613
    %v3741 = vunpack.c.l.b16 %v3614
    %v3742 = vunpack.c.h.b16 %v3614
    %v3743 = vunpack.c.l.b16 %v3615
    %v3744 = vunpack.c.h.b16 %v3615
    %v3745 = vunpack.c.l.b16 %v3616
    %v3746 = vunpack.c.h.b16 %v3616
    %v3747 = vunpack.c.l.b16 %v3617
    %v3748 = vunpack.c.h.b16 %v3617
    %v3749 = vunpack.c.l.b16 %v3618
    %v3750 = vunpack.c.h.b16 %v3618
    %v3751 = vunpack.c.l.b16 %v3619
    %v3752 = vunpack.c.h.b16 %v3619
    %v3753 = vunpack.c.l.b16 %v3620
    %v3754 = vunpack.c.h.b16 %v3620
    %v3755 = vunpack.c.l.b16 %v3621
    %v3756 = vunpack.c.h.b16 %v3621
    %v3757 = vunpack.c.l.b16 %v3622
    %v3758 = vunpack.c.h.b16 %v3622
    %v3759 = vunpack.c.l.b16 %v3623
    %v3760 = vunpack.c.h.b16 %v3623
    %v3761 = vunpack.c.l.b16 %v3624
    %v3762 = vunpack.c.h.b16 %v3624
    %v3763 = vunpack.c.l.b16 %v3625
    %v3764 = vunpack.c.h.b16 %v3625
    %v3765 = vunpack.c.l.b16 %v3626
    %v3766 = vunpack.c.h.b16 %v3626
    %v3767 = vunpack.c.l.b16 %v3627
    %v3768 = vunpack.c.h.b16 %v3627
    %v3769 = vunpack.c.l.b16 %v3628
    %v3770 = vunpack.c.h.b16 %v3628
    %v3771 = vunpack.c.l.b16 %v3629
    %v3772 = vunpack.c.h.b16 %v3629
    %v3773 = vunpack.c.l.b16 %v3630
    %v3774 = vunpack.c.h.b16 %v3630
    %v3775 = vunpack.c.l.b16 %v3631
    %v3776 = vunpack.c.h.b16 %v3631
    %v3777 = vunpack.c.l.b16 %v3632
    %v3778 = vunpack.c.h.b16 %v3632
    %v3779 = vunpack.c.l.b16 %v3633
    %v3780 = vunpack.c.h.b16 %v3633
    %v3781 = vunpack.c.l.b16 %v3634
    %v3782 = vunpack.c.h.b16 %v3634
    %v3783 = vunpack.c.l.b16 %v3635
    %v3784 = vunpack.c.h.b16 %v3635
    %v3785 = vunpack.c.l.b16 %v3636
    %v3786 = vunpack.c.h.b16 %v3636
    %v3787 = vunpack.c.l.b16 %v3637
    %v3788 = vunpack.c.h.b16 %v3637
    %v3789 = vunpack.c.l.b16 %v3638
    %v3790 = vunpack.c.h.b16 %v3638
    %v3791 = vunpack.c.l.b16 %v3639
    %v3792 = vunpack.c.h.b16 %v3639
    %v3793 = vunpack.c.l.b16 %v3640
    %v3794 = vunpack.c.h.b16 %v3640
    %v3795 = vunpack.c.l.b16 %v3641
    %v3796 = vunpack.c.h.b16 %v3641
    %v3797 = vunpack.c.l.b16 %v3642
    %v3798 = vunpack.c.h.b16 %v3642
    %v3799 = vunpack.c.l.b16 %v3643
    %v3800 = vunpack.c.h.b16 %v3643
    %v3801 = vunpack.c.l.b16 %v3644
    %v3802 = vunpack.c.h.b16 %v3644
    %v3803 = vunpack.c.l.b16 %v3645
    %v3804 = vunpack.c.h.b16 %v3645
    %v3805 = vunpack.c.l.b16 %v3646
    %v3806 = vunpack.c.h.b16 %v3646
    %v3807 = vunpack.c.l.b16 %v3647
    %v3808 = vunpack.c.h.b16 %v3647
    %v3809 = vunpack.c.l.b16 %v3648
    %v3810 = vunpack.c.h.b16 %v3648
    %v3811 = vunpack.c.l.b16 %v3649
    %v3812 = vunpack.c.h.b16 %v3649
    %v3813 = vunpack.c.l.b16 %v3650
    %v3814 = vunpack.c.h.b16 %v3650
    %v3815 = vunpack.c.l.b16 %v3651
    %v3816 = vunpack.c.h.b16 %v3651
    %v3817 = vunpack.c.l.b16 %v3652
    %v3818 = vunpack.c.h.b16 %v3652
    %v3819 = vunpack.c.l.b16 %v3653
    %v3820 = vunpack.c.h.b16 %v3653
    %v3821 = vunpack.c.l.b16 %v3654
    %v3822 = vunpack.c.h.b16 %v3654
    %v3823 = vunpack.c.l.b16 %v3655
    %v3824 = vunpack.c.h.b16 %v3655
    %v3825 = vunpack.c.l.b16 %v3656
    %v3826 = vunpack.c.h.b16 %v3656
    %v3827 = vunpack.c.l.b16 %v3657
    %v3828 = vunpack.c.h.b16 %v3657
    %v3829 = vunpack.c.l.b16 %v3658
    %v3830 = vunpack.c.h.b16 %v3658
    %v3831 = vunpack.c.l.b16 %v3659
    %v3832 = vunpack.c.h.b16 %v3659
    %v3833 = vunpack.c.l.b16 %v3660
    %v3834 = vunpack.c.h.b16 %v3660
    %v3835 = vunpack.c.l.b16 %v3661
    %v3836 = vunpack.c.h.b16 %v3661
    %v3837 = vunpack.c.l.b16 %v3662
    %v3838 = vunpack.c.h.b16 %v3662
    %v3839 = vunpack.c.l.b16 %v3663
    %v3840 = vunpack.c.h.b16 %v3663
    %v3841 = vunpack.c.l.b16 %v3664
    %v3842 = vunpack.c.h.b16 %v3664
    %v3843 = vunpack.c.l.b16 %v3665
    %v3844 = vunpack.c.h.b16 %v3665
    %v3845 = vunpack.c.l.b16 %v3666
    %v3846 = vunpack.c.h.b16 %v3666
    %v3847 = vpack.c.b16 %v3729, %v3727
    %v3848 = vpack.c.b16 %v3730, %v3728
    %v3849 = vpack.c.b16 %v3733, %v3731
    %v3850 = vpack.c.b16 %v3734, %v3732
    %v3851 = vpack.c.b16 %v3737, %v3735
    %v3852 = vpack.c.b16 %v3738, %v3736
    %v3853 = vpack.c.b16 %v3741, %v3739
    %v3854 = vpack.c.b16 %v3742, %v3740
    %v3855 = vpack.c.b16 %v3745, %v3743
    %v3856 = vpack.c.b16 %v3746, %v3744
    %v3857 = vpack.c.b16 %v3749, %v3747
    %v3858 = vpack.c.b16 %v3750, %v3748
    %v3859 = vpack.c.b16 %v3753, %v3751
    %v3860 = vpack.c.b16 %v3754, %v3752
    %v3861 = vpack.c.b16 %v3757, %v3755
    %v3862 = vpack.c.b16 %v3758, %v3756
    %v3863 = vpack.c.b16 %v3761, %v3759
    %v3864 = vpack.c.b16 %v3762, %v3760
    %v3865 = vpack.c.b16 %v3765, %v3763
    %v3866 = vpack.c.b16 %v3766, %v3764
    %v3867 = vpack.c.b16 %v3769, %v3767
    %v3868 = vpack.c.b16 %v3770, %v3768
    %v3869 = vpack.c.b16 %v3773, %v3771
    %v3870 = vpack.c.b16 %v3774, %v3772
    %v3871 = vpack.c.b16 %v3777, %v3775
    %v3872 = vpack.c.b16 %v3778, %v3776
    %v3873 = vpack.c.b16 %v3781, %v3779
    %v3874 = vpack.c.b16 %v3782, %v3780
    %v3875 = vpack.c.b16 %v3785, %v3783
    %v3876 = vpack.c.b16 %v3786, %v3784
    %v3877 = vpack.c.b16 %v3789, %v3787
    %v3878 = vpack.c.b16 %v3790, %v3788
    %v3879 = vpack.c.b16 %v3793, %v3791
    %v3880 = vpack.c.b16 %v3794, %v3792
    %v3881 = vpack.c.b16 %v3797, %v3795
    %v3882 = vpack.c.b16 %v3798, %v3796
    %v3883 = vpack.c.b16 %v3801, %v3799
    %v3884 = vpack.c.b16 %v3802, %v3800
    %v3885 = vpack.c.b16 %v3805, %v3803
    %v3886 = vpack.c.b16 %v3806, %v3804
    %v3887 = vpack.c.b16 %v3809, %v3807
    %v3888 = vpack.c.b16 %v3810, %v3808
    %v3889 = vpack.c.b16 %v3813, %v3811
    %v3890 = vpack.c.b16 %v3814, %v3812
    %v3891 = vpack.c.b16 %v3817, %v3815
    %v3892 = vpack.c.b16 %v3818, %v3816
    %v3893 = vpack.c.b16 %v3821, %v3819
    %v3894 = vpack.c.b16 %v3822, %v3820
    %v3895 = vpack.c.b16 %v3825, %v3823
    %v3896 = vpack.c.b16 %v3826, %v3824
    %v3897 = vpack.c.b16 %v3829, %v3827
    %v3898 = vpack.c.b16 %v3830, %v3828
    %v3899 = vpack.c.b16 %v3833, %v3831
    %v3900 = vpack.c.b16 %v3834, %v3832
    %v3901 = vpack.c.b16 %v3837, %v3835
    %v3902 = vpack.c.b16 %v3838, %v3836
    %v3903 = vpack.c.b16 %v3841, %v3839
    %v3904 = vpack.c.b16 %v3842, %v3840
    %v3905 = vpack.c.b16 %v3845, %v3843
    %v3906 = vpack.c.b16 %v3846, %v3844
    %v3968 = vsel %vm466, %v3605, 0
    %3970 = vmatprep.subr.bf16.mxu0 %v3848
    %3971 = vmatpush1.bf16.msra.mxu0 %v3847
    %3972 = vmatprep.subr.bf16.mxu0 %v3850
    %3973 = vmatpush1.bf16.msra.mxu0 %v3849
    %3974 = vmatprep.subr.bf16.mxu0 %v3852
    %3975 = vmatpush1.bf16.msra.mxu0 %v3851
    %3976 = vmatprep.subr.bf16.mxu0 %v3854
    %3977 = vmatpush1.bf16.msra.mxu0 %v3853
    %3978 = vmatprep.subr.bf16.mxu0 %v3856
    %3979 = vmatpush1.bf16.msra.mxu0 %v3855
    %3980 = vmatprep.subr.bf16.mxu0 %v3858
    %3981 = vmatpush1.bf16.msra.mxu0 %v3857
    %3982 = vmatprep.subr.bf16.mxu0 %v3860
    %3983 = vmatpush1.bf16.msra.mxu0 %v3859
    %3984 = vmatprep.subr.bf16.mxu0 %v3862
    %3985 = vmatpush1.bf16.msra.mxu0 %v3861
    %3986 = vmatprep.subr.bf16.mxu0 %v3864
    %3987 = vmatpush1.bf16.msra.mxu0 %v3863
    %3988 = vmatprep.subr.bf16.mxu0 %v3866
    %3989 = vmatpush1.bf16.msra.mxu0 %v3865
    %3990 = vmatprep.subr.bf16.mxu0 %v3868
    %3991 = vmatpush1.bf16.msra.mxu0 %v3867
    %3992 = vmatprep.subr.bf16.mxu0 %v3870
    %3993 = vmatpush1.bf16.msra.mxu0 %v3869
    %3994 = vmatprep.subr.bf16.mxu0 %v3872
    %3995 = vmatpush1.bf16.msra.mxu0 %v3871
    %3996 = vmatprep.subr.bf16.mxu0 %v3874
    %3997 = vmatpush1.bf16.msra.mxu0 %v3873
    %3998 = vmatprep.subr.bf16.mxu0 %v3876
    %3999 = vmatpush1.bf16.msra.mxu0 %v3875
    %4000 = vmatprep.subr.bf16.mxu0 %v3878
    %4001 = vmatpush1.bf16.msra.mxu0 %v3877
    %4002 = vmatprep.mubr.bf16.mxu0 %v3603
    %4003 = vmatmul.mubr.bf16.gmra.mrb[0].mxu0 %v3602
    %v4004 = vpop.f32.mrb[0].mxu0
    %v4005 = vadd.f32 0.0, %v4004
    %v4006 = vpop.f32.mrb[0].mxu0
    %v4007 = vadd.f32 0.0, %v4006
    %v4008 = vpop.f32.mrb[0].mxu0
    %v4009 = vadd.f32 0.0, %v4008
    %v4010 = vpop.f32.mrb[0].mxu0
    %v4011 = vadd.f32 0.0, %v4010
    %4012 = vdwg.mxu0
    %4013 = vmatprep.subr.bf16.mxu0 %v3880
    %4014 = vmatpush1.bf16.msra.mxu0 %v3879
    %4015 = vmatprep.subr.bf16.mxu0 %v3882
    %4016 = vmatpush1.bf16.msra.mxu0 %v3881
    %4017 = vmatprep.subr.bf16.mxu0 %v3884
    %4018 = vmatpush1.bf16.msra.mxu0 %v3883
    %4019 = vmatprep.subr.bf16.mxu0 %v3886
    %4020 = vmatpush1.bf16.msra.mxu0 %v3885
    %4021 = vmatprep.subr.bf16.mxu0 %v3888
    %4022 = vmatpush1.bf16.msra.mxu0 %v3887
    %4023 = vmatprep.subr.bf16.mxu0 %v3890
    %4024 = vmatpush1.bf16.msra.mxu0 %v3889
    %4025 = vmatprep.subr.bf16.mxu0 %v3892
    %4026 = vmatpush1.bf16.msra.mxu0 %v3891
    %4027 = vmatprep.subr.bf16.mxu0 %v3894
    %4028 = vmatpush1.bf16.msra.mxu0 %v3893
    %4029 = vmatprep.subr.bf16.mxu0 %v3896
    %4030 = vmatpush1.bf16.msra.mxu0 %v3895
    %4031 = vmatprep.subr.bf16.mxu0 %v3898
    %4032 = vmatpush1.bf16.msra.mxu0 %v3897
    %4033 = vmatprep.subr.bf16.mxu0 %v3900
    %4034 = vmatpush1.bf16.msra.mxu0 %v3899
    %4035 = vmatprep.subr.bf16.mxu0 %v3902
    %4036 = vmatpush1.bf16.msra.mxu0 %v3901
    %4037 = vmatprep.subr.bf16.mxu0 %v3904
    %4038 = vmatpush1.bf16.msra.mxu0 %v3903
    %4039 = vmatprep.subr.bf16.mxu0 %v3906
    %4040 = vmatpush1.bf16.msra.mxu0 %v3905
    %4041 = vmatprep.subr.bf16.mxu0 0
    %4042 = vmatpush1.bf16.msra.mxu0 0
    %4043 = vmatprep.subr.bf16.mxu0 0
    %4044 = vmatpush1.bf16.msra.mxu0 0
    %4045 = vmatprep.mubr.bf16.mxu0 %v3968
    %4046 = vmatmul.mubr.bf16.gmra.mrb[0].mxu0 %v3604
    %v4047 = vpop.f32.mrb[0].mxu0
    %v4048 = vadd.f32 %v4005, %v4047
    %v4049 = vpop.f32.mrb[0].mxu0
    %v4050 = vadd.f32 %v4007, %v4049
    %v4051 = vpop.f32.mrb[0].mxu0
    %v4052 = vadd.f32 %v4009, %v4051
    %v4053 = vpop.f32.mrb[0].mxu0
    %v4054 = vadd.f32 %v4011, %v4053
    %4055 = vdwg.mxu0
    %v4056 = vadd.f32 %v3497, %v4048
    %v4057 = vadd.f32 %v3499, %v4050
    %v4058 = vadd.f32 %v3501, %v4052
    %v4059 = vadd.f32 %v3503, %v4054
    %s4060 = scalar_lea.vmem %s15, 24
    %v4061 = vld [vmem:[%s4060] sm:$0xf]
    %v4062 = vld [vmem:[%s4060 + $0x4] sm:$0x3]
    %v4065 = vunpack.c.l.b16 %v4061
    %v4066 = vunpack.c.l.b16 %v4062
    %v4067 = vpack.c.b16 %v4066, %v4065
    %v4069 = vsel %vm2398, %v4067, 0
    %4071 = vmatprep.subr.bf16.mxu0 %v2384
    %4072 = vmatpush1.bf16.msra.mxu0 %v2383
    %4073 = vmatprep.subr.bf16.mxu0 %v2407
    %4074 = vmatpush1.bf16.msra.mxu0 %v2404
    %4075 = vmatprep.subr.bf16.mxu0 0
    %4076 = vmatpush1.bf16.msra.mxu0 0
    %4077 = vmatprep.subr.bf16.mxu0 0
    %4078 = vmatpush1.bf16.msra.mxu0 0
    %4079 = vmatprep.subr.bf16.mxu0 0
    %4080 = vmatpush1.bf16.msra.mxu0 0
    %4081 = vmatprep.subr.bf16.mxu0 0
    %4082 = vmatpush1.bf16.msra.mxu0 0
    %4083 = vmatprep.subr.bf16.mxu0 0
    %4084 = vmatpush1.bf16.msra.mxu0 0
    %4085 = vmatprep.subr.bf16.mxu0 0
    %4086 = vmatpush1.bf16.msra.mxu0 0
    %4087 = vmatprep.subr.bf16.mxu0 0
    %4088 = vmatpush1.bf16.msra.mxu0 0
    %4089 = vmatprep.subr.bf16.mxu0 0
    %4090 = vmatpush1.bf16.msra.mxu0 0
    %4091 = vmatprep.subr.bf16.mxu0 0
    %4092 = vmatpush1.bf16.msra.mxu0 0
    %4093 = vmatprep.subr.bf16.mxu0 0
    %4094 = vmatpush1.bf16.msra.mxu0 0
    %4095 = vmatprep.subr.bf16.mxu0 0
    %4096 = vmatpush1.bf16.msra.mxu0 0
    %4097 = vmatprep.subr.bf16.mxu0 0
    %4098 = vmatpush1.bf16.msra.mxu0 0
    %4099 = vmatprep.subr.bf16.mxu0 0
    %4100 = vmatpush1.bf16.msra.mxu0 0
    %4101 = vmatprep.subr.bf16.mxu0 0
    %4102 = vmatpush1.bf16.msra.mxu0 0
    %4103 = vmatprep.mubr.bf16.mxu0 0
    %4104 = vmatmul.mubr.bf16.gmra.mrb[0].mxu0 %v4069
    %v4105 = vpop.f32.mrb[0].mxu0
    %v4106 = vadd.f32 0.0, %v4105
    %v4107 = vpop.f32.mrb[0].mxu0
    %v4108 = vadd.f32 0.0, %v4107
    %v4109 = vpop.f32.mrb[0].mxu0
    %v4110 = vadd.f32 0.0, %v4109
    %v4111 = vpop.f32.mrb[0].mxu0
    %v4112 = vadd.f32 0.0, %v4111
    %4113 = vdwg.mxu0
    %4114 = vmatprep.subr.bf16.mxu0 %v2386
    %4115 = vmatpush1.bf16.msra.mxu0 %v2385
    %4116 = vmatprep.subr.bf16.mxu0 %v2413
    %4117 = vmatpush1.bf16.msra.mxu0 %v2410
    %4118 = vmatprep.subr.bf16.mxu0 0
    %4119 = vmatpush1.bf16.msra.mxu0 0
    %4120 = vmatprep.subr.bf16.mxu0 0
    %4121 = vmatpush1.bf16.msra.mxu0 0
    %4122 = vmatprep.subr.bf16.mxu0 0
    %4123 = vmatpush1.bf16.msra.mxu0 0
    %4124 = vmatprep.subr.bf16.mxu0 0
    %4125 = vmatpush1.bf16.msra.mxu0 0
    %4126 = vmatprep.subr.bf16.mxu0 0
    %4127 = vmatpush1.bf16.msra.mxu0 0
    %4128 = vmatprep.subr.bf16.mxu0 0
    %4129 = vmatpush1.bf16.msra.mxu0 0
    %4130 = vmatprep.subr.bf16.mxu0 0
    %4131 = vmatpush1.bf16.msra.mxu0 0
    %4132 = vmatprep.subr.bf16.mxu0 0
    %4133 = vmatpush1.bf16.msra.mxu0 0
    %4134 = vmatprep.subr.bf16.mxu0 0
    %4135 = vmatpush1.bf16.msra.mxu0 0
    %4136 = vmatprep.subr.bf16.mxu0 0
    %4137 = vmatpush1.bf16.msra.mxu0 0
    %4138 = vmatprep.subr.bf16.mxu0 0
    %4139 = vmatpush1.bf16.msra.mxu0 0
    %4140 = vmatprep.subr.bf16.mxu0 0
    %4141 = vmatpush1.bf16.msra.mxu0 0
    %4142 = vmatprep.subr.bf16.mxu0 0
    %4143 = vmatpush1.bf16.msra.mxu0 0
    %4144 = vmatprep.subr.bf16.mxu0 0
    %4145 = vmatpush1.bf16.msra.mxu0 0
    %4146 = vmatprep.mubr.bf16.mxu0 0
    %4147 = vmatmul.mubr.bf16.gmra.mrb[0].mxu0 %v4069
    %v4148 = vpop.f32.mrb[0].mxu0
    %v4149 = vadd.f32 0.0, %v4148
    %v4150 = vpop.f32.mrb[0].mxu0
    %v4151 = vadd.f32 0.0, %v4150
    %v4152 = vpop.f32.mrb[0].mxu0
    %v4153 = vadd.f32 0.0, %v4152
    %v4154 = vpop.f32.mrb[0].mxu0
    %v4155 = vadd.f32 0.0, %v4154
    %4156 = vdwg.mxu0
    %v4157 = vpack.c.bf16 %v4110, %v4106
    %v4158 = vpack.c.bf16 %v4112, %v4108
    %v4159 = vpack.c.bf16 %v4153, %v4149
    %v4160 = vpack.c.bf16 %v4155, %v4151
    %s4161 = scalar_lea.vmem %s17, 1440
    %v4162 = vld [vmem:[%s4161] sm:$0xff]
    %v4163 = vld [vmem:[%s4161 + $0x8] sm:$0xff]
    %v4164 = vld [vmem:[%s4161 + $0x10] sm:$0xff]
    %v4165 = vld [vmem:[%s4161 + $0x18] sm:$0xff]
    %v4166 = vld [vmem:[%s4161 + $0x20] sm:$0xff]
    %v4167 = vld [vmem:[%s4161 + $0x28] sm:$0xff]
    %v4168 = vld [vmem:[%s4161 + $0x30] sm:$0xff]
    %v4169 = vld [vmem:[%s4161 + $0x38] sm:$0xff]
    %v4170 = vld [vmem:[%s4161 + $0x40] sm:$0xff]
    %v4171 = vld [vmem:[%s4161 + $0x48] sm:$0xff]
    %v4172 = vld [vmem:[%s4161 + $0x50] sm:$0xff]
    %v4173 = vld [vmem:[%s4161 + $0x58] sm:$0xff]
    %v4174 = vld [vmem:[%s4161 + $0x60] sm:$0xff]
    %v4175 = vld [vmem:[%s4161 + $0x68] sm:$0xff]
    %v4176 = vld [vmem:[%s4161 + $0x70] sm:$0xff]
    %v4177 = vld [vmem:[%s4161 + $0x78] sm:$0xff]
    %v4178 = vld [vmem:[%s4161 + $0x80] sm:$0xff]
    %v4179 = vld [vmem:[%s4161 + $0x88] sm:$0xff]
    %v4180 = vld [vmem:[%s4161 + $0x90] sm:$0xff]
    %v4181 = vld [vmem:[%s4161 + $0x98] sm:$0xff]
    %v4182 = vld [vmem:[%s4161 + $0xa0] sm:$0xff]
    %v4183 = vld [vmem:[%s4161 + $0xa8] sm:$0xff]
    %v4184 = vld [vmem:[%s4161 + $0xb0] sm:$0xff]
    %v4185 = vld [vmem:[%s4161 + $0xb8] sm:$0xff]
    %v4186 = vld [vmem:[%s4161 + $0xc0] sm:$0xff]
    %v4187 = vld [vmem:[%s4161 + $0xc8] sm:$0xff]
    %v4188 = vld [vmem:[%s4161 + $0xd0] sm:$0xff]
    %v4189 = vld [vmem:[%s4161 + $0xd8] sm:$0xff]
    %v4190 = vld [vmem:[%s4161 + $0xe0] sm:$0xff]
    %v4191 = vld [vmem:[%s4161 + $0xe8] sm:$0xff]
    %v4192 = vld [vmem:[%s4161 + $0xf0] sm:$0xff]
    %v4193 = vld [vmem:[%s4161 + $0xf8] sm:$0xff]
    %v4194 = vld [vmem:[%s4161 + $0x100] sm:$0xff]
    %v4195 = vld [vmem:[%s4161 + $0x108] sm:$0xff]
    %v4196 = vld [vmem:[%s4161 + $0x110] sm:$0xff]
    %v4197 = vld [vmem:[%s4161 + $0x118] sm:$0xff]
    %v4198 = vld [vmem:[%s4161 + $0x120] sm:$0xff]
    %v4199 = vld [vmem:[%s4161 + $0x128] sm:$0xff]
    %v4200 = vld [vmem:[%s4161 + $0x130] sm:$0xff]
    %v4201 = vld [vmem:[%s4161 + $0x138] sm:$0xff]
    %v4202 = vld [vmem:[%s4161 + $0x140] sm:$0xff]
    %v4203 = vld [vmem:[%s4161 + $0x148] sm:$0xff]
    %v4204 = vld [vmem:[%s4161 + $0x150] sm:$0xff]
    %v4205 = vld [vmem:[%s4161 + $0x158] sm:$0xff]
    %v4206 = vld [vmem:[%s4161 + $0x160] sm:$0xff]
    %v4207 = vld [vmem:[%s4161 + $0x168] sm:$0xff]
    %v4208 = vld [vmem:[%s4161 + $0x170] sm:$0xff]
    %v4209 = vld [vmem:[%s4161 + $0x178] sm:$0xff]
    %v4210 = vld [vmem:[%s4161 + $0x180] sm:$0xff]
    %v4211 = vld [vmem:[%s4161 + $0x188] sm:$0xff]
    %v4212 = vld [vmem:[%s4161 + $0x190] sm:$0xff]
    %v4213 = vld [vmem:[%s4161 + $0x198] sm:$0xff]
    %v4214 = vld [vmem:[%s4161 + $0x1a0] sm:$0xff]
    %v4215 = vld [vmem:[%s4161 + $0x1a8] sm:$0xff]
    %v4216 = vld [vmem:[%s4161 + $0x1b0] sm:$0xff]
    %v4217 = vld [vmem:[%s4161 + $0x1b8] sm:$0xff]
    %v4218 = vld [vmem:[%s4161 + $0x1c0] sm:$0xff]
    %v4219 = vld [vmem:[%s4161 + $0x1c8] sm:$0xff]
    %v4220 = vld [vmem:[%s4161 + $0x1d0] sm:$0xff]
    %v4221 = vld [vmem:[%s4161 + $0x1d8] sm:$0xff]
    %v4282 = vunpack.c.l.b16 %v4162
    %v4283 = vunpack.c.h.b16 %v4162
    %v4284 = vunpack.c.l.b16 %v4163
    %v4285 = vunpack.c.h.b16 %v4163
    %v4286 = vunpack.c.l.b16 %v4164
    %v4287 = vunpack.c.h.b16 %v4164
    %v4288 = vunpack.c.l.b16 %v4165
    %v4289 = vunpack.c.h.b16 %v4165
    %v4290 = vunpack.c.l.b16 %v4166
    %v4291 = vunpack.c.h.b16 %v4166
    %v4292 = vunpack.c.l.b16 %v4167
    %v4293 = vunpack.c.h.b16 %v4167
    %v4294 = vunpack.c.l.b16 %v4168
    %v4295 = vunpack.c.h.b16 %v4168
    %v4296 = vunpack.c.l.b16 %v4169
    %v4297 = vunpack.c.h.b16 %v4169
    %v4298 = vunpack.c.l.b16 %v4170
    %v4299 = vunpack.c.h.b16 %v4170
    %v4300 = vunpack.c.l.b16 %v4171
    %v4301 = vunpack.c.h.b16 %v4171
    %v4302 = vunpack.c.l.b16 %v4172
    %v4303 = vunpack.c.h.b16 %v4172
    %v4304 = vunpack.c.l.b16 %v4173
    %v4305 = vunpack.c.h.b16 %v4173
    %v4306 = vunpack.c.l.b16 %v4174
    %v4307 = vunpack.c.h.b16 %v4174
    %v4308 = vunpack.c.l.b16 %v4175
    %v4309 = vunpack.c.h.b16 %v4175
    %v4310 = vunpack.c.l.b16 %v4176
    %v4311 = vunpack.c.h.b16 %v4176
    %v4312 = vunpack.c.l.b16 %v4177
    %v4313 = vunpack.c.h.b16 %v4177
    %v4314 = vunpack.c.l.b16 %v4178
    %v4315 = vunpack.c.h.b16 %v4178
    %v4316 = vunpack.c.l.b16 %v4179
    %v4317 = vunpack.c.h.b16 %v4179
    %v4318 = vunpack.c.l.b16 %v4180
    %v4319 = vunpack.c.h.b16 %v4180
    %v4320 = vunpack.c.l.b16 %v4181
    %v4321 = vunpack.c.h.b16 %v4181
    %v4322 = vunpack.c.l.b16 %v4182
    %v4323 = vunpack.c.h.b16 %v4182
    %v4324 = vunpack.c.l.b16 %v4183
    %v4325 = vunpack.c.h.b16 %v4183
    %v4326 = vunpack.c.l.b16 %v4184
    %v4327 = vunpack.c.h.b16 %v4184
    %v4328 = vunpack.c.l.b16 %v4185
    %v4329 = vunpack.c.h.b16 %v4185
    %v4330 = vunpack.c.l.b16 %v4186
    %v4331 = vunpack.c.h.b16 %v4186
    %v4332 = vunpack.c.l.b16 %v4187
    %v4333 = vunpack.c.h.b16 %v4187
    %v4334 = vunpack.c.l.b16 %v4188
    %v4335 = vunpack.c.h.b16 %v4188
    %v4336 = vunpack.c.l.b16 %v4189
    %v4337 = vunpack.c.h.b16 %v4189
    %v4338 = vunpack.c.l.b16 %v4190
    %v4339 = vunpack.c.h.b16 %v4190
    %v4340 = vunpack.c.l.b16 %v4191
    %v4341 = vunpack.c.h.b16 %v4191
    %v4342 = vunpack.c.l.b16 %v4192
    %v4343 = vunpack.c.h.b16 %v4192
    %v4344 = vunpack.c.l.b16 %v4193
    %v4345 = vunpack.c.h.b16 %v4193
    %v4346 = vunpack.c.l.b16 %v4194
    %v4347 = vunpack.c.h.b16 %v4194
    %v4348 = vunpack.c.l.b16 %v4195
    %v4349 = vunpack.c.h.b16 %v4195
    %v4350 = vunpack.c.l.b16 %v4196
    %v4351 = vunpack.c.h.b16 %v4196
    %v4352 = vunpack.c.l.b16 %v4197
    %v4353 = vunpack.c.h.b16 %v4197
    %v4354 = vunpack.c.l.b16 %v4198
    %v4355 = vunpack.c.h.b16 %v4198
    %v4356 = vunpack.c.l.b16 %v4199
    %v4357 = vunpack.c.h.b16 %v4199
    %v4358 = vunpack.c.l.b16 %v4200
    %v4359 = vunpack.c.h.b16 %v4200
    %v4360 = vunpack.c.l.b16 %v4201
    %v4361 = vunpack.c.h.b16 %v4201
    %v4362 = vunpack.c.l.b16 %v4202
    %v4363 = vunpack.c.h.b16 %v4202
    %v4364 = vunpack.c.l.b16 %v4203
    %v4365 = vunpack.c.h.b16 %v4203
    %v4366 = vunpack.c.l.b16 %v4204
    %v4367 = vunpack.c.h.b16 %v4204
    %v4368 = vunpack.c.l.b16 %v4205
    %v4369 = vunpack.c.h.b16 %v4205
    %v4370 = vunpack.c.l.b16 %v4206
    %v4371 = vunpack.c.h.b16 %v4206
    %v4372 = vunpack.c.l.b16 %v4207
    %v4373 = vunpack.c.h.b16 %v4207
    %v4374 = vunpack.c.l.b16 %v4208
    %v4375 = vunpack.c.h.b16 %v4208
    %v4376 = vunpack.c.l.b16 %v4209
    %v4377 = vunpack.c.h.b16 %v4209
    %v4378 = vunpack.c.l.b16 %v4210
    %v4379 = vunpack.c.h.b16 %v4210
    %v4380 = vunpack.c.l.b16 %v4211
    %v4381 = vunpack.c.h.b16 %v4211
    %v4382 = vunpack.c.l.b16 %v4212
    %v4383 = vunpack.c.h.b16 %v4212
    %v4384 = vunpack.c.l.b16 %v4213
    %v4385 = vunpack.c.h.b16 %v4213
    %v4386 = vunpack.c.l.b16 %v4214
    %v4387 = vunpack.c.h.b16 %v4214
    %v4388 = vunpack.c.l.b16 %v4215
    %v4389 = vunpack.c.h.b16 %v4215
    %v4390 = vunpack.c.l.b16 %v4216
    %v4391 = vunpack.c.h.b16 %v4216
    %v4392 = vunpack.c.l.b16 %v4217
    %v4393 = vunpack.c.h.b16 %v4217
    %v4394 = vunpack.c.l.b16 %v4218
    %v4395 = vunpack.c.h.b16 %v4218
    %v4396 = vunpack.c.l.b16 %v4219
    %v4397 = vunpack.c.h.b16 %v4219
    %v4398 = vunpack.c.l.b16 %v4220
    %v4399 = vunpack.c.h.b16 %v4220
    %v4400 = vunpack.c.l.b16 %v4221
    %v4401 = vunpack.c.h.b16 %v4221
    %v4402 = vpack.c.b16 %v4284, %v4282
    %v4403 = vpack.c.b16 %v4285, %v4283
    %v4404 = vpack.c.b16 %v4288, %v4286
    %v4405 = vpack.c.b16 %v4289, %v4287
    %v4406 = vpack.c.b16 %v4292, %v4290
    %v4407 = vpack.c.b16 %v4293, %v4291
    %v4408 = vpack.c.b16 %v4296, %v4294
    %v4409 = vpack.c.b16 %v4297, %v4295
    %v4410 = vpack.c.b16 %v4300, %v4298
    %v4411 = vpack.c.b16 %v4301, %v4299
    %v4412 = vpack.c.b16 %v4304, %v4302
    %v4413 = vpack.c.b16 %v4305, %v4303
    %v4414 = vpack.c.b16 %v4308, %v4306
    %v4415 = vpack.c.b16 %v4309, %v4307
    %v4416 = vpack.c.b16 %v4312, %v4310
    %v4417 = vpack.c.b16 %v4313, %v4311
    %v4418 = vpack.c.b16 %v4316, %v4314
    %v4419 = vpack.c.b16 %v4317, %v4315
    %v4420 = vpack.c.b16 %v4320, %v4318
    %v4421 = vpack.c.b16 %v4321, %v4319
    %v4422 = vpack.c.b16 %v4324, %v4322
    %v4423 = vpack.c.b16 %v4325, %v4323
    %v4424 = vpack.c.b16 %v4328, %v4326
    %v4425 = vpack.c.b16 %v4329, %v4327
    %v4426 = vpack.c.b16 %v4332, %v4330
    %v4427 = vpack.c.b16 %v4333, %v4331
    %v4428 = vpack.c.b16 %v4336, %v4334
    %v4429 = vpack.c.b16 %v4337, %v4335
    %v4430 = vpack.c.b16 %v4340, %v4338
    %v4431 = vpack.c.b16 %v4341, %v4339
    %v4432 = vpack.c.b16 %v4344, %v4342
    %v4433 = vpack.c.b16 %v4345, %v4343
    %v4434 = vpack.c.b16 %v4348, %v4346
    %v4435 = vpack.c.b16 %v4349, %v4347
    %v4436 = vpack.c.b16 %v4352, %v4350
    %v4437 = vpack.c.b16 %v4353, %v4351
    %v4438 = vpack.c.b16 %v4356, %v4354
    %v4439 = vpack.c.b16 %v4357, %v4355
    %v4440 = vpack.c.b16 %v4360, %v4358
    %v4441 = vpack.c.b16 %v4361, %v4359
    %v4442 = vpack.c.b16 %v4364, %v4362
    %v4443 = vpack.c.b16 %v4365, %v4363
    %v4444 = vpack.c.b16 %v4368, %v4366
    %v4445 = vpack.c.b16 %v4369, %v4367
    %v4446 = vpack.c.b16 %v4372, %v4370
    %v4447 = vpack.c.b16 %v4373, %v4371
    %v4448 = vpack.c.b16 %v4376, %v4374
    %v4449 = vpack.c.b16 %v4377, %v4375
    %v4450 = vpack.c.b16 %v4380, %v4378
    %v4451 = vpack.c.b16 %v4381, %v4379
    %v4452 = vpack.c.b16 %v4384, %v4382
    %v4453 = vpack.c.b16 %v4385, %v4383
    %v4454 = vpack.c.b16 %v4388, %v4386
    %v4455 = vpack.c.b16 %v4389, %v4387
    %v4456 = vpack.c.b16 %v4392, %v4390
    %v4457 = vpack.c.b16 %v4393, %v4391
    %v4458 = vpack.c.b16 %v4396, %v4394
    %v4459 = vpack.c.b16 %v4397, %v4395
    %v4460 = vpack.c.b16 %v4400, %v4398
    %v4461 = vpack.c.b16 %v4401, %v4399
    %v4523 = vsel %vm466, %v4160, 0
    %4525 = vmatprep.subr.bf16.mxu0 %v4403
    %4526 = vmatpush1.bf16.msra.mxu0 %v4402
    %4527 = vmatprep.subr.bf16.mxu0 %v4405
    %4528 = vmatpush1.bf16.msra.mxu0 %v4404
    %4529 = vmatprep.subr.bf16.mxu0 %v4407
    %4530 = vmatpush1.bf16.msra.mxu0 %v4406
    %4531 = vmatprep.subr.bf16.mxu0 %v4409
    %4532 = vmatpush1.bf16.msra.mxu0 %v4408
    %4533 = vmatprep.subr.bf16.mxu0 %v4411
    %4534 = vmatpush1.bf16.msra.mxu0 %v4410
    %4535 = vmatprep.subr.bf16.mxu0 %v4413
    %4536 = vmatpush1.bf16.msra.mxu0 %v4412
    %4537 = vmatprep.subr.bf16.mxu0 %v4415
    %4538 = vmatpush1.bf16.msra.mxu0 %v4414
    %4539 = vmatprep.subr.bf16.mxu0 %v4417
    %4540 = vmatpush1.bf16.msra.mxu0 %v4416
    %4541 = vmatprep.subr.bf16.mxu0 %v4419
    %4542 = vmatpush1.bf16.msra.mxu0 %v4418
    %4543 = vmatprep.subr.bf16.mxu0 %v4421
    %4544 = vmatpush1.bf16.msra.mxu0 %v4420
    %4545 = vmatprep.subr.bf16.mxu0 %v4423
    %4546 = vmatpush1.bf16.msra.mxu0 %v4422
    %4547 = vmatprep.subr.bf16.mxu0 %v4425
    %4548 = vmatpush1.bf16.msra.mxu0 %v4424
    %4549 = vmatprep.subr.bf16.mxu0 %v4427
    %4550 = vmatpush1.bf16.msra.mxu0 %v4426
    %4551 = vmatprep.subr.bf16.mxu0 %v4429
    %4552 = vmatpush1.bf16.msra.mxu0 %v4428
    %4553 = vmatprep.subr.bf16.mxu0 %v4431
    %4554 = vmatpush1.bf16.msra.mxu0 %v4430
    %4555 = vmatprep.subr.bf16.mxu0 %v4433
    %4556 = vmatpush1.bf16.msra.mxu0 %v4432
    %4557 = vmatprep.mubr.bf16.mxu0 %v4158
    %4558 = vmatmul.mubr.bf16.gmra.mrb[0].mxu0 %v4157
    %v4559 = vpop.f32.mrb[0].mxu0
    %v4560 = vadd.f32 0.0, %v4559
    %v4561 = vpop.f32.mrb[0].mxu0
    %v4562 = vadd.f32 0.0, %v4561
    %v4563 = vpop.f32.mrb[0].mxu0
    %v4564 = vadd.f32 0.0, %v4563
    %v4565 = vpop.f32.mrb[0].mxu0
    %v4566 = vadd.f32 0.0, %v4565
    %4567 = vdwg.mxu0
    %4568 = vmatprep.subr.bf16.mxu0 %v4435
    %4569 = vmatpush1.bf16.msra.mxu0 %v4434
    %4570 = vmatprep.subr.bf16.mxu0 %v4437
    %4571 = vmatpush1.bf16.msra.mxu0 %v4436
    %4572 = vmatprep.subr.bf16.mxu0 %v4439
    %4573 = vmatpush1.bf16.msra.mxu0 %v4438
    %4574 = vmatprep.subr.bf16.mxu0 %v4441
    %4575 = vmatpush1.bf16.msra.mxu0 %v4440
    %4576 = vmatprep.subr.bf16.mxu0 %v4443
    %4577 = vmatpush1.bf16.msra.mxu0 %v4442
    %4578 = vmatprep.subr.bf16.mxu0 %v4445
    %4579 = vmatpush1.bf16.msra.mxu0 %v4444
    %4580 = vmatprep.subr.bf16.mxu0 %v4447
    %4581 = vmatpush1.bf16.msra.mxu0 %v4446
    %4582 = vmatprep.subr.bf16.mxu0 %v4449
    %4583 = vmatpush1.bf16.msra.mxu0 %v4448
    %4584 = vmatprep.subr.bf16.mxu0 %v4451
    %4585 = vmatpush1.bf16.msra.mxu0 %v4450
    %4586 = vmatprep.subr.bf16.mxu0 %v4453
    %4587 = vmatpush1.bf16.msra.mxu0 %v4452
    %4588 = vmatprep.subr.bf16.mxu0 %v4455
    %4589 = vmatpush1.bf16.msra.mxu0 %v4454
    %4590 = vmatprep.subr.bf16.mxu0 %v4457
    %4591 = vmatpush1.bf16.msra.mxu0 %v4456
    %4592 = vmatprep.subr.bf16.mxu0 %v4459
    %4593 = vmatpush1.bf16.msra.mxu0 %v4458
    %4594 = vmatprep.subr.bf16.mxu0 %v4461
    %4595 = vmatpush1.bf16.msra.mxu0 %v4460
    %4596 = vmatprep.subr.bf16.mxu0 0
    %4597 = vmatpush1.bf16.msra.mxu0 0
    %4598 = vmatprep.subr.bf16.mxu0 0
    %4599 = vmatpush1.bf16.msra.mxu0 0
    %4600 = vmatprep.mubr.bf16.mxu0 %v4523
    %4601 = vmatmul.mubr.bf16.gmra.mrb[0].mxu0 %v4159
    %v4602 = vpop.f32.mrb[0].mxu0
    %v4603 = vadd.f32 %v4560, %v4602
    %v4604 = vpop.f32.mrb[0].mxu0
    %v4605 = vadd.f32 %v4562, %v4604
    %v4606 = vpop.f32.mrb[0].mxu0
    %v4607 = vadd.f32 %v4564, %v4606
    %v4608 = vpop.f32.mrb[0].mxu0
    %v4609 = vadd.f32 %v4566, %v4608
    %4610 = vdwg.mxu0
    %v4611 = vadd.f32 %v4056, %v4603
    %v4612 = vadd.f32 %v4057, %v4605
    %v4613 = vadd.f32 %v4058, %v4607
    %v4614 = vadd.f32 %v4059, %v4609
    %vm4615 = vcmask 1043456
    %v4616 = vsel %vm4615, %v4613, 0.0
    %v4617 = vadd.f32 %v4611, %v4616
    %v4618 = vrot.slane %v4617, 4
    %v4619 = vadd.f32 %v4617, %v4618
    %v4620 = vrot.slane %v4619, 2
    %v4621 = vadd.f32 %v4619, %v4620
    %v4622 = vrot.slane %v4621, 1
    %v4623 = vadd.f32 %v4621, %v4622
    %v4624 = vsel %vm167, %v4612, 0.0
    %vm4625 = vcmask 519168
    %v4626 = vsel %vm4625, %v4614, 0.0
    %v4627 = vadd.f32 %v4624, %v4626
    %v4628 = vrot.slane %v4627, 4
    %v4629 = vadd.f32 %v4627, %v4628
    %v4630 = vrot.slane %v4629, 2
    %v4631 = vadd.f32 %v4629, %v4630
    %v4632 = vrot.slane %v4631, 1
    %v4633 = vadd.f32 %v4631, %v4632
    %v4634 = vmul.f32 %v4611, %v4611
    %v4635 = vmul.f32 %v4612, %v4612
    %v4636 = vmul.f32 %v4613, %v4613
    %v4637 = vmul.f32 %v4614, %v4614
    %v4638 = vsel %vm4615, %v4636, 0.0
    %v4639 = vadd.f32 %v4634, %v4638
    %v4640 = vrot.slane %v4639, 4
    %v4641 = vadd.f32 %v4639, %v4640
    %v4642 = vrot.slane %v4641, 2
    %v4643 = vadd.f32 %v4641, %v4642
    %v4644 = vrot.slane %v4643, 1
    %v4645 = vadd.f32 %v4643, %v4644
    %v4646 = vsel %vm167, %v4635, 0.0
    %v4647 = vsel %vm4625, %v4637, 0.0
    %v4648 = vadd.f32 %v4646, %v4647
    %v4649 = vrot.slane %v4648, 4
    %v4650 = vadd.f32 %v4648, %v4649
    %v4651 = vrot.slane %v4650, 2
    %v4652 = vadd.f32 %v4650, %v4651
    %v4653 = vrot.slane %v4652, 1
    %v4654 = vadd.f32 %v4652, %v4653
    %v4655 = vld [vmem:[%s19] sm:$0xff]
    %v4656 = vld [vmem:[%s19 + $0x8] sm:$0xff]
    %v4657 = vld [vmem:[%s19 + $0x10] sm:$0xff]
    %v4658 = vld [vmem:[%s19 + $0x18] sm:$0xff]
    %v4659 = vld [vmem:[%s19 + $0x20] sm:$0xff]
    %v4660 = vld [vmem:[%s19 + $0x28] sm:$0xff]
    %v4661 = vld [vmem:[%s19 + $0x30] sm:$0xff]
    %v4662 = vld [vmem:[%s19 + $0x38] sm:$0xff]
    %v4663 = vld [vmem:[%s19 + $0x40] sm:$0xff]
    %v4664 = vld [vmem:[%s19 + $0x48] sm:$0xff]
    %v4665 = vld [vmem:[%s19 + $0x50] sm:$0xff]
    %v4666 = vld [vmem:[%s19 + $0x58] sm:$0xff]
    %v4667 = vld [vmem:[%s19 + $0x60] sm:$0xff]
    %v4668 = vld [vmem:[%s19 + $0x68] sm:$0xff]
    %v4669 = vld [vmem:[%s19 + $0x70] sm:$0xff]
    %v4670 = vld [vmem:[%s19 + $0x78] sm:$0xff]
    %v4671 = vld [vmem:[%s19 + $0x80] sm:$0xff]
    %v4672 = vld [vmem:[%s19 + $0x88] sm:$0xff]
    %v4673 = vld [vmem:[%s19 + $0x90] sm:$0xff]
    %v4674 = vld [vmem:[%s19 + $0x98] sm:$0xff]
    %v4675 = vld [vmem:[%s19 + $0xa0] sm:$0xff]
    %v4676 = vld [vmem:[%s19 + $0xa8] sm:$0xff]
    %v4677 = vld [vmem:[%s19 + $0xb0] sm:$0xff]
    %v4678 = vld [vmem:[%s19 + $0xb8] sm:$0xff]
    %v4680 = vsel %vm167, %v4633, 0
    %4682 = vmatprep.subr.mxu0 0.0
    %4683 = vmatpush1.msra.mxu0 %v4655
    %4684 = vmatprep.subr.mxu0 0.0
    %4685 = vmatpush1.msra.mxu0 %v4656
    %4686 = vmatprep.subr.mxu0 0.0
    %4687 = vmatpush1.msra.mxu0 %v4657
    %4688 = vmatprep.subr.mxu0 0.0
    %4689 = vmatpush1.msra.mxu0 %v4658
    %4690 = vmatprep.subr.mxu0 0.0
    %4691 = vmatpush1.msra.mxu0 %v4659
    %4692 = vmatprep.subr.mxu0 0.0
    %4693 = vmatpush1.msra.mxu0 %v4660
    %4694 = vmatprep.subr.mxu0 0.0
    %4695 = vmatpush1.msra.mxu0 %v4661
    %4696 = vmatprep.subr.mxu0 0.0
    %4697 = vmatpush1.msra.mxu0 %v4662
    %4698 = vmatprep.subr.mxu0 0.0
    %4699 = vmatpush1.msra.mxu0 %v4663
    %4700 = vmatprep.subr.mxu0 0.0
    %4701 = vmatpush1.msra.mxu0 %v4664
    %4702 = vmatprep.subr.mxu0 0.0
    %4703 = vmatpush1.msra.mxu0 %v4665
    %4704 = vmatprep.subr.mxu0 0.0
    %4705 = vmatpush1.msra.mxu0 %v4666
    %4706 = vmatprep.subr.mxu0 0.0
    %4707 = vmatpush1.msra.mxu0 %v4667
    %4708 = vmatprep.subr.mxu0 0.0
    %4709 = vmatpush1.msra.mxu0 %v4668
    %4710 = vmatprep.subr.mxu0 0.0
    %4711 = vmatpush1.msra.mxu0 %v4669
    %4712 = vmatprep.subr.mxu0 0.0
    %4713 = vmatpush1.msra.mxu0 %v4670
    %4714 = vmatprep.subr.mxu0 0.0
    %4715 = vmatpush1.msra.mxu0 %v4671
    %4716 = vmatprep.subr.mxu0 0.0
    %4717 = vmatpush1.msra.mxu0 %v4672
    %4718 = vmatprep.subr.mxu0 0.0
    %4719 = vmatpush1.msra.mxu0 %v4673
    %4720 = vmatprep.subr.mxu0 0.0
    %4721 = vmatpush1.msra.mxu0 %v4674
    %4722 = vmatprep.subr.mxu0 0.0
    %4723 = vmatpush1.msra.mxu0 %v4675
    %4724 = vmatprep.subr.mxu0 0.0
    %4725 = vmatpush1.msra.mxu0 %v4676
    %4726 = vmatprep.subr.mxu0 0.0
    %4727 = vmatpush1.msra.mxu0 %v4677
    %4728 = vmatprep.subr.mxu0 0.0
    %4729 = vmatpush1.msra.mxu0 %v4678
    %4730 = vmatprep.subr.mxu0 0.0
    %4731 = vmatpush1.msra.mxu0 0.0
    %4732 = vmatprep.subr.mxu0 0.0
    %4733 = vmatpush1.msra.mxu0 0.0
    %4734 = vmatprep.subr.mxu0 0.0
    %4735 = vmatpush1.msra.mxu0 0.0
    %4736 = vmatprep.subr.mxu0 0.0
    %4737 = vmatpush1.msra.mxu0 0.0
    %4738 = vmatprep.subr.mxu0 0.0
    %4739 = vmatpush1.msra.mxu0 0.0
    %4740 = vmatprep.subr.mxu0 0.0
    %4741 = vmatpush1.msra.mxu0 0.0
    %4742 = vmatprep.subr.mxu0 0.0
    %4743 = vmatpush1.msra.mxu0 0.0
    %4744 = vmatprep.subr.mxu0 0.0
    %4745 = vmatpush1.msra.mxu0 0.0
    %4746 = vmatprep.mubr.f32.mxu0 %v4680
    %4747 = vmatmul.mubr.f32.gmra.mrb[0].mxu0 %v4623
    %v4748 = vpop.f32.mrb[0].mxu0
    %v4749 = vadd.f32 0.0, %v4748
    %v4750 = vpop.f32.mrb[0].mxu0
    %4751 = vdwg.mxu0
    %v4753 = vsel %vm167, %v4654, 0
    %4755 = vmatprep.subr.mxu0 0.0
    %4756 = vmatpush1.msra.mxu0 %v4655
    %4757 = vmatprep.subr.mxu0 0.0
    %4758 = vmatpush1.msra.mxu0 %v4656
    %4759 = vmatprep.subr.mxu0 0.0
    %4760 = vmatpush1.msra.mxu0 %v4657
    %4761 = vmatprep.subr.mxu0 0.0
    %4762 = vmatpush1.msra.mxu0 %v4658
    %4763 = vmatprep.subr.mxu0 0.0
    %4764 = vmatpush1.msra.mxu0 %v4659
    %4765 = vmatprep.subr.mxu0 0.0
    %4766 = vmatpush1.msra.mxu0 %v4660
    %4767 = vmatprep.subr.mxu0 0.0
    %4768 = vmatpush1.msra.mxu0 %v4661
    %4769 = vmatprep.subr.mxu0 0.0
    %4770 = vmatpush1.msra.mxu0 %v4662
    %4771 = vmatprep.subr.mxu0 0.0
    %4772 = vmatpush1.msra.mxu0 %v4663
    %4773 = vmatprep.subr.mxu0 0.0
    %4774 = vmatpush1.msra.mxu0 %v4664
    %4775 = vmatprep.subr.mxu0 0.0
    %4776 = vmatpush1.msra.mxu0 %v4665
    %4777 = vmatprep.subr.mxu0 0.0
    %4778 = vmatpush1.msra.mxu0 %v4666
    %4779 = vmatprep.subr.mxu0 0.0
    %4780 = vmatpush1.msra.mxu0 %v4667
    %4781 = vmatprep.subr.mxu0 0.0
    %4782 = vmatpush1.msra.mxu0 %v4668
    %4783 = vmatprep.subr.mxu0 0.0
    %4784 = vmatpush1.msra.mxu0 %v4669
    %4785 = vmatprep.subr.mxu0 0.0
    %4786 = vmatpush1.msra.mxu0 %v4670
    %4787 = vmatprep.subr.mxu0 0.0
    %4788 = vmatpush1.msra.mxu0 %v4671
    %4789 = vmatprep.subr.mxu0 0.0
    %4790 = vmatpush1.msra.mxu0 %v4672
    %4791 = vmatprep.subr.mxu0 0.0
    %4792 = vmatpush1.msra.mxu0 %v4673
    %4793 = vmatprep.subr.mxu0 0.0
    %4794 = vmatpush1.msra.mxu0 %v4674
    %4795 = vmatprep.subr.mxu0 0.0
    %4796 = vmatpush1.msra.mxu0 %v4675
    %4797 = vmatprep.subr.mxu0 0.0
    %4798 = vmatpush1.msra.mxu0 %v4676
    %4799 = vmatprep.subr.mxu0 0.0
    %4800 = vmatpush1.msra.mxu0 %v4677
    %4801 = vmatprep.subr.mxu0 0.0
    %4802 = vmatpush1.msra.mxu0 %v4678
    %4803 = vmatprep.subr.mxu0 0.0
    %4804 = vmatpush1.msra.mxu0 0.0
    %4805 = vmatprep.subr.mxu0 0.0
    %4806 = vmatpush1.msra.mxu0 0.0
    %4807 = vmatprep.subr.mxu0 0.0
    %4808 = vmatpush1.msra.mxu0 0.0
    %4809 = vmatprep.subr.mxu0 0.0
    %4810 = vmatpush1.msra.mxu0 0.0
    %4811 = vmatprep.subr.mxu0 0.0
    %4812 = vmatpush1.msra.mxu0 0.0
    %4813 = vmatprep.subr.mxu0 0.0
    %4814 = vmatpush1.msra.mxu0 0.0
    %4815 = vmatprep.subr.mxu0 0.0
    %4816 = vmatpush1.msra.mxu0 0.0
    %4817 = vmatprep.subr.mxu0 0.0
    %4818 = vmatpush1.msra.mxu0 0.0
    %4819 = vmatprep.mubr.f32.mxu0 %v4753
    %4820 = vmatmul.mubr.f32.gmra.mrb[0].mxu0 %v4645
    %v4821 = vpop.f32.mrb[0].mxu0
    %v4822 = vadd.f32 0.0, %v4821
    %v4823 = vpop.f32.mrb[0].mxu0
    %4824 = vdwg.mxu0
    %v4825 = vrcp.pop 72.0
    %v4826 = vmul.f32 %v4749, %v4825
    %v4827 = vmul.f32 %v4822, %v4825
    %v4828 = vmul.f32 %v4826, %v4826
    %v4829 = vsub.f32 %v4827, %v4828
    %v4830 = vmax.f32 %v4829, 0.0
    %v4831 = vld [vmem:[%s23] sm:$0x1]
    %v4832 = vadd.f32 %v4830, 1e-05
    %v4833 = vrsqrt.pop %v4832
    %v4834 = vmul.f32 %v4831, %v4833
    %v4835 = vld [vmem:[%s25] sm:$0x1]
    %v4836 = vmul.f32 %v4826, %v4834
    %v4837 = vsub.f32 %v4835, %v4836
    %v4838 = vld [vmem:[%s21] sm:$0xff]
    %v4839 = vld [vmem:[%s21 + $0x8] sm:$0xff]
    %v4840 = vld [vmem:[%s21 + $0x10] sm:$0xff]
    %v4841 = vld [vmem:[%s21 + $0x18] sm:$0xff]
    %v4842 = vld [vmem:[%s21 + $0x20] sm:$0xff]
    %v4843 = vld [vmem:[%s21 + $0x28] sm:$0xff]
    %v4844 = vld [vmem:[%s21 + $0x30] sm:$0xff]
    %v4845 = vld [vmem:[%s21 + $0x38] sm:$0xff]
    %v4847 = vsel %vm1980, %v4834, 0
    %4849 = vmatprep.subr.mxu0 %v4839
    %4850 = vmatpush1.msra.mxu0 %v4838
    %4851 = vmatprep.subr.mxu0 %v4841
    %4852 = vmatpush1.msra.mxu0 %v4840
    %4853 = vmatprep.subr.mxu0 %v4843
    %4854 = vmatpush1.msra.mxu0 %v4842
    %4855 = vmatprep.subr.mxu0 %v4845
    %4856 = vmatpush1.msra.mxu0 %v4844
    %4857 = vmatprep.subr.mxu0 0.0
    %4858 = vmatpush1.msra.mxu0 0.0
    %4859 = vmatprep.subr.mxu0 0.0
    %4860 = vmatpush1.msra.mxu0 0.0
    %4861 = vmatprep.subr.mxu0 0.0
    %4862 = vmatpush1.msra.mxu0 0.0
    %4863 = vmatprep.subr.mxu0 0.0
    %4864 = vmatpush1.msra.mxu0 0.0
    %4865 = vmatprep.subr.mxu0 0.0
    %4866 = vmatpush1.msra.mxu0 0.0
    %4867 = vmatprep.subr.mxu0 0.0
    %4868 = vmatpush1.msra.mxu0 0.0
    %4869 = vmatprep.subr.mxu0 0.0
    %4870 = vmatpush1.msra.mxu0 0.0
    %4871 = vmatprep.subr.mxu0 0.0
    %4872 = vmatpush1.msra.mxu0 0.0
    %4873 = vmatprep.subr.mxu0 0.0
    %4874 = vmatpush1.msra.mxu0 0.0
    %4875 = vmatprep.subr.mxu0 0.0
    %4876 = vmatpush1.msra.mxu0 0.0
    %4877 = vmatprep.subr.mxu0 0.0
    %4878 = vmatpush1.msra.mxu0 0.0
    %4879 = vmatprep.subr.mxu0 0.0
    %4880 = vmatpush1.msra.mxu0 0.0
    %4881 = vmatprep.subr.mxu0 0.0
    %4882 = vmatpush1.msra.mxu0 0.0
    %4883 = vmatprep.subr.mxu0 0.0
    %4884 = vmatpush1.msra.mxu0 0.0
    %4885 = vmatprep.subr.mxu0 0.0
    %4886 = vmatpush1.msra.mxu0 0.0
    %4887 = vmatprep.subr.mxu0 0.0
    %4888 = vmatpush1.msra.mxu0 0.0
    %4889 = vmatprep.subr.mxu0 0.0
    %4890 = vmatpush1.msra.mxu0 0.0
    %4891 = vmatprep.subr.mxu0 0.0
    %4892 = vmatpush1.msra.mxu0 0.0
    %4893 = vmatprep.subr.mxu0 0.0
    %4894 = vmatpush1.msra.mxu0 0.0
    %4895 = vmatprep.subr.mxu0 0.0
    %4896 = vmatpush1.msra.mxu0 0.0
    %4897 = vmatprep.subr.mxu0 0.0
    %4898 = vmatpush1.msra.mxu0 0.0
    %4899 = vmatprep.subr.mxu0 0.0
    %4900 = vmatpush1.msra.mxu0 0.0
    %4901 = vmatprep.subr.mxu0 0.0
    %4902 = vmatpush1.msra.mxu0 0.0
    %4903 = vmatprep.subr.mxu0 0.0
    %4904 = vmatpush1.msra.mxu0 0.0
    %4905 = vmatprep.subr.mxu0 0.0
    %4906 = vmatpush1.msra.mxu0 0.0
    %4907 = vmatprep.subr.mxu0 0.0
    %4908 = vmatpush1.msra.mxu0 0.0
    %4909 = vmatprep.subr.mxu0 0.0
    %4910 = vmatpush1.msra.mxu0 0.0
    %4911 = vmatprep.subr.mxu0 0.0
    %4912 = vmatpush1.msra.mxu0 0.0
    %4913 = vmatprep.mubr.f32.mxu0 0.0
    %4914 = vmatmul.mubr.f32.gmra.mrb[0].mxu0 %v4847
    %v4915 = vpop.f32.mrb[0].mxu0
    %v4916 = vadd.f32 0.0, %v4915
    %v4917 = vpop.f32.mrb[0].mxu0
    %v4918 = vadd.f32 0.0, %v4917
    %4919 = vdwg.mxu0
    %v4921 = vsel %vm1980, %v4837, 0
    %4923 = vmatprep.subr.mxu0 %v4839
    %4924 = vmatpush1.msra.mxu0 %v4838
    %4925 = vmatprep.subr.mxu0 %v4841
    %4926 = vmatpush1.msra.mxu0 %v4840
    %4927 = vmatprep.subr.mxu0 %v4843
    %4928 = vmatpush1.msra.mxu0 %v4842
    %4929 = vmatprep.subr.mxu0 %v4845
    %4930 = vmatpush1.msra.mxu0 %v4844
    %4931 = vmatprep.subr.mxu0 0.0
    %4932 = vmatpush1.msra.mxu0 0.0
    %4933 = vmatprep.subr.mxu0 0.0
    %4934 = vmatpush1.msra.mxu0 0.0
    %4935 = vmatprep.subr.mxu0 0.0
    %4936 = vmatpush1.msra.mxu0 0.0
    %4937 = vmatprep.subr.mxu0 0.0
    %4938 = vmatpush1.msra.mxu0 0.0
    %4939 = vmatprep.subr.mxu0 0.0
    %4940 = vmatpush1.msra.mxu0 0.0
    %4941 = vmatprep.subr.mxu0 0.0
    %4942 = vmatpush1.msra.mxu0 0.0
    %4943 = vmatprep.subr.mxu0 0.0
    %4944 = vmatpush1.msra.mxu0 0.0
    %4945 = vmatprep.subr.mxu0 0.0
    %4946 = vmatpush1.msra.mxu0 0.0
    %4947 = vmatprep.subr.mxu0 0.0
    %4948 = vmatpush1.msra.mxu0 0.0
    %4949 = vmatprep.subr.mxu0 0.0
    %4950 = vmatpush1.msra.mxu0 0.0
    %4951 = vmatprep.subr.mxu0 0.0
    %4952 = vmatpush1.msra.mxu0 0.0
    %4953 = vmatprep.subr.mxu0 0.0
    %4954 = vmatpush1.msra.mxu0 0.0
    %4955 = vmatprep.subr.mxu0 0.0
    %4956 = vmatpush1.msra.mxu0 0.0
    %4957 = vmatprep.subr.mxu0 0.0
    %4958 = vmatpush1.msra.mxu0 0.0
    %4959 = vmatprep.subr.mxu0 0.0
    %4960 = vmatpush1.msra.mxu0 0.0
    %4961 = vmatprep.subr.mxu0 0.0
    %4962 = vmatpush1.msra.mxu0 0.0
    %4963 = vmatprep.subr.mxu0 0.0
    %4964 = vmatpush1.msra.mxu0 0.0
    %4965 = vmatprep.subr.mxu0 0.0
    %4966 = vmatpush1.msra.mxu0 0.0
    %4967 = vmatprep.subr.mxu0 0.0
    %4968 = vmatpush1.msra.mxu0 0.0
    %4969 = vmatprep.subr.mxu0 0.0
    %4970 = vmatpush1.msra.mxu0 0.0
    %4971 = vmatprep.subr.mxu0 0.0
    %4972 = vmatpush1.msra.mxu0 0.0
    %4973 = vmatprep.subr.mxu0 0.0
    %4974 = vmatpush1.msra.mxu0 0.0
    %4975 = vmatprep.subr.mxu0 0.0
    %4976 = vmatpush1.msra.mxu0 0.0
    %4977 = vmatprep.subr.mxu0 0.0
    %4978 = vmatpush1.msra.mxu0 0.0
    %4979 = vmatprep.subr.mxu0 0.0
    %4980 = vmatpush1.msra.mxu0 0.0
    %4981 = vmatprep.subr.mxu0 0.0
    %4982 = vmatpush1.msra.mxu0 0.0
    %4983 = vmatprep.subr.mxu0 0.0
    %4984 = vmatpush1.msra.mxu0 0.0
    %4985 = vmatprep.subr.mxu0 0.0
    %4986 = vmatpush1.msra.mxu0 0.0
    %4987 = vmatprep.mubr.f32.mxu0 0.0
    %4988 = vmatmul.mubr.f32.gmra.mrb[0].mxu0 %v4921
    %v4989 = vpop.f32.mrb[0].mxu0
    %v4990 = vadd.f32 0.0, %v4989
    %v4991 = vpop.f32.mrb[0].mxu0
    %v4992 = vadd.f32 0.0, %v4991
    %4993 = vdwg.mxu0
    %v4994 = vlaneseq
    %v4995 = vshrl.u32 %v4994, 7
    %v4996 = vsub.s32 0, %v4995
    %v4997 = vrot.slane %v4916, %v4996
    %v4998 = vlaneseq
    %v4999 = vshrl.u32 %v4998, 7
    %v5000 = vsub.s32 0, %v4999
    %v5001 = vrot.slane %v4918, %v5000
    %v5002 = vmul.f32 %v4611, %v4997
    %v5003 = vmul.f32 %v4612, %v5001
    %v5004 = vmul.f32 %v4613, %v4997
    %v5005 = vmul.f32 %v4614, %v5001
    %v5006 = vlaneseq
    %v5007 = vshrl.u32 %v5006, 7
    %v5008 = vsub.s32 0, %v5007
    %v5009 = vrot.slane %v4990, %v5008
    %v5010 = vlaneseq
    %v5011 = vshrl.u32 %v5010, 7
    %v5012 = vsub.s32 0, %v5011
    %v5013 = vrot.slane %v4992, %v5012
    %v5014 = vadd.f32 %v5002, %v5009
    %v5015 = vadd.f32 %v5003, %v5013
    %v5016 = vadd.f32 %v5004, %v5009
    %v5017 = vadd.f32 %v5005, %v5013
    %vm5018 = vcmp.ge.f32.partialorder %v5014, 0.0
    %vm5019 = vcmp.ge.f32.partialorder %v5015, 0.0
    %vm5020 = vcmp.ge.f32.partialorder %v5016, 0.0
    %vm5021 = vcmp.ge.f32.partialorder %v5017, 0.0
    %v5022 = vmul.f32 %v5014, 0.01
    %v5023 = vmul.f32 %v5015, 0.01
    %v5024 = vmul.f32 %v5016, 0.01
    %v5025 = vmul.f32 %v5017, 0.01
    %v5026 = vsel %vm5018, %v5014, %v5022
    %v5027 = vsel %vm5019, %v5015, %v5023
    %v5028 = vsel %vm5020, %v5016, %v5024
    %v5029 = vsel %vm5021, %v5017, %v5025
    %v5030 = vpack.c.bf16 %v5028, %v5026
    %v5031 = vpack.c.bf16 %v5029, %v5027
    %v5032 = vld [vmem:[%s27] sm:$0x3]
    %vm5033 = vcmask 97280
    %v5035 = vsel %vm5033, %v5032, 0
    %v5038 = vsel %vm1503, %v5030, 0
    %v5041 = vsel %vm1503, %v5031, 0
    %5043 = vmatprep.subr.bf16.mxu0 %v5041
    %5044 = vmatpush1.bf16.msra.mxu0 %v5038
    %5045 = vmatprep.subr.bf16.mxu0 0
    %5046 = vmatpush1.bf16.msra.mxu0 0
    %5047 = vmatprep.subr.bf16.mxu0 0
    %5048 = vmatpush1.bf16.msra.mxu0 0
    %5049 = vmatprep.subr.bf16.mxu0 0
    %5050 = vmatpush1.bf16.msra.mxu0 0
    %5051 = vmatprep.subr.bf16.mxu0 0
    %5052 = vmatpush1.bf16.msra.mxu0 0
    %5053 = vmatprep.subr.bf16.mxu0 0
    %5054 = vmatpush1.bf16.msra.mxu0 0
    %5055 = vmatprep.subr.bf16.mxu0 0
    %5056 = vmatpush1.bf16.msra.mxu0 0
    %5057 = vmatprep.subr.bf16.mxu0 0
    %5058 = vmatpush1.bf16.msra.mxu0 0
    %5059 = vmatprep.subr.bf16.mxu0 0
    %5060 = vmatpush1.bf16.msra.mxu0 0
    %5061 = vmatprep.subr.bf16.mxu0 0
    %5062 = vmatpush1.bf16.msra.mxu0 0
    %5063 = vmatprep.subr.bf16.mxu0 0
    %5064 = vmatpush1.bf16.msra.mxu0 0
    %5065 = vmatprep.subr.bf16.mxu0 0
    %5066 = vmatpush1.bf16.msra.mxu0 0
    %5067 = vmatprep.subr.bf16.mxu0 0
    %5068 = vmatpush1.bf16.msra.mxu0 0
    %5069 = vmatprep.subr.bf16.mxu0 0
    %5070 = vmatpush1.bf16.msra.mxu0 0
    %5071 = vmatprep.subr.bf16.mxu0 0
    %5072 = vmatpush1.bf16.msra.mxu0 0
    %5073 = vmatprep.subr.bf16.mxu0 0
    %5074 = vmatpush1.bf16.msra.mxu0 0
    %5075 = vmatprep.mubr.bf16.mxu0 0
    %5076 = vmatmul.mubr.bf16.gmra.mrb[0].mxu0 %v5035
    %v5077 = vpop.f32.mrb[0].mxu0
    %v5078 = vadd.f32 0.0, %v5077
    %v5079 = vpop.f32.mrb[0].mxu0
    %v5080 = vadd.f32 0.0, %v5079
    %v5081 = vpop.f32.mrb[0].mxu0
    %v5082 = vpop.f32.mrb[0].mxu0
    %5083 = vdwg.mxu0
    %v5084 = vpack.c.bf16 %v5078, %v5078
    %v5085 = vpack.c.bf16 %v5080, %v5080
    %v5086 = vld [vmem:[%s29] sm:$0xf]
    %v5087 = vld [vmem:[%s29 + $0x4] sm:$0xf]
    %v5088 = vld [vmem:[%s29 + $0x8] sm:$0xf]
    %v5089 = vld [vmem:[%s29 + $0xc] sm:$0xf]
    %v5090 = vld [vmem:[%s29 + $0x10] sm:$0xf]
    %v5091 = vld [vmem:[%s29 + $0x14] sm:$0xf]
    %v5092 = vld [vmem:[%s29 + $0x18] sm:$0xf]
    %v5093 = vld [vmem:[%s29 + $0x1c] sm:$0xf]
    %v5094 = vld [vmem:[%s29 + $0x20] sm:$0xf]
    %v5095 = vld [vmem:[%s29 + $0x24] sm:$0xf]
    %v5096 = vld [vmem:[%s29 + $0x28] sm:$0xf]
    %v5097 = vld [vmem:[%s29 + $0x2c] sm:$0xf]
    %v5098 = vld [vmem:[%s29 + $0x30] sm:$0xf]
    %v5099 = vld [vmem:[%s29 + $0x34] sm:$0xf]
    %v5100 = vld [vmem:[%s29 + $0x38] sm:$0xf]
    %v5101 = vld [vmem:[%s29 + $0x3c] sm:$0xf]
    %v5102 = vld [vmem:[%s29 + $0x40] sm:$0xf]
    %v5103 = vld [vmem:[%s29 + $0x44] sm:$0xf]
    %v5104 = vld [vmem:[%s29 + $0x48] sm:$0xf]
    %v5105 = vld [vmem:[%s29 + $0x4c] sm:$0xf]
    %v5106 = vld [vmem:[%s29 + $0x50] sm:$0xf]
    %v5107 = vld [vmem:[%s29 + $0x54] sm:$0xf]
    %v5108 = vld [vmem:[%s29 + $0x58] sm:$0xf]
    %v5109 = vld [vmem:[%s29 + $0x5c] sm:$0xf]
    %s5110 = scalar_lea.vmem %s27, 2
    %v5111 = vld [vmem:[%s5110] sm:$0x3]
    %v5113 = vsel %vm5033, %v5111, 0
    %5115 = vmatprep.subr.bf16.mxu0 %v5041
    %5116 = vmatpush1.bf16.msra.mxu0 %v5038
    %5117 = vmatprep.subr.bf16.mxu0 0
    %5118 = vmatpush1.bf16.msra.mxu0 0
    %5119 = vmatprep.subr.bf16.mxu0 0
    %5120 = vmatpush1.bf16.msra.mxu0 0
    %5121 = vmatprep.subr.bf16.mxu0 0
    %5122 = vmatpush1.bf16.msra.mxu0 0
    %5123 = vmatprep.subr.bf16.mxu0 0
    %5124 = vmatpush1.bf16.msra.mxu0 0
    %5125 = vmatprep.subr.bf16.mxu0 0
    %5126 = vmatpush1.bf16.msra.mxu0 0
    %5127 = vmatprep.subr.bf16.mxu0 0
    %5128 = vmatpush1.bf16.msra.mxu0 0
    %5129 = vmatprep.subr.bf16.mxu0 0
    %5130 = vmatpush1.bf16.msra.mxu0 0
    %5131 = vmatprep.subr.bf16.mxu0 0
    %5132 = vmatpush1.bf16.msra.mxu0 0
    %5133 = vmatprep.subr.bf16.mxu0 0
    %5134 = vmatpush1.bf16.msra.mxu0 0
    %5135 = vmatprep.subr.bf16.mxu0 0
    %5136 = vmatpush1.bf16.msra.mxu0 0
    %5137 = vmatprep.subr.bf16.mxu0 0
    %5138 = vmatpush1.bf16.msra.mxu0 0
    %5139 = vmatprep.subr.bf16.mxu0 0
    %5140 = vmatpush1.bf16.msra.mxu0 0
    %5141 = vmatprep.subr.bf16.mxu0 0
    %5142 = vmatpush1.bf16.msra.mxu0 0
    %5143 = vmatprep.subr.bf16.mxu0 0
    %5144 = vmatpush1.bf16.msra.mxu0 0
    %5145 = vmatprep.subr.bf16.mxu0 0
    %5146 = vmatpush1.bf16.msra.mxu0 0
    %5147 = vmatprep.mubr.bf16.mxu0 0
    %5148 = vmatmul.mubr.bf16.gmra.mrb[0].mxu0 %v5113
    %v5149 = vpop.f32.mrb[0].mxu0
    %v5150 = vadd.f32 0.0, %v5149
    %v5151 = vpop.f32.mrb[0].mxu0
    %v5152 = vadd.f32 0.0, %v5151
    %v5153 = vpop.f32.mrb[0].mxu0
    %v5154 = vpop.f32.mrb[0].mxu0
    %5155 = vdwg.mxu0
    %v5156 = vpack.c.bf16 %v5150, %v5150
    %v5157 = vpack.c.bf16 %v5152, %v5152
    %s5158 = scalar_lea.vmem %s29, 96
    %v5159 = vld [vmem:[%s5158] sm:$0xf]
    %v5160 = vld [vmem:[%s5158 + $0x4] sm:$0xf]
    %v5161 = vld [vmem:[%s5158 + $0x8] sm:$0xf]
    %v5162 = vld [vmem:[%s5158 + $0xc] sm:$0xf]
    %v5163 = vld [vmem:[%s5158 + $0x10] sm:$0xf]
    %v5164 = vld [vmem:[%s5158 + $0x14] sm:$0xf]
    %v5165 = vld [vmem:[%s5158 + $0x18] sm:$0xf]
    %v5166 = vld [vmem:[%s5158 + $0x1c] sm:$0xf]
    %v5167 = vld [vmem:[%s5158 + $0x20] sm:$0xf]
    %v5168 = vld [vmem:[%s5158 + $0x24] sm:$0xf]
    %v5169 = vld [vmem:[%s5158 + $0x28] sm:$0xf]
    %v5170 = vld [vmem:[%s5158 + $0x2c] sm:$0xf]
    %v5171 = vld [vmem:[%s5158 + $0x30] sm:$0xf]
    %v5172 = vld [vmem:[%s5158 + $0x34] sm:$0xf]
    %v5173 = vld [vmem:[%s5158 + $0x38] sm:$0xf]
    %v5174 = vld [vmem:[%s5158 + $0x3c] sm:$0xf]
    %v5175 = vld [vmem:[%s5158 + $0x40] sm:$0xf]
    %v5176 = vld [vmem:[%s5158 + $0x44] sm:$0xf]
    %v5177 = vld [vmem:[%s5158 + $0x48] sm:$0xf]
    %v5178 = vld [vmem:[%s5158 + $0x4c] sm:$0xf]
    %v5179 = vld [vmem:[%s5158 + $0x50] sm:$0xf]
    %v5180 = vld [vmem:[%s5158 + $0x54] sm:$0xf]
    %v5181 = vld [vmem:[%s5158 + $0x58] sm:$0xf]
    %v5182 = vld [vmem:[%s5158 + $0x5c] sm:$0xf]
    %v5207 = vunpack.c.l.b16 %v5159
    %v5208 = vunpack.c.l.b16 %v5160
    %v5209 = vunpack.c.l.b16 %v5161
    %v5210 = vunpack.c.l.b16 %v5162
    %v5211 = vunpack.c.l.b16 %v5163
    %v5212 = vunpack.c.l.b16 %v5164
    %v5213 = vunpack.c.l.b16 %v5165
    %v5214 = vunpack.c.l.b16 %v5166
    %v5215 = vunpack.c.l.b16 %v5167
    %v5216 = vunpack.c.l.b16 %v5168
    %v5217 = vunpack.c.l.b16 %v5169
    %v5218 = vunpack.c.l.b16 %v5170
    %v5219 = vunpack.c.l.b16 %v5171
    %v5220 = vunpack.c.l.b16 %v5172
    %v5221 = vunpack.c.l.b16 %v5173
    %v5222 = vunpack.c.l.b16 %v5174
    %v5223 = vunpack.c.l.b16 %v5175
    %v5224 = vunpack.c.l.b16 %v5176
    %v5225 = vunpack.c.l.b16 %v5177
    %v5226 = vunpack.c.l.b16 %v5178
    %v5227 = vunpack.c.l.b16 %v5179
    %v5228 = vunpack.c.l.b16 %v5180
    %v5229 = vunpack.c.l.b16 %v5181
    %v5230 = vunpack.c.l.b16 %v5182
    %v5231 = vpack.c.b16 %v5208, %v5207
    %v5232 = vpack.c.b16 %v5210, %v5209
    %v5233 = vpack.c.b16 %v5212, %v5211
    %v5234 = vpack.c.b16 %v5214, %v5213
    %v5235 = vpack.c.b16 %v5216, %v5215
    %v5236 = vpack.c.b16 %v5218, %v5217
    %v5237 = vpack.c.b16 %v5220, %v5219
    %v5238 = vpack.c.b16 %v5222, %v5221
    %v5239 = vpack.c.b16 %v5224, %v5223
    %v5240 = vpack.c.b16 %v5226, %v5225
    %v5241 = vpack.c.b16 %v5228, %v5227
    %v5242 = vpack.c.b16 %v5230, %v5229
    %v5256 = vsel %vm167, %v5157, 0
    %5258 = vmatprep.subr.bf16.mxu0 0
    %5259 = vmatpush1.bf16.msra.mxu0 %v5231
    %5260 = vmatprep.subr.bf16.mxu0 0
    %5261 = vmatpush1.bf16.msra.mxu0 %v5232
    %5262 = vmatprep.subr.bf16.mxu0 0
    %5263 = vmatpush1.bf16.msra.mxu0 %v5233
    %5264 = vmatprep.subr.bf16.mxu0 0
    %5265 = vmatpush1.bf16.msra.mxu0 %v5234
    %5266 = vmatprep.subr.bf16.mxu0 0
    %5267 = vmatpush1.bf16.msra.mxu0 %v5235
    %5268 = vmatprep.subr.bf16.mxu0 0
    %5269 = vmatpush1.bf16.msra.mxu0 %v5236
    %5270 = vmatprep.subr.bf16.mxu0 0
    %5271 = vmatpush1.bf16.msra.mxu0 %v5237
    %5272 = vmatprep.subr.bf16.mxu0 0
    %5273 = vmatpush1.bf16.msra.mxu0 %v5238
    %5274 = vmatprep.subr.bf16.mxu0 0
    %5275 = vmatpush1.bf16.msra.mxu0 %v5239
    %5276 = vmatprep.subr.bf16.mxu0 0
    %5277 = vmatpush1.bf16.msra.mxu0 %v5240
    %5278 = vmatprep.subr.bf16.mxu0 0
    %5279 = vmatpush1.bf16.msra.mxu0 %v5241
    %5280 = vmatprep.subr.bf16.mxu0 0
    %5281 = vmatpush1.bf16.msra.mxu0 %v5242
    %5282 = vmatprep.subr.bf16.mxu0 0
    %5283 = vmatpush1.bf16.msra.mxu0 0
    %5284 = vmatprep.subr.bf16.mxu0 0
    %5285 = vmatpush1.bf16.msra.mxu0 0
    %5286 = vmatprep.subr.bf16.mxu0 0
    %5287 = vmatpush1.bf16.msra.mxu0 0
    %5288 = vmatprep.subr.bf16.mxu0 0
    %5289 = vmatpush1.bf16.msra.mxu0 0
    %5290 = vmatprep.mubr.bf16.mxu0 %v5256
    %5291 = vmatmul.mubr.bf16.gmra.mrb[0].mxu0 %v5156
    %v5292 = vpop.f32.mrb[0].mxu0
    %v5293 = vadd.f32 0.0, %v5292
    %v5294 = vpop.f32.mrb[0].mxu0
    %v5295 = vpop.f32.mrb[0].mxu0
    %v5296 = vpop.f32.mrb[0].mxu0
    %5297 = vdwg.mxu0
    %v5322 = vunpack.c.l.b16 %v5086
    %v5323 = vunpack.c.l.b16 %v5087
    %v5324 = vunpack.c.l.b16 %v5088
    %v5325 = vunpack.c.l.b16 %v5089
    %v5326 = vunpack.c.l.b16 %v5090
    %v5327 = vunpack.c.l.b16 %v5091
    %v5328 = vunpack.c.l.b16 %v5092
    %v5329 = vunpack.c.l.b16 %v5093
    %v5330 = vunpack.c.l.b16 %v5094
    %v5331 = vunpack.c.l.b16 %v5095
    %v5332 = vunpack.c.l.b16 %v5096
    %v5333 = vunpack.c.l.b16 %v5097
    %v5334 = vunpack.c.l.b16 %v5098
    %v5335 = vunpack.c.l.b16 %v5099
    %v5336 = vunpack.c.l.b16 %v5100
    %v5337 = vunpack.c.l.b16 %v5101
    %v5338 = vunpack.c.l.b16 %v5102
    %v5339 = vunpack.c.l.b16 %v5103
    %v5340 = vunpack.c.l.b16 %v5104
    %v5341 = vunpack.c.l.b16 %v5105
    %v5342 = vunpack.c.l.b16 %v5106
    %v5343 = vunpack.c.l.b16 %v5107
    %v5344 = vunpack.c.l.b16 %v5108
    %v5345 = vunpack.c.l.b16 %v5109
    %v5346 = vpack.c.b16 %v5323, %v5322
    %v5347 = vpack.c.b16 %v5325, %v5324
    %v5348 = vpack.c.b16 %v5327, %v5326
    %v5349 = vpack.c.b16 %v5329, %v5328
    %v5350 = vpack.c.b16 %v5331, %v5330
    %v5351 = vpack.c.b16 %v5333, %v5332
    %v5352 = vpack.c.b16 %v5335, %v5334
    %v5353 = vpack.c.b16 %v5337, %v5336
    %v5354 = vpack.c.b16 %v5339, %v5338
    %v5355 = vpack.c.b16 %v5341, %v5340
    %v5356 = vpack.c.b16 %v5343, %v5342
    %v5357 = vpack.c.b16 %v5345, %v5344
    %v5371 = vsel %vm167, %v5085, 0
    %5373 = vmatprep.subr.bf16.mxu0 0
    %5374 = vmatpush1.bf16.msra.mxu0 %v5346
    %5375 = vmatprep.subr.bf16.mxu0 0
    %5376 = vmatpush1.bf16.msra.mxu0 %v5347
    %5377 = vmatprep.subr.bf16.mxu0 0
    %5378 = vmatpush1.bf16.msra.mxu0 %v5348
    %5379 = vmatprep.subr.bf16.mxu0 0
    %5380 = vmatpush1.bf16.msra.mxu0 %v5349
    %5381 = vmatprep.subr.bf16.mxu0 0
    %5382 = vmatpush1.bf16.msra.mxu0 %v5350
    %5383 = vmatprep.subr.bf16.mxu0 0
    %5384 = vmatpush1.bf16.msra.mxu0 %v5351
    %5385 = vmatprep.subr.bf16.mxu0 0
    %5386 = vmatpush1.bf16.msra.mxu0 %v5352
    %5387 = vmatprep.subr.bf16.mxu0 0
    %5388 = vmatpush1.bf16.msra.mxu0 %v5353
    %5389 = vmatprep.subr.bf16.mxu0 0
    %5390 = vmatpush1.bf16.msra.mxu0 %v5354
    %5391 = vmatprep.subr.bf16.mxu0 0
    %5392 = vmatpush1.bf16.msra.mxu0 %v5355
    %5393 = vmatprep.subr.bf16.mxu0 0
    %5394 = vmatpush1.bf16.msra.mxu0 %v5356
    %5395 = vmatprep.subr.bf16.mxu0 0
    %5396 = vmatpush1.bf16.msra.mxu0 %v5357
    %5397 = vmatprep.subr.bf16.mxu0 0
    %5398 = vmatpush1.bf16.msra.mxu0 0
    %5399 = vmatprep.subr.bf16.mxu0 0
    %5400 = vmatpush1.bf16.msra.mxu0 0
    %5401 = vmatprep.subr.bf16.mxu0 0
    %5402 = vmatpush1.bf16.msra.mxu0 0
    %5403 = vmatprep.subr.bf16.mxu0 0
    %5404 = vmatpush1.bf16.msra.mxu0 0
    %5405 = vmatprep.mubr.bf16.mxu0 %v5371
    %5406 = vmatmul.mubr.bf16.gmra.mrb[0].mxu0 %v5084
    %v5407 = vpop.f32.mrb[0].mxu0
    %v5408 = vadd.f32 %v5293, %v5407
    %v5409 = vpop.f32.mrb[0].mxu0
    %v5410 = vpop.f32.mrb[0].mxu0
    %v5411 = vpop.f32.mrb[0].mxu0
    %5412 = vdwg.mxu0
    %s5413 = scalar_lea.vmem %s27, 4
    %v5414 = vld [vmem:[%s5413] sm:$0x3]
    %v5416 = vsel %vm5033, %v5414, 0
    %5418 = vmatprep.subr.bf16.mxu0 %v5041
    %5419 = vmatpush1.bf16.msra.mxu0 %v5038
    %5420 = vmatprep.subr.bf16.mxu0 0
    %5421 = vmatpush1.bf16.msra.mxu0 0
    %5422 = vmatprep.subr.bf16.mxu0 0
    %5423 = vmatpush1.bf16.msra.mxu0 0
    %5424 = vmatprep.subr.bf16.mxu0 0
    %5425 = vmatpush1.bf16.msra.mxu0 0
    %5426 = vmatprep.subr.bf16.mxu0 0
    %5427 = vmatpush1.bf16.msra.mxu0 0
    %5428 = vmatprep.subr.bf16.mxu0 0
    %5429 = vmatpush1.bf16.msra.mxu0 0
    %5430 = vmatprep.subr.bf16.mxu0 0
    %5431 = vmatpush1.bf16.msra.mxu0 0
    %5432 = vmatprep.subr.bf16.mxu0 0
    %5433 = vmatpush1.bf16.msra.mxu0 0
    %5434 = vmatprep.subr.bf16.mxu0 0
    %5435 = vmatpush1.bf16.msra.mxu0 0
    %5436 = vmatprep.subr.bf16.mxu0 0
    %5437 = vmatpush1.bf16.msra.mxu0 0
    %5438 = vmatprep.subr.bf16.mxu0 0
    %5439 = vmatpush1.bf16.msra.mxu0 0
    %5440 = vmatprep.subr.bf16.mxu0 0
    %5441 = vmatpush1.bf16.msra.mxu0 0
    %5442 = vmatprep.subr.bf16.mxu0 0
    %5443 = vmatpush1.bf16.msra.mxu0 0
    %5444 = vmatprep.subr.bf16.mxu0 0
    %5445 = vmatpush1.bf16.msra.mxu0 0
    %5446 = vmatprep.subr.bf16.mxu0 0
    %5447 = vmatpush1.bf16.msra.mxu0 0
    %5448 = vmatprep.subr.bf16.mxu0 0
    %5449 = vmatpush1.bf16.msra.mxu0 0
    %5450 = vmatprep.mubr.bf16.mxu0 0
    %5451 = vmatmul.mubr.bf16.gmra.mrb[0].mxu0 %v5416
    %v5452 = vpop.f32.mrb[0].mxu0
    %v5453 = vadd.f32 0.0, %v5452
    %v5454 = vpop.f32.mrb[0].mxu0
    %v5455 = vadd.f32 0.0, %v5454
    %v5456 = vpop.f32.mrb[0].mxu0
    %v5457 = vpop.f32.mrb[0].mxu0
    %5458 = vdwg.mxu0
    %v5459 = vpack.c.bf16 %v5453, %v5453
    %v5460 = vpack.c.bf16 %v5455, %v5455
    %s5461 = scalar_lea.vmem %s29, 192
    %v5462 = vld [vmem:[%s5461] sm:$0xf]
    %v5463 = vld [vmem:[%s5461 + $0x4] sm:$0xf]
    %v5464 = vld [vmem:[%s5461 + $0x8] sm:$0xf]
    %v5465 = vld [vmem:[%s5461 + $0xc] sm:$0xf]
    %v5466 = vld [vmem:[%s5461 + $0x10] sm:$0xf]
    %v5467 = vld [vmem:[%s5461 + $0x14] sm:$0xf]
    %v5468 = vld [vmem:[%s5461 + $0x18] sm:$0xf]
    %v5469 = vld [vmem:[%s5461 + $0x1c] sm:$0xf]
    %v5470 = vld [vmem:[%s5461 + $0x20] sm:$0xf]
    %v5471 = vld [vmem:[%s5461 + $0x24] sm:$0xf]
    %v5472 = vld [vmem:[%s5461 + $0x28] sm:$0xf]
    %v5473 = vld [vmem:[%s5461 + $0x2c] sm:$0xf]
    %v5474 = vld [vmem:[%s5461 + $0x30] sm:$0xf]
    %v5475 = vld [vmem:[%s5461 + $0x34] sm:$0xf]
    %v5476 = vld [vmem:[%s5461 + $0x38] sm:$0xf]
    %v5477 = vld [vmem:[%s5461 + $0x3c] sm:$0xf]
    %v5478 = vld [vmem:[%s5461 + $0x40] sm:$0xf]
    %v5479 = vld [vmem:[%s5461 + $0x44] sm:$0xf]
    %v5480 = vld [vmem:[%s5461 + $0x48] sm:$0xf]
    %v5481 = vld [vmem:[%s5461 + $0x4c] sm:$0xf]
    %v5482 = vld [vmem:[%s5461 + $0x50] sm:$0xf]
    %v5483 = vld [vmem:[%s5461 + $0x54] sm:$0xf]
    %v5484 = vld [vmem:[%s5461 + $0x58] sm:$0xf]
    %v5485 = vld [vmem:[%s5461 + $0x5c] sm:$0xf]
    %v5510 = vunpack.c.l.b16 %v5462
    %v5511 = vunpack.c.l.b16 %v5463
    %v5512 = vunpack.c.l.b16 %v5464
    %v5513 = vunpack.c.l.b16 %v5465
    %v5514 = vunpack.c.l.b16 %v5466
    %v5515 = vunpack.c.l.b16 %v5467
    %v5516 = vunpack.c.l.b16 %v5468
    %v5517 = vunpack.c.l.b16 %v5469
    %v5518 = vunpack.c.l.b16 %v5470
    %v5519 = vunpack.c.l.b16 %v5471
    %v5520 = vunpack.c.l.b16 %v5472
    %v5521 = vunpack.c.l.b16 %v5473
    %v5522 = vunpack.c.l.b16 %v5474
    %v5523 = vunpack.c.l.b16 %v5475
    %v5524 = vunpack.c.l.b16 %v5476
    %v5525 = vunpack.c.l.b16 %v5477
    %v5526 = vunpack.c.l.b16 %v5478
    %v5527 = vunpack.c.l.b16 %v5479
    %v5528 = vunpack.c.l.b16 %v5480
    %v5529 = vunpack.c.l.b16 %v5481
    %v5530 = vunpack.c.l.b16 %v5482
    %v5531 = vunpack.c.l.b16 %v5483
    %v5532 = vunpack.c.l.b16 %v5484
    %v5533 = vunpack.c.l.b16 %v5485
    %v5534 = vpack.c.b16 %v5511, %v5510
    %v5535 = vpack.c.b16 %v5513, %v5512
    %v5536 = vpack.c.b16 %v5515, %v5514
    %v5537 = vpack.c.b16 %v5517, %v5516
    %v5538 = vpack.c.b16 %v5519, %v5518
    %v5539 = vpack.c.b16 %v5521, %v5520
    %v5540 = vpack.c.b16 %v5523, %v5522
    %v5541 = vpack.c.b16 %v5525, %v5524
    %v5542 = vpack.c.b16 %v5527, %v5526
    %v5543 = vpack.c.b16 %v5529, %v5528
    %v5544 = vpack.c.b16 %v5531, %v5530
    %v5545 = vpack.c.b16 %v5533, %v5532
    %v5559 = vsel %vm167, %v5460, 0
    %5561 = vmatprep.subr.bf16.mxu0 0
    %5562 = vmatpush1.bf16.msra.mxu0 %v5534
    %5563 = vmatprep.subr.bf16.mxu0 0
    %5564 = vmatpush1.bf16.msra.mxu0 %v5535
    %5565 = vmatprep.subr.bf16.mxu0 0
    %5566 = vmatpush1.bf16.msra.mxu0 %v5536
    %5567 = vmatprep.subr.bf16.mxu0 0
    %5568 = vmatpush1.bf16.msra.mxu0 %v5537
    %5569 = vmatprep.subr.bf16.mxu0 0
    %5570 = vmatpush1.bf16.msra.mxu0 %v5538
    %5571 = vmatprep.subr.bf16.mxu0 0
    %5572 = vmatpush1.bf16.msra.mxu0 %v5539
    %5573 = vmatprep.subr.bf16.mxu0 0
    %5574 = vmatpush1.bf16.msra.mxu0 %v5540
    %5575 = vmatprep.subr.bf16.mxu0 0
    %5576 = vmatpush1.bf16.msra.mxu0 %v5541
    %5577 = vmatprep.subr.bf16.mxu0 0
    %5578 = vmatpush1.bf16.msra.mxu0 %v5542
    %5579 = vmatprep.subr.bf16.mxu0 0
    %5580 = vmatpush1.bf16.msra.mxu0 %v5543
    %5581 = vmatprep.subr.bf16.mxu0 0
    %5582 = vmatpush1.bf16.msra.mxu0 %v5544
    %5583 = vmatprep.subr.bf16.mxu0 0
    %5584 = vmatpush1.bf16.msra.mxu0 %v5545
    %5585 = vmatprep.subr.bf16.mxu0 0
    %5586 = vmatpush1.bf16.msra.mxu0 0
    %5587 = vmatprep.subr.bf16.mxu0 0
    %5588 = vmatpush1.bf16.msra.mxu0 0
    %5589 = vmatprep.subr.bf16.mxu0 0
    %5590 = vmatpush1.bf16.msra.mxu0 0
    %5591 = vmatprep.subr.bf16.mxu0 0
    %5592 = vmatpush1.bf16.msra.mxu0 0
    %5593 = vmatprep.mubr.bf16.mxu0 %v5559
    %5594 = vmatmul.mubr.bf16.gmra.mrb[0].mxu0 %v5459
    %v5595 = vpop.f32.mrb[0].mxu0
    %v5596 = vadd.f32 0.0, %v5595
    %v5597 = vpop.f32.mrb[0].mxu0
    %v5598 = vpop.f32.mrb[0].mxu0
    %v5599 = vpop.f32.mrb[0].mxu0
    %5600 = vdwg.mxu0
    %v5601 = vadd.f32 %v5408, %v5596
    %s5602 = scalar_lea.vmem %s27, 6
    %v5603 = vld [vmem:[%s5602] sm:$0x3]
    %v5605 = vsel %vm5033, %v5603, 0
    %5607 = vmatprep.subr.bf16.mxu0 %v5041
    %5608 = vmatpush1.bf16.msra.mxu0 %v5038
    %5609 = vmatprep.subr.bf16.mxu0 0
    %5610 = vmatpush1.bf16.msra.mxu0 0
    %5611 = vmatprep.subr.bf16.mxu0 0
    %5612 = vmatpush1.bf16.msra.mxu0 0
    %5613 = vmatprep.subr.bf16.mxu0 0
    %5614 = vmatpush1.bf16.msra.mxu0 0
    %5615 = vmatprep.subr.bf16.mxu0 0
    %5616 = vmatpush1.bf16.msra.mxu0 0
    %5617 = vmatprep.subr.bf16.mxu0 0
    %5618 = vmatpush1.bf16.msra.mxu0 0
    %5619 = vmatprep.subr.bf16.mxu0 0
    %5620 = vmatpush1.bf16.msra.mxu0 0
    %5621 = vmatprep.subr.bf16.mxu0 0
    %5622 = vmatpush1.bf16.msra.mxu0 0
    %5623 = vmatprep.subr.bf16.mxu0 0
    %5624 = vmatpush1.bf16.msra.mxu0 0
    %5625 = vmatprep.subr.bf16.mxu0 0
    %5626 = vmatpush1.bf16.msra.mxu0 0
    %5627 = vmatprep.subr.bf16.mxu0 0
    %5628 = vmatpush1.bf16.msra.mxu0 0
    %5629 = vmatprep.subr.bf16.mxu0 0
    %5630 = vmatpush1.bf16.msra.mxu0 0
    %5631 = vmatprep.subr.bf16.mxu0 0
    %5632 = vmatpush1.bf16.msra.mxu0 0
    %5633 = vmatprep.subr.bf16.mxu0 0
    %5634 = vmatpush1.bf16.msra.mxu0 0
    %5635 = vmatprep.subr.bf16.mxu0 0
    %5636 = vmatpush1.bf16.msra.mxu0 0
    %5637 = vmatprep.subr.bf16.mxu0 0
    %5638 = vmatpush1.bf16.msra.mxu0 0
    %5639 = vmatprep.mubr.bf16.mxu0 0
    %5640 = vmatmul.mubr.bf16.gmra.mrb[0].mxu0 %v5605
    %v5641 = vpop.f32.mrb[0].mxu0
    %v5642 = vadd.f32 0.0, %v5641
    %v5643 = vpop.f32.mrb[0].mxu0
    %v5644 = vadd.f32 0.0, %v5643
    %v5645 = vpop.f32.mrb[0].mxu0
    %v5646 = vpop.f32.mrb[0].mxu0
    %5647 = vdwg.mxu0
    %v5648 = vpack.c.bf16 %v5642, %v5642
    %v5649 = vpack.c.bf16 %v5644, %v5644
    %s5650 = scalar_lea.vmem %s29, 288
    %v5651 = vld [vmem:[%s5650] sm:$0xf]
    %v5652 = vld [vmem:[%s5650 + $0x4] sm:$0xf]
    %v5653 = vld [vmem:[%s5650 + $0x8] sm:$0xf]
    %v5654 = vld [vmem:[%s5650 + $0xc] sm:$0xf]
    %v5655 = vld [vmem:[%s5650 + $0x10] sm:$0xf]
    %v5656 = vld [vmem:[%s5650 + $0x14] sm:$0xf]
    %v5657 = vld [vmem:[%s5650 + $0x18] sm:$0xf]
    %v5658 = vld [vmem:[%s5650 + $0x1c] sm:$0xf]
    %v5659 = vld [vmem:[%s5650 + $0x20] sm:$0xf]
    %v5660 = vld [vmem:[%s5650 + $0x24] sm:$0xf]
    %v5661 = vld [vmem:[%s5650 + $0x28] sm:$0xf]
    %v5662 = vld [vmem:[%s5650 + $0x2c] sm:$0xf]
    %v5663 = vld [vmem:[%s5650 + $0x30] sm:$0xf]
    %v5664 = vld [vmem:[%s5650 + $0x34] sm:$0xf]
    %v5665 = vld [vmem:[%s5650 + $0x38] sm:$0xf]
    %v5666 = vld [vmem:[%s5650 + $0x3c] sm:$0xf]
    %v5667 = vld [vmem:[%s5650 + $0x40] sm:$0xf]
    %v5668 = vld [vmem:[%s5650 + $0x44] sm:$0xf]
    %v5669 = vld [vmem:[%s5650 + $0x48] sm:$0xf]
    %v5670 = vld [vmem:[%s5650 + $0x4c] sm:$0xf]
    %v5671 = vld [vmem:[%s5650 + $0x50] sm:$0xf]
    %v5672 = vld [vmem:[%s5650 + $0x54] sm:$0xf]
    %v5673 = vld [vmem:[%s5650 + $0x58] sm:$0xf]
    %v5674 = vld [vmem:[%s5650 + $0x5c] sm:$0xf]
    %v5699 = vunpack.c.l.b16 %v5651
    %v5700 = vunpack.c.l.b16 %v5652
    %v5701 = vunpack.c.l.b16 %v5653
    %v5702 = vunpack.c.l.b16 %v5654
    %v5703 = vunpack.c.l.b16 %v5655
    %v5704 = vunpack.c.l.b16 %v5656
    %v5705 = vunpack.c.l.b16 %v5657
    %v5706 = vunpack.c.l.b16 %v5658
    %v5707 = vunpack.c.l.b16 %v5659
    %v5708 = vunpack.c.l.b16 %v5660
    %v5709 = vunpack.c.l.b16 %v5661
    %v5710 = vunpack.c.l.b16 %v5662
    %v5711 = vunpack.c.l.b16 %v5663
    %v5712 = vunpack.c.l.b16 %v5664
    %v5713 = vunpack.c.l.b16 %v5665
    %v5714 = vunpack.c.l.b16 %v5666
    %v5715 = vunpack.c.l.b16 %v5667
    %v5716 = vunpack.c.l.b16 %v5668
    %v5717 = vunpack.c.l.b16 %v5669
    %v5718 = vunpack.c.l.b16 %v5670
    %v5719 = vunpack.c.l.b16 %v5671
    %v5720 = vunpack.c.l.b16 %v5672
    %v5721 = vunpack.c.l.b16 %v5673
    %v5722 = vunpack.c.l.b16 %v5674
    %v5723 = vpack.c.b16 %v5700, %v5699
    %v5724 = vpack.c.b16 %v5702, %v5701
    %v5725 = vpack.c.b16 %v5704, %v5703
    %v5726 = vpack.c.b16 %v5706, %v5705
    %v5727 = vpack.c.b16 %v5708, %v5707
    %v5728 = vpack.c.b16 %v5710, %v5709
    %v5729 = vpack.c.b16 %v5712, %v5711
    %v5730 = vpack.c.b16 %v5714, %v5713
    %v5731 = vpack.c.b16 %v5716, %v5715
    %v5732 = vpack.c.b16 %v5718, %v5717
    %v5733 = vpack.c.b16 %v5720, %v5719
    %v5734 = vpack.c.b16 %v5722, %v5721
    %v5748 = vsel %vm167, %v5649, 0
    %5750 = vmatprep.subr.bf16.mxu0 0
    %5751 = vmatpush1.bf16.msra.mxu0 %v5723
    %5752 = vmatprep.subr.bf16.mxu0 0
    %5753 = vmatpush1.bf16.msra.mxu0 %v5724
    %5754 = vmatprep.subr.bf16.mxu0 0
    %5755 = vmatpush1.bf16.msra.mxu0 %v5725
    %5756 = vmatprep.subr.bf16.mxu0 0
    %5757 = vmatpush1.bf16.msra.mxu0 %v5726
    %5758 = vmatprep.subr.bf16.mxu0 0
    %5759 = vmatpush1.bf16.msra.mxu0 %v5727
    %5760 = vmatprep.subr.bf16.mxu0 0
    %5761 = vmatpush1.bf16.msra.mxu0 %v5728
    %5762 = vmatprep.subr.bf16.mxu0 0
    %5763 = vmatpush1.bf16.msra.mxu0 %v5729
    %5764 = vmatprep.subr.bf16.mxu0 0
    %5765 = vmatpush1.bf16.msra.mxu0 %v5730
    %5766 = vmatprep.subr.bf16.mxu0 0
    %5767 = vmatpush1.bf16.msra.mxu0 %v5731
    %5768 = vmatprep.subr.bf16.mxu0 0
    %5769 = vmatpush1.bf16.msra.mxu0 %v5732
    %5770 = vmatprep.subr.bf16.mxu0 0
    %5771 = vmatpush1.bf16.msra.mxu0 %v5733
    %5772 = vmatprep.subr.bf16.mxu0 0
    %5773 = vmatpush1.bf16.msra.mxu0 %v5734
    %5774 = vmatprep.subr.bf16.mxu0 0
    %5775 = vmatpush1.bf16.msra.mxu0 0
    %5776 = vmatprep.subr.bf16.mxu0 0
    %5777 = vmatpush1.bf16.msra.mxu0 0
    %5778 = vmatprep.subr.bf16.mxu0 0
    %5779 = vmatpush1.bf16.msra.mxu0 0
    %5780 = vmatprep.subr.bf16.mxu0 0
    %5781 = vmatpush1.bf16.msra.mxu0 0
    %5782 = vmatprep.mubr.bf16.mxu0 %v5748
    %5783 = vmatmul.mubr.bf16.gmra.mrb[0].mxu0 %v5648
    %v5784 = vpop.f32.mrb[0].mxu0
    %v5785 = vadd.f32 0.0, %v5784
    %v5786 = vpop.f32.mrb[0].mxu0
    %v5787 = vpop.f32.mrb[0].mxu0
    %v5788 = vpop.f32.mrb[0].mxu0
    %5789 = vdwg.mxu0
    %v5790 = vadd.f32 %v5601, %v5785
    %v5791 = vsel %vm4625, %v5790, 0.0
    %v5792 = vrot.slane %v5791, 4
    %v5793 = vadd.f32 %v5791, %v5792
    %v5794 = vrot.slane %v5793, 2
    %v5795 = vadd.f32 %v5793, %v5794
    %v5796 = vrot.slane %v5795, 1
    %v5797 = vadd.f32 %v5795, %v5796
    %v5798 = vmul.f32 %v5790, %v5790
    %v5799 = vsel %vm4625, %v5798, 0.0
    %v5800 = vrot.slane %v5799, 4
    %v5801 = vadd.f32 %v5799, %v5800
    %v5802 = vrot.slane %v5801, 2
    %v5803 = vadd.f32 %v5801, %v5802
    %v5804 = vrot.slane %v5803, 1
    %v5805 = vadd.f32 %v5803, %v5804
    %v5806 = vld [vmem:[%s31] sm:$0xff]
    %v5807 = vld [vmem:[%s31 + $0x8] sm:$0xff]
    %v5808 = vld [vmem:[%s31 + $0x10] sm:$0xff]
    %v5809 = vld [vmem:[%s31 + $0x18] sm:$0xff]
    %v5810 = vld [vmem:[%s31 + $0x20] sm:$0xff]
    %v5811 = vld [vmem:[%s31 + $0x28] sm:$0xff]
    %v5812 = vld [vmem:[%s31 + $0x30] sm:$0xff]
    %v5813 = vld [vmem:[%s31 + $0x38] sm:$0xff]
    %v5815 = vsel %vm167, %v5797, 0
    %5817 = vmatprep.subr.mxu0 0.0
    %5818 = vmatpush1.msra.mxu0 %v5806
    %5819 = vmatprep.subr.mxu0 0.0
    %5820 = vmatpush1.msra.mxu0 %v5807
    %5821 = vmatprep.subr.mxu0 0.0
    %5822 = vmatpush1.msra.mxu0 %v5808
    %5823 = vmatprep.subr.mxu0 0.0
    %5824 = vmatpush1.msra.mxu0 %v5809
    %5825 = vmatprep.subr.mxu0 0.0
    %5826 = vmatpush1.msra.mxu0 %v5810
    %5827 = vmatprep.subr.mxu0 0.0
    %5828 = vmatpush1.msra.mxu0 %v5811
    %5829 = vmatprep.subr.mxu0 0.0
    %5830 = vmatpush1.msra.mxu0 %v5812
    %5831 = vmatprep.subr.mxu0 0.0
    %5832 = vmatpush1.msra.mxu0 %v5813
    %5833 = vmatprep.subr.mxu0 0.0
    %5834 = vmatpush1.msra.mxu0 0.0
    %5835 = vmatprep.subr.mxu0 0.0
    %5836 = vmatpush1.msra.mxu0 0.0
    %5837 = vmatprep.subr.mxu0 0.0
    %5838 = vmatpush1.msra.mxu0 0.0
    %5839 = vmatprep.subr.mxu0 0.0
    %5840 = vmatpush1.msra.mxu0 0.0
    %5841 = vmatprep.subr.mxu0 0.0
    %5842 = vmatpush1.msra.mxu0 0.0
    %5843 = vmatprep.subr.mxu0 0.0
    %5844 = vmatpush1.msra.mxu0 0.0
    %5845 = vmatprep.subr.mxu0 0.0
    %5846 = vmatpush1.msra.mxu0 0.0
    %5847 = vmatprep.subr.mxu0 0.0
    %5848 = vmatpush1.msra.mxu0 0.0
    %5849 = vmatprep.subr.mxu0 0.0
    %5850 = vmatpush1.msra.mxu0 0.0
    %5851 = vmatprep.subr.mxu0 0.0
    %5852 = vmatpush1.msra.mxu0 0.0
    %5853 = vmatprep.subr.mxu0 0.0
    %5854 = vmatpush1.msra.mxu0 0.0
    %5855 = vmatprep.subr.mxu0 0.0
    %5856 = vmatpush1.msra.mxu0 0.0
    %5857 = vmatprep.subr.mxu0 0.0
    %5858 = vmatpush1.msra.mxu0 0.0
    %5859 = vmatprep.subr.mxu0 0.0
    %5860 = vmatpush1.msra.mxu0 0.0
    %5861 = vmatprep.subr.mxu0 0.0
    %5862 = vmatpush1.msra.mxu0 0.0
    %5863 = vmatprep.subr.mxu0 0.0
    %5864 = vmatpush1.msra.mxu0 0.0
    %5865 = vmatprep.subr.mxu0 0.0
    %5866 = vmatpush1.msra.mxu0 0.0
    %5867 = vmatprep.subr.mxu0 0.0
    %5868 = vmatpush1.msra.mxu0 0.0
    %5869 = vmatprep.subr.mxu0 0.0
    %5870 = vmatpush1.msra.mxu0 0.0
    %5871 = vmatprep.subr.mxu0 0.0
    %5872 = vmatpush1.msra.mxu0 0.0
    %5873 = vmatprep.subr.mxu0 0.0
    %5874 = vmatpush1.msra.mxu0 0.0
    %5875 = vmatprep.subr.mxu0 0.0
    %5876 = vmatpush1.msra.mxu0 0.0
    %5877 = vmatprep.subr.mxu0 0.0
    %5878 = vmatpush1.msra.mxu0 0.0
    %5879 = vmatprep.subr.mxu0 0.0
    %5880 = vmatpush1.msra.mxu0 0.0
    %5881 = vmatprep.mubr.f32.mxu0 0.0
    %5882 = vmatmul.mubr.f32.gmra.mrb[0].mxu0 %v5815
    %v5883 = vpop.f32.mrb[0].mxu0
    %v5884 = vadd.f32 0.0, %v5883
    %v5885 = vpop.f32.mrb[0].mxu0
    %5886 = vdwg.mxu0
    %v5888 = vsel %vm167, %v5805, 0
    %5890 = vmatprep.subr.mxu0 0.0
    %5891 = vmatpush1.msra.mxu0 %v5806
    %5892 = vmatprep.subr.mxu0 0.0
    %5893 = vmatpush1.msra.mxu0 %v5807
    %5894 = vmatprep.subr.mxu0 0.0
    %5895 = vmatpush1.msra.mxu0 %v5808
    %5896 = vmatprep.subr.mxu0 0.0
    %5897 = vmatpush1.msra.mxu0 %v5809
    %5898 = vmatprep.subr.mxu0 0.0
    %5899 = vmatpush1.msra.mxu0 %v5810
    %5900 = vmatprep.subr.mxu0 0.0
    %5901 = vmatpush1.msra.mxu0 %v5811
    %5902 = vmatprep.subr.mxu0 0.0
    %5903 = vmatpush1.msra.mxu0 %v5812
    %5904 = vmatprep.subr.mxu0 0.0
    %5905 = vmatpush1.msra.mxu0 %v5813
    %5906 = vmatprep.subr.mxu0 0.0
    %5907 = vmatpush1.msra.mxu0 0.0
    %5908 = vmatprep.subr.mxu0 0.0
    %5909 = vmatpush1.msra.mxu0 0.0
    %5910 = vmatprep.subr.mxu0 0.0
    %5911 = vmatpush1.msra.mxu0 0.0
    %5912 = vmatprep.subr.mxu0 0.0
    %5913 = vmatpush1.msra.mxu0 0.0
    %5914 = vmatprep.subr.mxu0 0.0
    %5915 = vmatpush1.msra.mxu0 0.0
    %5916 = vmatprep.subr.mxu0 0.0
    %5917 = vmatpush1.msra.mxu0 0.0
    %5918 = vmatprep.subr.mxu0 0.0
    %5919 = vmatpush1.msra.mxu0 0.0
    %5920 = vmatprep.subr.mxu0 0.0
    %5921 = vmatpush1.msra.mxu0 0.0
    %5922 = vmatprep.subr.mxu0 0.0
    %5923 = vmatpush1.msra.mxu0 0.0
    %5924 = vmatprep.subr.mxu0 0.0
    %5925 = vmatpush1.msra.mxu0 0.0
    %5926 = vmatprep.subr.mxu0 0.0
    %5927 = vmatpush1.msra.mxu0 0.0
    %5928 = vmatprep.subr.mxu0 0.0
    %5929 = vmatpush1.msra.mxu0 0.0
    %5930 = vmatprep.subr.mxu0 0.0
    %5931 = vmatpush1.msra.mxu0 0.0
    %5932 = vmatprep.subr.mxu0 0.0
    %5933 = vmatpush1.msra.mxu0 0.0
    %5934 = vmatprep.subr.mxu0 0.0
    %5935 = vmatpush1.msra.mxu0 0.0
    %5936 = vmatprep.subr.mxu0 0.0
    %5937 = vmatpush1.msra.mxu0 0.0
    %5938 = vmatprep.subr.mxu0 0.0
    %5939 = vmatpush1.msra.mxu0 0.0
    %5940 = vmatprep.subr.mxu0 0.0
    %5941 = vmatpush1.msra.mxu0 0.0
    %5942 = vmatprep.subr.mxu0 0.0
    %5943 = vmatpush1.msra.mxu0 0.0
    %5944 = vmatprep.subr.mxu0 0.0
    %5945 = vmatpush1.msra.mxu0 0.0
    %5946 = vmatprep.subr.mxu0 0.0
    %5947 = vmatpush1.msra.mxu0 0.0
    %5948 = vmatprep.subr.mxu0 0.0
    %5949 = vmatpush1.msra.mxu0 0.0
    %5950 = vmatprep.subr.mxu0 0.0
    %5951 = vmatpush1.msra.mxu0 0.0
    %5952 = vmatprep.subr.mxu0 0.0
    %5953 = vmatpush1.msra.mxu0 0.0
    %5954 = vmatprep.mubr.f32.mxu0 0.0
    %5955 = vmatmul.mubr.f32.gmra.mrb[0].mxu0 %v5888
    %v5956 = vpop.f32.mrb[0].mxu0
    %v5957 = vadd.f32 0.0, %v5956
    %v5958 = vpop.f32.mrb[0].mxu0
    %5959 = vdwg.mxu0
    %v5960 = vrcp.pop 8.0
    %v5961 = vmul.f32 %v5884, %v5960
    %v5962 = vmul.f32 %v5957, %v5960
    %v5963 = vmul.f32 %v5961, %v5961
    %v5964 = vsub.f32 %v5962, %v5963
    %v5965 = vmax.f32 %v5964, 0.0
    %v5966 = vld [vmem:[%s35] sm:$0x1]
    %v5967 = vadd.f32 %v5965, 1e-05
    %v5968 = vrsqrt.pop %v5967
    %v5969 = vmul.f32 %v5966, %v5968
    %v5970 = vld [vmem:[%s37] sm:$0x1]
    %v5971 = vmul.f32 %v5961, %v5969
    %v5972 = vsub.f32 %v5970, %v5971
    %v5973 = vld [vmem:[%s33] sm:$0xff]
    %v5974 = vld [vmem:[%s33 + $0x8] sm:$0xff]
    %v5975 = vld [vmem:[%s33 + $0x10] sm:$0xff]
    %v5976 = vld [vmem:[%s33 + $0x18] sm:$0xff]
    %v5978 = vsel %vm1980, %v5969, 0
    %5980 = vmatprep.subr.mxu0 0.0
    %5981 = vmatpush1.msra.mxu0 %v5973
    %5982 = vmatprep.subr.mxu0 0.0
    %5983 = vmatpush1.msra.mxu0 %v5974
    %5984 = vmatprep.subr.mxu0 0.0
    %5985 = vmatpush1.msra.mxu0 %v5975
    %5986 = vmatprep.subr.mxu0 0.0
    %5987 = vmatpush1.msra.mxu0 %v5976
    %5988 = vmatprep.subr.mxu0 0.0
    %5989 = vmatpush1.msra.mxu0 0.0
    %5990 = vmatprep.subr.mxu0 0.0
    %5991 = vmatpush1.msra.mxu0 0.0
    %5992 = vmatprep.subr.mxu0 0.0
    %5993 = vmatpush1.msra.mxu0 0.0
    %5994 = vmatprep.subr.mxu0 0.0
    %5995 = vmatpush1.msra.mxu0 0.0
    %5996 = vmatprep.subr.mxu0 0.0
    %5997 = vmatpush1.msra.mxu0 0.0
    %5998 = vmatprep.subr.mxu0 0.0
    %5999 = vmatpush1.msra.mxu0 0.0
    %6000 = vmatprep.subr.mxu0 0.0
    %6001 = vmatpush1.msra.mxu0 0.0
    %6002 = vmatprep.subr.mxu0 0.0
    %6003 = vmatpush1.msra.mxu0 0.0
    %6004 = vmatprep.subr.mxu0 0.0
    %6005 = vmatpush1.msra.mxu0 0.0
    %6006 = vmatprep.subr.mxu0 0.0
    %6007 = vmatpush1.msra.mxu0 0.0
    %6008 = vmatprep.subr.mxu0 0.0
    %6009 = vmatpush1.msra.mxu0 0.0
    %6010 = vmatprep.subr.mxu0 0.0
    %6011 = vmatpush1.msra.mxu0 0.0
    %6012 = vmatprep.subr.mxu0 0.0
    %6013 = vmatpush1.msra.mxu0 0.0
    %6014 = vmatprep.subr.mxu0 0.0
    %6015 = vmatpush1.msra.mxu0 0.0
    %6016 = vmatprep.subr.mxu0 0.0
    %6017 = vmatpush1.msra.mxu0 0.0
    %6018 = vmatprep.subr.mxu0 0.0
    %6019 = vmatpush1.msra.mxu0 0.0
    %6020 = vmatprep.subr.mxu0 0.0
    %6021 = vmatpush1.msra.mxu0 0.0
    %6022 = vmatprep.subr.mxu0 0.0
    %6023 = vmatpush1.msra.mxu0 0.0
    %6024 = vmatprep.subr.mxu0 0.0
    %6025 = vmatpush1.msra.mxu0 0.0
    %6026 = vmatprep.subr.mxu0 0.0
    %6027 = vmatpush1.msra.mxu0 0.0
    %6028 = vmatprep.subr.mxu0 0.0
    %6029 = vmatpush1.msra.mxu0 0.0
    %6030 = vmatprep.subr.mxu0 0.0
    %6031 = vmatpush1.msra.mxu0 0.0
    %6032 = vmatprep.subr.mxu0 0.0
    %6033 = vmatpush1.msra.mxu0 0.0
    %6034 = vmatprep.subr.mxu0 0.0
    %6035 = vmatpush1.msra.mxu0 0.0
    %6036 = vmatprep.subr.mxu0 0.0
    %6037 = vmatpush1.msra.mxu0 0.0
    %6038 = vmatprep.subr.mxu0 0.0
    %6039 = vmatpush1.msra.mxu0 0.0
    %6040 = vmatprep.subr.mxu0 0.0
    %6041 = vmatpush1.msra.mxu0 0.0
    %6042 = vmatprep.subr.mxu0 0.0
    %6043 = vmatpush1.msra.mxu0 0.0
    %6044 = vmatprep.mubr.f32.mxu0 0.0
    %6045 = vmatmul.mubr.f32.gmra.mrb[0].mxu0 %v5978
    %v6046 = vpop.f32.mrb[0].mxu0
    %v6047 = vadd.f32 0.0, %v6046
    %v6048 = vpop.f32.mrb[0].mxu0
    %6049 = vdwg.mxu0
    %v6051 = vsel %vm1980, %v5972, 0
    %6053 = vmatprep.subr.mxu0 0.0
    %6054 = vmatpush1.msra.mxu0 %v5973
    %6055 = vmatprep.subr.mxu0 0.0
    %6056 = vmatpush1.msra.mxu0 %v5974
    %6057 = vmatprep.subr.mxu0 0.0
    %6058 = vmatpush1.msra.mxu0 %v5975
    %6059 = vmatprep.subr.mxu0 0.0
    %6060 = vmatpush1.msra.mxu0 %v5976
    %6061 = vmatprep.subr.mxu0 0.0
    %6062 = vmatpush1.msra.mxu0 0.0
    %6063 = vmatprep.subr.mxu0 0.0
    %6064 = vmatpush1.msra.mxu0 0.0
    %6065 = vmatprep.subr.mxu0 0.0
    %6066 = vmatpush1.msra.mxu0 0.0
    %6067 = vmatprep.subr.mxu0 0.0
    %6068 = vmatpush1.msra.mxu0 0.0
    %6069 = vmatprep.subr.mxu0 0.0
    %6070 = vmatpush1.msra.mxu0 0.0
    %6071 = vmatprep.subr.mxu0 0.0
    %6072 = vmatpush1.msra.mxu0 0.0
    %6073 = vmatprep.subr.mxu0 0.0
    %6074 = vmatpush1.msra.mxu0 0.0
    %6075 = vmatprep.subr.mxu0 0.0
    %6076 = vmatpush1.msra.mxu0 0.0
    %6077 = vmatprep.subr.mxu0 0.0
    %6078 = vmatpush1.msra.mxu0 0.0
    %6079 = vmatprep.subr.mxu0 0.0
    %6080 = vmatpush1.msra.mxu0 0.0
    %6081 = vmatprep.subr.mxu0 0.0
    %6082 = vmatpush1.msra.mxu0 0.0
    %6083 = vmatprep.subr.mxu0 0.0
    %6084 = vmatpush1.msra.mxu0 0.0
    %6085 = vmatprep.subr.mxu0 0.0
    %6086 = vmatpush1.msra.mxu0 0.0
    %6087 = vmatprep.subr.mxu0 0.0
    %6088 = vmatpush1.msra.mxu0 0.0
    %6089 = vmatprep.subr.mxu0 0.0
    %6090 = vmatpush1.msra.mxu0 0.0
    %6091 = vmatprep.subr.mxu0 0.0
    %6092 = vmatpush1.msra.mxu0 0.0
    %6093 = vmatprep.subr.mxu0 0.0
    %6094 = vmatpush1.msra.mxu0 0.0
    %6095 = vmatprep.subr.mxu0 0.0
    %6096 = vmatpush1.msra.mxu0 0.0
    %6097 = vmatprep.subr.mxu0 0.0
    %6098 = vmatpush1.msra.mxu0 0.0
    %6099 = vmatprep.subr.mxu0 0.0
    %6100 = vmatpush1.msra.mxu0 0.0
    %6101 = vmatprep.subr.mxu0 0.0
    %6102 = vmatpush1.msra.mxu0 0.0
    %6103 = vmatprep.subr.mxu0 0.0
    %6104 = vmatpush1.msra.mxu0 0.0
    %6105 = vmatprep.subr.mxu0 0.0
    %6106 = vmatpush1.msra.mxu0 0.0
    %6107 = vmatprep.subr.mxu0 0.0
    %6108 = vmatpush1.msra.mxu0 0.0
    %6109 = vmatprep.subr.mxu0 0.0
    %6110 = vmatpush1.msra.mxu0 0.0
    %6111 = vmatprep.subr.mxu0 0.0
    %6112 = vmatpush1.msra.mxu0 0.0
    %6113 = vmatprep.subr.mxu0 0.0
    %6114 = vmatpush1.msra.mxu0 0.0
    %6115 = vmatprep.subr.mxu0 0.0
    %6116 = vmatpush1.msra.mxu0 0.0
    %6117 = vmatprep.mubr.f32.mxu0 0.0
    %6118 = vmatmul.mubr.f32.gmra.mrb[0].mxu0 %v6051
    %v6119 = vpop.f32.mrb[0].mxu0
    %v6120 = vadd.f32 0.0, %v6119
    %v6121 = vpop.f32.mrb[0].mxu0
    %6122 = vdwg.mxu0
    %v6123 = vlaneseq
    %v6124 = vshrl.u32 %v6123, 7
    %v6125 = vsub.s32 0, %v6124
    %v6126 = vrot.slane %v6047, %v6125
    %v6127 = vmul.f32 %v5790, %v6126
    %v6128 = vlaneseq
    %v6129 = vshrl.u32 %v6128, 7
    %v6130 = vsub.s32 0, %v6129
    %v6131 = vrot.slane %v6120, %v6130
    %v6132 = vadd.f32 %v6127, %v6131
    %vm6133 = vcmp.ge.f32.partialorder %v6132, 0.0
    %v6134 = vmul.f32 %v6132, 0.01
    %v6135 = vsel %vm6133, %v6132, %v6134
    %v6136 = vpack.c.bf16 %v6135, %v6135
    %v6137 = vld [vmem:[%s39] sm:$0xf]
    %v6138 = vld [vmem:[%s39 + $0x4] sm:$0xf]
    %v6139 = vld [vmem:[%s39 + $0x8] sm:$0xf]
    %v6140 = vld [vmem:[%s39 + $0xc] sm:$0xf]
    %v6141 = vld [vmem:[%s39 + $0x10] sm:$0xf]
    %v6142 = vld [vmem:[%s39 + $0x14] sm:$0xf]
    %v6143 = vld [vmem:[%s39 + $0x18] sm:$0xf]
    %v6144 = vld [vmem:[%s39 + $0x1c] sm:$0xf]
    %s6145 = scalar_lea.vmem %s39, 32
    %v6146 = vld [vmem:[%s6145] sm:$0xf]
    %v6147 = vld [vmem:[%s6145 + $0x4] sm:$0xf]
    %v6148 = vld [vmem:[%s6145 + $0x8] sm:$0xf]
    %v6149 = vld [vmem:[%s6145 + $0xc] sm:$0xf]
    %v6150 = vld [vmem:[%s6145 + $0x10] sm:$0xf]
    %v6151 = vld [vmem:[%s6145 + $0x14] sm:$0xf]
    %v6152 = vld [vmem:[%s6145 + $0x18] sm:$0xf]
    %v6153 = vld [vmem:[%s6145 + $0x1c] sm:$0xf]
    %v6155 = vrot.slane %v6136, 1
    %v6164 = vunpack.c.l.b16 %v6146
    %v6165 = vunpack.c.l.b16 %v6147
    %v6166 = vunpack.c.l.b16 %v6148
    %v6167 = vunpack.c.l.b16 %v6149
    %v6168 = vunpack.c.l.b16 %v6150
    %v6169 = vunpack.c.l.b16 %v6151
    %v6170 = vunpack.c.l.b16 %v6152
    %v6171 = vunpack.c.l.b16 %v6153
    %v6172 = vpack.c.b16 %v6165, %v6164
    %v6173 = vpack.c.b16 %v6167, %v6166
    %v6174 = vpack.c.b16 %v6169, %v6168
    %v6175 = vpack.c.b16 %v6171, %v6170
    %v6181 = vsel %vm167, %v6155, 0
    %6183 = vmatprep.subr.bf16.mxu0 0
    %6184 = vmatpush1.bf16.msra.mxu0 %v6172
    %6185 = vmatprep.subr.bf16.mxu0 0
    %6186 = vmatpush1.bf16.msra.mxu0 %v6173
    %6187 = vmatprep.subr.bf16.mxu0 0
    %6188 = vmatpush1.bf16.msra.mxu0 %v6174
    %6189 = vmatprep.subr.bf16.mxu0 0
    %6190 = vmatpush1.bf16.msra.mxu0 %v6175
    %6191 = vmatprep.subr.bf16.mxu0 0
    %6192 = vmatpush1.bf16.msra.mxu0 0
    %6193 = vmatprep.subr.bf16.mxu0 0
    %6194 = vmatpush1.bf16.msra.mxu0 0
    %6195 = vmatprep.subr.bf16.mxu0 0
    %6196 = vmatpush1.bf16.msra.mxu0 0
    %6197 = vmatprep.subr.bf16.mxu0 0
    %6198 = vmatpush1.bf16.msra.mxu0 0
    %6199 = vmatprep.subr.bf16.mxu0 0
    %6200 = vmatpush1.bf16.msra.mxu0 0
    %6201 = vmatprep.subr.bf16.mxu0 0
    %6202 = vmatpush1.bf16.msra.mxu0 0
    %6203 = vmatprep.subr.bf16.mxu0 0
    %6204 = vmatpush1.bf16.msra.mxu0 0
    %6205 = vmatprep.subr.bf16.mxu0 0
    %6206 = vmatpush1.bf16.msra.mxu0 0
    %6207 = vmatprep.subr.bf16.mxu0 0
    %6208 = vmatpush1.bf16.msra.mxu0 0
    %6209 = vmatprep.subr.bf16.mxu0 0
    %6210 = vmatpush1.bf16.msra.mxu0 0
    %6211 = vmatprep.subr.bf16.mxu0 0
    %6212 = vmatpush1.bf16.msra.mxu0 0
    %6213 = vmatprep.subr.bf16.mxu0 0
    %6214 = vmatpush1.bf16.msra.mxu0 0
    %6215 = vmatprep.mubr.bf16.mxu0 0
    %6216 = vmatmul.mubr.bf16.gmra.mrb[0].mxu0 %v6181
    %v6217 = vpop.f32.mrb[0].mxu0
    %v6218 = vadd.f32 0.0, %v6217
    %v6219 = vpop.f32.mrb[0].mxu0
    %v6220 = vpop.f32.mrb[0].mxu0
    %v6221 = vpop.f32.mrb[0].mxu0
    %6222 = vdwg.mxu0
    %v6231 = vunpack.c.l.b16 %v6137
    %v6232 = vunpack.c.l.b16 %v6138
    %v6233 = vunpack.c.l.b16 %v6139
    %v6234 = vunpack.c.l.b16 %v6140
    %v6235 = vunpack.c.l.b16 %v6141
    %v6236 = vunpack.c.l.b16 %v6142
    %v6237 = vunpack.c.l.b16 %v6143
    %v6238 = vunpack.c.l.b16 %v6144
    %v6239 = vpack.c.b16 %v6232, %v6231
    %v6240 = vpack.c.b16 %v6234, %v6233
    %v6241 = vpack.c.b16 %v6236, %v6235
    %v6242 = vpack.c.b16 %v6238, %v6237
    %v6248 = vsel %vm167, %v6136, 0
    %6250 = vmatprep.subr.bf16.mxu0 0
    %6251 = vmatpush1.bf16.msra.mxu0 %v6239
    %6252 = vmatprep.subr.bf16.mxu0 0
    %6253 = vmatpush1.bf16.msra.mxu0 %v6240
    %6254 = vmatprep.subr.bf16.mxu0 0
    %6255 = vmatpush1.bf16.msra.mxu0 %v6241
    %6256 = vmatprep.subr.bf16.mxu0 0
    %6257 = vmatpush1.bf16.msra.mxu0 %v6242
    %6258 = vmatprep.subr.bf16.mxu0 0
    %6259 = vmatpush1.bf16.msra.mxu0 0
    %6260 = vmatprep.subr.bf16.mxu0 0
    %6261 = vmatpush1.bf16.msra.mxu0 0
    %6262 = vmatprep.subr.bf16.mxu0 0
    %6263 = vmatpush1.bf16.msra.mxu0 0
    %6264 = vmatprep.subr.bf16.mxu0 0
    %6265 = vmatpush1.bf16.msra.mxu0 0
    %6266 = vmatprep.subr.bf16.mxu0 0
    %6267 = vmatpush1.bf16.msra.mxu0 0
    %6268 = vmatprep.subr.bf16.mxu0 0
    %6269 = vmatpush1.bf16.msra.mxu0 0
    %6270 = vmatprep.subr.bf16.mxu0 0
    %6271 = vmatpush1.bf16.msra.mxu0 0
    %6272 = vmatprep.subr.bf16.mxu0 0
    %6273 = vmatpush1.bf16.msra.mxu0 0
    %6274 = vmatprep.subr.bf16.mxu0 0
    %6275 = vmatpush1.bf16.msra.mxu0 0
    %6276 = vmatprep.subr.bf16.mxu0 0
    %6277 = vmatpush1.bf16.msra.mxu0 0
    %6278 = vmatprep.subr.bf16.mxu0 0
    %6279 = vmatpush1.bf16.msra.mxu0 0
    %6280 = vmatprep.subr.bf16.mxu0 0
    %6281 = vmatpush1.bf16.msra.mxu0 0
    %6282 = vmatprep.mubr.bf16.mxu0 0
    %6283 = vmatmul.mubr.bf16.gmra.mrb[0].mxu0 %v6248
    %v6284 = vpop.f32.mrb[0].mxu0
    %v6285 = vadd.f32 %v6218, %v6284
    %v6286 = vpop.f32.mrb[0].mxu0
    %v6287 = vpop.f32.mrb[0].mxu0
    %v6288 = vpop.f32.mrb[0].mxu0
    %6289 = vdwg.mxu0
    %v6290 = vld [vmem:[%s41] sm:$0x1]
    %v6292 = vlaneseq
    %v6293 = vshrl.u32 %v6292, 7
    %v6294 = vsub.s32 0, %v6293
    %v6295 = vrot.slane %v6290, %v6294
    %v6297 = vadd.f32 %v6285, %v6295
    %v6298 = vmax.f32 %v6297, 0.0
    %v6299 = vpack.c.bf16 %v6298, %v6298
    %v6300 = vld [vmem:[%s43] sm:$0xf]
    %v6301 = vld [vmem:[%s43 + $0x4] sm:$0xf]
    %v6302 = vld [vmem:[%s43 + $0x8] sm:$0xf]
    %v6303 = vld [vmem:[%s43 + $0xc] sm:$0xf]
    %v6304 = vld [vmem:[%s43 + $0x10] sm:$0xf]
    %v6305 = vld [vmem:[%s43 + $0x14] sm:$0xf]
    %v6306 = vld [vmem:[%s43 + $0x18] sm:$0xf]
    %v6307 = vld [vmem:[%s43 + $0x1c] sm:$0xf]
    %v6308 = vld [vmem:[%s43 + $0x20] sm:$0xf]
    %v6309 = vld [vmem:[%s43 + $0x24] sm:$0xf]
    %v6310 = vld [vmem:[%s43 + $0x28] sm:$0xf]
    %v6311 = vld [vmem:[%s43 + $0x2c] sm:$0xf]
    %v6312 = vld [vmem:[%s43 + $0x30] sm:$0x3]
    %v6313 = vld [vmem:[%s45] sm:$0x1]
    %v6315 = vlaneseq
    %v6316 = vshrl.u32 %v6315, 7
    %v6317 = vsub.s32 0, %v6316
    %v6318 = vrot.slane %v6313, %v6317
    %v6333 = vunpack.c.l.b16 %v6300
    %v6334 = vunpack.c.l.b16 %v6301
    %v6335 = vunpack.c.l.b16 %v6302
    %v6336 = vunpack.c.l.b16 %v6303
    %v6337 = vunpack.c.l.b16 %v6304
    %v6338 = vunpack.c.l.b16 %v6305
    %v6339 = vunpack.c.l.b16 %v6306
    %v6340 = vunpack.c.l.b16 %v6307
    %v6341 = vunpack.c.l.b16 %v6308
    %v6342 = vunpack.c.l.b16 %v6309
    %v6343 = vunpack.c.l.b16 %v6310
    %v6344 = vunpack.c.l.b16 %v6311
    %v6345 = vunpack.c.l.b16 %v6312
    %v6346 = vpack.c.b16 %v6334, %v6333
    %v6347 = vpack.c.b16 %v6336, %v6335
    %v6348 = vpack.c.b16 %v6338, %v6337
    %v6349 = vpack.c.b16 %v6340, %v6339
    %v6350 = vpack.c.b16 %v6342, %v6341
    %v6351 = vpack.c.b16 %v6344, %v6343
    %v6352 = vpack.c.b16 %v6345, %v6345
    %vm6359 = vcmask 818176
    %v6361 = vsel %vm6359, %v6299, 0
    %vm6363 = vcmask 1041408
    %v6365 = vsel %vm6363, %v6352, 0
    %6367 = vmatprep.subr.bf16.mxu0 0
    %6368 = vmatpush1.bf16.msra.mxu0 %v6346
    %6369 = vmatprep.subr.bf16.mxu0 0
    %6370 = vmatpush1.bf16.msra.mxu0 %v6347
    %6371 = vmatprep.subr.bf16.mxu0 0
    %6372 = vmatpush1.bf16.msra.mxu0 %v6348
    %6373 = vmatprep.subr.bf16.mxu0 0
    %6374 = vmatpush1.bf16.msra.mxu0 %v6349
    %6375 = vmatprep.subr.bf16.mxu0 0
    %6376 = vmatpush1.bf16.msra.mxu0 %v6350
    %6377 = vmatprep.subr.bf16.mxu0 0
    %6378 = vmatpush1.bf16.msra.mxu0 %v6351
    %6379 = vmatprep.subr.bf16.mxu0 0
    %6380 = vmatpush1.bf16.msra.mxu0 %v6365
    %6381 = vmatprep.subr.bf16.mxu0 0
    %6382 = vmatpush1.bf16.msra.mxu0 0
    %6383 = vmatprep.subr.bf16.mxu0 0
    %6384 = vmatpush1.bf16.msra.mxu0 0
    %6385 = vmatprep.subr.bf16.mxu0 0
    %6386 = vmatpush1.bf16.msra.mxu0 0
    %6387 = vmatprep.subr.bf16.mxu0 0
    %6388 = vmatpush1.bf16.msra.mxu0 0
    %6389 = vmatprep.subr.bf16.mxu0 0
    %6390 = vmatpush1.bf16.msra.mxu0 0
    %6391 = vmatprep.subr.bf16.mxu0 0
    %6392 = vmatpush1.bf16.msra.mxu0 0
    %6393 = vmatprep.subr.bf16.mxu0 0
    %6394 = vmatpush1.bf16.msra.mxu0 0
    %6395 = vmatprep.subr.bf16.mxu0 0
    %6396 = vmatpush1.bf16.msra.mxu0 0
    %6397 = vmatprep.subr.bf16.mxu0 0
    %6398 = vmatpush1.bf16.msra.mxu0 0
    %6399 = vmatprep.mubr.bf16.mxu0 0
    %6400 = vmatmul.mubr.bf16.gmra.mrb[0].mxu0 %v6361
    %v6401 = vpop.f32.mrb[0].mxu0
    %v6402 = vadd.f32 %v6318, %v6401
    %v6403 = vpop.f32.mrb[0].mxu0
    %v6404 = vpop.f32.mrb[0].mxu0
    %v6405 = vpop.f32.mrb[0].mxu0
    %6406 = vdwg.mxu0
    %vm6407 = vcmask 33792
    %v6408 = vsel %vm6407, %v6402, -inf
    %6409 = vmax.xlane.f32.xlu0 %v6408
    %v6410 = vpop.xlane.xlu0 %6409
    %v6411 = vsub.f32 %v6402, %v6410
    %v6412 = vmul.f32 %v6411, 1.442695
    %v6413 = vpow.pop %v6412
    %v6414 = vsel %vm6407, %v6413, 0.0
    %6415 = vadd.xlane.f32.xlu0 %v6414
    %v6416 = vpop.xlane.xlu0 %6415
    %v6417 = vrcp.pop %v6416
    %v6418 = vmul.f32 %v6413, %v6417
    %6419 = vst.msk [vmem:[#allocation2] sm:$0x3] %vm6407, %v6418
    %v6420 = vld [vmem:[%s47] sm:$0xf]
    %v6421 = vld [vmem:[%s47 + $0x4] sm:$0xf]
    %v6422 = vld [vmem:[%s47 + $0x8] sm:$0xf]
    %v6423 = vld [vmem:[%s47 + $0xc] sm:$0xf]
    %v6424 = vld [vmem:[%s47 + $0x10] sm:$0xf]
    %v6425 = vld [vmem:[%s47 + $0x14] sm:$0xf]
    %v6426 = vld [vmem:[%s47 + $0x18] sm:$0xf]
    %v6427 = vld [vmem:[%s47 + $0x1c] sm:$0xf]
    %v6428 = vld [vmem:[%s47 + $0x20] sm:$0xf]
    %v6429 = vld [vmem:[%s47 + $0x24] sm:$0xf]
    %v6430 = vld [vmem:[%s47 + $0x28] sm:$0xf]
    %v6431 = vld [vmem:[%s47 + $0x2c] sm:$0xf]
    %v6432 = vld [vmem:[%s47 + $0x30] sm:$0x3]
    %v6433 = vld [vmem:[%s49] sm:$0x1]
    %v6435 = vlaneseq
    %v6436 = vshrl.u32 %v6435, 7
    %v6437 = vsub.s32 0, %v6436
    %v6438 = vrot.slane %v6433, %v6437
    %v6453 = vunpack.c.l.b16 %v6420
    %v6454 = vunpack.c.l.b16 %v6421
    %v6455 = vunpack.c.l.b16 %v6422
    %v6456 = vunpack.c.l.b16 %v6423
    %v6457 = vunpack.c.l.b16 %v6424
    %v6458 = vunpack.c.l.b16 %v6425
    %v6459 = vunpack.c.l.b16 %v6426
    %v6460 = vunpack.c.l.b16 %v6427
    %v6461 = vunpack.c.l.b16 %v6428
    %v6462 = vunpack.c.l.b16 %v6429
    %v6463 = vunpack.c.l.b16 %v6430
    %v6464 = vunpack.c.l.b16 %v6431
    %v6465 = vunpack.c.l.b16 %v6432
    %v6466 = vpack.c.b16 %v6454, %v6453
    %v6467 = vpack.c.b16 %v6456, %v6455
    %v6468 = vpack.c.b16 %v6458, %v6457
    %v6469 = vpack.c.b16 %v6460, %v6459
    %v6470 = vpack.c.b16 %v6462, %v6461
    %v6471 = vpack.c.b16 %v6464, %v6463
    %v6472 = vpack.c.b16 %v6465, %v6465
    %v6480 = vsel %vm6363, %v6472, 0
    %6482 = vmatprep.subr.bf16.mxu0 0
    %6483 = vmatpush1.bf16.msra.mxu0 %v6466
    %6484 = vmatprep.subr.bf16.mxu0 0
    %6485 = vmatpush1.bf16.msra.mxu0 %v6467
    %6486 = vmatprep.subr.bf16.mxu0 0
    %6487 = vmatpush1.bf16.msra.mxu0 %v6468
    %6488 = vmatprep.subr.bf16.mxu0 0
    %6489 = vmatpush1.bf16.msra.mxu0 %v6469
    %6490 = vmatprep.subr.bf16.mxu0 0
    %6491 = vmatpush1.bf16.msra.mxu0 %v6470
    %6492 = vmatprep.subr.bf16.mxu0 0
    %6493 = vmatpush1.bf16.msra.mxu0 %v6471
    %6494 = vmatprep.subr.bf16.mxu0 0
    %6495 = vmatpush1.bf16.msra.mxu0 %v6480
    %6496 = vmatprep.subr.bf16.mxu0 0
    %6497 = vmatpush1.bf16.msra.mxu0 0
    %6498 = vmatprep.subr.bf16.mxu0 0
    %6499 = vmatpush1.bf16.msra.mxu0 0
    %6500 = vmatprep.subr.bf16.mxu0 0
    %6501 = vmatpush1.bf16.msra.mxu0 0
    %6502 = vmatprep.subr.bf16.mxu0 0
    %6503 = vmatpush1.bf16.msra.mxu0 0
    %6504 = vmatprep.subr.bf16.mxu0 0
    %6505 = vmatpush1.bf16.msra.mxu0 0
    %6506 = vmatprep.subr.bf16.mxu0 0
    %6507 = vmatpush1.bf16.msra.mxu0 0
    %6508 = vmatprep.subr.bf16.mxu0 0
    %6509 = vmatpush1.bf16.msra.mxu0 0
    %6510 = vmatprep.subr.bf16.mxu0 0
    %6511 = vmatpush1.bf16.msra.mxu0 0
    %6512 = vmatprep.subr.bf16.mxu0 0
    %6513 = vmatpush1.bf16.msra.mxu0 0
    %6514 = vmatprep.mubr.bf16.mxu0 0
    %6515 = vmatmul.mubr.bf16.gmra.mrb[0].mxu0 %v6361
    %v6516 = vpop.f32.mrb[0].mxu0
    %v6517 = vadd.f32 %v6438, %v6516
    %v6518 = vpop.f32.mrb[0].mxu0
    %v6519 = vpop.f32.mrb[0].mxu0
    %v6520 = vpop.f32.mrb[0].mxu0
    %6521 = vdwg.mxu0
    %v6522 = vmul.f32 %v6517, 1.442695
    %v6523 = vpow.pop %v6522
    %vm6524 = vcmask 279552
    %6525 = vst.msk [vmem:[%s57] sm:$0x3] %vm6524, %v6523
    %v6526 = vld [vmem:[%s51] sm:$0xf]
    %v6527 = vld [vmem:[%s51 + $0x4] sm:$0xf]
    %v6528 = vld [vmem:[%s51 + $0x8] sm:$0xf]
    %v6529 = vld [vmem:[%s51 + $0xc] sm:$0xf]
    %v6530 = vld [vmem:[%s51 + $0x10] sm:$0xf]
    %v6531 = vld [vmem:[%s51 + $0x14] sm:$0xf]
    %v6532 = vld [vmem:[%s51 + $0x18] sm:$0xf]
    %v6533 = vld [vmem:[%s51 + $0x1c] sm:$0xf]
    %v6534 = vld [vmem:[%s51 + $0x20] sm:$0xf]
    %v6535 = vld [vmem:[%s51 + $0x24] sm:$0xf]
    %v6536 = vld [vmem:[%s51 + $0x28] sm:$0xf]
    %v6537 = vld [vmem:[%s51 + $0x2c] sm:$0xf]
    %v6538 = vld [vmem:[%s51 + $0x30] sm:$0x3]
    %v6539 = vld [vmem:[%s53] sm:$0x1]
    %v6541 = vlaneseq
    %v6542 = vshrl.u32 %v6541, 7
    %v6543 = vsub.s32 0, %v6542
    %v6544 = vrot.slane %v6539, %v6543
    %v6559 = vunpack.c.l.b16 %v6526
    %v6560 = vunpack.c.l.b16 %v6527
    %v6561 = vunpack.c.l.b16 %v6528
    %v6562 = vunpack.c.l.b16 %v6529
    %v6563 = vunpack.c.l.b16 %v6530
    %v6564 = vunpack.c.l.b16 %v6531
    %v6565 = vunpack.c.l.b16 %v6532
    %v6566 = vunpack.c.l.b16 %v6533
    %v6567 = vunpack.c.l.b16 %v6534
    %v6568 = vunpack.c.l.b16 %v6535
    %v6569 = vunpack.c.l.b16 %v6536
    %v6570 = vunpack.c.l.b16 %v6537
    %v6571 = vunpack.c.l.b16 %v6538
    %v6572 = vpack.c.b16 %v6560, %v6559
    %v6573 = vpack.c.b16 %v6562, %v6561
    %v6574 = vpack.c.b16 %v6564, %v6563
    %v6575 = vpack.c.b16 %v6566, %v6565
    %v6576 = vpack.c.b16 %v6568, %v6567
    %v6577 = vpack.c.b16 %v6570, %v6569
    %v6578 = vpack.c.b16 %v6571, %v6571
    %v6586 = vsel %vm6363, %v6578, 0
    %6588 = vmatprep.subr.bf16.mxu0 0
    %6589 = vmatpush1.bf16.msra.mxu0 %v6572
    %6590 = vmatprep.subr.bf16.mxu0 0
    %6591 = vmatpush1.bf16.msra.mxu0 %v6573
    %6592 = vmatprep.subr.bf16.mxu0 0
    %6593 = vmatpush1.bf16.msra.mxu0 %v6574
    %6594 = vmatprep.subr.bf16.mxu0 0
    %6595 = vmatpush1.bf16.msra.mxu0 %v6575
    %6596 = vmatprep.subr.bf16.mxu0 0
    %6597 = vmatpush1.bf16.msra.mxu0 %v6576
    %6598 = vmatprep.subr.bf16.mxu0 0
    %6599 = vmatpush1.bf16.msra.mxu0 %v6577
    %6600 = vmatprep.subr.bf16.mxu0 0
    %6601 = vmatpush1.bf16.msra.mxu0 %v6586
    %6602 = vmatprep.subr.bf16.mxu0 0
    %6603 = vmatpush1.bf16.msra.mxu0 0
    %6604 = vmatprep.subr.bf16.mxu0 0
    %6605 = vmatpush1.bf16.msra.mxu0 0
    %6606 = vmatprep.subr.bf16.mxu0 0
    %6607 = vmatpush1.bf16.msra.mxu0 0
    %6608 = vmatprep.subr.bf16.mxu0 0
    %6609 = vmatpush1.bf16.msra.mxu0 0
    %6610 = vmatprep.subr.bf16.mxu0 0
    %6611 = vmatpush1.bf16.msra.mxu0 0
    %6612 = vmatprep.subr.bf16.mxu0 0
    %6613 = vmatpush1.bf16.msra.mxu0 0
    %6614 = vmatprep.subr.bf16.mxu0 0
    %6615 = vmatpush1.bf16.msra.mxu0 0
    %6616 = vmatprep.subr.bf16.mxu0 0
    %6617 = vmatpush1.bf16.msra.mxu0 0
    %6618 = vmatprep.subr.bf16.mxu0 0
    %6619 = vmatpush1.bf16.msra.mxu0 0
    %6620 = vmatprep.mubr.bf16.mxu0 0
    %6621 = vmatmul.mubr.bf16.gmra.mrb[0].mxu0 %v6361
    %v6622 = vpop.f32.mrb[0].mxu0
    %v6623 = vadd.f32 %v6544, %v6622
    %v6624 = vpop.f32.mrb[0].mxu0
    %v6625 = vpop.f32.mrb[0].mxu0
    %v6626 = vpop.f32.mrb[0].mxu0
    %6627 = vdwg.mxu0
    %6628 = vst.msk [vmem:[%s59] sm:$0x3] %vm6524, %v6623
    // Predicated region
    $region110: #{forward.1} parent=1 // pred_check
      _
    $region111: #{forward.1} parent=1 // pred_check_branch
      %6630 = sbr.rel (0) target = $region113
    $region112: #{forward.1} parent=1 // pred_region
      %s6632 = ssub.s32 32, 32
      %6633 = vsyncadd [#allocation3], %s6632
      %s6635 = sshll.u32 [#allocation2], 4
      %s6636 = int_to_ptr.vmem [resolvable:$true] %s6635
      %6638 = dma.vmem_to_hbm [thread:$0]  %s6636, 32, %s55, [#allocation3]
    $region113: #{forward.1} parent=1 // pred_fallthru
      _
    // Predicated region
    $region114: #{forward.1} parent=1 // pred_check
      _
    $region115: #{forward.1} parent=1 // pred_check_branch
      %6640 = sbr.rel (0) target = $region117
    $region116: #{forward.1} parent=1 // pred_region
      _
    $region117: #{forward.1} parent=1 // pred_fallthru
      _
    // Predicated region
    $region118: #{forward.1} parent=1 // pred_check
      _
    $region119: #{forward.1} parent=1 // pred_check_branch
      %6642 = sbr.rel (0) target = $region121
    $region120: #{forward.1} parent=1 // pred_region
      _
    $region121: #{forward.1} parent=1 // pred_fallthru
      _
    // Predicated region
    $region122: #{forward.1} parent=1 // pred_check
      _
    $region123: #{forward.1} parent=1 // pred_check_branch
      %6644 = sbr.rel (0) target = $region125
    $region124: #{forward.1} parent=1 // pred_region
      %6645 = dma.done [#allocation3], 32
    $region125: #{forward.1} parent=1 // pred_fallthru
      _
    // Predicated region
    $region126: #{forward.1} parent=1 // pred_check
      _
    $region127: #{forward.1} parent=1 // pred_check_branch
      %6647 = sbr.rel (0) target = $region129
    $region128: #{forward.1} parent=1 // pred_region
      _
    $region129: #{forward.1} parent=1 // pred_fallthru
      _
    // Predicated region
    $region130: #{forward.1} parent=1 // pred_check
      _
    $region131: #{forward.1} parent=1 // pred_check_branch
      %6649 = sbr.rel (0) target = $region133
    $region132: #{forward.1} parent=1 // pred_region
      _
    $region133: #{forward.1} parent=1 // pred_fallthru
      _
    %6650 = vsyncpa [#allocation3], 1

</llo_original>
